<compile_context>
chip_gen: v6e
topology: v6e:2x2x1
jax: 0.10.0
libtpu: 0.0.40
codegen_flags: <defaults>
</compile_context>

<pallas_src>
import jax
import jax.numpy as jnp
from jax.experimental import pallas as pl
from jax.experimental.pallas import tpu as pltpu


def conv3d_pallas(x, w):
    """x: (N, C, D, H, W) f32, w: (O, C, KD, KH, KW) f32 -> (N, O, Do, Ho, Wo)."""
    N, C, D, H, W = x.shape
    O, C2, KD, KH, KW = w.shape
    assert C == C2
    Dout, Hout, Wout = D - KD + 1, H - KH + 1, W - KW + 1

    HW = H * W
    LANES = 128
    SRC_LANES = 256                 # padded input lane width
    KP = KH * KW * C                # GEMM contraction dim (105)
    KPAD = 128                      # zero-padded contraction dim

    # This specialization relies on the (small) spatial plane fitting in lanes.
    assert HW <= LANES, "H*W must fit in one 128-lane tile"
    assert KP <= KPAD, "KH*KW*C must fit in 128"
    assert (KH - 1) * W + (KW - 1) + LANES <= SRC_LANES

    # ---- wrapper-side layout plumbing (tiny: ~23 KB input, ~80 KB weight) ----
    # x: (N, C, D, H, W) -> (N, D, C, H*W), lane-pad to SRC_LANES with zeros.
    x_t = jnp.transpose(x, (0, 2, 1, 3, 4)).reshape(N, D, C, HW)
    x_t = jnp.pad(x_t, ((0, 0), (0, 0), (0, 0), (0, SRC_LANES - HW)))
    # w: (O, C, KD, KH, KW) -> (KD, O, KH*KW*C), zero-pad contraction to KPAD.
    w_t = jnp.transpose(w, (2, 0, 3, 4, 1)).reshape(KD, O, KP)
    w_t = jnp.pad(w_t, ((0, 0), (0, 0), (0, KPAD - KP)))

    def kernel(x_ref, w_ref, o_ref, p_ref):
        # x_ref: (N, D, C, SRC_LANES)   raw input, whole block in VMEM
        # w_ref: (KD, O, KPAD)          per-kd weight matrices
        # o_ref: (N, Dout, O, LANES)    lane-dense output slabs
        # p_ref: (N*D, KPAD, LANES)     im2col patch slab (VMEM scratch)

        # Zero the contraction-pad rows once so 0-weight * garbage can't be NaN.
        p_ref[:, KP:, :] = jnp.zeros((N * D, KPAD - KP, LANES), jnp.float32)

        # In-kernel im2col: each (kh, kw) tap is a static lane-offset window of
        # the (H*W) axis; one (D, C, 128) copy per tap per sample, no kd slicing.
        for n in range(N):
            for kh in range(KH):
                for kw in range(KW):
                    s = kh * W + kw
                    base = (kh * KW + kw) * C
                    p_ref[n * D:(n + 1) * D, base:base + C, :] = (
                        x_ref[n, :, :, s:s + LANES])

        # GEMM: for each (n, do), accumulate KD full-width MXU matmuls
        #   (O, KPAD) x (KPAD, 128) in f32, then one unmasked 128-lane store.
        w_taps = [w_ref[kd] for kd in range(KD)]
        for n in range(N):
            for do in range(Dout):
                acc = jnp.dot(w_taps[0], p_ref[n * D + do],
                              preferred_element_type=jnp.float32)
                for kd in range(1, KD):
                    acc += jnp.dot(w_taps[kd], p_ref[n * D + do + kd],
                                   preferred_element_type=jnp.float32)
                o_ref[n, do] = acc

    out = pl.pallas_call(
        kernel,
        out_shape=jax.ShapeDtypeStruct((N, Dout, O, LANES), jnp.float32),
        grid=(1,),
        in_specs=[
            pl.BlockSpec((N, D, C, SRC_LANES), lambda i: (0, 0, 0, 0)),
            pl.BlockSpec((KD, O, KPAD), lambda i: (0, 0, 0)),
        ],
        out_specs=pl.BlockSpec((N, Dout, O, LANES), lambda i: (0, 0, 0, 0)),
        scratch_shapes=[pltpu.VMEM((N * D, KPAD, LANES), jnp.float32)],
        compiler_params=pltpu.CompilerParams(
            dimension_semantics=("arbitrary",)),
    )(x_t, w_t)

    # (N, Dout, O, 128) -> keep valid lanes -> (N, Dout, O, H, W) -> crop -> NCDHW
    out = out[..., :HW].reshape(N, Dout, O, H, W)[:, :, :, :Hout, :Wout]
    return jnp.transpose(out, (0, 2, 1, 3, 4)).astype(x.dtype)


if __name__ == "__main__":
    # Module constants: in_channels=3, out_channels=64, kernel_size=(3, 5, 7)
    in_channels, out_channels = 3, 64
    KD, KH, KW = 3, 5, 7

    # Small asymmetric spatial input (batch=2)
    N, D, H, W = 2, 8, 10, 12

    key = jax.random.PRNGKey(0)
    kx, kw_ = jax.random.split(key)
    x = jax.random.normal(kx, (N, in_channels, D, H, W), dtype=jnp.float32)

    # Deterministic Conv3d-style init: U(-b, b), b = 1/sqrt(C*KD*KH*KW)
    fan_in = in_channels * KD * KH * KW
    bound = 1.0 / jnp.sqrt(jnp.float32(fan_in))
    weight = jax.random.uniform(
        kw_, (out_channels, in_channels, KD, KH, KW),
        dtype=jnp.float32, minval=-bound, maxval=bound)

    conv3d = jax.jit(conv3d_pallas)
    out = jax.block_until_ready(conv3d(x, weight))

    # reference check against XLA's conv
    ref = jax.lax.conv_general_dilated(
        x, weight, window_strides=(1, 1, 1), padding="VALID",
        dimension_numbers=("NCDHW", "OIDHW", "NCDHW"))
    ref = jax.block_until_ready(ref)

    assert out.shape == (N, out_channels, D - KD + 1, H - KH + 1, W - KW + 1)
    if not jnp.allclose(out, ref, atol=1e-4, rtol=1e-4):
        raise SystemExit("mismatch vs reference conv")
    print("KERNEL_OK")
</pallas_src>

<mosaic_0001>
module attributes {stable_mosaic.version = 11 : i64} {
  func.func @kernel(%arg0: i32, %arg1: memref<2x8x3x256xf32, #tpu.memory_space<vmem>>, %arg2: memref<3x64x128xf32, #tpu.memory_space<vmem>>, %arg3: memref<2x6x64x128xf32, #tpu.memory_space<vmem>>, %arg4: memref<16x128x128xf32, #tpu.memory_space<vmem>>) attributes {dimension_semantics = [#tpu.dimension_semantics<arbitrary>], iteration_bounds = array<i64: 1>, scalar_prefetch = 0 : i64, scratch_operands = 1 : i64, tpu.core_type = #tpu.core_type<tc>, window_params = [{pipeline_mode = #tpu.pipeline_mode<synchronous>, transform_indices = @transform_0, window_bounds = array<i64: 2, 8, 3, 256>}, {pipeline_mode = #tpu.pipeline_mode<synchronous>, transform_indices = @transform_1, window_bounds = array<i64: 3, 64, 128>}, {pipeline_mode = #tpu.pipeline_mode<synchronous>, transform_indices = @transform_2, window_bounds = array<i64: 2, 6, 64, 128>}]} {
    %cst = arith.constant 0.000000e+00 : f32
    %0 = vector.broadcast %cst : f32 to vector<16x23x128xf32>
    %c0 = arith.constant 0 : index
    %c105 = arith.constant 105 : index
    %c0_0 = arith.constant 0 : index
    %1 = vector.load %arg4[%c0, %c105, %c0_0] : memref<16x128x128xf32, #tpu.memory_space<vmem>>, vector<16x23x128xf32>
    tpu.vector_store %arg4[%c0, %c105, %c0_0], %0 {strides = array<i32>} : memref<16x128x128xf32, #tpu.memory_space<vmem>>, vector<16x23x128xf32>,
    %c0_1 = arith.constant 0 : index
    %c0_2 = arith.constant 0 : index
    %c0_3 = arith.constant 0 : index
    %c0_4 = arith.constant 0 : index
    %2 = vector.load %arg1[%c0_1, %c0_2, %c0_3, %c0_4] : memref<2x8x3x256xf32, #tpu.memory_space<vmem>>, vector<1x8x3x128xf32>
    %3 = vector.shape_cast %2 : vector<1x8x3x128xf32> to vector<8x3x128xf32>
    %c0_5 = arith.constant 0 : index
    %c0_6 = arith.constant 0 : index
    %c0_7 = arith.constant 0 : index
    %4 = vector.load %arg4[%c0_5, %c0_6, %c0_7] : memref<16x128x128xf32, #tpu.memory_space<vmem>>, vector<8x3x128xf32>
    tpu.vector_store %arg4[%c0_5, %c0_6, %c0_7], %3 {strides = array<i32>} : memref<16x128x128xf32, #tpu.memory_space<vmem>>, vector<8x3x128xf32>,
    %c0_8 = arith.constant 0 : index
    %c0_9 = arith.constant 0 : index
    %c0_10 = arith.constant 0 : index
    %c1 = arith.constant 1 : index
    %5 = vector.load %arg1[%c0_8, %c0_9, %c0_10, %c1] : memref<2x8x3x256xf32, #tpu.memory_space<vmem>>, vector<1x8x3x128xf32>
    %6 = vector.shape_cast %5 : vector<1x8x3x128xf32> to vector<8x3x128xf32>
    %c0_11 = arith.constant 0 : index
    %c3 = arith.constant 3 : index
    %c0_12 = arith.constant 0 : index
    %7 = vector.load %arg4[%c0_11, %c3, %c0_12] : memref<16x128x128xf32, #tpu.memory_space<vmem>>, vector<8x3x128xf32>
    tpu.vector_store %arg4[%c0_11, %c3, %c0_12], %6 {strides = array<i32>} : memref<16x128x128xf32, #tpu.memory_space<vmem>>, vector<8x3x128xf32>,
    %c0_13 = arith.constant 0 : index
    %c0_14 = arith.constant 0 : index
    %c0_15 = arith.constant 0 : index
    %c2 = arith.constant 2 : index
    %8 = vector.load %arg1[%c0_13, %c0_14, %c0_15, %c2] : memref<2x8x3x256xf32, #tpu.memory_space<vmem>>, vector<1x8x3x128xf32>
    %9 = vector.shape_cast %8 : vector<1x8x3x128xf32> to vector<8x3x128xf32>
    %c0_16 = arith.constant 0 : index
    %c6 = arith.constant 6 : index
    %c0_17 = arith.constant 0 : index
    %10 = vector.load %arg4[%c0_16, %c6, %c0_17] : memref<16x128x128xf32, #tpu.memory_space<vmem>>, vector<8x3x128xf32>
    tpu.vector_store %arg4[%c0_16, %c6, %c0_17], %9 {strides = array<i32>} : memref<16x128x128xf32, #tpu.memory_space<vmem>>, vector<8x3x128xf32>,
    %c0_18 = arith.constant 0 : index
    %c0_19 = arith.constant 0 : index
    %c0_20 = arith.constant 0 : index
    %c3_21 = arith.constant 3 : index
    %11 = vector.load %arg1[%c0_18, %c0_19, %c0_20, %c3_21] : memref<2x8x3x256xf32, #tpu.memory_space<vmem>>, vector<1x8x3x128xf32>
    %12 = vector.shape_cast %11 : vector<1x8x3x128xf32> to vector<8x3x128xf32>
    %c0_22 = arith.constant 0 : index
    %c9 = arith.constant 9 : index
    %c0_23 = arith.constant 0 : index
    %13 = vector.load %arg4[%c0_22, %c9, %c0_23] : memref<16x128x128xf32, #tpu.memory_space<vmem>>, vector<8x3x128xf32>
    tpu.vector_store %arg4[%c0_22, %c9, %c0_23], %12 {strides = array<i32>} : memref<16x128x128xf32, #tpu.memory_space<vmem>>, vector<8x3x128xf32>,
    %c0_24 = arith.constant 0 : index
    %c0_25 = arith.constant 0 : index
    %c0_26 = arith.constant 0 : index
    %c4 = arith.constant 4 : index
    %14 = vector.load %arg1[%c0_24, %c0_25, %c0_26, %c4] : memref<2x8x3x256xf32, #tpu.memory_space<vmem>>, vector<1x8x3x128xf32>
    %15 = vector.shape_cast %14 : vector<1x8x3x128xf32> to vector<8x3x128xf32>
    %c0_27 = arith.constant 0 : index
    %c12 = arith.constant 12 : index
    %c0_28 = arith.constant 0 : index
    %16 = vector.load %arg4[%c0_27, %c12, %c0_28] : memref<16x128x128xf32, #tpu.memory_space<vmem>>, vector<8x3x128xf32>
    tpu.vector_store %arg4[%c0_27, %c12, %c0_28], %15 {strides = array<i32>} : memref<16x128x128xf32, #tpu.memory_space<vmem>>, vector<8x3x128xf32>,
    %c0_29 = arith.constant 0 : index
    %c0_30 = arith.constant 0 : index
    %c0_31 = arith.constant 0 : index
    %c5 = arith.constant 5 : index
    %17 = vector.load %arg1[%c0_29, %c0_30, %c0_31, %c5] : memref<2x8x3x256xf32, #tpu.memory_space<vmem>>, vector<1x8x3x128xf32>
    %18 = vector.shape_cast %17 : vector<1x8x3x128xf32> to vector<8x3x128xf32>
    %c0_32 = arith.constant 0 : index
    %c15 = arith.constant 15 : index
    %c0_33 = arith.constant 0 : index
    %19 = vector.load %arg4[%c0_32, %c15, %c0_33] : memref<16x128x128xf32, #tpu.memory_space<vmem>>, vector<8x3x128xf32>
    tpu.vector_store %arg4[%c0_32, %c15, %c0_33], %18 {strides = array<i32>} : memref<16x128x128xf32, #tpu.memory_space<vmem>>, vector<8x3x128xf32>,
    %c0_34 = arith.constant 0 : index
    %c0_35 = arith.constant 0 : index
    %c0_36 = arith.constant 0 : index
    %c6_37 = arith.constant 6 : index
    %20 = vector.load %arg1[%c0_34, %c0_35, %c0_36, %c6_37] : memref<2x8x3x256xf32, #tpu.memory_space<vmem>>, vector<1x8x3x128xf32>
    %21 = vector.shape_cast %20 : vector<1x8x3x128xf32> to vector<8x3x128xf32>
    %c0_38 = arith.constant 0 : index
    %c18 = arith.constant 18 : index
    %c0_39 = arith.constant 0 : index
    %22 = vector.load %arg4[%c0_38, %c18, %c0_39] : memref<16x128x128xf32, #tpu.memory_space<vmem>>, vector<8x3x128xf32>
    tpu.vector_store %arg4[%c0_38, %c18, %c0_39], %21 {strides = array<i32>} : memref<16x128x128xf32, #tpu.memory_space<vmem>>, vector<8x3x128xf32>,
    %c0_40 = arith.constant 0 : index
    %c0_41 = arith.constant 0 : index
    %c0_42 = arith.constant 0 : index
    %c12_43 = arith.constant 12 : index
    %23 = vector.load %arg1[%c0_40, %c0_41, %c0_42, %c12_43] : memref<2x8x3x256xf32, #tpu.memory_space<vmem>>, vector<1x8x3x128xf32>
    %24 = vector.shape_cast %23 : vector<1x8x3x128xf32> to vector<8x3x128xf32>
    %c0_44 = arith.constant 0 : index
    %c21 = arith.constant 21 : index
    %c0_45 = arith.constant 0 : index
    %25 = vector.load %arg4[%c0_44, %c21, %c0_45] : memref<16x128x128xf32, #tpu.memory_space<vmem>>, vector<8x3x128xf32>
    tpu.vector_store %arg4[%c0_44, %c21, %c0_45], %24 {strides = array<i32>} : memref<16x128x128xf32, #tpu.memory_space<vmem>>, vector<8x3x128xf32>,
    %c0_46 = arith.constant 0 : index
    %c0_47 = arith.constant 0 : index
    %c0_48 = arith.constant 0 : index
    %c13 = arith.constant 13 : index
    %26 = vector.load %arg1[%c0_46, %c0_47, %c0_48, %c13] : memref<2x8x3x256xf32, #tpu.memory_space<vmem>>, vector<1x8x3x128xf32>
    %27 = vector.shape_cast %26 : vector<1x8x3x128xf32> to vector<8x3x128xf32>
    %c0_49 = arith.constant 0 : index
    %c24 = arith.constant 24 : index
    %c0_50 = arith.constant 0 : index
    %28 = vector.load %arg4[%c0_49, %c24, %c0_50] : memref<16x128x128xf32, #tpu.memory_space<vmem>>, vector<8x3x128xf32>
    tpu.vector_store %arg4[%c0_49, %c24, %c0_50], %27 {strides = array<i32>} : memref<16x128x128xf32, #tpu.memory_space<vmem>>, vector<8x3x128xf32>,
    %c0_51 = arith.constant 0 : index
    %c0_52 = arith.constant 0 : index
    %c0_53 = arith.constant 0 : index
    %c14 = arith.constant 14 : index
    %29 = vector.load %arg1[%c0_51, %c0_52, %c0_53, %c14] : memref<2x8x3x256xf32, #tpu.memory_space<vmem>>, vector<1x8x3x128xf32>
    %30 = vector.shape_cast %29 : vector<1x8x3x128xf32> to vector<8x3x128xf32>
    %c0_54 = arith.constant 0 : index
    %c27 = arith.constant 27 : index
    %c0_55 = arith.constant 0 : index
    %31 = vector.load %arg4[%c0_54, %c27, %c0_55] : memref<16x128x128xf32, #tpu.memory_space<vmem>>, vector<8x3x128xf32>
    tpu.vector_store %arg4[%c0_54, %c27, %c0_55], %30 {strides = array<i32>} : memref<16x128x128xf32, #tpu.memory_space<vmem>>, vector<8x3x128xf32>,
    %c0_56 = arith.constant 0 : index
    %c0_57 = arith.constant 0 : index
    %c0_58 = arith.constant 0 : index
    %c15_59 = arith.constant 15 : index
    %32 = vector.load %arg1[%c0_56, %c0_57, %c0_58, %c15_59] : memref<2x8x3x256xf32, #tpu.memory_space<vmem>>, vector<1x8x3x128xf32>
    %33 = vector.shape_cast %32 : vector<1x8x3x128xf32> to vector<8x3x128xf32>
    %c0_60 = arith.constant 0 : index
    %c30 = arith.constant 30 : index
    %c0_61 = arith.constant 0 : index
    %34 = vector.load %arg4[%c0_60, %c30, %c0_61] : memref<16x128x128xf32, #tpu.memory_space<vmem>>, vector<8x3x128xf32>
    tpu.vector_store %arg4[%c0_60, %c30, %c0_61], %33 {strides = array<i32>} : memref<16x128x128xf32, #tpu.memory_space<vmem>>, vector<8x3x128xf32>,
    %c0_62 = arith.constant 0 : index
    %c0_63 = arith.constant 0 : index
    %c0_64 = arith.constant 0 : index
    %c16 = arith.constant 16 : index
    %35 = vector.load %arg1[%c0_62, %c0_63, %c0_64, %c16] : memref<2x8x3x256xf32, #tpu.memory_space<vmem>>, vector<1x8x3x128xf32>
    %36 = vector.shape_cast %35 : vector<1x8x3x128xf32> to vector<8x3x128xf32>
    %c0_65 = arith.constant 0 : index
    %c33 = arith.constant 33 : index
    %c0_66 = arith.constant 0 : index
    %37 = vector.load %arg4[%c0_65, %c33, %c0_66] : memref<16x128x128xf32, #tpu.memory_space<vmem>>, vector<8x3x128xf32>
    tpu.vector_store %arg4[%c0_65, %c33, %c0_66], %36 {strides = array<i32>} : memref<16x128x128xf32, #tpu.memory_space<vmem>>, vector<8x3x128xf32>,
    %c0_67 = arith.constant 0 : index
    %c0_68 = arith.constant 0 : index
    %c0_69 = arith.constant 0 : index
    %c17 = arith.constant 17 : index
    %38 = vector.load %arg1[%c0_67, %c0_68, %c0_69, %c17] : memref<2x8x3x256xf32, #tpu.memory_space<vmem>>, vector<1x8x3x128xf32>
    %39 = vector.shape_cast %38 : vector<1x8x3x128xf32> to vector<8x3x128xf32>
    %c0_70 = arith.constant 0 : index
    %c36 = arith.constant 36 : index
    %c0_71 = arith.constant 0 : index
    %40 = vector.load %arg4[%c0_70, %c36, %c0_71] : memref<16x128x128xf32, #tpu.memory_space<vmem>>, vector<8x3x128xf32>
    tpu.vector_store %arg4[%c0_70, %c36, %c0_71], %39 {strides = array<i32>} : memref<16x128x128xf32, #tpu.memory_space<vmem>>, vector<8x3x128xf32>,
    %c0_72 = arith.constant 0 : index
    %c0_73 = arith.constant 0 : index
    %c0_74 = arith.constant 0 : index
    %c18_75 = arith.constant 18 : index
    %41 = vector.load %arg1[%c0_72, %c0_73, %c0_74, %c18_75] : memref<2x8x3x256xf32, #tpu.memory_space<vmem>>, vector<1x8x3x128xf32>
    %42 = vector.shape_cast %41 : vector<1x8x3x128xf32> to vector<8x3x128xf32>
    %c0_76 = arith.constant 0 : index
    %c39 = arith.constant 39 : index
    %c0_77 = arith.constant 0 : index
    %43 = vector.load %arg4[%c0_76, %c39, %c0_77] : memref<16x128x128xf32, #tpu.memory_space<vmem>>, vector<8x3x128xf32>
    tpu.vector_store %arg4[%c0_76, %c39, %c0_77], %42 {strides = array<i32>} : memref<16x128x128xf32, #tpu.memory_space<vmem>>, vector<8x3x128xf32>,
    %c0_78 = arith.constant 0 : index
    %c0_79 = arith.constant 0 : index
    %c0_80 = arith.constant 0 : index
    %c24_81 = arith.constant 24 : index
    %44 = vector.load %arg1[%c0_78, %c0_79, %c0_80, %c24_81] : memref<2x8x3x256xf32, #tpu.memory_space<vmem>>, vector<1x8x3x128xf32>
    %45 = vector.shape_cast %44 : vector<1x8x3x128xf32> to vector<8x3x128xf32>
    %c0_82 = arith.constant 0 : index
    %c42 = arith.constant 42 : index
    %c0_83 = arith.constant 0 : index
    %46 = vector.load %arg4[%c0_82, %c42, %c0_83] : memref<16x128x128xf32, #tpu.memory_space<vmem>>, vector<8x3x128xf32>
    tpu.vector_store %arg4[%c0_82, %c42, %c0_83], %45 {strides = array<i32>} : memref<16x128x128xf32, #tpu.memory_space<vmem>>, vector<8x3x128xf32>,
    %c0_84 = arith.constant 0 : index
    %c0_85 = arith.constant 0 : index
    %c0_86 = arith.constant 0 : index
    %c25 = arith.constant 25 : index
    %47 = vector.load %arg1[%c0_84, %c0_85, %c0_86, %c25] : memref<2x8x3x256xf32, #tpu.memory_space<vmem>>, vector<1x8x3x128xf32>
    %48 = vector.shape_cast %47 : vector<1x8x3x128xf32> to vector<8x3x128xf32>
    %c0_87 = arith.constant 0 : index
    %c45 = arith.constant 45 : index
    %c0_88 = arith.constant 0 : index
    %49 = vector.load %arg4[%c0_87, %c45, %c0_88] : memref<16x128x128xf32, #tpu.memory_space<vmem>>, vector<8x3x128xf32>
    tpu.vector_store %arg4[%c0_87, %c45, %c0_88], %48 {strides = array<i32>} : memref<16x128x128xf32, #tpu.memory_space<vmem>>, vector<8x3x128xf32>,
    %c0_89 = arith.constant 0 : index
    %c0_90 = arith.constant 0 : index
    %c0_91 = arith.constant 0 : index
    %c26 = arith.constant 26 : index
    %50 = vector.load %arg1[%c0_89, %c0_90, %c0_91, %c26] : memref<2x8x3x256xf32, #tpu.memory_space<vmem>>, vector<1x8x3x128xf32>
    %51 = vector.shape_cast %50 : vector<1x8x3x128xf32> to vector<8x3x128xf32>
    %c0_92 = arith.constant 0 : index
    %c48 = arith.constant 48 : index
    %c0_93 = arith.constant 0 : index
    %52 = vector.load %arg4[%c0_92, %c48, %c0_93] : memref<16x128x128xf32, #tpu.memory_space<vmem>>, vector<8x3x128xf32>
    tpu.vector_store %arg4[%c0_92, %c48, %c0_93], %51 {strides = array<i32>} : memref<16x128x128xf32, #tpu.memory_space<vmem>>, vector<8x3x128xf32>,
    %c0_94 = arith.constant 0 : index
    %c0_95 = arith.constant 0 : index
    %c0_96 = arith.constant 0 : index
    %c27_97 = arith.constant 27 : index
    %53 = vector.load %arg1[%c0_94, %c0_95, %c0_96, %c27_97] : memref<2x8x3x256xf32, #tpu.memory_space<vmem>>, vector<1x8x3x128xf32>
    %54 = vector.shape_cast %53 : vector<1x8x3x128xf32> to vector<8x3x128xf32>
    %c0_98 = arith.constant 0 : index
    %c51 = arith.constant 51 : index
    %c0_99 = arith.constant 0 : index
    %55 = vector.load %arg4[%c0_98, %c51, %c0_99] : memref<16x128x128xf32, #tpu.memory_space<vmem>>, vector<8x3x128xf32>
    tpu.vector_store %arg4[%c0_98, %c51, %c0_99], %54 {strides = array<i32>} : memref<16x128x128xf32, #tpu.memory_space<vmem>>, vector<8x3x128xf32>,
    %c0_100 = arith.constant 0 : index
    %c0_101 = arith.constant 0 : index
    %c0_102 = arith.constant 0 : index
    %c28 = arith.constant 28 : index
    %56 = vector.load %arg1[%c0_100, %c0_101, %c0_102, %c28] : memref<2x8x3x256xf32, #tpu.memory_space<vmem>>, vector<1x8x3x128xf32>
    %57 = vector.shape_cast %56 : vector<1x8x3x128xf32> to vector<8x3x128xf32>
    %c0_103 = arith.constant 0 : index
    %c54 = arith.constant 54 : index
    %c0_104 = arith.constant 0 : index
    %58 = vector.load %arg4[%c0_103, %c54, %c0_104] : memref<16x128x128xf32, #tpu.memory_space<vmem>>, vector<8x3x128xf32>
    tpu.vector_store %arg4[%c0_103, %c54, %c0_104], %57 {strides = array<i32>} : memref<16x128x128xf32, #tpu.memory_space<vmem>>, vector<8x3x128xf32>,
    %c0_105 = arith.constant 0 : index
    %c0_106 = arith.constant 0 : index
    %c0_107 = arith.constant 0 : index
    %c29 = arith.constant 29 : index
    %59 = vector.load %arg1[%c0_105, %c0_106, %c0_107, %c29] : memref<2x8x3x256xf32, #tpu.memory_space<vmem>>, vector<1x8x3x128xf32>
    %60 = vector.shape_cast %59 : vector<1x8x3x128xf32> to vector<8x3x128xf32>
    %c0_108 = arith.constant 0 : index
    %c57 = arith.constant 57 : index
    %c0_109 = arith.constant 0 : index
    %61 = vector.load %arg4[%c0_108, %c57, %c0_109] : memref<16x128x128xf32, #tpu.memory_space<vmem>>, vector<8x3x128xf32>
    tpu.vector_store %arg4[%c0_108, %c57, %c0_109], %60 {strides = array<i32>} : memref<16x128x128xf32, #tpu.memory_space<vmem>>, vector<8x3x128xf32>,
    %c0_110 = arith.constant 0 : index
    %c0_111 = arith.constant 0 : index
    %c0_112 = arith.constant 0 : index
    %c30_113 = arith.constant 30 : index
    %62 = vector.load %arg1[%c0_110, %c0_111, %c0_112, %c30_113] : memref<2x8x3x256xf32, #tpu.memory_space<vmem>>, vector<1x8x3x128xf32>
    %63 = vector.shape_cast %62 : vector<1x8x3x128xf32> to vector<8x3x128xf32>
    %c0_114 = arith.constant 0 : index
    %c60 = arith.constant 60 : index
    %c0_115 = arith.constant 0 : index
    %64 = vector.load %arg4[%c0_114, %c60, %c0_115] : memref<16x128x128xf32, #tpu.memory_space<vmem>>, vector<8x3x128xf32>
    tpu.vector_store %arg4[%c0_114, %c60, %c0_115], %63 {strides = array<i32>} : memref<16x128x128xf32, #tpu.memory_space<vmem>>, vector<8x3x128xf32>,
    %c0_116 = arith.constant 0 : index
    %c0_117 = arith.constant 0 : index
    %c0_118 = arith.constant 0 : index
    %c36_119 = arith.constant 36 : index
    %65 = vector.load %arg1[%c0_116, %c0_117, %c0_118, %c36_119] : memref<2x8x3x256xf32, #tpu.memory_space<vmem>>, vector<1x8x3x128xf32>
    %66 = vector.shape_cast %65 : vector<1x8x3x128xf32> to vector<8x3x128xf32>
    %c0_120 = arith.constant 0 : index
    %c63 = arith.constant 63 : index
    %c0_121 = arith.constant 0 : index
    %67 = vector.load %arg4[%c0_120, %c63, %c0_121] : memref<16x128x128xf32, #tpu.memory_space<vmem>>, vector<8x3x128xf32>
    tpu.vector_store %arg4[%c0_120, %c63, %c0_121], %66 {strides = array<i32>} : memref<16x128x128xf32, #tpu.memory_space<vmem>>, vector<8x3x128xf32>,
    %c0_122 = arith.constant 0 : index
    %c0_123 = arith.constant 0 : index
    %c0_124 = arith.constant 0 : index
    %c37 = arith.constant 37 : index
    %68 = vector.load %arg1[%c0_122, %c0_123, %c0_124, %c37] : memref<2x8x3x256xf32, #tpu.memory_space<vmem>>, vector<1x8x3x128xf32>
    %69 = vector.shape_cast %68 : vector<1x8x3x128xf32> to vector<8x3x128xf32>
    %c0_125 = arith.constant 0 : index
    %c66 = arith.constant 66 : index
    %c0_126 = arith.constant 0 : index
    %70 = vector.load %arg4[%c0_125, %c66, %c0_126] : memref<16x128x128xf32, #tpu.memory_space<vmem>>, vector<8x3x128xf32>
    tpu.vector_store %arg4[%c0_125, %c66, %c0_126], %69 {strides = array<i32>} : memref<16x128x128xf32, #tpu.memory_space<vmem>>, vector<8x3x128xf32>,
    %c0_127 = arith.constant 0 : index
    %c0_128 = arith.constant 0 : index
    %c0_129 = arith.constant 0 : index
    %c38 = arith.constant 38 : index
    %71 = vector.load %arg1[%c0_127, %c0_128, %c0_129, %c38] : memref<2x8x3x256xf32, #tpu.memory_space<vmem>>, vector<1x8x3x128xf32>
    %72 = vector.shape_cast %71 : vector<1x8x3x128xf32> to vector<8x3x128xf32>
    %c0_130 = arith.constant 0 : index
    %c69 = arith.constant 69 : index
    %c0_131 = arith.constant 0 : index
    %73 = vector.load %arg4[%c0_130, %c69, %c0_131] : memref<16x128x128xf32, #tpu.memory_space<vmem>>, vector<8x3x128xf32>
    tpu.vector_store %arg4[%c0_130, %c69, %c0_131], %72 {strides = array<i32>} : memref<16x128x128xf32, #tpu.memory_space<vmem>>, vector<8x3x128xf32>,
    %c0_132 = arith.constant 0 : index
    %c0_133 = arith.constant 0 : index
    %c0_134 = arith.constant 0 : index
    %c39_135 = arith.constant 39 : index
    %74 = vector.load %arg1[%c0_132, %c0_133, %c0_134, %c39_135] : memref<2x8x3x256xf32, #tpu.memory_space<vmem>>, vector<1x8x3x128xf32>
    %75 = vector.shape_cast %74 : vector<1x8x3x128xf32> to vector<8x3x128xf32>
    %c0_136 = arith.constant 0 : index
    %c72 = arith.constant 72 : index
    %c0_137 = arith.constant 0 : index
    %76 = vector.load %arg4[%c0_136, %c72, %c0_137] : memref<16x128x128xf32, #tpu.memory_space<vmem>>, vector<8x3x128xf32>
    tpu.vector_store %arg4[%c0_136, %c72, %c0_137], %75 {strides = array<i32>} : memref<16x128x128xf32, #tpu.memory_space<vmem>>, vector<8x3x128xf32>,
    %c0_138 = arith.constant 0 : index
    %c0_139 = arith.constant 0 : index
    %c0_140 = arith.constant 0 : index
    %c40 = arith.constant 40 : index
    %77 = vector.load %arg1[%c0_138, %c0_139, %c0_140, %c40] : memref<2x8x3x256xf32, #tpu.memory_space<vmem>>, vector<1x8x3x128xf32>
    %78 = vector.shape_cast %77 : vector<1x8x3x128xf32> to vector<8x3x128xf32>
    %c0_141 = arith.constant 0 : index
    %c75 = arith.constant 75 : index
    %c0_142 = arith.constant 0 : index
    %79 = vector.load %arg4[%c0_141, %c75, %c0_142] : memref<16x128x128xf32, #tpu.memory_space<vmem>>, vector<8x3x128xf32>
    tpu.vector_store %arg4[%c0_141, %c75, %c0_142], %78 {strides = array<i32>} : memref<16x128x128xf32, #tpu.memory_space<vmem>>, vector<8x3x128xf32>,
    %c0_143 = arith.constant 0 : index
    %c0_144 = arith.constant 0 : index
    %c0_145 = arith.constant 0 : index
    %c41 = arith.constant 41 : index
    %80 = vector.load %arg1[%c0_143, %c0_144, %c0_145, %c41] : memref<2x8x3x256xf32, #tpu.memory_space<vmem>>, vector<1x8x3x128xf32>
    %81 = vector.shape_cast %80 : vector<1x8x3x128xf32> to vector<8x3x128xf32>
    %c0_146 = arith.constant 0 : index
    %c78 = arith.constant 78 : index
    %c0_147 = arith.constant 0 : index
    %82 = vector.load %arg4[%c0_146, %c78, %c0_147] : memref<16x128x128xf32, #tpu.memory_space<vmem>>, vector<8x3x128xf32>
    tpu.vector_store %arg4[%c0_146, %c78, %c0_147], %81 {strides = array<i32>} : memref<16x128x128xf32, #tpu.memory_space<vmem>>, vector<8x3x128xf32>,
    %c0_148 = arith.constant 0 : index
    %c0_149 = arith.constant 0 : index
    %c0_150 = arith.constant 0 : index
    %c42_151 = arith.constant 42 : index
    %83 = vector.load %arg1[%c0_148, %c0_149, %c0_150, %c42_151] : memref<2x8x3x256xf32, #tpu.memory_space<vmem>>, vector<1x8x3x128xf32>
    %84 = vector.shape_cast %83 : vector<1x8x3x128xf32> to vector<8x3x128xf32>
    %c0_152 = arith.constant 0 : index
    %c81 = arith.constant 81 : index
    %c0_153 = arith.constant 0 : index
    %85 = vector.load %arg4[%c0_152, %c81, %c0_153] : memref<16x128x128xf32, #tpu.memory_space<vmem>>, vector<8x3x128xf32>
    tpu.vector_store %arg4[%c0_152, %c81, %c0_153], %84 {strides = array<i32>} : memref<16x128x128xf32, #tpu.memory_space<vmem>>, vector<8x3x128xf32>,
    %c0_154 = arith.constant 0 : index
    %c0_155 = arith.constant 0 : index
    %c0_156 = arith.constant 0 : index
    %c48_157 = arith.constant 48 : index
    %86 = vector.load %arg1[%c0_154, %c0_155, %c0_156, %c48_157] : memref<2x8x3x256xf32, #tpu.memory_space<vmem>>, vector<1x8x3x128xf32>
    %87 = vector.shape_cast %86 : vector<1x8x3x128xf32> to vector<8x3x128xf32>
    %c0_158 = arith.constant 0 : index
    %c84 = arith.constant 84 : index
    %c0_159 = arith.constant 0 : index
    %88 = vector.load %arg4[%c0_158, %c84, %c0_159] : memref<16x128x128xf32, #tpu.memory_space<vmem>>, vector<8x3x128xf32>
    tpu.vector_store %arg4[%c0_158, %c84, %c0_159], %87 {strides = array<i32>} : memref<16x128x128xf32, #tpu.memory_space<vmem>>, vector<8x3x128xf32>,
    %c0_160 = arith.constant 0 : index
    %c0_161 = arith.constant 0 : index
    %c0_162 = arith.constant 0 : index
    %c49 = arith.constant 49 : index
    %89 = vector.load %arg1[%c0_160, %c0_161, %c0_162, %c49] : memref<2x8x3x256xf32, #tpu.memory_space<vmem>>, vector<1x8x3x128xf32>
    %90 = vector.shape_cast %89 : vector<1x8x3x128xf32> to vector<8x3x128xf32>
    %c0_163 = arith.constant 0 : index
    %c87 = arith.constant 87 : index
    %c0_164 = arith.constant 0 : index
    %91 = vector.load %arg4[%c0_163, %c87, %c0_164] : memref<16x128x128xf32, #tpu.memory_space<vmem>>, vector<8x3x128xf32>
    tpu.vector_store %arg4[%c0_163, %c87, %c0_164], %90 {strides = array<i32>} : memref<16x128x128xf32, #tpu.memory_space<vmem>>, vector<8x3x128xf32>,
    %c0_165 = arith.constant 0 : index
    %c0_166 = arith.constant 0 : index
    %c0_167 = arith.constant 0 : index
    %c50 = arith.constant 50 : index
    %92 = vector.load %arg1[%c0_165, %c0_166, %c0_167, %c50] : memref<2x8x3x256xf32, #tpu.memory_space<vmem>>, vector<1x8x3x128xf32>
    %93 = vector.shape_cast %92 : vector<1x8x3x128xf32> to vector<8x3x128xf32>
    %c0_168 = arith.constant 0 : index
    %c90 = arith.constant 90 : index
    %c0_169 = arith.constant 0 : index
    %94 = vector.load %arg4[%c0_168, %c90, %c0_169] : memref<16x128x128xf32, #tpu.memory_space<vmem>>, vector<8x3x128xf32>
    tpu.vector_store %arg4[%c0_168, %c90, %c0_169], %93 {strides = array<i32>} : memref<16x128x128xf32, #tpu.memory_space<vmem>>, vector<8x3x128xf32>,
    %c0_170 = arith.constant 0 : index
    %c0_171 = arith.constant 0 : index
    %c0_172 = arith.constant 0 : index
    %c51_173 = arith.constant 51 : index
    %95 = vector.load %arg1[%c0_170, %c0_171, %c0_172, %c51_173] : memref<2x8x3x256xf32, #tpu.memory_space<vmem>>, vector<1x8x3x128xf32>
    %96 = vector.shape_cast %95 : vector<1x8x3x128xf32> to vector<8x3x128xf32>
    %c0_174 = arith.constant 0 : index
    %c93 = arith.constant 93 : index
    %c0_175 = arith.constant 0 : index
    %97 = vector.load %arg4[%c0_174, %c93, %c0_175] : memref<16x128x128xf32, #tpu.memory_space<vmem>>, vector<8x3x128xf32>
    tpu.vector_store %arg4[%c0_174, %c93, %c0_175], %96 {strides = array<i32>} : memref<16x128x128xf32, #tpu.memory_space<vmem>>, vector<8x3x128xf32>,
    %c0_176 = arith.constant 0 : index
    %c0_177 = arith.constant 0 : index
    %c0_178 = arith.constant 0 : index
    %c52 = arith.constant 52 : index
    %98 = vector.load %arg1[%c0_176, %c0_177, %c0_178, %c52] : memref<2x8x3x256xf32, #tpu.memory_space<vmem>>, vector<1x8x3x128xf32>
    %99 = vector.shape_cast %98 : vector<1x8x3x128xf32> to vector<8x3x128xf32>
    %c0_179 = arith.constant 0 : index
    %c96 = arith.constant 96 : index
    %c0_180 = arith.constant 0 : index
    %100 = vector.load %arg4[%c0_179, %c96, %c0_180] : memref<16x128x128xf32, #tpu.memory_space<vmem>>, vector<8x3x128xf32>
    tpu.vector_store %arg4[%c0_179, %c96, %c0_180], %99 {strides = array<i32>} : memref<16x128x128xf32, #tpu.memory_space<vmem>>, vector<8x3x128xf32>,
    %c0_181 = arith.constant 0 : index
    %c0_182 = arith.constant 0 : index
    %c0_183 = arith.constant 0 : index
    %c53 = arith.constant 53 : index
    %101 = vector.load %arg1[%c0_181, %c0_182, %c0_183, %c53] : memref<2x8x3x256xf32, #tpu.memory_space<vmem>>, vector<1x8x3x128xf32>
    %102 = vector.shape_cast %101 : vector<1x8x3x128xf32> to vector<8x3x128xf32>
    %c0_184 = arith.constant 0 : index
    %c99 = arith.constant 99 : index
    %c0_185 = arith.constant 0 : index
    %103 = vector.load %arg4[%c0_184, %c99, %c0_185] : memref<16x128x128xf32, #tpu.memory_space<vmem>>, vector<8x3x128xf32>
    tpu.vector_store %arg4[%c0_184, %c99, %c0_185], %102 {strides = array<i32>} : memref<16x128x128xf32, #tpu.memory_space<vmem>>, vector<8x3x128xf32>,
    %c0_186 = arith.constant 0 : index
    %c0_187 = arith.constant 0 : index
    %c0_188 = arith.constant 0 : index
    %c54_189 = arith.constant 54 : index
    %104 = vector.load %arg1[%c0_186, %c0_187, %c0_188, %c54_189] : memref<2x8x3x256xf32, #tpu.memory_space<vmem>>, vector<1x8x3x128xf32>
    %105 = vector.shape_cast %104 : vector<1x8x3x128xf32> to vector<8x3x128xf32>
    %c0_190 = arith.constant 0 : index
    %c102 = arith.constant 102 : index
    %c0_191 = arith.constant 0 : index
    %106 = vector.load %arg4[%c0_190, %c102, %c0_191] : memref<16x128x128xf32, #tpu.memory_space<vmem>>, vector<8x3x128xf32>
    tpu.vector_store %arg4[%c0_190, %c102, %c0_191], %105 {strides = array<i32>} : memref<16x128x128xf32, #tpu.memory_space<vmem>>, vector<8x3x128xf32>,
    %c1_192 = arith.constant 1 : index
    %c0_193 = arith.constant 0 : index
    %c0_194 = arith.constant 0 : index
    %c0_195 = arith.constant 0 : index
    %107 = vector.load %arg1[%c1_192, %c0_193, %c0_194, %c0_195] : memref<2x8x3x256xf32, #tpu.memory_space<vmem>>, vector<1x8x3x128xf32>
    %108 = vector.shape_cast %107 : vector<1x8x3x128xf32> to vector<8x3x128xf32>
    %c8 = arith.constant 8 : index
    %c0_196 = arith.constant 0 : index
    %c0_197 = arith.constant 0 : index
    %109 = vector.load %arg4[%c8, %c0_196, %c0_197] : memref<16x128x128xf32, #tpu.memory_space<vmem>>, vector<8x3x128xf32>
    tpu.vector_store %arg4[%c8, %c0_196, %c0_197], %108 {strides = array<i32>} : memref<16x128x128xf32, #tpu.memory_space<vmem>>, vector<8x3x128xf32>,
    %c1_198 = arith.constant 1 : index
    %c0_199 = arith.constant 0 : index
    %c0_200 = arith.constant 0 : index
    %c1_201 = arith.constant 1 : index
    %110 = vector.load %arg1[%c1_198, %c0_199, %c0_200, %c1_201] : memref<2x8x3x256xf32, #tpu.memory_space<vmem>>, vector<1x8x3x128xf32>
    %111 = vector.shape_cast %110 : vector<1x8x3x128xf32> to vector<8x3x128xf32>
    %c8_202 = arith.constant 8 : index
    %c3_203 = arith.constant 3 : index
    %c0_204 = arith.constant 0 : index
    %112 = vector.load %arg4[%c8_202, %c3_203, %c0_204] : memref<16x128x128xf32, #tpu.memory_space<vmem>>, vector<8x3x128xf32>
    tpu.vector_store %arg4[%c8_202, %c3_203, %c0_204], %111 {strides = array<i32>} : memref<16x128x128xf32, #tpu.memory_space<vmem>>, vector<8x3x128xf32>,
    %c1_205 = arith.constant 1 : index
    %c0_206 = arith.constant 0 : index
    %c0_207 = arith.constant 0 : index
    %c2_208 = arith.constant 2 : index
    %113 = vector.load %arg1[%c1_205, %c0_206, %c0_207, %c2_208] : memref<2x8x3x256xf32, #tpu.memory_space<vmem>>, vector<1x8x3x128xf32>
    %114 = vector.shape_cast %113 : vector<1x8x3x128xf32> to vector<8x3x128xf32>
    %c8_209 = arith.constant 8 : index
    %c6_210 = arith.constant 6 : index
    %c0_211 = arith.constant 0 : index
    %115 = vector.load %arg4[%c8_209, %c6_210, %c0_211] : memref<16x128x128xf32, #tpu.memory_space<vmem>>, vector<8x3x128xf32>
    tpu.vector_store %arg4[%c8_209, %c6_210, %c0_211], %114 {strides = array<i32>} : memref<16x128x128xf32, #tpu.memory_space<vmem>>, vector<8x3x128xf32>,
    %c1_212 = arith.constant 1 : index
    %c0_213 = arith.constant 0 : index
    %c0_214 = arith.constant 0 : index
    %c3_215 = arith.constant 3 : index
    %116 = vector.load %arg1[%c1_212, %c0_213, %c0_214, %c3_215] : memref<2x8x3x256xf32, #tpu.memory_space<vmem>>, vector<1x8x3x128xf32>
    %117 = vector.shape_cast %116 : vector<1x8x3x128xf32> to vector<8x3x128xf32>
    %c8_216 = arith.constant 8 : index
    %c9_217 = arith.constant 9 : index
    %c0_218 = arith.constant 0 : index
    %118 = vector.load %arg4[%c8_216, %c9_217, %c0_218] : memref<16x128x128xf32, #tpu.memory_space<vmem>>, vector<8x3x128xf32>
    tpu.vector_store %arg4[%c8_216, %c9_217, %c0_218], %117 {strides = array<i32>} : memref<16x128x128xf32, #tpu.memory_space<vmem>>, vector<8x3x128xf32>,
    %c1_219 = arith.constant 1 : index
    %c0_220 = arith.constant 0 : index
    %c0_221 = arith.constant 0 : index
    %c4_222 = arith.constant 4 : index
    %119 = vector.load %arg1[%c1_219, %c0_220, %c0_221, %c4_222] : memref<2x8x3x256xf32, #tpu.memory_space<vmem>>, vector<1x8x3x128xf32>
    %120 = vector.shape_cast %119 : vector<1x8x3x128xf32> to vector<8x3x128xf32>
    %c8_223 = arith.constant 8 : index
    %c12_224 = arith.constant 12 : index
    %c0_225 = arith.constant 0 : index
    %121 = vector.load %arg4[%c8_223, %c12_224, %c0_225] : memref<16x128x128xf32, #tpu.memory_space<vmem>>, vector<8x3x128xf32>
    tpu.vector_store %arg4[%c8_223, %c12_224, %c0_225], %120 {strides = array<i32>} : memref<16x128x128xf32, #tpu.memory_space<vmem>>, vector<8x3x128xf32>,
    %c1_226 = arith.constant 1 : index
    %c0_227 = arith.constant 0 : index
    %c0_228 = arith.constant 0 : index
    %c5_229 = arith.constant 5 : index
    %122 = vector.load %arg1[%c1_226, %c0_227, %c0_228, %c5_229] : memref<2x8x3x256xf32, #tpu.memory_space<vmem>>, vector<1x8x3x128xf32>
    %123 = vector.shape_cast %122 : vector<1x8x3x128xf32> to vector<8x3x128xf32>
    %c8_230 = arith.constant 8 : index
    %c15_231 = arith.constant 15 : index
    %c0_232 = arith.constant 0 : index
    %124 = vector.load %arg4[%c8_230, %c15_231, %c0_232] : memref<16x128x128xf32, #tpu.memory_space<vmem>>, vector<8x3x128xf32>
    tpu.vector_store %arg4[%c8_230, %c15_231, %c0_232], %123 {strides = array<i32>} : memref<16x128x128xf32, #tpu.memory_space<vmem>>, vector<8x3x128xf32>,
    %c1_233 = arith.constant 1 : index
    %c0_234 = arith.constant 0 : index
    %c0_235 = arith.constant 0 : index
    %c6_236 = arith.constant 6 : index
    %125 = vector.load %arg1[%c1_233, %c0_234, %c0_235, %c6_236] : memref<2x8x3x256xf32, #tpu.memory_space<vmem>>, vector<1x8x3x128xf32>
    %126 = vector.shape_cast %125 : vector<1x8x3x128xf32> to vector<8x3x128xf32>
    %c8_237 = arith.constant 8 : index
    %c18_238 = arith.constant 18 : index
    %c0_239 = arith.constant 0 : index
    %127 = vector.load %arg4[%c8_237, %c18_238, %c0_239] : memref<16x128x128xf32, #tpu.memory_space<vmem>>, vector<8x3x128xf32>
    tpu.vector_store %arg4[%c8_237, %c18_238, %c0_239], %126 {strides = array<i32>} : memref<16x128x128xf32, #tpu.memory_space<vmem>>, vector<8x3x128xf32>,
    %c1_240 = arith.constant 1 : index
    %c0_241 = arith.constant 0 : index
    %c0_242 = arith.constant 0 : index
    %c12_243 = arith.constant 12 : index
    %128 = vector.load %arg1[%c1_240, %c0_241, %c0_242, %c12_243] : memref<2x8x3x256xf32, #tpu.memory_space<vmem>>, vector<1x8x3x128xf32>
    %129 = vector.shape_cast %128 : vector<1x8x3x128xf32> to vector<8x3x128xf32>
    %c8_244 = arith.constant 8 : index
    %c21_245 = arith.constant 21 : index
    %c0_246 = arith.constant 0 : index
    %130 = vector.load %arg4[%c8_244, %c21_245, %c0_246] : memref<16x128x128xf32, #tpu.memory_space<vmem>>, vector<8x3x128xf32>
    tpu.vector_store %arg4[%c8_244, %c21_245, %c0_246], %129 {strides = array<i32>} : memref<16x128x128xf32, #tpu.memory_space<vmem>>, vector<8x3x128xf32>,
    %c1_247 = arith.constant 1 : index
    %c0_248 = arith.constant 0 : index
    %c0_249 = arith.constant 0 : index
    %c13_250 = arith.constant 13 : index
    %131 = vector.load %arg1[%c1_247, %c0_248, %c0_249, %c13_250] : memref<2x8x3x256xf32, #tpu.memory_space<vmem>>, vector<1x8x3x128xf32>
    %132 = vector.shape_cast %131 : vector<1x8x3x128xf32> to vector<8x3x128xf32>
    %c8_251 = arith.constant 8 : index
    %c24_252 = arith.constant 24 : index
    %c0_253 = arith.constant 0 : index
    %133 = vector.load %arg4[%c8_251, %c24_252, %c0_253] : memref<16x128x128xf32, #tpu.memory_space<vmem>>, vector<8x3x128xf32>
    tpu.vector_store %arg4[%c8_251, %c24_252, %c0_253], %132 {strides = array<i32>} : memref<16x128x128xf32, #tpu.memory_space<vmem>>, vector<8x3x128xf32>,
    %c1_254 = arith.constant 1 : index
    %c0_255 = arith.constant 0 : index
    %c0_256 = arith.constant 0 : index
    %c14_257 = arith.constant 14 : index
    %134 = vector.load %arg1[%c1_254, %c0_255, %c0_256, %c14_257] : memref<2x8x3x256xf32, #tpu.memory_space<vmem>>, vector<1x8x3x128xf32>
    %135 = vector.shape_cast %134 : vector<1x8x3x128xf32> to vector<8x3x128xf32>
    %c8_258 = arith.constant 8 : index
    %c27_259 = arith.constant 27 : index
    %c0_260 = arith.constant 0 : index
    %136 = vector.load %arg4[%c8_258, %c27_259, %c0_260] : memref<16x128x128xf32, #tpu.memory_space<vmem>>, vector<8x3x128xf32>
    tpu.vector_store %arg4[%c8_258, %c27_259, %c0_260], %135 {strides = array<i32>} : memref<16x128x128xf32, #tpu.memory_space<vmem>>, vector<8x3x128xf32>,
    %c1_261 = arith.constant 1 : index
    %c0_262 = arith.constant 0 : index
    %c0_263 = arith.constant 0 : index
    %c15_264 = arith.constant 15 : index
    %137 = vector.load %arg1[%c1_261, %c0_262, %c0_263, %c15_264] : memref<2x8x3x256xf32, #tpu.memory_space<vmem>>, vector<1x8x3x128xf32>
    %138 = vector.shape_cast %137 : vector<1x8x3x128xf32> to vector<8x3x128xf32>
    %c8_265 = arith.constant 8 : index
    %c30_266 = arith.constant 30 : index
    %c0_267 = arith.constant 0 : index
    %139 = vector.load %arg4[%c8_265, %c30_266, %c0_267] : memref<16x128x128xf32, #tpu.memory_space<vmem>>, vector<8x3x128xf32>
    tpu.vector_store %arg4[%c8_265, %c30_266, %c0_267], %138 {strides = array<i32>} : memref<16x128x128xf32, #tpu.memory_space<vmem>>, vector<8x3x128xf32>,
    %c1_268 = arith.constant 1 : index
    %c0_269 = arith.constant 0 : index
    %c0_270 = arith.constant 0 : index
    %c16_271 = arith.constant 16 : index
    %140 = vector.load %arg1[%c1_268, %c0_269, %c0_270, %c16_271] : memref<2x8x3x256xf32, #tpu.memory_space<vmem>>, vector<1x8x3x128xf32>
    %141 = vector.shape_cast %140 : vector<1x8x3x128xf32> to vector<8x3x128xf32>
    %c8_272 = arith.constant 8 : index
    %c33_273 = arith.constant 33 : index
    %c0_274 = arith.constant 0 : index
    %142 = vector.load %arg4[%c8_272, %c33_273, %c0_274] : memref<16x128x128xf32, #tpu.memory_space<vmem>>, vector<8x3x128xf32>
    tpu.vector_store %arg4[%c8_272, %c33_273, %c0_274], %141 {strides = array<i32>} : memref<16x128x128xf32, #tpu.memory_space<vmem>>, vector<8x3x128xf32>,
    %c1_275 = arith.constant 1 : index
    %c0_276 = arith.constant 0 : index
    %c0_277 = arith.constant 0 : index
    %c17_278 = arith.constant 17 : index
    %143 = vector.load %arg1[%c1_275, %c0_276, %c0_277, %c17_278] : memref<2x8x3x256xf32, #tpu.memory_space<vmem>>, vector<1x8x3x128xf32>
    %144 = vector.shape_cast %143 : vector<1x8x3x128xf32> to vector<8x3x128xf32>
    %c8_279 = arith.constant 8 : index
    %c36_280 = arith.constant 36 : index
    %c0_281 = arith.constant 0 : index
    %145 = vector.load %arg4[%c8_279, %c36_280, %c0_281] : memref<16x128x128xf32, #tpu.memory_space<vmem>>, vector<8x3x128xf32>
    tpu.vector_store %arg4[%c8_279, %c36_280, %c0_281], %144 {strides = array<i32>} : memref<16x128x128xf32, #tpu.memory_space<vmem>>, vector<8x3x128xf32>,
    %c1_282 = arith.constant 1 : index
    %c0_283 = arith.constant 0 : index
    %c0_284 = arith.constant 0 : index
    %c18_285 = arith.constant 18 : index
    %146 = vector.load %arg1[%c1_282, %c0_283, %c0_284, %c18_285] : memref<2x8x3x256xf32, #tpu.memory_space<vmem>>, vector<1x8x3x128xf32>
    %147 = vector.shape_cast %146 : vector<1x8x3x128xf32> to vector<8x3x128xf32>
    %c8_286 = arith.constant 8 : index
    %c39_287 = arith.constant 39 : index
    %c0_288 = arith.constant 0 : index
    %148 = vector.load %arg4[%c8_286, %c39_287, %c0_288] : memref<16x128x128xf32, #tpu.memory_space<vmem>>, vector<8x3x128xf32>
    tpu.vector_store %arg4[%c8_286, %c39_287, %c0_288], %147 {strides = array<i32>} : memref<16x128x128xf32, #tpu.memory_space<vmem>>, vector<8x3x128xf32>,
    %c1_289 = arith.constant 1 : index
    %c0_290 = arith.constant 0 : index
    %c0_291 = arith.constant 0 : index
    %c24_292 = arith.constant 24 : index
    %149 = vector.load %arg1[%c1_289, %c0_290, %c0_291, %c24_292] : memref<2x8x3x256xf32, #tpu.memory_space<vmem>>, vector<1x8x3x128xf32>
    %150 = vector.shape_cast %149 : vector<1x8x3x128xf32> to vector<8x3x128xf32>
    %c8_293 = arith.constant 8 : index
    %c42_294 = arith.constant 42 : index
    %c0_295 = arith.constant 0 : index
    %151 = vector.load %arg4[%c8_293, %c42_294, %c0_295] : memref<16x128x128xf32, #tpu.memory_space<vmem>>, vector<8x3x128xf32>
    tpu.vector_store %arg4[%c8_293, %c42_294, %c0_295], %150 {strides = array<i32>} : memref<16x128x128xf32, #tpu.memory_space<vmem>>, vector<8x3x128xf32>,
    %c1_296 = arith.constant 1 : index
    %c0_297 = arith.constant 0 : index
    %c0_298 = arith.constant 0 : index
    %c25_299 = arith.constant 25 : index
    %152 = vector.load %arg1[%c1_296, %c0_297, %c0_298, %c25_299] : memref<2x8x3x256xf32, #tpu.memory_space<vmem>>, vector<1x8x3x128xf32>
    %153 = vector.shape_cast %152 : vector<1x8x3x128xf32> to vector<8x3x128xf32>
    %c8_300 = arith.constant 8 : index
    %c45_301 = arith.constant 45 : index
    %c0_302 = arith.constant 0 : index
    %154 = vector.load %arg4[%c8_300, %c45_301, %c0_302] : memref<16x128x128xf32, #tpu.memory_space<vmem>>, vector<8x3x128xf32>
    tpu.vector_store %arg4[%c8_300, %c45_301, %c0_302], %153 {strides = array<i32>} : memref<16x128x128xf32, #tpu.memory_space<vmem>>, vector<8x3x128xf32>,
    %c1_303 = arith.constant 1 : index
    %c0_304 = arith.constant 0 : index
    %c0_305 = arith.constant 0 : index
    %c26_306 = arith.constant 26 : index
    %155 = vector.load %arg1[%c1_303, %c0_304, %c0_305, %c26_306] : memref<2x8x3x256xf32, #tpu.memory_space<vmem>>, vector<1x8x3x128xf32>
    %156 = vector.shape_cast %155 : vector<1x8x3x128xf32> to vector<8x3x128xf32>
    %c8_307 = arith.constant 8 : index
    %c48_308 = arith.constant 48 : index
    %c0_309 = arith.constant 0 : index
    %157 = vector.load %arg4[%c8_307, %c48_308, %c0_309] : memref<16x128x128xf32, #tpu.memory_space<vmem>>, vector<8x3x128xf32>
    tpu.vector_store %arg4[%c8_307, %c48_308, %c0_309], %156 {strides = array<i32>} : memref<16x128x128xf32, #tpu.memory_space<vmem>>, vector<8x3x128xf32>,
    %c1_310 = arith.constant 1 : index
    %c0_311 = arith.constant 0 : index
    %c0_312 = arith.constant 0 : index
    %c27_313 = arith.constant 27 : index
    %158 = vector.load %arg1[%c1_310, %c0_311, %c0_312, %c27_313] : memref<2x8x3x256xf32, #tpu.memory_space<vmem>>, vector<1x8x3x128xf32>
    %159 = vector.shape_cast %158 : vector<1x8x3x128xf32> to vector<8x3x128xf32>
    %c8_314 = arith.constant 8 : index
    %c51_315 = arith.constant 51 : index
    %c0_316 = arith.constant 0 : index
    %160 = vector.load %arg4[%c8_314, %c51_315, %c0_316] : memref<16x128x128xf32, #tpu.memory_space<vmem>>, vector<8x3x128xf32>
    tpu.vector_store %arg4[%c8_314, %c51_315, %c0_316], %159 {strides = array<i32>} : memref<16x128x128xf32, #tpu.memory_space<vmem>>, vector<8x3x128xf32>,
    %c1_317 = arith.constant 1 : index
    %c0_318 = arith.constant 0 : index
    %c0_319 = arith.constant 0 : index
    %c28_320 = arith.constant 28 : index
    %161 = vector.load %arg1[%c1_317, %c0_318, %c0_319, %c28_320] : memref<2x8x3x256xf32, #tpu.memory_space<vmem>>, vector<1x8x3x128xf32>
    %162 = vector.shape_cast %161 : vector<1x8x3x128xf32> to vector<8x3x128xf32>
    %c8_321 = arith.constant 8 : index
    %c54_322 = arith.constant 54 : index
    %c0_323 = arith.constant 0 : index
    %163 = vector.load %arg4[%c8_321, %c54_322, %c0_323] : memref<16x128x128xf32, #tpu.memory_space<vmem>>, vector<8x3x128xf32>
    tpu.vector_store %arg4[%c8_321, %c54_322, %c0_323], %162 {strides = array<i32>} : memref<16x128x128xf32, #tpu.memory_space<vmem>>, vector<8x3x128xf32>,
    %c1_324 = arith.constant 1 : index
    %c0_325 = arith.constant 0 : index
    %c0_326 = arith.constant 0 : index
    %c29_327 = arith.constant 29 : index
    %164 = vector.load %arg1[%c1_324, %c0_325, %c0_326, %c29_327] : memref<2x8x3x256xf32, #tpu.memory_space<vmem>>, vector<1x8x3x128xf32>
    %165 = vector.shape_cast %164 : vector<1x8x3x128xf32> to vector<8x3x128xf32>
    %c8_328 = arith.constant 8 : index
    %c57_329 = arith.constant 57 : index
    %c0_330 = arith.constant 0 : index
    %166 = vector.load %arg4[%c8_328, %c57_329, %c0_330] : memref<16x128x128xf32, #tpu.memory_space<vmem>>, vector<8x3x128xf32>
    tpu.vector_store %arg4[%c8_328, %c57_329, %c0_330], %165 {strides = array<i32>} : memref<16x128x128xf32, #tpu.memory_space<vmem>>, vector<8x3x128xf32>,
    %c1_331 = arith.constant 1 : index
    %c0_332 = arith.constant 0 : index
    %c0_333 = arith.constant 0 : index
    %c30_334 = arith.constant 30 : index
    %167 = vector.load %arg1[%c1_331, %c0_332, %c0_333, %c30_334] : memref<2x8x3x256xf32, #tpu.memory_space<vmem>>, vector<1x8x3x128xf32>
    %168 = vector.shape_cast %167 : vector<1x8x3x128xf32> to vector<8x3x128xf32>
    %c8_335 = arith.constant 8 : index
    %c60_336 = arith.constant 60 : index
    %c0_337 = arith.constant 0 : index
    %169 = vector.load %arg4[%c8_335, %c60_336, %c0_337] : memref<16x128x128xf32, #tpu.memory_space<vmem>>, vector<8x3x128xf32>
    tpu.vector_store %arg4[%c8_335, %c60_336, %c0_337], %168 {strides = array<i32>} : memref<16x128x128xf32, #tpu.memory_space<vmem>>, vector<8x3x128xf32>,
    %c1_338 = arith.constant 1 : index
    %c0_339 = arith.constant 0 : index
    %c0_340 = arith.constant 0 : index
    %c36_341 = arith.constant 36 : index
    %170 = vector.load %arg1[%c1_338, %c0_339, %c0_340, %c36_341] : memref<2x8x3x256xf32, #tpu.memory_space<vmem>>, vector<1x8x3x128xf32>
    %171 = vector.shape_cast %170 : vector<1x8x3x128xf32> to vector<8x3x128xf32>
    %c8_342 = arith.constant 8 : index
    %c63_343 = arith.constant 63 : index
    %c0_344 = arith.constant 0 : index
    %172 = vector.load %arg4[%c8_342, %c63_343, %c0_344] : memref<16x128x128xf32, #tpu.memory_space<vmem>>, vector<8x3x128xf32>
    tpu.vector_store %arg4[%c8_342, %c63_343, %c0_344], %171 {strides = array<i32>} : memref<16x128x128xf32, #tpu.memory_space<vmem>>, vector<8x3x128xf32>,
    %c1_345 = arith.constant 1 : index
    %c0_346 = arith.constant 0 : index
    %c0_347 = arith.constant 0 : index
    %c37_348 = arith.constant 37 : index
    %173 = vector.load %arg1[%c1_345, %c0_346, %c0_347, %c37_348] : memref<2x8x3x256xf32, #tpu.memory_space<vmem>>, vector<1x8x3x128xf32>
    %174 = vector.shape_cast %173 : vector<1x8x3x128xf32> to vector<8x3x128xf32>
    %c8_349 = arith.constant 8 : index
    %c66_350 = arith.constant 66 : index
    %c0_351 = arith.constant 0 : index
    %175 = vector.load %arg4[%c8_349, %c66_350, %c0_351] : memref<16x128x128xf32, #tpu.memory_space<vmem>>, vector<8x3x128xf32>
    tpu.vector_store %arg4[%c8_349, %c66_350, %c0_351], %174 {strides = array<i32>} : memref<16x128x128xf32, #tpu.memory_space<vmem>>, vector<8x3x128xf32>,
    %c1_352 = arith.constant 1 : index
    %c0_353 = arith.constant 0 : index
    %c0_354 = arith.constant 0 : index
    %c38_355 = arith.constant 38 : index
    %176 = vector.load %arg1[%c1_352, %c0_353, %c0_354, %c38_355] : memref<2x8x3x256xf32, #tpu.memory_space<vmem>>, vector<1x8x3x128xf32>
    %177 = vector.shape_cast %176 : vector<1x8x3x128xf32> to vector<8x3x128xf32>
    %c8_356 = arith.constant 8 : index
    %c69_357 = arith.constant 69 : index
    %c0_358 = arith.constant 0 : index
    %178 = vector.load %arg4[%c8_356, %c69_357, %c0_358] : memref<16x128x128xf32, #tpu.memory_space<vmem>>, vector<8x3x128xf32>
    tpu.vector_store %arg4[%c8_356, %c69_357, %c0_358], %177 {strides = array<i32>} : memref<16x128x128xf32, #tpu.memory_space<vmem>>, vector<8x3x128xf32>,
    %c1_359 = arith.constant 1 : index
    %c0_360 = arith.constant 0 : index
    %c0_361 = arith.constant 0 : index
    %c39_362 = arith.constant 39 : index
    %179 = vector.load %arg1[%c1_359, %c0_360, %c0_361, %c39_362] : memref<2x8x3x256xf32, #tpu.memory_space<vmem>>, vector<1x8x3x128xf32>
    %180 = vector.shape_cast %179 : vector<1x8x3x128xf32> to vector<8x3x128xf32>
    %c8_363 = arith.constant 8 : index
    %c72_364 = arith.constant 72 : index
    %c0_365 = arith.constant 0 : index
    %181 = vector.load %arg4[%c8_363, %c72_364, %c0_365] : memref<16x128x128xf32, #tpu.memory_space<vmem>>, vector<8x3x128xf32>
    tpu.vector_store %arg4[%c8_363, %c72_364, %c0_365], %180 {strides = array<i32>} : memref<16x128x128xf32, #tpu.memory_space<vmem>>, vector<8x3x128xf32>,
    %c1_366 = arith.constant 1 : index
    %c0_367 = arith.constant 0 : index
    %c0_368 = arith.constant 0 : index
    %c40_369 = arith.constant 40 : index
    %182 = vector.load %arg1[%c1_366, %c0_367, %c0_368, %c40_369] : memref<2x8x3x256xf32, #tpu.memory_space<vmem>>, vector<1x8x3x128xf32>
    %183 = vector.shape_cast %182 : vector<1x8x3x128xf32> to vector<8x3x128xf32>
    %c8_370 = arith.constant 8 : index
    %c75_371 = arith.constant 75 : index
    %c0_372 = arith.constant 0 : index
    %184 = vector.load %arg4[%c8_370, %c75_371, %c0_372] : memref<16x128x128xf32, #tpu.memory_space<vmem>>, vector<8x3x128xf32>
    tpu.vector_store %arg4[%c8_370, %c75_371, %c0_372], %183 {strides = array<i32>} : memref<16x128x128xf32, #tpu.memory_space<vmem>>, vector<8x3x128xf32>,
    %c1_373 = arith.constant 1 : index
    %c0_374 = arith.constant 0 : index
    %c0_375 = arith.constant 0 : index
    %c41_376 = arith.constant 41 : index
    %185 = vector.load %arg1[%c1_373, %c0_374, %c0_375, %c41_376] : memref<2x8x3x256xf32, #tpu.memory_space<vmem>>, vector<1x8x3x128xf32>
    %186 = vector.shape_cast %185 : vector<1x8x3x128xf32> to vector<8x3x128xf32>
    %c8_377 = arith.constant 8 : index
    %c78_378 = arith.constant 78 : index
    %c0_379 = arith.constant 0 : index
    %187 = vector.load %arg4[%c8_377, %c78_378, %c0_379] : memref<16x128x128xf32, #tpu.memory_space<vmem>>, vector<8x3x128xf32>
    tpu.vector_store %arg4[%c8_377, %c78_378, %c0_379], %186 {strides = array<i32>} : memref<16x128x128xf32, #tpu.memory_space<vmem>>, vector<8x3x128xf32>,
    %c1_380 = arith.constant 1 : index
    %c0_381 = arith.constant 0 : index
    %c0_382 = arith.constant 0 : index
    %c42_383 = arith.constant 42 : index
    %188 = vector.load %arg1[%c1_380, %c0_381, %c0_382, %c42_383] : memref<2x8x3x256xf32, #tpu.memory_space<vmem>>, vector<1x8x3x128xf32>
    %189 = vector.shape_cast %188 : vector<1x8x3x128xf32> to vector<8x3x128xf32>
    %c8_384 = arith.constant 8 : index
    %c81_385 = arith.constant 81 : index
    %c0_386 = arith.constant 0 : index
    %190 = vector.load %arg4[%c8_384, %c81_385, %c0_386] : memref<16x128x128xf32, #tpu.memory_space<vmem>>, vector<8x3x128xf32>
    tpu.vector_store %arg4[%c8_384, %c81_385, %c0_386], %189 {strides = array<i32>} : memref<16x128x128xf32, #tpu.memory_space<vmem>>, vector<8x3x128xf32>,
    %c1_387 = arith.constant 1 : index
    %c0_388 = arith.constant 0 : index
    %c0_389 = arith.constant 0 : index
    %c48_390 = arith.constant 48 : index
    %191 = vector.load %arg1[%c1_387, %c0_388, %c0_389, %c48_390] : memref<2x8x3x256xf32, #tpu.memory_space<vmem>>, vector<1x8x3x128xf32>
    %192 = vector.shape_cast %191 : vector<1x8x3x128xf32> to vector<8x3x128xf32>
    %c8_391 = arith.constant 8 : index
    %c84_392 = arith.constant 84 : index
    %c0_393 = arith.constant 0 : index
    %193 = vector.load %arg4[%c8_391, %c84_392, %c0_393] : memref<16x128x128xf32, #tpu.memory_space<vmem>>, vector<8x3x128xf32>
    tpu.vector_store %arg4[%c8_391, %c84_392, %c0_393], %192 {strides = array<i32>} : memref<16x128x128xf32, #tpu.memory_space<vmem>>, vector<8x3x128xf32>,
    %c1_394 = arith.constant 1 : index
    %c0_395 = arith.constant 0 : index
    %c0_396 = arith.constant 0 : index
    %c49_397 = arith.constant 49 : index
    %194 = vector.load %arg1[%c1_394, %c0_395, %c0_396, %c49_397] : memref<2x8x3x256xf32, #tpu.memory_space<vmem>>, vector<1x8x3x128xf32>
    %195 = vector.shape_cast %194 : vector<1x8x3x128xf32> to vector<8x3x128xf32>
    %c8_398 = arith.constant 8 : index
    %c87_399 = arith.constant 87 : index
    %c0_400 = arith.constant 0 : index
    %196 = vector.load %arg4[%c8_398, %c87_399, %c0_400] : memref<16x128x128xf32, #tpu.memory_space<vmem>>, vector<8x3x128xf32>
    tpu.vector_store %arg4[%c8_398, %c87_399, %c0_400], %195 {strides = array<i32>} : memref<16x128x128xf32, #tpu.memory_space<vmem>>, vector<8x3x128xf32>,
    %c1_401 = arith.constant 1 : index
    %c0_402 = arith.constant 0 : index
    %c0_403 = arith.constant 0 : index
    %c50_404 = arith.constant 50 : index
    %197 = vector.load %arg1[%c1_401, %c0_402, %c0_403, %c50_404] : memref<2x8x3x256xf32, #tpu.memory_space<vmem>>, vector<1x8x3x128xf32>
    %198 = vector.shape_cast %197 : vector<1x8x3x128xf32> to vector<8x3x128xf32>
    %c8_405 = arith.constant 8 : index
    %c90_406 = arith.constant 90 : index
    %c0_407 = arith.constant 0 : index
    %199 = vector.load %arg4[%c8_405, %c90_406, %c0_407] : memref<16x128x128xf32, #tpu.memory_space<vmem>>, vector<8x3x128xf32>
    tpu.vector_store %arg4[%c8_405, %c90_406, %c0_407], %198 {strides = array<i32>} : memref<16x128x128xf32, #tpu.memory_space<vmem>>, vector<8x3x128xf32>,
    %c1_408 = arith.constant 1 : index
    %c0_409 = arith.constant 0 : index
    %c0_410 = arith.constant 0 : index
    %c51_411 = arith.constant 51 : index
    %200 = vector.load %arg1[%c1_408, %c0_409, %c0_410, %c51_411] : memref<2x8x3x256xf32, #tpu.memory_space<vmem>>, vector<1x8x3x128xf32>
    %201 = vector.shape_cast %200 : vector<1x8x3x128xf32> to vector<8x3x128xf32>
    %c8_412 = arith.constant 8 : index
    %c93_413 = arith.constant 93 : index
    %c0_414 = arith.constant 0 : index
    %202 = vector.load %arg4[%c8_412, %c93_413, %c0_414] : memref<16x128x128xf32, #tpu.memory_space<vmem>>, vector<8x3x128xf32>
    tpu.vector_store %arg4[%c8_412, %c93_413, %c0_414], %201 {strides = array<i32>} : memref<16x128x128xf32, #tpu.memory_space<vmem>>, vector<8x3x128xf32>,
    %c1_415 = arith.constant 1 : index
    %c0_416 = arith.constant 0 : index
    %c0_417 = arith.constant 0 : index
    %c52_418 = arith.constant 52 : index
    %203 = vector.load %arg1[%c1_415, %c0_416, %c0_417, %c52_418] : memref<2x8x3x256xf32, #tpu.memory_space<vmem>>, vector<1x8x3x128xf32>
    %204 = vector.shape_cast %203 : vector<1x8x3x128xf32> to vector<8x3x128xf32>
    %c8_419 = arith.constant 8 : index
    %c96_420 = arith.constant 96 : index
    %c0_421 = arith.constant 0 : index
    %205 = vector.load %arg4[%c8_419, %c96_420, %c0_421] : memref<16x128x128xf32, #tpu.memory_space<vmem>>, vector<8x3x128xf32>
    tpu.vector_store %arg4[%c8_419, %c96_420, %c0_421], %204 {strides = array<i32>} : memref<16x128x128xf32, #tpu.memory_space<vmem>>, vector<8x3x128xf32>,
    %c1_422 = arith.constant 1 : index
    %c0_423 = arith.constant 0 : index
    %c0_424 = arith.constant 0 : index
    %c53_425 = arith.constant 53 : index
    %206 = vector.load %arg1[%c1_422, %c0_423, %c0_424, %c53_425] : memref<2x8x3x256xf32, #tpu.memory_space<vmem>>, vector<1x8x3x128xf32>
    %207 = vector.shape_cast %206 : vector<1x8x3x128xf32> to vector<8x3x128xf32>
    %c8_426 = arith.constant 8 : index
    %c99_427 = arith.constant 99 : index
    %c0_428 = arith.constant 0 : index
    %208 = vector.load %arg4[%c8_426, %c99_427, %c0_428] : memref<16x128x128xf32, #tpu.memory_space<vmem>>, vector<8x3x128xf32>
    tpu.vector_store %arg4[%c8_426, %c99_427, %c0_428], %207 {strides = array<i32>} : memref<16x128x128xf32, #tpu.memory_space<vmem>>, vector<8x3x128xf32>,
    %c1_429 = arith.constant 1 : index
    %c0_430 = arith.constant 0 : index
    %c0_431 = arith.constant 0 : index
    %c54_432 = arith.constant 54 : index
    %209 = vector.load %arg1[%c1_429, %c0_430, %c0_431, %c54_432] : memref<2x8x3x256xf32, #tpu.memory_space<vmem>>, vector<1x8x3x128xf32>
    %210 = vector.shape_cast %209 : vector<1x8x3x128xf32> to vector<8x3x128xf32>
    %c8_433 = arith.constant 8 : index
    %c102_434 = arith.constant 102 : index
    %c0_435 = arith.constant 0 : index
    %211 = vector.load %arg4[%c8_433, %c102_434, %c0_435] : memref<16x128x128xf32, #tpu.memory_space<vmem>>, vector<8x3x128xf32>
    tpu.vector_store %arg4[%c8_433, %c102_434, %c0_435], %210 {strides = array<i32>} : memref<16x128x128xf32, #tpu.memory_space<vmem>>, vector<8x3x128xf32>,
    %c0_436 = arith.constant 0 : index
    %c0_437 = arith.constant 0 : index
    %c0_438 = arith.constant 0 : index
    %212 = vector.load %arg2[%c0_436, %c0_437, %c0_438] : memref<3x64x128xf32, #tpu.memory_space<vmem>>, vector<1x64x128xf32>
    %213 = vector.shape_cast %212 : vector<1x64x128xf32> to vector<64x128xf32>
    %c1_439 = arith.constant 1 : index
    %c0_440 = arith.constant 0 : index
    %c0_441 = arith.constant 0 : index
    %214 = vector.load %arg2[%c1_439, %c0_440, %c0_441] : memref<3x64x128xf32, #tpu.memory_space<vmem>>, vector<1x64x128xf32>
    %215 = vector.shape_cast %214 : vector<1x64x128xf32> to vector<64x128xf32>
    %c2_442 = arith.constant 2 : index
    %c0_443 = arith.constant 0 : index
    %c0_444 = arith.constant 0 : index
    %216 = vector.load %arg2[%c2_442, %c0_443, %c0_444] : memref<3x64x128xf32, #tpu.memory_space<vmem>>, vector<1x64x128xf32>
    %217 = vector.shape_cast %216 : vector<1x64x128xf32> to vector<64x128xf32>
    %c0_445 = arith.constant 0 : index
    %c0_446 = arith.constant 0 : index
    %c0_447 = arith.constant 0 : index
    %218 = vector.load %arg4[%c0_445, %c0_446, %c0_447] : memref<16x128x128xf32, #tpu.memory_space<vmem>>, vector<1x128x128xf32>
    %219 = vector.shape_cast %218 : vector<1x128x128xf32> to vector<128x128xf32>
    %cst_448 = arith.constant dense<0.000000e+00> : vector<64x128xf32>
    %220 = tpu.matmul %213, %219, %cst_448 {dimension_numbers = #tpu.dot_dimension_numbers<[1], [0], [0], [1], [0, 0, 1, 1], [], []>} : vector<64x128xf32>, vector<128x128xf32>, vector<64x128xf32> -> vector<64x128xf32>
    %c1_449 = arith.constant 1 : index
    %c0_450 = arith.constant 0 : index
    %c0_451 = arith.constant 0 : index
    %221 = vector.load %arg4[%c1_449, %c0_450, %c0_451] : memref<16x128x128xf32, #tpu.memory_space<vmem>>, vector<1x128x128xf32>
    %222 = vector.shape_cast %221 : vector<1x128x128xf32> to vector<128x128xf32>
    %cst_452 = arith.constant dense<0.000000e+00> : vector<64x128xf32>
    %223 = tpu.matmul %215, %222, %cst_452 {dimension_numbers = #tpu.dot_dimension_numbers<[1], [0], [0], [1], [0, 0, 1, 1], [], []>} : vector<64x128xf32>, vector<128x128xf32>, vector<64x128xf32> -> vector<64x128xf32>
    %224 = arith.addf %220, %223 : vector<64x128xf32>
    %c2_453 = arith.constant 2 : index
    %c0_454 = arith.constant 0 : index
    %c0_455 = arith.constant 0 : index
    %225 = vector.load %arg4[%c2_453, %c0_454, %c0_455] : memref<16x128x128xf32, #tpu.memory_space<vmem>>, vector<1x128x128xf32>
    %226 = vector.shape_cast %225 : vector<1x128x128xf32> to vector<128x128xf32>
    %cst_456 = arith.constant dense<0.000000e+00> : vector<64x128xf32>
    %227 = tpu.matmul %217, %226, %cst_456 {dimension_numbers = #tpu.dot_dimension_numbers<[1], [0], [0], [1], [0, 0, 1, 1], [], []>} : vector<64x128xf32>, vector<128x128xf32>, vector<64x128xf32> -> vector<64x128xf32>
    %228 = arith.addf %224, %227 : vector<64x128xf32>
    %c0_457 = arith.constant 0 : index
    %c0_458 = arith.constant 0 : index
    %c0_459 = arith.constant 0 : index
    %c0_460 = arith.constant 0 : index
    %229 = vector.load %arg3[%c0_457, %c0_458, %c0_459, %c0_460] : memref<2x6x64x128xf32, #tpu.memory_space<vmem>>, vector<1x1x64x128xf32>
    %230 = vector.shape_cast %229 : vector<1x1x64x128xf32> to vector<64x128xf32>
    %231 = vector.shape_cast %228 : vector<64x128xf32> to vector<1x1x64x128xf32>
    tpu.vector_store %arg3[%c0_457, %c0_458, %c0_459, %c0_460], %231 {strides = array<i32>} : memref<2x6x64x128xf32, #tpu.memory_space<vmem>>, vector<1x1x64x128xf32>,
    %c1_461 = arith.constant 1 : index
    %c0_462 = arith.constant 0 : index
    %c0_463 = arith.constant 0 : index
    %232 = vector.load %arg4[%c1_461, %c0_462, %c0_463] : memref<16x128x128xf32, #tpu.memory_space<vmem>>, vector<1x128x128xf32>
    %233 = vector.shape_cast %232 : vector<1x128x128xf32> to vector<128x128xf32>
    %cst_464 = arith.constant dense<0.000000e+00> : vector<64x128xf32>
    %234 = tpu.matmul %213, %233, %cst_464 {dimension_numbers = #tpu.dot_dimension_numbers<[1], [0], [0], [1], [0, 0, 1, 1], [], []>} : vector<64x128xf32>, vector<128x128xf32>, vector<64x128xf32> -> vector<64x128xf32>
    %c2_465 = arith.constant 2 : index
    %c0_466 = arith.constant 0 : index
    %c0_467 = arith.constant 0 : index
    %235 = vector.load %arg4[%c2_465, %c0_466, %c0_467] : memref<16x128x128xf32, #tpu.memory_space<vmem>>, vector<1x128x128xf32>
    %236 = vector.shape_cast %235 : vector<1x128x128xf32> to vector<128x128xf32>
    %cst_468 = arith.constant dense<0.000000e+00> : vector<64x128xf32>
    %237 = tpu.matmul %215, %236, %cst_468 {dimension_numbers = #tpu.dot_dimension_numbers<[1], [0], [0], [1], [0, 0, 1, 1], [], []>} : vector<64x128xf32>, vector<128x128xf32>, vector<64x128xf32> -> vector<64x128xf32>
    %238 = arith.addf %234, %237 : vector<64x128xf32>
    %c3_469 = arith.constant 3 : index
    %c0_470 = arith.constant 0 : index
    %c0_471 = arith.constant 0 : index
    %239 = vector.load %arg4[%c3_469, %c0_470, %c0_471] : memref<16x128x128xf32, #tpu.memory_space<vmem>>, vector<1x128x128xf32>
    %240 = vector.shape_cast %239 : vector<1x128x128xf32> to vector<128x128xf32>
    %cst_472 = arith.constant dense<0.000000e+00> : vector<64x128xf32>
    %241 = tpu.matmul %217, %240, %cst_472 {dimension_numbers = #tpu.dot_dimension_numbers<[1], [0], [0], [1], [0, 0, 1, 1], [], []>} : vector<64x128xf32>, vector<128x128xf32>, vector<64x128xf32> -> vector<64x128xf32>
    %242 = arith.addf %238, %241 : vector<64x128xf32>
    %c0_473 = arith.constant 0 : index
    %c1_474 = arith.constant 1 : index
    %c0_475 = arith.constant 0 : index
    %c0_476 = arith.constant 0 : index
    %243 = vector.load %arg3[%c0_473, %c1_474, %c0_475, %c0_476] : memref<2x6x64x128xf32, #tpu.memory_space<vmem>>, vector<1x1x64x128xf32>
    %244 = vector.shape_cast %243 : vector<1x1x64x128xf32> to vector<64x128xf32>
    %245 = vector.shape_cast %242 : vector<64x128xf32> to vector<1x1x64x128xf32>
    tpu.vector_store %arg3[%c0_473, %c1_474, %c0_475, %c0_476], %245 {strides = array<i32>} : memref<2x6x64x128xf32, #tpu.memory_space<vmem>>, vector<1x1x64x128xf32>,
    %c2_477 = arith.constant 2 : index
    %c0_478 = arith.constant 0 : index
    %c0_479 = arith.constant 0 : index
    %246 = vector.load %arg4[%c2_477, %c0_478, %c0_479] : memref<16x128x128xf32, #tpu.memory_space<vmem>>, vector<1x128x128xf32>
    %247 = vector.shape_cast %246 : vector<1x128x128xf32> to vector<128x128xf32>
    %cst_480 = arith.constant dense<0.000000e+00> : vector<64x128xf32>
    %248 = tpu.matmul %213, %247, %cst_480 {dimension_numbers = #tpu.dot_dimension_numbers<[1], [0], [0], [1], [0, 0, 1, 1], [], []>} : vector<64x128xf32>, vector<128x128xf32>, vector<64x128xf32> -> vector<64x128xf32>
    %c3_481 = arith.constant 3 : index
    %c0_482 = arith.constant 0 : index
    %c0_483 = arith.constant 0 : index
    %249 = vector.load %arg4[%c3_481, %c0_482, %c0_483] : memref<16x128x128xf32, #tpu.memory_space<vmem>>, vector<1x128x128xf32>
    %250 = vector.shape_cast %249 : vector<1x128x128xf32> to vector<128x128xf32>
    %cst_484 = arith.constant dense<0.000000e+00> : vector<64x128xf32>
    %251 = tpu.matmul %215, %250, %cst_484 {dimension_numbers = #tpu.dot_dimension_numbers<[1], [0], [0], [1], [0, 0, 1, 1], [], []>} : vector<64x128xf32>, vector<128x128xf32>, vector<64x128xf32> -> vector<64x128xf32>
    %252 = arith.addf %248, %251 : vector<64x128xf32>
    %c4_485 = arith.constant 4 : index
    %c0_486 = arith.constant 0 : index
    %c0_487 = arith.constant 0 : index
    %253 = vector.load %arg4[%c4_485, %c0_486, %c0_487] : memref<16x128x128xf32, #tpu.memory_space<vmem>>, vector<1x128x128xf32>
    %254 = vector.shape_cast %253 : vector<1x128x128xf32> to vector<128x128xf32>
    %cst_488 = arith.constant dense<0.000000e+00> : vector<64x128xf32>
    %255 = tpu.matmul %217, %254, %cst_488 {dimension_numbers = #tpu.dot_dimension_numbers<[1], [0], [0], [1], [0, 0, 1, 1], [], []>} : vector<64x128xf32>, vector<128x128xf32>, vector<64x128xf32> -> vector<64x128xf32>
    %256 = arith.addf %252, %255 : vector<64x128xf32>
    %c0_489 = arith.constant 0 : index
    %c2_490 = arith.constant 2 : index
    %c0_491 = arith.constant 0 : index
    %c0_492 = arith.constant 0 : index
    %257 = vector.load %arg3[%c0_489, %c2_490, %c0_491, %c0_492] : memref<2x6x64x128xf32, #tpu.memory_space<vmem>>, vector<1x1x64x128xf32>
    %258 = vector.shape_cast %257 : vector<1x1x64x128xf32> to vector<64x128xf32>
    %259 = vector.shape_cast %256 : vector<64x128xf32> to vector<1x1x64x128xf32>
    tpu.vector_store %arg3[%c0_489, %c2_490, %c0_491, %c0_492], %259 {strides = array<i32>} : memref<2x6x64x128xf32, #tpu.memory_space<vmem>>, vector<1x1x64x128xf32>,
    %c3_493 = arith.constant 3 : index
    %c0_494 = arith.constant 0 : index
    %c0_495 = arith.constant 0 : index
    %260 = vector.load %arg4[%c3_493, %c0_494, %c0_495] : memref<16x128x128xf32, #tpu.memory_space<vmem>>, vector<1x128x128xf32>
    %261 = vector.shape_cast %260 : vector<1x128x128xf32> to vector<128x128xf32>
    %cst_496 = arith.constant dense<0.000000e+00> : vector<64x128xf32>
    %262 = tpu.matmul %213, %261, %cst_496 {dimension_numbers = #tpu.dot_dimension_numbers<[1], [0], [0], [1], [0, 0, 1, 1], [], []>} : vector<64x128xf32>, vector<128x128xf32>, vector<64x128xf32> -> vector<64x128xf32>
    %c4_497 = arith.constant 4 : index
    %c0_498 = arith.constant 0 : index
    %c0_499 = arith.constant 0 : index
    %263 = vector.load %arg4[%c4_497, %c0_498, %c0_499] : memref<16x128x128xf32, #tpu.memory_space<vmem>>, vector<1x128x128xf32>
    %264 = vector.shape_cast %263 : vector<1x128x128xf32> to vector<128x128xf32>
    %cst_500 = arith.constant dense<0.000000e+00> : vector<64x128xf32>
    %265 = tpu.matmul %215, %264, %cst_500 {dimension_numbers = #tpu.dot_dimension_numbers<[1], [0], [0], [1], [0, 0, 1, 1], [], []>} : vector<64x128xf32>, vector<128x128xf32>, vector<64x128xf32> -> vector<64x128xf32>
    %266 = arith.addf %262, %265 : vector<64x128xf32>
    %c5_501 = arith.constant 5 : index
    %c0_502 = arith.constant 0 : index
    %c0_503 = arith.constant 0 : index
    %267 = vector.load %arg4[%c5_501, %c0_502, %c0_503] : memref<16x128x128xf32, #tpu.memory_space<vmem>>, vector<1x128x128xf32>
    %268 = vector.shape_cast %267 : vector<1x128x128xf32> to vector<128x128xf32>
    %cst_504 = arith.constant dense<0.000000e+00> : vector<64x128xf32>
    %269 = tpu.matmul %217, %268, %cst_504 {dimension_numbers = #tpu.dot_dimension_numbers<[1], [0], [0], [1], [0, 0, 1, 1], [], []>} : vector<64x128xf32>, vector<128x128xf32>, vector<64x128xf32> -> vector<64x128xf32>
    %270 = arith.addf %266, %269 : vector<64x128xf32>
    %c0_505 = arith.constant 0 : index
    %c3_506 = arith.constant 3 : index
    %c0_507 = arith.constant 0 : index
    %c0_508 = arith.constant 0 : index
    %271 = vector.load %arg3[%c0_505, %c3_506, %c0_507, %c0_508] : memref<2x6x64x128xf32, #tpu.memory_space<vmem>>, vector<1x1x64x128xf32>
    %272 = vector.shape_cast %271 : vector<1x1x64x128xf32> to vector<64x128xf32>
    %273 = vector.shape_cast %270 : vector<64x128xf32> to vector<1x1x64x128xf32>
    tpu.vector_store %arg3[%c0_505, %c3_506, %c0_507, %c0_508], %273 {strides = array<i32>} : memref<2x6x64x128xf32, #tpu.memory_space<vmem>>, vector<1x1x64x128xf32>,
    %c4_509 = arith.constant 4 : index
    %c0_510 = arith.constant 0 : index
    %c0_511 = arith.constant 0 : index
    %274 = vector.load %arg4[%c4_509, %c0_510, %c0_511] : memref<16x128x128xf32, #tpu.memory_space<vmem>>, vector<1x128x128xf32>
    %275 = vector.shape_cast %274 : vector<1x128x128xf32> to vector<128x128xf32>
    %cst_512 = arith.constant dense<0.000000e+00> : vector<64x128xf32>
    %276 = tpu.matmul %213, %275, %cst_512 {dimension_numbers = #tpu.dot_dimension_numbers<[1], [0], [0], [1], [0, 0, 1, 1], [], []>} : vector<64x128xf32>, vector<128x128xf32>, vector<64x128xf32> -> vector<64x128xf32>
    %c5_513 = arith.constant 5 : index
    %c0_514 = arith.constant 0 : index
    %c0_515 = arith.constant 0 : index
    %277 = vector.load %arg4[%c5_513, %c0_514, %c0_515] : memref<16x128x128xf32, #tpu.memory_space<vmem>>, vector<1x128x128xf32>
    %278 = vector.shape_cast %277 : vector<1x128x128xf32> to vector<128x128xf32>
    %cst_516 = arith.constant dense<0.000000e+00> : vector<64x128xf32>
    %279 = tpu.matmul %215, %278, %cst_516 {dimension_numbers = #tpu.dot_dimension_numbers<[1], [0], [0], [1], [0, 0, 1, 1], [], []>} : vector<64x128xf32>, vector<128x128xf32>, vector<64x128xf32> -> vector<64x128xf32>
    %280 = arith.addf %276, %279 : vector<64x128xf32>
    %c6_517 = arith.constant 6 : index
    %c0_518 = arith.constant 0 : index
    %c0_519 = arith.constant 0 : index
    %281 = vector.load %arg4[%c6_517, %c0_518, %c0_519] : memref<16x128x128xf32, #tpu.memory_space<vmem>>, vector<1x128x128xf32>
    %282 = vector.shape_cast %281 : vector<1x128x128xf32> to vector<128x128xf32>
    %cst_520 = arith.constant dense<0.000000e+00> : vector<64x128xf32>
    %283 = tpu.matmul %217, %282, %cst_520 {dimension_numbers = #tpu.dot_dimension_numbers<[1], [0], [0], [1], [0, 0, 1, 1], [], []>} : vector<64x128xf32>, vector<128x128xf32>, vector<64x128xf32> -> vector<64x128xf32>
    %284 = arith.addf %280, %283 : vector<64x128xf32>
    %c0_521 = arith.constant 0 : index
    %c4_522 = arith.constant 4 : index
    %c0_523 = arith.constant 0 : index
    %c0_524 = arith.constant 0 : index
    %285 = vector.load %arg3[%c0_521, %c4_522, %c0_523, %c0_524] : memref<2x6x64x128xf32, #tpu.memory_space<vmem>>, vector<1x1x64x128xf32>
    %286 = vector.shape_cast %285 : vector<1x1x64x128xf32> to vector<64x128xf32>
    %287 = vector.shape_cast %284 : vector<64x128xf32> to vector<1x1x64x128xf32>
    tpu.vector_store %arg3[%c0_521, %c4_522, %c0_523, %c0_524], %287 {strides = array<i32>} : memref<2x6x64x128xf32, #tpu.memory_space<vmem>>, vector<1x1x64x128xf32>,
    %c5_525 = arith.constant 5 : index
    %c0_526 = arith.constant 0 : index
    %c0_527 = arith.constant 0 : index
    %288 = vector.load %arg4[%c5_525, %c0_526, %c0_527] : memref<16x128x128xf32, #tpu.memory_space<vmem>>, vector<1x128x128xf32>
    %289 = vector.shape_cast %288 : vector<1x128x128xf32> to vector<128x128xf32>
    %cst_528 = arith.constant dense<0.000000e+00> : vector<64x128xf32>
    %290 = tpu.matmul %213, %289, %cst_528 {dimension_numbers = #tpu.dot_dimension_numbers<[1], [0], [0], [1], [0, 0, 1, 1], [], []>} : vector<64x128xf32>, vector<128x128xf32>, vector<64x128xf32> -> vector<64x128xf32>
    %c6_529 = arith.constant 6 : index
    %c0_530 = arith.constant 0 : index
    %c0_531 = arith.constant 0 : index
    %291 = vector.load %arg4[%c6_529, %c0_530, %c0_531] : memref<16x128x128xf32, #tpu.memory_space<vmem>>, vector<1x128x128xf32>
    %292 = vector.shape_cast %291 : vector<1x128x128xf32> to vector<128x128xf32>
    %cst_532 = arith.constant dense<0.000000e+00> : vector<64x128xf32>
    %293 = tpu.matmul %215, %292, %cst_532 {dimension_numbers = #tpu.dot_dimension_numbers<[1], [0], [0], [1], [0, 0, 1, 1], [], []>} : vector<64x128xf32>, vector<128x128xf32>, vector<64x128xf32> -> vector<64x128xf32>
    %294 = arith.addf %290, %293 : vector<64x128xf32>
    %c7 = arith.constant 7 : index
    %c0_533 = arith.constant 0 : index
    %c0_534 = arith.constant 0 : index
    %295 = vector.load %arg4[%c7, %c0_533, %c0_534] : memref<16x128x128xf32, #tpu.memory_space<vmem>>, vector<1x128x128xf32>
    %296 = vector.shape_cast %295 : vector<1x128x128xf32> to vector<128x128xf32>
    %cst_535 = arith.constant dense<0.000000e+00> : vector<64x128xf32>
    %297 = tpu.matmul %217, %296, %cst_535 {dimension_numbers = #tpu.dot_dimension_numbers<[1], [0], [0], [1], [0, 0, 1, 1], [], []>} : vector<64x128xf32>, vector<128x128xf32>, vector<64x128xf32> -> vector<64x128xf32>
    %298 = arith.addf %294, %297 : vector<64x128xf32>
    %c0_536 = arith.constant 0 : index
    %c5_537 = arith.constant 5 : index
    %c0_538 = arith.constant 0 : index
    %c0_539 = arith.constant 0 : index
    %299 = vector.load %arg3[%c0_536, %c5_537, %c0_538, %c0_539] : memref<2x6x64x128xf32, #tpu.memory_space<vmem>>, vector<1x1x64x128xf32>
    %300 = vector.shape_cast %299 : vector<1x1x64x128xf32> to vector<64x128xf32>
    %301 = vector.shape_cast %298 : vector<64x128xf32> to vector<1x1x64x128xf32>
    tpu.vector_store %arg3[%c0_536, %c5_537, %c0_538, %c0_539], %301 {strides = array<i32>} : memref<2x6x64x128xf32, #tpu.memory_space<vmem>>, vector<1x1x64x128xf32>,
    %c8_540 = arith.constant 8 : index
    %c0_541 = arith.constant 0 : index
    %c0_542 = arith.constant 0 : index
    %302 = vector.load %arg4[%c8_540, %c0_541, %c0_542] : memref<16x128x128xf32, #tpu.memory_space<vmem>>, vector<1x128x128xf32>
    %303 = vector.shape_cast %302 : vector<1x128x128xf32> to vector<128x128xf32>
    %cst_543 = arith.constant dense<0.000000e+00> : vector<64x128xf32>
    %304 = tpu.matmul %213, %303, %cst_543 {dimension_numbers = #tpu.dot_dimension_numbers<[1], [0], [0], [1], [0, 0, 1, 1], [], []>} : vector<64x128xf32>, vector<128x128xf32>, vector<64x128xf32> -> vector<64x128xf32>
    %c9_544 = arith.constant 9 : index
    %c0_545 = arith.constant 0 : index
    %c0_546 = arith.constant 0 : index
    %305 = vector.load %arg4[%c9_544, %c0_545, %c0_546] : memref<16x128x128xf32, #tpu.memory_space<vmem>>, vector<1x128x128xf32>
    %306 = vector.shape_cast %305 : vector<1x128x128xf32> to vector<128x128xf32>
    %cst_547 = arith.constant dense<0.000000e+00> : vector<64x128xf32>
    %307 = tpu.matmul %215, %306, %cst_547 {dimension_numbers = #tpu.dot_dimension_numbers<[1], [0], [0], [1], [0, 0, 1, 1], [], []>} : vector<64x128xf32>, vector<128x128xf32>, vector<64x128xf32> -> vector<64x128xf32>
    %308 = arith.addf %304, %307 : vector<64x128xf32>
    %c10 = arith.constant 10 : index
    %c0_548 = arith.constant 0 : index
    %c0_549 = arith.constant 0 : index
    %309 = vector.load %arg4[%c10, %c0_548, %c0_549] : memref<16x128x128xf32, #tpu.memory_space<vmem>>, vector<1x128x128xf32>
    %310 = vector.shape_cast %309 : vector<1x128x128xf32> to vector<128x128xf32>
    %cst_550 = arith.constant dense<0.000000e+00> : vector<64x128xf32>
    %311 = tpu.matmul %217, %310, %cst_550 {dimension_numbers = #tpu.dot_dimension_numbers<[1], [0], [0], [1], [0, 0, 1, 1], [], []>} : vector<64x128xf32>, vector<128x128xf32>, vector<64x128xf32> -> vector<64x128xf32>
    %312 = arith.addf %308, %311 : vector<64x128xf32>
    %c1_551 = arith.constant 1 : index
    %c0_552 = arith.constant 0 : index
    %c0_553 = arith.constant 0 : index
    %c0_554 = arith.constant 0 : index
    %313 = vector.load %arg3[%c1_551, %c0_552, %c0_553, %c0_554] : memref<2x6x64x128xf32, #tpu.memory_space<vmem>>, vector<1x1x64x128xf32>
    %314 = vector.shape_cast %313 : vector<1x1x64x128xf32> to vector<64x128xf32>
    %315 = vector.shape_cast %312 : vector<64x128xf32> to vector<1x1x64x128xf32>
    tpu.vector_store %arg3[%c1_551, %c0_552, %c0_553, %c0_554], %315 {strides = array<i32>} : memref<2x6x64x128xf32, #tpu.memory_space<vmem>>, vector<1x1x64x128xf32>,
    %c9_555 = arith.constant 9 : index
    %c0_556 = arith.constant 0 : index
    %c0_557 = arith.constant 0 : index
    %316 = vector.load %arg4[%c9_555, %c0_556, %c0_557] : memref<16x128x128xf32, #tpu.memory_space<vmem>>, vector<1x128x128xf32>
    %317 = vector.shape_cast %316 : vector<1x128x128xf32> to vector<128x128xf32>
    %cst_558 = arith.constant dense<0.000000e+00> : vector<64x128xf32>
    %318 = tpu.matmul %213, %317, %cst_558 {dimension_numbers = #tpu.dot_dimension_numbers<[1], [0], [0], [1], [0, 0, 1, 1], [], []>} : vector<64x128xf32>, vector<128x128xf32>, vector<64x128xf32> -> vector<64x128xf32>
    %c10_559 = arith.constant 10 : index
    %c0_560 = arith.constant 0 : index
    %c0_561 = arith.constant 0 : index
    %319 = vector.load %arg4[%c10_559, %c0_560, %c0_561] : memref<16x128x128xf32, #tpu.memory_space<vmem>>, vector<1x128x128xf32>
    %320 = vector.shape_cast %319 : vector<1x128x128xf32> to vector<128x128xf32>
    %cst_562 = arith.constant dense<0.000000e+00> : vector<64x128xf32>
    %321 = tpu.matmul %215, %320, %cst_562 {dimension_numbers = #tpu.dot_dimension_numbers<[1], [0], [0], [1], [0, 0, 1, 1], [], []>} : vector<64x128xf32>, vector<128x128xf32>, vector<64x128xf32> -> vector<64x128xf32>
    %322 = arith.addf %318, %321 : vector<64x128xf32>
    %c11 = arith.constant 11 : index
    %c0_563 = arith.constant 0 : index
    %c0_564 = arith.constant 0 : index
    %323 = vector.load %arg4[%c11, %c0_563, %c0_564] : memref<16x128x128xf32, #tpu.memory_space<vmem>>, vector<1x128x128xf32>
    %324 = vector.shape_cast %323 : vector<1x128x128xf32> to vector<128x128xf32>
    %cst_565 = arith.constant dense<0.000000e+00> : vector<64x128xf32>
    %325 = tpu.matmul %217, %324, %cst_565 {dimension_numbers = #tpu.dot_dimension_numbers<[1], [0], [0], [1], [0, 0, 1, 1], [], []>} : vector<64x128xf32>, vector<128x128xf32>, vector<64x128xf32> -> vector<64x128xf32>
    %326 = arith.addf %322, %325 : vector<64x128xf32>
    %c1_566 = arith.constant 1 : index
    %c1_567 = arith.constant 1 : index
    %c0_568 = arith.constant 0 : index
    %c0_569 = arith.constant 0 : index
    %327 = vector.load %arg3[%c1_566, %c1_567, %c0_568, %c0_569] : memref<2x6x64x128xf32, #tpu.memory_space<vmem>>, vector<1x1x64x128xf32>
    %328 = vector.shape_cast %327 : vector<1x1x64x128xf32> to vector<64x128xf32>
    %329 = vector.shape_cast %326 : vector<64x128xf32> to vector<1x1x64x128xf32>
    tpu.vector_store %arg3[%c1_566, %c1_567, %c0_568, %c0_569], %329 {strides = array<i32>} : memref<2x6x64x128xf32, #tpu.memory_space<vmem>>, vector<1x1x64x128xf32>,
    %c10_570 = arith.constant 10 : index
    %c0_571 = arith.constant 0 : index
    %c0_572 = arith.constant 0 : index
    %330 = vector.load %arg4[%c10_570, %c0_571, %c0_572] : memref<16x128x128xf32, #tpu.memory_space<vmem>>, vector<1x128x128xf32>
    %331 = vector.shape_cast %330 : vector<1x128x128xf32> to vector<128x128xf32>
    %cst_573 = arith.constant dense<0.000000e+00> : vector<64x128xf32>
    %332 = tpu.matmul %213, %331, %cst_573 {dimension_numbers = #tpu.dot_dimension_numbers<[1], [0], [0], [1], [0, 0, 1, 1], [], []>} : vector<64x128xf32>, vector<128x128xf32>, vector<64x128xf32> -> vector<64x128xf32>
    %c11_574 = arith.constant 11 : index
    %c0_575 = arith.constant 0 : index
    %c0_576 = arith.constant 0 : index
    %333 = vector.load %arg4[%c11_574, %c0_575, %c0_576] : memref<16x128x128xf32, #tpu.memory_space<vmem>>, vector<1x128x128xf32>
    %334 = vector.shape_cast %333 : vector<1x128x128xf32> to vector<128x128xf32>
    %cst_577 = arith.constant dense<0.000000e+00> : vector<64x128xf32>
    %335 = tpu.matmul %215, %334, %cst_577 {dimension_numbers = #tpu.dot_dimension_numbers<[1], [0], [0], [1], [0, 0, 1, 1], [], []>} : vector<64x128xf32>, vector<128x128xf32>, vector<64x128xf32> -> vector<64x128xf32>
    %336 = arith.addf %332, %335 : vector<64x128xf32>
    %c12_578 = arith.constant 12 : index
    %c0_579 = arith.constant 0 : index
    %c0_580 = arith.constant 0 : index
    %337 = vector.load %arg4[%c12_578, %c0_579, %c0_580] : memref<16x128x128xf32, #tpu.memory_space<vmem>>, vector<1x128x128xf32>
    %338 = vector.shape_cast %337 : vector<1x128x128xf32> to vector<128x128xf32>
    %cst_581 = arith.constant dense<0.000000e+00> : vector<64x128xf32>
    %339 = tpu.matmul %217, %338, %cst_581 {dimension_numbers = #tpu.dot_dimension_numbers<[1], [0], [0], [1], [0, 0, 1, 1], [], []>} : vector<64x128xf32>, vector<128x128xf32>, vector<64x128xf32> -> vector<64x128xf32>
    %340 = arith.addf %336, %339 : vector<64x128xf32>
    %c1_582 = arith.constant 1 : index
    %c2_583 = arith.constant 2 : index
    %c0_584 = arith.constant 0 : index
    %c0_585 = arith.constant 0 : index
    %341 = vector.load %arg3[%c1_582, %c2_583, %c0_584, %c0_585] : memref<2x6x64x128xf32, #tpu.memory_space<vmem>>, vector<1x1x64x128xf32>
    %342 = vector.shape_cast %341 : vector<1x1x64x128xf32> to vector<64x128xf32>
    %343 = vector.shape_cast %340 : vector<64x128xf32> to vector<1x1x64x128xf32>
    tpu.vector_store %arg3[%c1_582, %c2_583, %c0_584, %c0_585], %343 {strides = array<i32>} : memref<2x6x64x128xf32, #tpu.memory_space<vmem>>, vector<1x1x64x128xf32>,
    %c11_586 = arith.constant 11 : index
    %c0_587 = arith.constant 0 : index
    %c0_588 = arith.constant 0 : index
    %344 = vector.load %arg4[%c11_586, %c0_587, %c0_588] : memref<16x128x128xf32, #tpu.memory_space<vmem>>, vector<1x128x128xf32>
    %345 = vector.shape_cast %344 : vector<1x128x128xf32> to vector<128x128xf32>
    %cst_589 = arith.constant dense<0.000000e+00> : vector<64x128xf32>
    %346 = tpu.matmul %213, %345, %cst_589 {dimension_numbers = #tpu.dot_dimension_numbers<[1], [0], [0], [1], [0, 0, 1, 1], [], []>} : vector<64x128xf32>, vector<128x128xf32>, vector<64x128xf32> -> vector<64x128xf32>
    %c12_590 = arith.constant 12 : index
    %c0_591 = arith.constant 0 : index
    %c0_592 = arith.constant 0 : index
    %347 = vector.load %arg4[%c12_590, %c0_591, %c0_592] : memref<16x128x128xf32, #tpu.memory_space<vmem>>, vector<1x128x128xf32>
    %348 = vector.shape_cast %347 : vector<1x128x128xf32> to vector<128x128xf32>
    %cst_593 = arith.constant dense<0.000000e+00> : vector<64x128xf32>
    %349 = tpu.matmul %215, %348, %cst_593 {dimension_numbers = #tpu.dot_dimension_numbers<[1], [0], [0], [1], [0, 0, 1, 1], [], []>} : vector<64x128xf32>, vector<128x128xf32>, vector<64x128xf32> -> vector<64x128xf32>
    %350 = arith.addf %346, %349 : vector<64x128xf32>
    %c13_594 = arith.constant 13 : index
    %c0_595 = arith.constant 0 : index
    %c0_596 = arith.constant 0 : index
    %351 = vector.load %arg4[%c13_594, %c0_595, %c0_596] : memref<16x128x128xf32, #tpu.memory_space<vmem>>, vector<1x128x128xf32>
    %352 = vector.shape_cast %351 : vector<1x128x128xf32> to vector<128x128xf32>
    %cst_597 = arith.constant dense<0.000000e+00> : vector<64x128xf32>
    %353 = tpu.matmul %217, %352, %cst_597 {dimension_numbers = #tpu.dot_dimension_numbers<[1], [0], [0], [1], [0, 0, 1, 1], [], []>} : vector<64x128xf32>, vector<128x128xf32>, vector<64x128xf32> -> vector<64x128xf32>
    %354 = arith.addf %350, %353 : vector<64x128xf32>
    %c1_598 = arith.constant 1 : index
    %c3_599 = arith.constant 3 : index
    %c0_600 = arith.constant 0 : index
    %c0_601 = arith.constant 0 : index
    %355 = vector.load %arg3[%c1_598, %c3_599, %c0_600, %c0_601] : memref<2x6x64x128xf32, #tpu.memory_space<vmem>>, vector<1x1x64x128xf32>
    %356 = vector.shape_cast %355 : vector<1x1x64x128xf32> to vector<64x128xf32>
    %357 = vector.shape_cast %354 : vector<64x128xf32> to vector<1x1x64x128xf32>
    tpu.vector_store %arg3[%c1_598, %c3_599, %c0_600, %c0_601], %357 {strides = array<i32>} : memref<2x6x64x128xf32, #tpu.memory_space<vmem>>, vector<1x1x64x128xf32>,
    %c12_602 = arith.constant 12 : index
    %c0_603 = arith.constant 0 : index
    %c0_604 = arith.constant 0 : index
    %358 = vector.load %arg4[%c12_602, %c0_603, %c0_604] : memref<16x128x128xf32, #tpu.memory_space<vmem>>, vector<1x128x128xf32>
    %359 = vector.shape_cast %358 : vector<1x128x128xf32> to vector<128x128xf32>
    %cst_605 = arith.constant dense<0.000000e+00> : vector<64x128xf32>
    %360 = tpu.matmul %213, %359, %cst_605 {dimension_numbers = #tpu.dot_dimension_numbers<[1], [0], [0], [1], [0, 0, 1, 1], [], []>} : vector<64x128xf32>, vector<128x128xf32>, vector<64x128xf32> -> vector<64x128xf32>
    %c13_606 = arith.constant 13 : index
    %c0_607 = arith.constant 0 : index
    %c0_608 = arith.constant 0 : index
    %361 = vector.load %arg4[%c13_606, %c0_607, %c0_608] : memref<16x128x128xf32, #tpu.memory_space<vmem>>, vector<1x128x128xf32>
    %362 = vector.shape_cast %361 : vector<1x128x128xf32> to vector<128x128xf32>
    %cst_609 = arith.constant dense<0.000000e+00> : vector<64x128xf32>
    %363 = tpu.matmul %215, %362, %cst_609 {dimension_numbers = #tpu.dot_dimension_numbers<[1], [0], [0], [1], [0, 0, 1, 1], [], []>} : vector<64x128xf32>, vector<128x128xf32>, vector<64x128xf32> -> vector<64x128xf32>
    %364 = arith.addf %360, %363 : vector<64x128xf32>
    %c14_610 = arith.constant 14 : index
    %c0_611 = arith.constant 0 : index
    %c0_612 = arith.constant 0 : index
    %365 = vector.load %arg4[%c14_610, %c0_611, %c0_612] : memref<16x128x128xf32, #tpu.memory_space<vmem>>, vector<1x128x128xf32>
    %366 = vector.shape_cast %365 : vector<1x128x128xf32> to vector<128x128xf32>
    %cst_613 = arith.constant dense<0.000000e+00> : vector<64x128xf32>
    %367 = tpu.matmul %217, %366, %cst_613 {dimension_numbers = #tpu.dot_dimension_numbers<[1], [0], [0], [1], [0, 0, 1, 1], [], []>} : vector<64x128xf32>, vector<128x128xf32>, vector<64x128xf32> -> vector<64x128xf32>
    %368 = arith.addf %364, %367 : vector<64x128xf32>
    %c1_614 = arith.constant 1 : index
    %c4_615 = arith.constant 4 : index
    %c0_616 = arith.constant 0 : index
    %c0_617 = arith.constant 0 : index
    %369 = vector.load %arg3[%c1_614, %c4_615, %c0_616, %c0_617] : memref<2x6x64x128xf32, #tpu.memory_space<vmem>>, vector<1x1x64x128xf32>
    %370 = vector.shape_cast %369 : vector<1x1x64x128xf32> to vector<64x128xf32>
    %371 = vector.shape_cast %368 : vector<64x128xf32> to vector<1x1x64x128xf32>
    tpu.vector_store %arg3[%c1_614, %c4_615, %c0_616, %c0_617], %371 {strides = array<i32>} : memref<2x6x64x128xf32, #tpu.memory_space<vmem>>, vector<1x1x64x128xf32>,
    %c13_618 = arith.constant 13 : index
    %c0_619 = arith.constant 0 : index
    %c0_620 = arith.constant 0 : index
    %372 = vector.load %arg4[%c13_618, %c0_619, %c0_620] : memref<16x128x128xf32, #tpu.memory_space<vmem>>, vector<1x128x128xf32>
    %373 = vector.shape_cast %372 : vector<1x128x128xf32> to vector<128x128xf32>
    %cst_621 = arith.constant dense<0.000000e+00> : vector<64x128xf32>
    %374 = tpu.matmul %213, %373, %cst_621 {dimension_numbers = #tpu.dot_dimension_numbers<[1], [0], [0], [1], [0, 0, 1, 1], [], []>} : vector<64x128xf32>, vector<128x128xf32>, vector<64x128xf32> -> vector<64x128xf32>
    %c14_622 = arith.constant 14 : index
    %c0_623 = arith.constant 0 : index
    %c0_624 = arith.constant 0 : index
    %375 = vector.load %arg4[%c14_622, %c0_623, %c0_624] : memref<16x128x128xf32, #tpu.memory_space<vmem>>, vector<1x128x128xf32>
    %376 = vector.shape_cast %375 : vector<1x128x128xf32> to vector<128x128xf32>
    %cst_625 = arith.constant dense<0.000000e+00> : vector<64x128xf32>
    %377 = tpu.matmul %215, %376, %cst_625 {dimension_numbers = #tpu.dot_dimension_numbers<[1], [0], [0], [1], [0, 0, 1, 1], [], []>} : vector<64x128xf32>, vector<128x128xf32>, vector<64x128xf32> -> vector<64x128xf32>
    %378 = arith.addf %374, %377 : vector<64x128xf32>
    %c15_626 = arith.constant 15 : index
    %c0_627 = arith.constant 0 : index
    %c0_628 = arith.constant 0 : index
    %379 = vector.load %arg4[%c15_626, %c0_627, %c0_628] : memref<16x128x128xf32, #tpu.memory_space<vmem>>, vector<1x128x128xf32>
    %380 = vector.shape_cast %379 : vector<1x128x128xf32> to vector<128x128xf32>
    %cst_629 = arith.constant dense<0.000000e+00> : vector<64x128xf32>
    %381 = tpu.matmul %217, %380, %cst_629 {dimension_numbers = #tpu.dot_dimension_numbers<[1], [0], [0], [1], [0, 0, 1, 1], [], []>} : vector<64x128xf32>, vector<128x128xf32>, vector<64x128xf32> -> vector<64x128xf32>
    %382 = arith.addf %378, %381 : vector<64x128xf32>
    %c1_630 = arith.constant 1 : index
    %c5_631 = arith.constant 5 : index
    %c0_632 = arith.constant 0 : index
    %c0_633 = arith.constant 0 : index
    %383 = vector.load %arg3[%c1_630, %c5_631, %c0_632, %c0_633] : memref<2x6x64x128xf32, #tpu.memory_space<vmem>>, vector<1x1x64x128xf32>
    %384 = vector.shape_cast %383 : vector<1x1x64x128xf32> to vector<64x128xf32>
    %385 = vector.shape_cast %382 : vector<64x128xf32> to vector<1x1x64x128xf32>
    tpu.vector_store %arg3[%c1_630, %c5_631, %c0_632, %c0_633], %385 {strides = array<i32>} : memref<2x6x64x128xf32, #tpu.memory_space<vmem>>, vector<1x1x64x128xf32>,
    return
  }
  func.func @transform_0(%arg0: i32) -> (i32, i32, i32, i32) {
    %c0_i32 = arith.constant 0 : i32
    %c0_i32_0 = arith.constant 0 : i32
    %c0_i32_1 = arith.constant 0 : i32
    %c0_i32_2 = arith.constant 0 : i32
    %c0_i32_3 = arith.constant 0 : i32
    return %c0_i32, %c0_i32_0, %c0_i32_1, %c0_i32_2 : i32, i32, i32, i32
  }
  func.func @transform_1(%arg0: i32) -> (i32, i32, i32) {
    %c0_i32 = arith.constant 0 : i32
    %c0_i32_0 = arith.constant 0 : i32
    %c0_i32_1 = arith.constant 0 : i32
    %c0_i32_2 = arith.constant 0 : i32
    return %c0_i32, %c0_i32_0, %c0_i32_1 : i32, i32, i32
  }
  func.func @transform_2(%arg0: i32) -> (i32, i32, i32, i32) {
    %c0_i32 = arith.constant 0 : i32
    %c0_i32_0 = arith.constant 0 : i32
    %c0_i32_1 = arith.constant 0 : i32
    %c0_i32_2 = arith.constant 0 : i32
    %c0_i32_3 = arith.constant 0 : i32
    return %c0_i32, %c0_i32_0, %c0_i32_1, %c0_i32_2 : i32, i32, i32, i32
  }
}

</mosaic_0001>

<llo_original>
// kernel: conv3d_pallas.1
$region0: #{conv3d_pallas.1}
  #allocation0 [shape = 'u32[]', space=smem, size = 0x4, offset = 0x4, fixed_abs, tag = 'smem constant byte address 0x4 - core index']
  #allocation1 [shape = 'u32[144,128]{1,0:T(1,128)}', space=vmem, size = 0x12000, scoped, tag = 'internal scratch']
  #allocation2 [shape = 'f32[16,128,128]{2,1,0:T(8,128)}', space=vmem, size = 0x100000, scoped, tag = 'scratch operand']
  %s0 = inlined_call_operand.vmem [shape: f32[2,8,3,256], index: 0, kind: input, shape index: {}]
  %s1 = inlined_call_operand.vmem [shape: f32[3,64,128], index: 1, kind: input, shape index: {}]
  %s2 = inlined_call_operand.vmem [shape: f32[2,6,64,128], index: 2, kind: output, shape index: {}]
  %s3 = sld [smem:[#allocation0]]
  $region18: #{conv3d_pallas.1} parent=0
    _
  %s5 = ssub.s32 1, %s3
  %s6 = scalar_select 0, %s5, %s3
  // Predicated region
  $region2: #{conv3d_pallas.1} parent=0 // pred_check
    _
  $region3: #{conv3d_pallas.1} parent=0 // pred_check_branch
    %8 = sbr.rel (0) target = $region5
  $region4: #{conv3d_pallas.1} parent=0 // pred_region
    _
  $region5: #{conv3d_pallas.1} parent=0 // pred_fallthru
    _
  // Predicated region
  $region6: #{conv3d_pallas.1} parent=0 // pred_check
    _
  $region7: #{conv3d_pallas.1} parent=0 // pred_check_branch
    %10 = sbr.rel (0) target = $region9
  $region8: #{conv3d_pallas.1} parent=0 // pred_region
    _
  $region9: #{conv3d_pallas.1} parent=0 // pred_fallthru
    _
  %11 = vst [vmem:[#allocation2 + $0x69] sm:$0xff] 0.0
  %12 = vst [vmem:[#allocation2 + $0x71] sm:$0xff] 0.0
  %13 = vst [vmem:[#allocation2 + $0x79] sm:$0x7f] 0.0
  %14 = vst [vmem:[#allocation2 + $0xe9] sm:$0xff] 0.0
  %15 = vst [vmem:[#allocation2 + $0xf1] sm:$0xff] 0.0
  %16 = vst [vmem:[#allocation2 + $0xf9] sm:$0x7f] 0.0
  %17 = vst [vmem:[#allocation2 + $0x169] sm:$0xff] 0.0
  %18 = vst [vmem:[#allocation2 + $0x171] sm:$0xff] 0.0
  %19 = vst [vmem:[#allocation2 + $0x179] sm:$0x7f] 0.0
  %20 = vst [vmem:[#allocation2 + $0x1e9] sm:$0xff] 0.0
  %21 = vst [vmem:[#allocation2 + $0x1f1] sm:$0xff] 0.0
  %22 = vst [vmem:[#allocation2 + $0x1f9] sm:$0x7f] 0.0
  %23 = vst [vmem:[#allocation2 + $0x269] sm:$0xff] 0.0
  %24 = vst [vmem:[#allocation2 + $0x271] sm:$0xff] 0.0
  %25 = vst [vmem:[#allocation2 + $0x279] sm:$0x7f] 0.0
  %26 = vst [vmem:[#allocation2 + $0x2e9] sm:$0xff] 0.0
  %27 = vst [vmem:[#allocation2 + $0x2f1] sm:$0xff] 0.0
  %28 = vst [vmem:[#allocation2 + $0x2f9] sm:$0x7f] 0.0
  %29 = vst [vmem:[#allocation2 + $0x369] sm:$0xff] 0.0
  %30 = vst [vmem:[#allocation2 + $0x371] sm:$0xff] 0.0
  %31 = vst [vmem:[#allocation2 + $0x379] sm:$0x7f] 0.0
  %32 = vst [vmem:[#allocation2 + $0x3e9] sm:$0xff] 0.0
  %33 = vst [vmem:[#allocation2 + $0x3f1] sm:$0xff] 0.0
  %34 = vst [vmem:[#allocation2 + $0x3f9] sm:$0x7f] 0.0
  %35 = vst [vmem:[#allocation2 + $0x469] sm:$0xff] 0.0
  %36 = vst [vmem:[#allocation2 + $0x471] sm:$0xff] 0.0
  %37 = vst [vmem:[#allocation2 + $0x479] sm:$0x7f] 0.0
  %38 = vst [vmem:[#allocation2 + $0x4e9] sm:$0xff] 0.0
  %39 = vst [vmem:[#allocation2 + $0x4f1] sm:$0xff] 0.0
  %40 = vst [vmem:[#allocation2 + $0x4f9] sm:$0x7f] 0.0
  %41 = vst [vmem:[#allocation2 + $0x569] sm:$0xff] 0.0
  %42 = vst [vmem:[#allocation2 + $0x571] sm:$0xff] 0.0
  %43 = vst [vmem:[#allocation2 + $0x579] sm:$0x7f] 0.0
  %44 = vst [vmem:[#allocation2 + $0x5e9] sm:$0xff] 0.0
  %45 = vst [vmem:[#allocation2 + $0x5f1] sm:$0xff] 0.0
  %46 = vst [vmem:[#allocation2 + $0x5f9] sm:$0x7f] 0.0
  %47 = vst [vmem:[#allocation2 + $0x669] sm:$0xff] 0.0
  %48 = vst [vmem:[#allocation2 + $0x671] sm:$0xff] 0.0
  %49 = vst [vmem:[#allocation2 + $0x679] sm:$0x7f] 0.0
  %50 = vst [vmem:[#allocation2 + $0x6e9] sm:$0xff] 0.0
  %51 = vst [vmem:[#allocation2 + $0x6f1] sm:$0xff] 0.0
  %52 = vst [vmem:[#allocation2 + $0x6f9] sm:$0x7f] 0.0
  %53 = vst [vmem:[#allocation2 + $0x769] sm:$0xff] 0.0
  %54 = vst [vmem:[#allocation2 + $0x771] sm:$0xff] 0.0
  %55 = vst [vmem:[#allocation2 + $0x779] sm:$0x7f] 0.0
  %56 = vst [vmem:[#allocation2 + $0x7e9] sm:$0xff] 0.0
  %57 = vst [vmem:[#allocation2 + $0x7f1] sm:$0xff] 0.0
  %58 = vst [vmem:[#allocation2 + $0x7f9] sm:$0x7f] 0.0
  %v59 = vld [vmem:[%s0] sm:$0x7]
  %v60 = vld [vmem:[%s0 + $0x8] sm:$0x7]
  %v61 = vld [vmem:[%s0 + $0x10] sm:$0x7]
  %v62 = vld [vmem:[%s0 + $0x18] sm:$0x7]
  %v63 = vld [vmem:[%s0 + $0x20] sm:$0x7]
  %v64 = vld [vmem:[%s0 + $0x28] sm:$0x7]
  %v65 = vld [vmem:[%s0 + $0x30] sm:$0x7]
  %v66 = vld [vmem:[%s0 + $0x38] sm:$0x7]
  %67 = vst [vmem:[#allocation2] sm:$0x7] %v59
  %68 = vst [vmem:[#allocation2 + $0x80] sm:$0x7] %v60
  %69 = vst [vmem:[#allocation2 + $0x100] sm:$0x7] %v61
  %70 = vst [vmem:[#allocation2 + $0x180] sm:$0x7] %v62
  %71 = vst [vmem:[#allocation2 + $0x200] sm:$0x7] %v63
  %72 = vst [vmem:[#allocation2 + $0x280] sm:$0x7] %v64
  %73 = vst [vmem:[#allocation2 + $0x300] sm:$0x7] %v65
  %74 = vst [vmem:[#allocation2 + $0x380] sm:$0x7] %v66
  %v75 = vld [vmem:[%s0] sm:$0x77]
  %v76 = vld [vmem:[%s0 + $0x8] sm:$0x77]
  %v77 = vld [vmem:[%s0 + $0x10] sm:$0x77]
  %v78 = vld [vmem:[%s0 + $0x18] sm:$0x77]
  %v79 = vld [vmem:[%s0 + $0x20] sm:$0x77]
  %v80 = vld [vmem:[%s0 + $0x28] sm:$0x77]
  %v81 = vld [vmem:[%s0 + $0x30] sm:$0x77]
  %v82 = vld [vmem:[%s0 + $0x38] sm:$0x77]
  %v91 = vcombine.high %v75, %v75
  %v92 = vcombine.high %v76, %v76
  %v93 = vcombine.high %v77, %v77
  %v94 = vcombine.high %v78, %v78
  %v95 = vcombine.high %v79, %v79
  %v96 = vcombine.high %v80, %v80
  %v97 = vcombine.high %v81, %v81
  %v98 = vcombine.high %v82, %v82
  %99 = vrot.lane.b32.xlu0 %v75, 127
  %v100 = vpop.permute.xlu0 %99
  %101 = vrot.lane.b32.xlu0 %v91, 127
  %v102 = vpop.permute.xlu0 %101
  %103 = vrot.lane.b32.xlu0 %v76, 127
  %v104 = vpop.permute.xlu0 %103
  %105 = vrot.lane.b32.xlu0 %v92, 127
  %v106 = vpop.permute.xlu0 %105
  %107 = vrot.lane.b32.xlu0 %v77, 127
  %v108 = vpop.permute.xlu0 %107
  %109 = vrot.lane.b32.xlu0 %v93, 127
  %v110 = vpop.permute.xlu0 %109
  %111 = vrot.lane.b32.xlu0 %v78, 127
  %v112 = vpop.permute.xlu0 %111
  %113 = vrot.lane.b32.xlu0 %v94, 127
  %v114 = vpop.permute.xlu0 %113
  %115 = vrot.lane.b32.xlu0 %v79, 127
  %v116 = vpop.permute.xlu0 %115
  %117 = vrot.lane.b32.xlu0 %v95, 127
  %v118 = vpop.permute.xlu0 %117
  %119 = vrot.lane.b32.xlu0 %v80, 127
  %v120 = vpop.permute.xlu0 %119
  %121 = vrot.lane.b32.xlu0 %v96, 127
  %v122 = vpop.permute.xlu0 %121
  %123 = vrot.lane.b32.xlu0 %v81, 127
  %v124 = vpop.permute.xlu0 %123
  %125 = vrot.lane.b32.xlu0 %v97, 127
  %v126 = vpop.permute.xlu0 %125
  %127 = vrot.lane.b32.xlu0 %v82, 127
  %v128 = vpop.permute.xlu0 %127
  %129 = vrot.lane.b32.xlu0 %v98, 127
  %v130 = vpop.permute.xlu0 %129
  %vm131 = vcmask 1039360
  %v132 = vsel %vm131, %v100, %v102
  %v133 = vsel %vm131, %v104, %v106
  %v134 = vsel %vm131, %v108, %v110
  %v135 = vsel %vm131, %v112, %v114
  %v136 = vsel %vm131, %v116, %v118
  %v137 = vsel %vm131, %v120, %v122
  %v138 = vsel %vm131, %v124, %v126
  %v139 = vsel %vm131, %v128, %v130
  %148 = vst [vmem:[#allocation2 + $0x3] sm:$0x7] %v132
  %149 = vst [vmem:[#allocation2 + $0x83] sm:$0x7] %v133
  %150 = vst [vmem:[#allocation2 + $0x103] sm:$0x7] %v134
  %151 = vst [vmem:[#allocation2 + $0x183] sm:$0x7] %v135
  %152 = vst [vmem:[#allocation2 + $0x203] sm:$0x7] %v136
  %153 = vst [vmem:[#allocation2 + $0x283] sm:$0x7] %v137
  %154 = vst [vmem:[#allocation2 + $0x303] sm:$0x7] %v138
  %155 = vst [vmem:[#allocation2 + $0x383] sm:$0x7] %v139
  %v156 = vld [vmem:[%s0] sm:$0x77]
  %v157 = vld [vmem:[%s0 + $0x8] sm:$0x77]
  %v158 = vld [vmem:[%s0 + $0x10] sm:$0x77]
  %v159 = vld [vmem:[%s0 + $0x18] sm:$0x77]
  %v160 = vld [vmem:[%s0 + $0x20] sm:$0x77]
  %v161 = vld [vmem:[%s0 + $0x28] sm:$0x77]
  %v162 = vld [vmem:[%s0 + $0x30] sm:$0x77]
  %v163 = vld [vmem:[%s0 + $0x38] sm:$0x77]
  %v172 = vcombine.high %v156, %v156
  %v173 = vcombine.high %v157, %v157
  %v174 = vcombine.high %v158, %v158
  %v175 = vcombine.high %v159, %v159
  %v176 = vcombine.high %v160, %v160
  %v177 = vcombine.high %v161, %v161
  %v178 = vcombine.high %v162, %v162
  %v179 = vcombine.high %v163, %v163
  %180 = vrot.lane.b32.xlu0 %v156, 126
  %v181 = vpop.permute.xlu0 %180
  %182 = vrot.lane.b32.xlu0 %v172, 126
  %v183 = vpop.permute.xlu0 %182
  %184 = vrot.lane.b32.xlu0 %v157, 126
  %v185 = vpop.permute.xlu0 %184
  %186 = vrot.lane.b32.xlu0 %v173, 126
  %v187 = vpop.permute.xlu0 %186
  %188 = vrot.lane.b32.xlu0 %v158, 126
  %v189 = vpop.permute.xlu0 %188
  %190 = vrot.lane.b32.xlu0 %v174, 126
  %v191 = vpop.permute.xlu0 %190
  %192 = vrot.lane.b32.xlu0 %v159, 126
  %v193 = vpop.permute.xlu0 %192
  %194 = vrot.lane.b32.xlu0 %v175, 126
  %v195 = vpop.permute.xlu0 %194
  %196 = vrot.lane.b32.xlu0 %v160, 126
  %v197 = vpop.permute.xlu0 %196
  %198 = vrot.lane.b32.xlu0 %v176, 126
  %v199 = vpop.permute.xlu0 %198
  %200 = vrot.lane.b32.xlu0 %v161, 126
  %v201 = vpop.permute.xlu0 %200
  %202 = vrot.lane.b32.xlu0 %v177, 126
  %v203 = vpop.permute.xlu0 %202
  %204 = vrot.lane.b32.xlu0 %v162, 126
  %v205 = vpop.permute.xlu0 %204
  %206 = vrot.lane.b32.xlu0 %v178, 126
  %v207 = vpop.permute.xlu0 %206
  %208 = vrot.lane.b32.xlu0 %v163, 126
  %v209 = vpop.permute.xlu0 %208
  %210 = vrot.lane.b32.xlu0 %v179, 126
  %v211 = vpop.permute.xlu0 %210
  %vm212 = vcmask 1031168
  %v213 = vsel %vm212, %v181, %v183
  %v214 = vsel %vm212, %v185, %v187
  %v215 = vsel %vm212, %v189, %v191
  %v216 = vsel %vm212, %v193, %v195
  %v217 = vsel %vm212, %v197, %v199
  %v218 = vsel %vm212, %v201, %v203
  %v219 = vsel %vm212, %v205, %v207
  %v220 = vsel %vm212, %v209, %v211
  %229 = vst [vmem:[#allocation2 + $0x6] sm:$0x7] %v213
  %230 = vst [vmem:[#allocation2 + $0x86] sm:$0x7] %v214
  %231 = vst [vmem:[#allocation2 + $0x106] sm:$0x7] %v215
  %232 = vst [vmem:[#allocation2 + $0x186] sm:$0x7] %v216
  %233 = vst [vmem:[#allocation2 + $0x206] sm:$0x7] %v217
  %234 = vst [vmem:[#allocation2 + $0x286] sm:$0x7] %v218
  %235 = vst [vmem:[#allocation2 + $0x306] sm:$0x7] %v219
  %236 = vst [vmem:[#allocation2 + $0x386] sm:$0x7] %v220
  %v237 = vld [vmem:[%s0] sm:$0x77]
  %v238 = vld [vmem:[%s0 + $0x8] sm:$0x77]
  %v239 = vld [vmem:[%s0 + $0x10] sm:$0x77]
  %v240 = vld [vmem:[%s0 + $0x18] sm:$0x77]
  %v241 = vld [vmem:[%s0 + $0x20] sm:$0x77]
  %v242 = vld [vmem:[%s0 + $0x28] sm:$0x77]
  %v243 = vld [vmem:[%s0 + $0x30] sm:$0x77]
  %v244 = vld [vmem:[%s0 + $0x38] sm:$0x77]
  %v253 = vcombine.high %v237, %v237
  %v254 = vcombine.high %v238, %v238
  %v255 = vcombine.high %v239, %v239
  %v256 = vcombine.high %v240, %v240
  %v257 = vcombine.high %v241, %v241
  %v258 = vcombine.high %v242, %v242
  %v259 = vcombine.high %v243, %v243
  %v260 = vcombine.high %v244, %v244
  %261 = vrot.lane.b32.xlu0 %v237, 125
  %v262 = vpop.permute.xlu0 %261
  %263 = vrot.lane.b32.xlu0 %v253, 125
  %v264 = vpop.permute.xlu0 %263
  %265 = vrot.lane.b32.xlu0 %v238, 125
  %v266 = vpop.permute.xlu0 %265
  %267 = vrot.lane.b32.xlu0 %v254, 125
  %v268 = vpop.permute.xlu0 %267
  %269 = vrot.lane.b32.xlu0 %v239, 125
  %v270 = vpop.permute.xlu0 %269
  %271 = vrot.lane.b32.xlu0 %v255, 125
  %v272 = vpop.permute.xlu0 %271
  %273 = vrot.lane.b32.xlu0 %v240, 125
  %v274 = vpop.permute.xlu0 %273
  %275 = vrot.lane.b32.xlu0 %v256, 125
  %v276 = vpop.permute.xlu0 %275
  %277 = vrot.lane.b32.xlu0 %v241, 125
  %v278 = vpop.permute.xlu0 %277
  %279 = vrot.lane.b32.xlu0 %v257, 125
  %v280 = vpop.permute.xlu0 %279
  %281 = vrot.lane.b32.xlu0 %v242, 125
  %v282 = vpop.permute.xlu0 %281
  %283 = vrot.lane.b32.xlu0 %v258, 125
  %v284 = vpop.permute.xlu0 %283
  %285 = vrot.lane.b32.xlu0 %v243, 125
  %v286 = vpop.permute.xlu0 %285
  %287 = vrot.lane.b32.xlu0 %v259, 125
  %v288 = vpop.permute.xlu0 %287
  %289 = vrot.lane.b32.xlu0 %v244, 125
  %v290 = vpop.permute.xlu0 %289
  %291 = vrot.lane.b32.xlu0 %v260, 125
  %v292 = vpop.permute.xlu0 %291
  %vm293 = vcmask 1022976
  %v294 = vsel %vm293, %v262, %v264
  %v295 = vsel %vm293, %v266, %v268
  %v296 = vsel %vm293, %v270, %v272
  %v297 = vsel %vm293, %v274, %v276
  %v298 = vsel %vm293, %v278, %v280
  %v299 = vsel %vm293, %v282, %v284
  %v300 = vsel %vm293, %v286, %v288
  %v301 = vsel %vm293, %v290, %v292
  %310 = vst [vmem:[#allocation2 + $0x9] sm:$0x7] %v294
  %311 = vst [vmem:[#allocation2 + $0x89] sm:$0x7] %v295
  %312 = vst [vmem:[#allocation2 + $0x109] sm:$0x7] %v296
  %313 = vst [vmem:[#allocation2 + $0x189] sm:$0x7] %v297
  %314 = vst [vmem:[#allocation2 + $0x209] sm:$0x7] %v298
  %315 = vst [vmem:[#allocation2 + $0x289] sm:$0x7] %v299
  %316 = vst [vmem:[#allocation2 + $0x309] sm:$0x7] %v300
  %317 = vst [vmem:[#allocation2 + $0x389] sm:$0x7] %v301
  %v318 = vld [vmem:[%s0] sm:$0x77]
  %v319 = vld [vmem:[%s0 + $0x8] sm:$0x77]
  %v320 = vld [vmem:[%s0 + $0x10] sm:$0x77]
  %v321 = vld [vmem:[%s0 + $0x18] sm:$0x77]
  %v322 = vld [vmem:[%s0 + $0x20] sm:$0x77]
  %v323 = vld [vmem:[%s0 + $0x28] sm:$0x77]
  %v324 = vld [vmem:[%s0 + $0x30] sm:$0x77]
  %v325 = vld [vmem:[%s0 + $0x38] sm:$0x77]
  %v334 = vcombine.high %v318, %v318
  %v335 = vcombine.high %v319, %v319
  %v336 = vcombine.high %v320, %v320
  %v337 = vcombine.high %v321, %v321
  %v338 = vcombine.high %v322, %v322
  %v339 = vcombine.high %v323, %v323
  %v340 = vcombine.high %v324, %v324
  %v341 = vcombine.high %v325, %v325
  %342 = vrot.lane.b32.xlu0 %v318, 124
  %v343 = vpop.permute.xlu0 %342
  %344 = vrot.lane.b32.xlu0 %v334, 124
  %v345 = vpop.permute.xlu0 %344
  %346 = vrot.lane.b32.xlu0 %v319, 124
  %v347 = vpop.permute.xlu0 %346
  %348 = vrot.lane.b32.xlu0 %v335, 124
  %v349 = vpop.permute.xlu0 %348
  %350 = vrot.lane.b32.xlu0 %v320, 124
  %v351 = vpop.permute.xlu0 %350
  %352 = vrot.lane.b32.xlu0 %v336, 124
  %v353 = vpop.permute.xlu0 %352
  %354 = vrot.lane.b32.xlu0 %v321, 124
  %v355 = vpop.permute.xlu0 %354
  %356 = vrot.lane.b32.xlu0 %v337, 124
  %v357 = vpop.permute.xlu0 %356
  %358 = vrot.lane.b32.xlu0 %v322, 124
  %v359 = vpop.permute.xlu0 %358
  %360 = vrot.lane.b32.xlu0 %v338, 124
  %v361 = vpop.permute.xlu0 %360
  %362 = vrot.lane.b32.xlu0 %v323, 124
  %v363 = vpop.permute.xlu0 %362
  %364 = vrot.lane.b32.xlu0 %v339, 124
  %v365 = vpop.permute.xlu0 %364
  %366 = vrot.lane.b32.xlu0 %v324, 124
  %v367 = vpop.permute.xlu0 %366
  %368 = vrot.lane.b32.xlu0 %v340, 124
  %v369 = vpop.permute.xlu0 %368
  %370 = vrot.lane.b32.xlu0 %v325, 124
  %v371 = vpop.permute.xlu0 %370
  %372 = vrot.lane.b32.xlu0 %v341, 124
  %v373 = vpop.permute.xlu0 %372
  %vm374 = vcmask 1014784
  %v375 = vsel %vm374, %v343, %v345
  %v376 = vsel %vm374, %v347, %v349
  %v377 = vsel %vm374, %v351, %v353
  %v378 = vsel %vm374, %v355, %v357
  %v379 = vsel %vm374, %v359, %v361
  %v380 = vsel %vm374, %v363, %v365
  %v381 = vsel %vm374, %v367, %v369
  %v382 = vsel %vm374, %v371, %v373
  %391 = vst [vmem:[#allocation2 + $0xc] sm:$0x7] %v375
  %392 = vst [vmem:[#allocation2 + $0x8c] sm:$0x7] %v376
  %393 = vst [vmem:[#allocation2 + $0x10c] sm:$0x7] %v377
  %394 = vst [vmem:[#allocation2 + $0x18c] sm:$0x7] %v378
  %395 = vst [vmem:[#allocation2 + $0x20c] sm:$0x7] %v379
  %396 = vst [vmem:[#allocation2 + $0x28c] sm:$0x7] %v380
  %397 = vst [vmem:[#allocation2 + $0x30c] sm:$0x7] %v381
  %398 = vst [vmem:[#allocation2 + $0x38c] sm:$0x7] %v382
  %v399 = vld [vmem:[%s0] sm:$0x77]
  %v400 = vld [vmem:[%s0 + $0x8] sm:$0x77]
  %v401 = vld [vmem:[%s0 + $0x10] sm:$0x77]
  %v402 = vld [vmem:[%s0 + $0x18] sm:$0x77]
  %v403 = vld [vmem:[%s0 + $0x20] sm:$0x77]
  %v404 = vld [vmem:[%s0 + $0x28] sm:$0x77]
  %v405 = vld [vmem:[%s0 + $0x30] sm:$0x77]
  %v406 = vld [vmem:[%s0 + $0x38] sm:$0x77]
  %v415 = vcombine.high %v399, %v399
  %v416 = vcombine.high %v400, %v400
  %v417 = vcombine.high %v401, %v401
  %v418 = vcombine.high %v402, %v402
  %v419 = vcombine.high %v403, %v403
  %v420 = vcombine.high %v404, %v404
  %v421 = vcombine.high %v405, %v405
  %v422 = vcombine.high %v406, %v406
  %423 = vrot.lane.b32.xlu0 %v399, 123
  %v424 = vpop.permute.xlu0 %423
  %425 = vrot.lane.b32.xlu0 %v415, 123
  %v426 = vpop.permute.xlu0 %425
  %427 = vrot.lane.b32.xlu0 %v400, 123
  %v428 = vpop.permute.xlu0 %427
  %429 = vrot.lane.b32.xlu0 %v416, 123
  %v430 = vpop.permute.xlu0 %429
  %431 = vrot.lane.b32.xlu0 %v401, 123
  %v432 = vpop.permute.xlu0 %431
  %433 = vrot.lane.b32.xlu0 %v417, 123
  %v434 = vpop.permute.xlu0 %433
  %435 = vrot.lane.b32.xlu0 %v402, 123
  %v436 = vpop.permute.xlu0 %435
  %437 = vrot.lane.b32.xlu0 %v418, 123
  %v438 = vpop.permute.xlu0 %437
  %439 = vrot.lane.b32.xlu0 %v403, 123
  %v440 = vpop.permute.xlu0 %439
  %441 = vrot.lane.b32.xlu0 %v419, 123
  %v442 = vpop.permute.xlu0 %441
  %443 = vrot.lane.b32.xlu0 %v404, 123
  %v444 = vpop.permute.xlu0 %443
  %445 = vrot.lane.b32.xlu0 %v420, 123
  %v446 = vpop.permute.xlu0 %445
  %447 = vrot.lane.b32.xlu0 %v405, 123
  %v448 = vpop.permute.xlu0 %447
  %449 = vrot.lane.b32.xlu0 %v421, 123
  %v450 = vpop.permute.xlu0 %449
  %451 = vrot.lane.b32.xlu0 %v406, 123
  %v452 = vpop.permute.xlu0 %451
  %453 = vrot.lane.b32.xlu0 %v422, 123
  %v454 = vpop.permute.xlu0 %453
  %vm455 = vcmask 1006592
  %v456 = vsel %vm455, %v424, %v426
  %v457 = vsel %vm455, %v428, %v430
  %v458 = vsel %vm455, %v432, %v434
  %v459 = vsel %vm455, %v436, %v438
  %v460 = vsel %vm455, %v440, %v442
  %v461 = vsel %vm455, %v444, %v446
  %v462 = vsel %vm455, %v448, %v450
  %v463 = vsel %vm455, %v452, %v454
  %472 = vst [vmem:[#allocation2 + $0xf] sm:$0x7] %v456
  %473 = vst [vmem:[#allocation2 + $0x8f] sm:$0x7] %v457
  %474 = vst [vmem:[#allocation2 + $0x10f] sm:$0x7] %v458
  %475 = vst [vmem:[#allocation2 + $0x18f] sm:$0x7] %v459
  %476 = vst [vmem:[#allocation2 + $0x20f] sm:$0x7] %v460
  %477 = vst [vmem:[#allocation2 + $0x28f] sm:$0x7] %v461
  %478 = vst [vmem:[#allocation2 + $0x30f] sm:$0x7] %v462
  %479 = vst [vmem:[#allocation2 + $0x38f] sm:$0x7] %v463
  %v480 = vld [vmem:[%s0] sm:$0x77]
  %v481 = vld [vmem:[%s0 + $0x8] sm:$0x77]
  %v482 = vld [vmem:[%s0 + $0x10] sm:$0x77]
  %v483 = vld [vmem:[%s0 + $0x18] sm:$0x77]
  %v484 = vld [vmem:[%s0 + $0x20] sm:$0x77]
  %v485 = vld [vmem:[%s0 + $0x28] sm:$0x77]
  %v486 = vld [vmem:[%s0 + $0x30] sm:$0x77]
  %v487 = vld [vmem:[%s0 + $0x38] sm:$0x77]
  %v496 = vcombine.high %v480, %v480
  %v497 = vcombine.high %v481, %v481
  %v498 = vcombine.high %v482, %v482
  %v499 = vcombine.high %v483, %v483
  %v500 = vcombine.high %v484, %v484
  %v501 = vcombine.high %v485, %v485
  %v502 = vcombine.high %v486, %v486
  %v503 = vcombine.high %v487, %v487
  %504 = vrot.lane.b32.xlu0 %v480, 122
  %v505 = vpop.permute.xlu0 %504
  %506 = vrot.lane.b32.xlu0 %v496, 122
  %v507 = vpop.permute.xlu0 %506
  %508 = vrot.lane.b32.xlu0 %v481, 122
  %v509 = vpop.permute.xlu0 %508
  %510 = vrot.lane.b32.xlu0 %v497, 122
  %v511 = vpop.permute.xlu0 %510
  %512 = vrot.lane.b32.xlu0 %v482, 122
  %v513 = vpop.permute.xlu0 %512
  %514 = vrot.lane.b32.xlu0 %v498, 122
  %v515 = vpop.permute.xlu0 %514
  %516 = vrot.lane.b32.xlu0 %v483, 122
  %v517 = vpop.permute.xlu0 %516
  %518 = vrot.lane.b32.xlu0 %v499, 122
  %v519 = vpop.permute.xlu0 %518
  %520 = vrot.lane.b32.xlu0 %v484, 122
  %v521 = vpop.permute.xlu0 %520
  %522 = vrot.lane.b32.xlu0 %v500, 122
  %v523 = vpop.permute.xlu0 %522
  %524 = vrot.lane.b32.xlu0 %v485, 122
  %v525 = vpop.permute.xlu0 %524
  %526 = vrot.lane.b32.xlu0 %v501, 122
  %v527 = vpop.permute.xlu0 %526
  %528 = vrot.lane.b32.xlu0 %v486, 122
  %v529 = vpop.permute.xlu0 %528
  %530 = vrot.lane.b32.xlu0 %v502, 122
  %v531 = vpop.permute.xlu0 %530
  %532 = vrot.lane.b32.xlu0 %v487, 122
  %v533 = vpop.permute.xlu0 %532
  %534 = vrot.lane.b32.xlu0 %v503, 122
  %v535 = vpop.permute.xlu0 %534
  %vm536 = vcmask 998400
  %v537 = vsel %vm536, %v505, %v507
  %v538 = vsel %vm536, %v509, %v511
  %v539 = vsel %vm536, %v513, %v515
  %v540 = vsel %vm536, %v517, %v519
  %v541 = vsel %vm536, %v521, %v523
  %v542 = vsel %vm536, %v525, %v527
  %v543 = vsel %vm536, %v529, %v531
  %v544 = vsel %vm536, %v533, %v535
  %553 = vst [vmem:[#allocation2 + $0x12] sm:$0x7] %v537
  %554 = vst [vmem:[#allocation2 + $0x92] sm:$0x7] %v538
  %555 = vst [vmem:[#allocation2 + $0x112] sm:$0x7] %v539
  %556 = vst [vmem:[#allocation2 + $0x192] sm:$0x7] %v540
  %557 = vst [vmem:[#allocation2 + $0x212] sm:$0x7] %v541
  %558 = vst [vmem:[#allocation2 + $0x292] sm:$0x7] %v542
  %559 = vst [vmem:[#allocation2 + $0x312] sm:$0x7] %v543
  %560 = vst [vmem:[#allocation2 + $0x392] sm:$0x7] %v544
  %v561 = vld [vmem:[%s0] sm:$0x77]
  %v562 = vld [vmem:[%s0 + $0x8] sm:$0x77]
  %v563 = vld [vmem:[%s0 + $0x10] sm:$0x77]
  %v564 = vld [vmem:[%s0 + $0x18] sm:$0x77]
  %v565 = vld [vmem:[%s0 + $0x20] sm:$0x77]
  %v566 = vld [vmem:[%s0 + $0x28] sm:$0x77]
  %v567 = vld [vmem:[%s0 + $0x30] sm:$0x77]
  %v568 = vld [vmem:[%s0 + $0x38] sm:$0x77]
  %v577 = vcombine.high %v561, %v561
  %v578 = vcombine.high %v562, %v562
  %v579 = vcombine.high %v563, %v563
  %v580 = vcombine.high %v564, %v564
  %v581 = vcombine.high %v565, %v565
  %v582 = vcombine.high %v566, %v566
  %v583 = vcombine.high %v567, %v567
  %v584 = vcombine.high %v568, %v568
  %585 = vrot.lane.b32.xlu0 %v561, 116
  %v586 = vpop.permute.xlu0 %585
  %587 = vrot.lane.b32.xlu0 %v577, 116
  %v588 = vpop.permute.xlu0 %587
  %589 = vrot.lane.b32.xlu0 %v562, 116
  %v590 = vpop.permute.xlu0 %589
  %591 = vrot.lane.b32.xlu0 %v578, 116
  %v592 = vpop.permute.xlu0 %591
  %593 = vrot.lane.b32.xlu0 %v563, 116
  %v594 = vpop.permute.xlu0 %593
  %595 = vrot.lane.b32.xlu0 %v579, 116
  %v596 = vpop.permute.xlu0 %595
  %597 = vrot.lane.b32.xlu0 %v564, 116
  %v598 = vpop.permute.xlu0 %597
  %599 = vrot.lane.b32.xlu0 %v580, 116
  %v600 = vpop.permute.xlu0 %599
  %601 = vrot.lane.b32.xlu0 %v565, 116
  %v602 = vpop.permute.xlu0 %601
  %603 = vrot.lane.b32.xlu0 %v581, 116
  %v604 = vpop.permute.xlu0 %603
  %605 = vrot.lane.b32.xlu0 %v566, 116
  %v606 = vpop.permute.xlu0 %605
  %607 = vrot.lane.b32.xlu0 %v582, 116
  %v608 = vpop.permute.xlu0 %607
  %609 = vrot.lane.b32.xlu0 %v567, 116
  %v610 = vpop.permute.xlu0 %609
  %611 = vrot.lane.b32.xlu0 %v583, 116
  %v612 = vpop.permute.xlu0 %611
  %613 = vrot.lane.b32.xlu0 %v568, 116
  %v614 = vpop.permute.xlu0 %613
  %615 = vrot.lane.b32.xlu0 %v584, 116
  %v616 = vpop.permute.xlu0 %615
  %vm617 = vcmask 949248
  %v618 = vsel %vm617, %v586, %v588
  %v619 = vsel %vm617, %v590, %v592
  %v620 = vsel %vm617, %v594, %v596
  %v621 = vsel %vm617, %v598, %v600
  %v622 = vsel %vm617, %v602, %v604
  %v623 = vsel %vm617, %v606, %v608
  %v624 = vsel %vm617, %v610, %v612
  %v625 = vsel %vm617, %v614, %v616
  %634 = vst [vmem:[#allocation2 + $0x15] sm:$0x7] %v618
  %635 = vst [vmem:[#allocation2 + $0x95] sm:$0x7] %v619
  %636 = vst [vmem:[#allocation2 + $0x115] sm:$0x7] %v620
  %637 = vst [vmem:[#allocation2 + $0x195] sm:$0x7] %v621
  %638 = vst [vmem:[#allocation2 + $0x215] sm:$0x7] %v622
  %639 = vst [vmem:[#allocation2 + $0x295] sm:$0x7] %v623
  %640 = vst [vmem:[#allocation2 + $0x315] sm:$0x7] %v624
  %641 = vst [vmem:[#allocation2 + $0x395] sm:$0x7] %v625
  %v642 = vld [vmem:[%s0] sm:$0x77]
  %v643 = vld [vmem:[%s0 + $0x8] sm:$0x77]
  %v644 = vld [vmem:[%s0 + $0x10] sm:$0x77]
  %v645 = vld [vmem:[%s0 + $0x18] sm:$0x77]
  %v646 = vld [vmem:[%s0 + $0x20] sm:$0x77]
  %v647 = vld [vmem:[%s0 + $0x28] sm:$0x77]
  %v648 = vld [vmem:[%s0 + $0x30] sm:$0x77]
  %v649 = vld [vmem:[%s0 + $0x38] sm:$0x77]
  %v658 = vcombine.high %v642, %v642
  %v659 = vcombine.high %v643, %v643
  %v660 = vcombine.high %v644, %v644
  %v661 = vcombine.high %v645, %v645
  %v662 = vcombine.high %v646, %v646
  %v663 = vcombine.high %v647, %v647
  %v664 = vcombine.high %v648, %v648
  %v665 = vcombine.high %v649, %v649
  %666 = vrot.lane.b32.xlu0 %v642, 115
  %v667 = vpop.permute.xlu0 %666
  %668 = vrot.lane.b32.xlu0 %v658, 115
  %v669 = vpop.permute.xlu0 %668
  %670 = vrot.lane.b32.xlu0 %v643, 115
  %v671 = vpop.permute.xlu0 %670
  %672 = vrot.lane.b32.xlu0 %v659, 115
  %v673 = vpop.permute.xlu0 %672
  %674 = vrot.lane.b32.xlu0 %v644, 115
  %v675 = vpop.permute.xlu0 %674
  %676 = vrot.lane.b32.xlu0 %v660, 115
  %v677 = vpop.permute.xlu0 %676
  %678 = vrot.lane.b32.xlu0 %v645, 115
  %v679 = vpop.permute.xlu0 %678
  %680 = vrot.lane.b32.xlu0 %v661, 115
  %v681 = vpop.permute.xlu0 %680
  %682 = vrot.lane.b32.xlu0 %v646, 115
  %v683 = vpop.permute.xlu0 %682
  %684 = vrot.lane.b32.xlu0 %v662, 115
  %v685 = vpop.permute.xlu0 %684
  %686 = vrot.lane.b32.xlu0 %v647, 115
  %v687 = vpop.permute.xlu0 %686
  %688 = vrot.lane.b32.xlu0 %v663, 115
  %v689 = vpop.permute.xlu0 %688
  %690 = vrot.lane.b32.xlu0 %v648, 115
  %v691 = vpop.permute.xlu0 %690
  %692 = vrot.lane.b32.xlu0 %v664, 115
  %v693 = vpop.permute.xlu0 %692
  %694 = vrot.lane.b32.xlu0 %v649, 115
  %v695 = vpop.permute.xlu0 %694
  %696 = vrot.lane.b32.xlu0 %v665, 115
  %v697 = vpop.permute.xlu0 %696
  %vm698 = vcmask 941056
  %v699 = vsel %vm698, %v667, %v669
  %v700 = vsel %vm698, %v671, %v673
  %v701 = vsel %vm698, %v675, %v677
  %v702 = vsel %vm698, %v679, %v681
  %v703 = vsel %vm698, %v683, %v685
  %v704 = vsel %vm698, %v687, %v689
  %v705 = vsel %vm698, %v691, %v693
  %v706 = vsel %vm698, %v695, %v697
  %715 = vst [vmem:[#allocation2 + $0x18] sm:$0x7] %v699
  %716 = vst [vmem:[#allocation2 + $0x98] sm:$0x7] %v700
  %717 = vst [vmem:[#allocation2 + $0x118] sm:$0x7] %v701
  %718 = vst [vmem:[#allocation2 + $0x198] sm:$0x7] %v702
  %719 = vst [vmem:[#allocation2 + $0x218] sm:$0x7] %v703
  %720 = vst [vmem:[#allocation2 + $0x298] sm:$0x7] %v704
  %721 = vst [vmem:[#allocation2 + $0x318] sm:$0x7] %v705
  %722 = vst [vmem:[#allocation2 + $0x398] sm:$0x7] %v706
  %v723 = vld [vmem:[%s0] sm:$0x77]
  %v724 = vld [vmem:[%s0 + $0x8] sm:$0x77]
  %v725 = vld [vmem:[%s0 + $0x10] sm:$0x77]
  %v726 = vld [vmem:[%s0 + $0x18] sm:$0x77]
  %v727 = vld [vmem:[%s0 + $0x20] sm:$0x77]
  %v728 = vld [vmem:[%s0 + $0x28] sm:$0x77]
  %v729 = vld [vmem:[%s0 + $0x30] sm:$0x77]
  %v730 = vld [vmem:[%s0 + $0x38] sm:$0x77]
  %v739 = vcombine.high %v723, %v723
  %v740 = vcombine.high %v724, %v724
  %v741 = vcombine.high %v725, %v725
  %v742 = vcombine.high %v726, %v726
  %v743 = vcombine.high %v727, %v727
  %v744 = vcombine.high %v728, %v728
  %v745 = vcombine.high %v729, %v729
  %v746 = vcombine.high %v730, %v730
  %747 = vrot.lane.b32.xlu0 %v723, 114
  %v748 = vpop.permute.xlu0 %747
  %749 = vrot.lane.b32.xlu0 %v739, 114
  %v750 = vpop.permute.xlu0 %749
  %751 = vrot.lane.b32.xlu0 %v724, 114
  %v752 = vpop.permute.xlu0 %751
  %753 = vrot.lane.b32.xlu0 %v740, 114
  %v754 = vpop.permute.xlu0 %753
  %755 = vrot.lane.b32.xlu0 %v725, 114
  %v756 = vpop.permute.xlu0 %755
  %757 = vrot.lane.b32.xlu0 %v741, 114
  %v758 = vpop.permute.xlu0 %757
  %759 = vrot.lane.b32.xlu0 %v726, 114
  %v760 = vpop.permute.xlu0 %759
  %761 = vrot.lane.b32.xlu0 %v742, 114
  %v762 = vpop.permute.xlu0 %761
  %763 = vrot.lane.b32.xlu0 %v727, 114
  %v764 = vpop.permute.xlu0 %763
  %765 = vrot.lane.b32.xlu0 %v743, 114
  %v766 = vpop.permute.xlu0 %765
  %767 = vrot.lane.b32.xlu0 %v728, 114
  %v768 = vpop.permute.xlu0 %767
  %769 = vrot.lane.b32.xlu0 %v744, 114
  %v770 = vpop.permute.xlu0 %769
  %771 = vrot.lane.b32.xlu0 %v729, 114
  %v772 = vpop.permute.xlu0 %771
  %773 = vrot.lane.b32.xlu0 %v745, 114
  %v774 = vpop.permute.xlu0 %773
  %775 = vrot.lane.b32.xlu0 %v730, 114
  %v776 = vpop.permute.xlu0 %775
  %777 = vrot.lane.b32.xlu0 %v746, 114
  %v778 = vpop.permute.xlu0 %777
  %vm779 = vcmask 932864
  %v780 = vsel %vm779, %v748, %v750
  %v781 = vsel %vm779, %v752, %v754
  %v782 = vsel %vm779, %v756, %v758
  %v783 = vsel %vm779, %v760, %v762
  %v784 = vsel %vm779, %v764, %v766
  %v785 = vsel %vm779, %v768, %v770
  %v786 = vsel %vm779, %v772, %v774
  %v787 = vsel %vm779, %v776, %v778
  %796 = vst [vmem:[#allocation2 + $0x1b] sm:$0x7] %v780
  %797 = vst [vmem:[#allocation2 + $0x9b] sm:$0x7] %v781
  %798 = vst [vmem:[#allocation2 + $0x11b] sm:$0x7] %v782
  %799 = vst [vmem:[#allocation2 + $0x19b] sm:$0x7] %v783
  %800 = vst [vmem:[#allocation2 + $0x21b] sm:$0x7] %v784
  %801 = vst [vmem:[#allocation2 + $0x29b] sm:$0x7] %v785
  %802 = vst [vmem:[#allocation2 + $0x31b] sm:$0x7] %v786
  %803 = vst [vmem:[#allocation2 + $0x39b] sm:$0x7] %v787
  %v804 = vld [vmem:[%s0] sm:$0x77]
  %v805 = vld [vmem:[%s0 + $0x8] sm:$0x77]
  %v806 = vld [vmem:[%s0 + $0x10] sm:$0x77]
  %v807 = vld [vmem:[%s0 + $0x18] sm:$0x77]
  %v808 = vld [vmem:[%s0 + $0x20] sm:$0x77]
  %v809 = vld [vmem:[%s0 + $0x28] sm:$0x77]
  %v810 = vld [vmem:[%s0 + $0x30] sm:$0x77]
  %v811 = vld [vmem:[%s0 + $0x38] sm:$0x77]
  %v820 = vcombine.high %v804, %v804
  %v821 = vcombine.high %v805, %v805
  %v822 = vcombine.high %v806, %v806
  %v823 = vcombine.high %v807, %v807
  %v824 = vcombine.high %v808, %v808
  %v825 = vcombine.high %v809, %v809
  %v826 = vcombine.high %v810, %v810
  %v827 = vcombine.high %v811, %v811
  %828 = vrot.lane.b32.xlu0 %v804, 113
  %v829 = vpop.permute.xlu0 %828
  %830 = vrot.lane.b32.xlu0 %v820, 113
  %v831 = vpop.permute.xlu0 %830
  %832 = vrot.lane.b32.xlu0 %v805, 113
  %v833 = vpop.permute.xlu0 %832
  %834 = vrot.lane.b32.xlu0 %v821, 113
  %v835 = vpop.permute.xlu0 %834
  %836 = vrot.lane.b32.xlu0 %v806, 113
  %v837 = vpop.permute.xlu0 %836
  %838 = vrot.lane.b32.xlu0 %v822, 113
  %v839 = vpop.permute.xlu0 %838
  %840 = vrot.lane.b32.xlu0 %v807, 113
  %v841 = vpop.permute.xlu0 %840
  %842 = vrot.lane.b32.xlu0 %v823, 113
  %v843 = vpop.permute.xlu0 %842
  %844 = vrot.lane.b32.xlu0 %v808, 113
  %v845 = vpop.permute.xlu0 %844
  %846 = vrot.lane.b32.xlu0 %v824, 113
  %v847 = vpop.permute.xlu0 %846
  %848 = vrot.lane.b32.xlu0 %v809, 113
  %v849 = vpop.permute.xlu0 %848
  %850 = vrot.lane.b32.xlu0 %v825, 113
  %v851 = vpop.permute.xlu0 %850
  %852 = vrot.lane.b32.xlu0 %v810, 113
  %v853 = vpop.permute.xlu0 %852
  %854 = vrot.lane.b32.xlu0 %v826, 113
  %v855 = vpop.permute.xlu0 %854
  %856 = vrot.lane.b32.xlu0 %v811, 113
  %v857 = vpop.permute.xlu0 %856
  %858 = vrot.lane.b32.xlu0 %v827, 113
  %v859 = vpop.permute.xlu0 %858
  %vm860 = vcmask 924672
  %v861 = vsel %vm860, %v829, %v831
  %v862 = vsel %vm860, %v833, %v835
  %v863 = vsel %vm860, %v837, %v839
  %v864 = vsel %vm860, %v841, %v843
  %v865 = vsel %vm860, %v845, %v847
  %v866 = vsel %vm860, %v849, %v851
  %v867 = vsel %vm860, %v853, %v855
  %v868 = vsel %vm860, %v857, %v859
  %877 = vst [vmem:[#allocation2 + $0x1e] sm:$0x7] %v861
  %878 = vst [vmem:[#allocation2 + $0x9e] sm:$0x7] %v862
  %879 = vst [vmem:[#allocation2 + $0x11e] sm:$0x7] %v863
  %880 = vst [vmem:[#allocation2 + $0x19e] sm:$0x7] %v864
  %881 = vst [vmem:[#allocation2 + $0x21e] sm:$0x7] %v865
  %882 = vst [vmem:[#allocation2 + $0x29e] sm:$0x7] %v866
  %883 = vst [vmem:[#allocation2 + $0x31e] sm:$0x7] %v867
  %884 = vst [vmem:[#allocation2 + $0x39e] sm:$0x7] %v868
  %v885 = vld [vmem:[%s0] sm:$0x77]
  %v886 = vld [vmem:[%s0 + $0x8] sm:$0x77]
  %v887 = vld [vmem:[%s0 + $0x10] sm:$0x77]
  %v888 = vld [vmem:[%s0 + $0x18] sm:$0x77]
  %v889 = vld [vmem:[%s0 + $0x20] sm:$0x77]
  %v890 = vld [vmem:[%s0 + $0x28] sm:$0x77]
  %v891 = vld [vmem:[%s0 + $0x30] sm:$0x77]
  %v892 = vld [vmem:[%s0 + $0x38] sm:$0x77]
  %v901 = vcombine.high %v885, %v885
  %v902 = vcombine.high %v886, %v886
  %v903 = vcombine.high %v887, %v887
  %v904 = vcombine.high %v888, %v888
  %v905 = vcombine.high %v889, %v889
  %v906 = vcombine.high %v890, %v890
  %v907 = vcombine.high %v891, %v891
  %v908 = vcombine.high %v892, %v892
  %909 = vrot.lane.b32.xlu0 %v885, 112
  %v910 = vpop.permute.xlu0 %909
  %911 = vrot.lane.b32.xlu0 %v901, 112
  %v912 = vpop.permute.xlu0 %911
  %913 = vrot.lane.b32.xlu0 %v886, 112
  %v914 = vpop.permute.xlu0 %913
  %915 = vrot.lane.b32.xlu0 %v902, 112
  %v916 = vpop.permute.xlu0 %915
  %917 = vrot.lane.b32.xlu0 %v887, 112
  %v918 = vpop.permute.xlu0 %917
  %919 = vrot.lane.b32.xlu0 %v903, 112
  %v920 = vpop.permute.xlu0 %919
  %921 = vrot.lane.b32.xlu0 %v888, 112
  %v922 = vpop.permute.xlu0 %921
  %923 = vrot.lane.b32.xlu0 %v904, 112
  %v924 = vpop.permute.xlu0 %923
  %925 = vrot.lane.b32.xlu0 %v889, 112
  %v926 = vpop.permute.xlu0 %925
  %927 = vrot.lane.b32.xlu0 %v905, 112
  %v928 = vpop.permute.xlu0 %927
  %929 = vrot.lane.b32.xlu0 %v890, 112
  %v930 = vpop.permute.xlu0 %929
  %931 = vrot.lane.b32.xlu0 %v906, 112
  %v932 = vpop.permute.xlu0 %931
  %933 = vrot.lane.b32.xlu0 %v891, 112
  %v934 = vpop.permute.xlu0 %933
  %935 = vrot.lane.b32.xlu0 %v907, 112
  %v936 = vpop.permute.xlu0 %935
  %937 = vrot.lane.b32.xlu0 %v892, 112
  %v938 = vpop.permute.xlu0 %937
  %939 = vrot.lane.b32.xlu0 %v908, 112
  %v940 = vpop.permute.xlu0 %939
  %vm941 = vcmask 916480
  %v942 = vsel %vm941, %v910, %v912
  %v943 = vsel %vm941, %v914, %v916
  %v944 = vsel %vm941, %v918, %v920
  %v945 = vsel %vm941, %v922, %v924
  %v946 = vsel %vm941, %v926, %v928
  %v947 = vsel %vm941, %v930, %v932
  %v948 = vsel %vm941, %v934, %v936
  %v949 = vsel %vm941, %v938, %v940
  %958 = vst [vmem:[#allocation2 + $0x21] sm:$0x7] %v942
  %959 = vst [vmem:[#allocation2 + $0xa1] sm:$0x7] %v943
  %960 = vst [vmem:[#allocation2 + $0x121] sm:$0x7] %v944
  %961 = vst [vmem:[#allocation2 + $0x1a1] sm:$0x7] %v945
  %962 = vst [vmem:[#allocation2 + $0x221] sm:$0x7] %v946
  %963 = vst [vmem:[#allocation2 + $0x2a1] sm:$0x7] %v947
  %964 = vst [vmem:[#allocation2 + $0x321] sm:$0x7] %v948
  %965 = vst [vmem:[#allocation2 + $0x3a1] sm:$0x7] %v949
  %v966 = vld [vmem:[%s0] sm:$0x77]
  %v967 = vld [vmem:[%s0 + $0x8] sm:$0x77]
  %v968 = vld [vmem:[%s0 + $0x10] sm:$0x77]
  %v969 = vld [vmem:[%s0 + $0x18] sm:$0x77]
  %v970 = vld [vmem:[%s0 + $0x20] sm:$0x77]
  %v971 = vld [vmem:[%s0 + $0x28] sm:$0x77]
  %v972 = vld [vmem:[%s0 + $0x30] sm:$0x77]
  %v973 = vld [vmem:[%s0 + $0x38] sm:$0x77]
  %v982 = vcombine.high %v966, %v966
  %v983 = vcombine.high %v967, %v967
  %v984 = vcombine.high %v968, %v968
  %v985 = vcombine.high %v969, %v969
  %v986 = vcombine.high %v970, %v970
  %v987 = vcombine.high %v971, %v971
  %v988 = vcombine.high %v972, %v972
  %v989 = vcombine.high %v973, %v973
  %990 = vrot.lane.b32.xlu0 %v966, 111
  %v991 = vpop.permute.xlu0 %990
  %992 = vrot.lane.b32.xlu0 %v982, 111
  %v993 = vpop.permute.xlu0 %992
  %994 = vrot.lane.b32.xlu0 %v967, 111
  %v995 = vpop.permute.xlu0 %994
  %996 = vrot.lane.b32.xlu0 %v983, 111
  %v997 = vpop.permute.xlu0 %996
  %998 = vrot.lane.b32.xlu0 %v968, 111
  %v999 = vpop.permute.xlu0 %998
  %1000 = vrot.lane.b32.xlu0 %v984, 111
  %v1001 = vpop.permute.xlu0 %1000
  %1002 = vrot.lane.b32.xlu0 %v969, 111
  %v1003 = vpop.permute.xlu0 %1002
  %1004 = vrot.lane.b32.xlu0 %v985, 111
  %v1005 = vpop.permute.xlu0 %1004
  %1006 = vrot.lane.b32.xlu0 %v970, 111
  %v1007 = vpop.permute.xlu0 %1006
  %1008 = vrot.lane.b32.xlu0 %v986, 111
  %v1009 = vpop.permute.xlu0 %1008
  %1010 = vrot.lane.b32.xlu0 %v971, 111
  %v1011 = vpop.permute.xlu0 %1010
  %1012 = vrot.lane.b32.xlu0 %v987, 111
  %v1013 = vpop.permute.xlu0 %1012
  %1014 = vrot.lane.b32.xlu0 %v972, 111
  %v1015 = vpop.permute.xlu0 %1014
  %1016 = vrot.lane.b32.xlu0 %v988, 111
  %v1017 = vpop.permute.xlu0 %1016
  %1018 = vrot.lane.b32.xlu0 %v973, 111
  %v1019 = vpop.permute.xlu0 %1018
  %1020 = vrot.lane.b32.xlu0 %v989, 111
  %v1021 = vpop.permute.xlu0 %1020
  %vm1022 = vcmask 908288
  %v1023 = vsel %vm1022, %v991, %v993
  %v1024 = vsel %vm1022, %v995, %v997
  %v1025 = vsel %vm1022, %v999, %v1001
  %v1026 = vsel %vm1022, %v1003, %v1005
  %v1027 = vsel %vm1022, %v1007, %v1009
  %v1028 = vsel %vm1022, %v1011, %v1013
  %v1029 = vsel %vm1022, %v1015, %v1017
  %v1030 = vsel %vm1022, %v1019, %v1021
  %1039 = vst [vmem:[#allocation2 + $0x24] sm:$0x7] %v1023
  %1040 = vst [vmem:[#allocation2 + $0xa4] sm:$0x7] %v1024
  %1041 = vst [vmem:[#allocation2 + $0x124] sm:$0x7] %v1025
  %1042 = vst [vmem:[#allocation2 + $0x1a4] sm:$0x7] %v1026
  %1043 = vst [vmem:[#allocation2 + $0x224] sm:$0x7] %v1027
  %1044 = vst [vmem:[#allocation2 + $0x2a4] sm:$0x7] %v1028
  %1045 = vst [vmem:[#allocation2 + $0x324] sm:$0x7] %v1029
  %1046 = vst [vmem:[#allocation2 + $0x3a4] sm:$0x7] %v1030
  %v1047 = vld [vmem:[%s0] sm:$0x77]
  %v1048 = vld [vmem:[%s0 + $0x8] sm:$0x77]
  %v1049 = vld [vmem:[%s0 + $0x10] sm:$0x77]
  %v1050 = vld [vmem:[%s0 + $0x18] sm:$0x77]
  %v1051 = vld [vmem:[%s0 + $0x20] sm:$0x77]
  %v1052 = vld [vmem:[%s0 + $0x28] sm:$0x77]
  %v1053 = vld [vmem:[%s0 + $0x30] sm:$0x77]
  %v1054 = vld [vmem:[%s0 + $0x38] sm:$0x77]
  %v1063 = vcombine.high %v1047, %v1047
  %v1064 = vcombine.high %v1048, %v1048
  %v1065 = vcombine.high %v1049, %v1049
  %v1066 = vcombine.high %v1050, %v1050
  %v1067 = vcombine.high %v1051, %v1051
  %v1068 = vcombine.high %v1052, %v1052
  %v1069 = vcombine.high %v1053, %v1053
  %v1070 = vcombine.high %v1054, %v1054
  %1071 = vrot.lane.b32.xlu0 %v1047, 110
  %v1072 = vpop.permute.xlu0 %1071
  %1073 = vrot.lane.b32.xlu0 %v1063, 110
  %v1074 = vpop.permute.xlu0 %1073
  %1075 = vrot.lane.b32.xlu0 %v1048, 110
  %v1076 = vpop.permute.xlu0 %1075
  %1077 = vrot.lane.b32.xlu0 %v1064, 110
  %v1078 = vpop.permute.xlu0 %1077
  %1079 = vrot.lane.b32.xlu0 %v1049, 110
  %v1080 = vpop.permute.xlu0 %1079
  %1081 = vrot.lane.b32.xlu0 %v1065, 110
  %v1082 = vpop.permute.xlu0 %1081
  %1083 = vrot.lane.b32.xlu0 %v1050, 110
  %v1084 = vpop.permute.xlu0 %1083
  %1085 = vrot.lane.b32.xlu0 %v1066, 110
  %v1086 = vpop.permute.xlu0 %1085
  %1087 = vrot.lane.b32.xlu0 %v1051, 110
  %v1088 = vpop.permute.xlu0 %1087
  %1089 = vrot.lane.b32.xlu0 %v1067, 110
  %v1090 = vpop.permute.xlu0 %1089
  %1091 = vrot.lane.b32.xlu0 %v1052, 110
  %v1092 = vpop.permute.xlu0 %1091
  %1093 = vrot.lane.b32.xlu0 %v1068, 110
  %v1094 = vpop.permute.xlu0 %1093
  %1095 = vrot.lane.b32.xlu0 %v1053, 110
  %v1096 = vpop.permute.xlu0 %1095
  %1097 = vrot.lane.b32.xlu0 %v1069, 110
  %v1098 = vpop.permute.xlu0 %1097
  %1099 = vrot.lane.b32.xlu0 %v1054, 110
  %v1100 = vpop.permute.xlu0 %1099
  %1101 = vrot.lane.b32.xlu0 %v1070, 110
  %v1102 = vpop.permute.xlu0 %1101
  %vm1103 = vcmask 900096
  %v1104 = vsel %vm1103, %v1072, %v1074
  %v1105 = vsel %vm1103, %v1076, %v1078
  %v1106 = vsel %vm1103, %v1080, %v1082
  %v1107 = vsel %vm1103, %v1084, %v1086
  %v1108 = vsel %vm1103, %v1088, %v1090
  %v1109 = vsel %vm1103, %v1092, %v1094
  %v1110 = vsel %vm1103, %v1096, %v1098
  %v1111 = vsel %vm1103, %v1100, %v1102
  %1120 = vst [vmem:[#allocation2 + $0x27] sm:$0x7] %v1104
  %1121 = vst [vmem:[#allocation2 + $0xa7] sm:$0x7] %v1105
  %1122 = vst [vmem:[#allocation2 + $0x127] sm:$0x7] %v1106
  %1123 = vst [vmem:[#allocation2 + $0x1a7] sm:$0x7] %v1107
  %1124 = vst [vmem:[#allocation2 + $0x227] sm:$0x7] %v1108
  %1125 = vst [vmem:[#allocation2 + $0x2a7] sm:$0x7] %v1109
  %1126 = vst [vmem:[#allocation2 + $0x327] sm:$0x7] %v1110
  %1127 = vst [vmem:[#allocation2 + $0x3a7] sm:$0x7] %v1111
  %v1128 = vld [vmem:[%s0] sm:$0x77]
  %v1129 = vld [vmem:[%s0 + $0x8] sm:$0x77]
  %v1130 = vld [vmem:[%s0 + $0x10] sm:$0x77]
  %v1131 = vld [vmem:[%s0 + $0x18] sm:$0x77]
  %v1132 = vld [vmem:[%s0 + $0x20] sm:$0x77]
  %v1133 = vld [vmem:[%s0 + $0x28] sm:$0x77]
  %v1134 = vld [vmem:[%s0 + $0x30] sm:$0x77]
  %v1135 = vld [vmem:[%s0 + $0x38] sm:$0x77]
  %v1144 = vcombine.high %v1128, %v1128
  %v1145 = vcombine.high %v1129, %v1129
  %v1146 = vcombine.high %v1130, %v1130
  %v1147 = vcombine.high %v1131, %v1131
  %v1148 = vcombine.high %v1132, %v1132
  %v1149 = vcombine.high %v1133, %v1133
  %v1150 = vcombine.high %v1134, %v1134
  %v1151 = vcombine.high %v1135, %v1135
  %1152 = vrot.lane.b32.xlu0 %v1128, 104
  %v1153 = vpop.permute.xlu0 %1152
  %1154 = vrot.lane.b32.xlu0 %v1144, 104
  %v1155 = vpop.permute.xlu0 %1154
  %1156 = vrot.lane.b32.xlu0 %v1129, 104
  %v1157 = vpop.permute.xlu0 %1156
  %1158 = vrot.lane.b32.xlu0 %v1145, 104
  %v1159 = vpop.permute.xlu0 %1158
  %1160 = vrot.lane.b32.xlu0 %v1130, 104
  %v1161 = vpop.permute.xlu0 %1160
  %1162 = vrot.lane.b32.xlu0 %v1146, 104
  %v1163 = vpop.permute.xlu0 %1162
  %1164 = vrot.lane.b32.xlu0 %v1131, 104
  %v1165 = vpop.permute.xlu0 %1164
  %1166 = vrot.lane.b32.xlu0 %v1147, 104
  %v1167 = vpop.permute.xlu0 %1166
  %1168 = vrot.lane.b32.xlu0 %v1132, 104
  %v1169 = vpop.permute.xlu0 %1168
  %1170 = vrot.lane.b32.xlu0 %v1148, 104
  %v1171 = vpop.permute.xlu0 %1170
  %1172 = vrot.lane.b32.xlu0 %v1133, 104
  %v1173 = vpop.permute.xlu0 %1172
  %1174 = vrot.lane.b32.xlu0 %v1149, 104
  %v1175 = vpop.permute.xlu0 %1174
  %1176 = vrot.lane.b32.xlu0 %v1134, 104
  %v1177 = vpop.permute.xlu0 %1176
  %1178 = vrot.lane.b32.xlu0 %v1150, 104
  %v1179 = vpop.permute.xlu0 %1178
  %1180 = vrot.lane.b32.xlu0 %v1135, 104
  %v1181 = vpop.permute.xlu0 %1180
  %1182 = vrot.lane.b32.xlu0 %v1151, 104
  %v1183 = vpop.permute.xlu0 %1182
  %vm1184 = vcmask 850944
  %v1185 = vsel %vm1184, %v1153, %v1155
  %v1186 = vsel %vm1184, %v1157, %v1159
  %v1187 = vsel %vm1184, %v1161, %v1163
  %v1188 = vsel %vm1184, %v1165, %v1167
  %v1189 = vsel %vm1184, %v1169, %v1171
  %v1190 = vsel %vm1184, %v1173, %v1175
  %v1191 = vsel %vm1184, %v1177, %v1179
  %v1192 = vsel %vm1184, %v1181, %v1183
  %1201 = vst [vmem:[#allocation2 + $0x2a] sm:$0x7] %v1185
  %1202 = vst [vmem:[#allocation2 + $0xaa] sm:$0x7] %v1186
  %1203 = vst [vmem:[#allocation2 + $0x12a] sm:$0x7] %v1187
  %1204 = vst [vmem:[#allocation2 + $0x1aa] sm:$0x7] %v1188
  %1205 = vst [vmem:[#allocation2 + $0x22a] sm:$0x7] %v1189
  %1206 = vst [vmem:[#allocation2 + $0x2aa] sm:$0x7] %v1190
  %1207 = vst [vmem:[#allocation2 + $0x32a] sm:$0x7] %v1191
  %1208 = vst [vmem:[#allocation2 + $0x3aa] sm:$0x7] %v1192
  %v1209 = vld [vmem:[%s0] sm:$0x77]
  %v1210 = vld [vmem:[%s0 + $0x8] sm:$0x77]
  %v1211 = vld [vmem:[%s0 + $0x10] sm:$0x77]
  %v1212 = vld [vmem:[%s0 + $0x18] sm:$0x77]
  %v1213 = vld [vmem:[%s0 + $0x20] sm:$0x77]
  %v1214 = vld [vmem:[%s0 + $0x28] sm:$0x77]
  %v1215 = vld [vmem:[%s0 + $0x30] sm:$0x77]
  %v1216 = vld [vmem:[%s0 + $0x38] sm:$0x77]
  %v1225 = vcombine.high %v1209, %v1209
  %v1226 = vcombine.high %v1210, %v1210
  %v1227 = vcombine.high %v1211, %v1211
  %v1228 = vcombine.high %v1212, %v1212
  %v1229 = vcombine.high %v1213, %v1213
  %v1230 = vcombine.high %v1214, %v1214
  %v1231 = vcombine.high %v1215, %v1215
  %v1232 = vcombine.high %v1216, %v1216
  %1233 = vrot.lane.b32.xlu0 %v1209, 103
  %v1234 = vpop.permute.xlu0 %1233
  %1235 = vrot.lane.b32.xlu0 %v1225, 103
  %v1236 = vpop.permute.xlu0 %1235
  %1237 = vrot.lane.b32.xlu0 %v1210, 103
  %v1238 = vpop.permute.xlu0 %1237
  %1239 = vrot.lane.b32.xlu0 %v1226, 103
  %v1240 = vpop.permute.xlu0 %1239
  %1241 = vrot.lane.b32.xlu0 %v1211, 103
  %v1242 = vpop.permute.xlu0 %1241
  %1243 = vrot.lane.b32.xlu0 %v1227, 103
  %v1244 = vpop.permute.xlu0 %1243
  %1245 = vrot.lane.b32.xlu0 %v1212, 103
  %v1246 = vpop.permute.xlu0 %1245
  %1247 = vrot.lane.b32.xlu0 %v1228, 103
  %v1248 = vpop.permute.xlu0 %1247
  %1249 = vrot.lane.b32.xlu0 %v1213, 103
  %v1250 = vpop.permute.xlu0 %1249
  %1251 = vrot.lane.b32.xlu0 %v1229, 103
  %v1252 = vpop.permute.xlu0 %1251
  %1253 = vrot.lane.b32.xlu0 %v1214, 103
  %v1254 = vpop.permute.xlu0 %1253
  %1255 = vrot.lane.b32.xlu0 %v1230, 103
  %v1256 = vpop.permute.xlu0 %1255
  %1257 = vrot.lane.b32.xlu0 %v1215, 103
  %v1258 = vpop.permute.xlu0 %1257
  %1259 = vrot.lane.b32.xlu0 %v1231, 103
  %v1260 = vpop.permute.xlu0 %1259
  %1261 = vrot.lane.b32.xlu0 %v1216, 103
  %v1262 = vpop.permute.xlu0 %1261
  %1263 = vrot.lane.b32.xlu0 %v1232, 103
  %v1264 = vpop.permute.xlu0 %1263
  %vm1265 = vcmask 842752
  %v1266 = vsel %vm1265, %v1234, %v1236
  %v1267 = vsel %vm1265, %v1238, %v1240
  %v1268 = vsel %vm1265, %v1242, %v1244
  %v1269 = vsel %vm1265, %v1246, %v1248
  %v1270 = vsel %vm1265, %v1250, %v1252
  %v1271 = vsel %vm1265, %v1254, %v1256
  %v1272 = vsel %vm1265, %v1258, %v1260
  %v1273 = vsel %vm1265, %v1262, %v1264
  %1282 = vst [vmem:[#allocation2 + $0x2d] sm:$0x7] %v1266
  %1283 = vst [vmem:[#allocation2 + $0xad] sm:$0x7] %v1267
  %1284 = vst [vmem:[#allocation2 + $0x12d] sm:$0x7] %v1268
  %1285 = vst [vmem:[#allocation2 + $0x1ad] sm:$0x7] %v1269
  %1286 = vst [vmem:[#allocation2 + $0x22d] sm:$0x7] %v1270
  %1287 = vst [vmem:[#allocation2 + $0x2ad] sm:$0x7] %v1271
  %1288 = vst [vmem:[#allocation2 + $0x32d] sm:$0x7] %v1272
  %1289 = vst [vmem:[#allocation2 + $0x3ad] sm:$0x7] %v1273
  %v1290 = vld [vmem:[%s0] sm:$0x77]
  %v1291 = vld [vmem:[%s0 + $0x8] sm:$0x77]
  %v1292 = vld [vmem:[%s0 + $0x10] sm:$0x77]
  %v1293 = vld [vmem:[%s0 + $0x18] sm:$0x77]
  %v1294 = vld [vmem:[%s0 + $0x20] sm:$0x77]
  %v1295 = vld [vmem:[%s0 + $0x28] sm:$0x77]
  %v1296 = vld [vmem:[%s0 + $0x30] sm:$0x77]
  %v1297 = vld [vmem:[%s0 + $0x38] sm:$0x77]
  %v1306 = vcombine.high %v1290, %v1290
  %v1307 = vcombine.high %v1291, %v1291
  %v1308 = vcombine.high %v1292, %v1292
  %v1309 = vcombine.high %v1293, %v1293
  %v1310 = vcombine.high %v1294, %v1294
  %v1311 = vcombine.high %v1295, %v1295
  %v1312 = vcombine.high %v1296, %v1296
  %v1313 = vcombine.high %v1297, %v1297
  %1314 = vrot.lane.b32.xlu0 %v1290, 102
  %v1315 = vpop.permute.xlu0 %1314
  %1316 = vrot.lane.b32.xlu0 %v1306, 102
  %v1317 = vpop.permute.xlu0 %1316
  %1318 = vrot.lane.b32.xlu0 %v1291, 102
  %v1319 = vpop.permute.xlu0 %1318
  %1320 = vrot.lane.b32.xlu0 %v1307, 102
  %v1321 = vpop.permute.xlu0 %1320
  %1322 = vrot.lane.b32.xlu0 %v1292, 102
  %v1323 = vpop.permute.xlu0 %1322
  %1324 = vrot.lane.b32.xlu0 %v1308, 102
  %v1325 = vpop.permute.xlu0 %1324
  %1326 = vrot.lane.b32.xlu0 %v1293, 102
  %v1327 = vpop.permute.xlu0 %1326
  %1328 = vrot.lane.b32.xlu0 %v1309, 102
  %v1329 = vpop.permute.xlu0 %1328
  %1330 = vrot.lane.b32.xlu0 %v1294, 102
  %v1331 = vpop.permute.xlu0 %1330
  %1332 = vrot.lane.b32.xlu0 %v1310, 102
  %v1333 = vpop.permute.xlu0 %1332
  %1334 = vrot.lane.b32.xlu0 %v1295, 102
  %v1335 = vpop.permute.xlu0 %1334
  %1336 = vrot.lane.b32.xlu0 %v1311, 102
  %v1337 = vpop.permute.xlu0 %1336
  %1338 = vrot.lane.b32.xlu0 %v1296, 102
  %v1339 = vpop.permute.xlu0 %1338
  %1340 = vrot.lane.b32.xlu0 %v1312, 102
  %v1341 = vpop.permute.xlu0 %1340
  %1342 = vrot.lane.b32.xlu0 %v1297, 102
  %v1343 = vpop.permute.xlu0 %1342
  %1344 = vrot.lane.b32.xlu0 %v1313, 102
  %v1345 = vpop.permute.xlu0 %1344
  %vm1346 = vcmask 834560
  %v1347 = vsel %vm1346, %v1315, %v1317
  %v1348 = vsel %vm1346, %v1319, %v1321
  %v1349 = vsel %vm1346, %v1323, %v1325
  %v1350 = vsel %vm1346, %v1327, %v1329
  %v1351 = vsel %vm1346, %v1331, %v1333
  %v1352 = vsel %vm1346, %v1335, %v1337
  %v1353 = vsel %vm1346, %v1339, %v1341
  %v1354 = vsel %vm1346, %v1343, %v1345
  %1363 = vst [vmem:[#allocation2 + $0x30] sm:$0x7] %v1347
  %1364 = vst [vmem:[#allocation2 + $0xb0] sm:$0x7] %v1348
  %1365 = vst [vmem:[#allocation2 + $0x130] sm:$0x7] %v1349
  %1366 = vst [vmem:[#allocation2 + $0x1b0] sm:$0x7] %v1350
  %1367 = vst [vmem:[#allocation2 + $0x230] sm:$0x7] %v1351
  %1368 = vst [vmem:[#allocation2 + $0x2b0] sm:$0x7] %v1352
  %1369 = vst [vmem:[#allocation2 + $0x330] sm:$0x7] %v1353
  %1370 = vst [vmem:[#allocation2 + $0x3b0] sm:$0x7] %v1354
  %v1371 = vld [vmem:[%s0] sm:$0x77]
  %v1372 = vld [vmem:[%s0 + $0x8] sm:$0x77]
  %v1373 = vld [vmem:[%s0 + $0x10] sm:$0x77]
  %v1374 = vld [vmem:[%s0 + $0x18] sm:$0x77]
  %v1375 = vld [vmem:[%s0 + $0x20] sm:$0x77]
  %v1376 = vld [vmem:[%s0 + $0x28] sm:$0x77]
  %v1377 = vld [vmem:[%s0 + $0x30] sm:$0x77]
  %v1378 = vld [vmem:[%s0 + $0x38] sm:$0x77]
  %v1387 = vcombine.high %v1371, %v1371
  %v1388 = vcombine.high %v1372, %v1372
  %v1389 = vcombine.high %v1373, %v1373
  %v1390 = vcombine.high %v1374, %v1374
  %v1391 = vcombine.high %v1375, %v1375
  %v1392 = vcombine.high %v1376, %v1376
  %v1393 = vcombine.high %v1377, %v1377
  %v1394 = vcombine.high %v1378, %v1378
  %1395 = vrot.lane.b32.xlu0 %v1371, 101
  %v1396 = vpop.permute.xlu0 %1395
  %1397 = vrot.lane.b32.xlu0 %v1387, 101
  %v1398 = vpop.permute.xlu0 %1397
  %1399 = vrot.lane.b32.xlu0 %v1372, 101
  %v1400 = vpop.permute.xlu0 %1399
  %1401 = vrot.lane.b32.xlu0 %v1388, 101
  %v1402 = vpop.permute.xlu0 %1401
  %1403 = vrot.lane.b32.xlu0 %v1373, 101
  %v1404 = vpop.permute.xlu0 %1403
  %1405 = vrot.lane.b32.xlu0 %v1389, 101
  %v1406 = vpop.permute.xlu0 %1405
  %1407 = vrot.lane.b32.xlu0 %v1374, 101
  %v1408 = vpop.permute.xlu0 %1407
  %1409 = vrot.lane.b32.xlu0 %v1390, 101
  %v1410 = vpop.permute.xlu0 %1409
  %1411 = vrot.lane.b32.xlu0 %v1375, 101
  %v1412 = vpop.permute.xlu0 %1411
  %1413 = vrot.lane.b32.xlu0 %v1391, 101
  %v1414 = vpop.permute.xlu0 %1413
  %1415 = vrot.lane.b32.xlu0 %v1376, 101
  %v1416 = vpop.permute.xlu0 %1415
  %1417 = vrot.lane.b32.xlu0 %v1392, 101
  %v1418 = vpop.permute.xlu0 %1417
  %1419 = vrot.lane.b32.xlu0 %v1377, 101
  %v1420 = vpop.permute.xlu0 %1419
  %1421 = vrot.lane.b32.xlu0 %v1393, 101
  %v1422 = vpop.permute.xlu0 %1421
  %1423 = vrot.lane.b32.xlu0 %v1378, 101
  %v1424 = vpop.permute.xlu0 %1423
  %1425 = vrot.lane.b32.xlu0 %v1394, 101
  %v1426 = vpop.permute.xlu0 %1425
  %vm1427 = vcmask 826368
  %v1428 = vsel %vm1427, %v1396, %v1398
  %v1429 = vsel %vm1427, %v1400, %v1402
  %v1430 = vsel %vm1427, %v1404, %v1406
  %v1431 = vsel %vm1427, %v1408, %v1410
  %v1432 = vsel %vm1427, %v1412, %v1414
  %v1433 = vsel %vm1427, %v1416, %v1418
  %v1434 = vsel %vm1427, %v1420, %v1422
  %v1435 = vsel %vm1427, %v1424, %v1426
  %1444 = vst [vmem:[#allocation2 + $0x33] sm:$0x7] %v1428
  %1445 = vst [vmem:[#allocation2 + $0xb3] sm:$0x7] %v1429
  %1446 = vst [vmem:[#allocation2 + $0x133] sm:$0x7] %v1430
  %1447 = vst [vmem:[#allocation2 + $0x1b3] sm:$0x7] %v1431
  %1448 = vst [vmem:[#allocation2 + $0x233] sm:$0x7] %v1432
  %1449 = vst [vmem:[#allocation2 + $0x2b3] sm:$0x7] %v1433
  %1450 = vst [vmem:[#allocation2 + $0x333] sm:$0x7] %v1434
  %1451 = vst [vmem:[#allocation2 + $0x3b3] sm:$0x7] %v1435
  %v1452 = vld [vmem:[%s0] sm:$0x77]
  %v1453 = vld [vmem:[%s0 + $0x8] sm:$0x77]
  %v1454 = vld [vmem:[%s0 + $0x10] sm:$0x77]
  %v1455 = vld [vmem:[%s0 + $0x18] sm:$0x77]
  %v1456 = vld [vmem:[%s0 + $0x20] sm:$0x77]
  %v1457 = vld [vmem:[%s0 + $0x28] sm:$0x77]
  %v1458 = vld [vmem:[%s0 + $0x30] sm:$0x77]
  %v1459 = vld [vmem:[%s0 + $0x38] sm:$0x77]
  %v1468 = vcombine.high %v1452, %v1452
  %v1469 = vcombine.high %v1453, %v1453
  %v1470 = vcombine.high %v1454, %v1454
  %v1471 = vcombine.high %v1455, %v1455
  %v1472 = vcombine.high %v1456, %v1456
  %v1473 = vcombine.high %v1457, %v1457
  %v1474 = vcombine.high %v1458, %v1458
  %v1475 = vcombine.high %v1459, %v1459
  %1476 = vrot.lane.b32.xlu0 %v1452, 100
  %v1477 = vpop.permute.xlu0 %1476
  %1478 = vrot.lane.b32.xlu0 %v1468, 100
  %v1479 = vpop.permute.xlu0 %1478
  %1480 = vrot.lane.b32.xlu0 %v1453, 100
  %v1481 = vpop.permute.xlu0 %1480
  %1482 = vrot.lane.b32.xlu0 %v1469, 100
  %v1483 = vpop.permute.xlu0 %1482
  %1484 = vrot.lane.b32.xlu0 %v1454, 100
  %v1485 = vpop.permute.xlu0 %1484
  %1486 = vrot.lane.b32.xlu0 %v1470, 100
  %v1487 = vpop.permute.xlu0 %1486
  %1488 = vrot.lane.b32.xlu0 %v1455, 100
  %v1489 = vpop.permute.xlu0 %1488
  %1490 = vrot.lane.b32.xlu0 %v1471, 100
  %v1491 = vpop.permute.xlu0 %1490
  %1492 = vrot.lane.b32.xlu0 %v1456, 100
  %v1493 = vpop.permute.xlu0 %1492
  %1494 = vrot.lane.b32.xlu0 %v1472, 100
  %v1495 = vpop.permute.xlu0 %1494
  %1496 = vrot.lane.b32.xlu0 %v1457, 100
  %v1497 = vpop.permute.xlu0 %1496
  %1498 = vrot.lane.b32.xlu0 %v1473, 100
  %v1499 = vpop.permute.xlu0 %1498
  %1500 = vrot.lane.b32.xlu0 %v1458, 100
  %v1501 = vpop.permute.xlu0 %1500
  %1502 = vrot.lane.b32.xlu0 %v1474, 100
  %v1503 = vpop.permute.xlu0 %1502
  %1504 = vrot.lane.b32.xlu0 %v1459, 100
  %v1505 = vpop.permute.xlu0 %1504
  %1506 = vrot.lane.b32.xlu0 %v1475, 100
  %v1507 = vpop.permute.xlu0 %1506
  %vm1508 = vcmask 818176
  %v1509 = vsel %vm1508, %v1477, %v1479
  %v1510 = vsel %vm1508, %v1481, %v1483
  %v1511 = vsel %vm1508, %v1485, %v1487
  %v1512 = vsel %vm1508, %v1489, %v1491
  %v1513 = vsel %vm1508, %v1493, %v1495
  %v1514 = vsel %vm1508, %v1497, %v1499
  %v1515 = vsel %vm1508, %v1501, %v1503
  %v1516 = vsel %vm1508, %v1505, %v1507
  %1525 = vst [vmem:[#allocation2 + $0x36] sm:$0x7] %v1509
  %1526 = vst [vmem:[#allocation2 + $0xb6] sm:$0x7] %v1510
  %1527 = vst [vmem:[#allocation2 + $0x136] sm:$0x7] %v1511
  %1528 = vst [vmem:[#allocation2 + $0x1b6] sm:$0x7] %v1512
  %1529 = vst [vmem:[#allocation2 + $0x236] sm:$0x7] %v1513
  %1530 = vst [vmem:[#allocation2 + $0x2b6] sm:$0x7] %v1514
  %1531 = vst [vmem:[#allocation2 + $0x336] sm:$0x7] %v1515
  %1532 = vst [vmem:[#allocation2 + $0x3b6] sm:$0x7] %v1516
  %v1533 = vld [vmem:[%s0] sm:$0x77]
  %v1534 = vld [vmem:[%s0 + $0x8] sm:$0x77]
  %v1535 = vld [vmem:[%s0 + $0x10] sm:$0x77]
  %v1536 = vld [vmem:[%s0 + $0x18] sm:$0x77]
  %v1537 = vld [vmem:[%s0 + $0x20] sm:$0x77]
  %v1538 = vld [vmem:[%s0 + $0x28] sm:$0x77]
  %v1539 = vld [vmem:[%s0 + $0x30] sm:$0x77]
  %v1540 = vld [vmem:[%s0 + $0x38] sm:$0x77]
  %v1549 = vcombine.high %v1533, %v1533
  %v1550 = vcombine.high %v1534, %v1534
  %v1551 = vcombine.high %v1535, %v1535
  %v1552 = vcombine.high %v1536, %v1536
  %v1553 = vcombine.high %v1537, %v1537
  %v1554 = vcombine.high %v1538, %v1538
  %v1555 = vcombine.high %v1539, %v1539
  %v1556 = vcombine.high %v1540, %v1540
  %1557 = vrot.lane.b32.xlu0 %v1533, 99
  %v1558 = vpop.permute.xlu0 %1557
  %1559 = vrot.lane.b32.xlu0 %v1549, 99
  %v1560 = vpop.permute.xlu0 %1559
  %1561 = vrot.lane.b32.xlu0 %v1534, 99
  %v1562 = vpop.permute.xlu0 %1561
  %1563 = vrot.lane.b32.xlu0 %v1550, 99
  %v1564 = vpop.permute.xlu0 %1563
  %1565 = vrot.lane.b32.xlu0 %v1535, 99
  %v1566 = vpop.permute.xlu0 %1565
  %1567 = vrot.lane.b32.xlu0 %v1551, 99
  %v1568 = vpop.permute.xlu0 %1567
  %1569 = vrot.lane.b32.xlu0 %v1536, 99
  %v1570 = vpop.permute.xlu0 %1569
  %1571 = vrot.lane.b32.xlu0 %v1552, 99
  %v1572 = vpop.permute.xlu0 %1571
  %1573 = vrot.lane.b32.xlu0 %v1537, 99
  %v1574 = vpop.permute.xlu0 %1573
  %1575 = vrot.lane.b32.xlu0 %v1553, 99
  %v1576 = vpop.permute.xlu0 %1575
  %1577 = vrot.lane.b32.xlu0 %v1538, 99
  %v1578 = vpop.permute.xlu0 %1577
  %1579 = vrot.lane.b32.xlu0 %v1554, 99
  %v1580 = vpop.permute.xlu0 %1579
  %1581 = vrot.lane.b32.xlu0 %v1539, 99
  %v1582 = vpop.permute.xlu0 %1581
  %1583 = vrot.lane.b32.xlu0 %v1555, 99
  %v1584 = vpop.permute.xlu0 %1583
  %1585 = vrot.lane.b32.xlu0 %v1540, 99
  %v1586 = vpop.permute.xlu0 %1585
  %1587 = vrot.lane.b32.xlu0 %v1556, 99
  %v1588 = vpop.permute.xlu0 %1587
  %vm1589 = vcmask 809984
  %v1590 = vsel %vm1589, %v1558, %v1560
  %v1591 = vsel %vm1589, %v1562, %v1564
  %v1592 = vsel %vm1589, %v1566, %v1568
  %v1593 = vsel %vm1589, %v1570, %v1572
  %v1594 = vsel %vm1589, %v1574, %v1576
  %v1595 = vsel %vm1589, %v1578, %v1580
  %v1596 = vsel %vm1589, %v1582, %v1584
  %v1597 = vsel %vm1589, %v1586, %v1588
  %1606 = vst [vmem:[#allocation2 + $0x39] sm:$0x7] %v1590
  %1607 = vst [vmem:[#allocation2 + $0xb9] sm:$0x7] %v1591
  %1608 = vst [vmem:[#allocation2 + $0x139] sm:$0x7] %v1592
  %1609 = vst [vmem:[#allocation2 + $0x1b9] sm:$0x7] %v1593
  %1610 = vst [vmem:[#allocation2 + $0x239] sm:$0x7] %v1594
  %1611 = vst [vmem:[#allocation2 + $0x2b9] sm:$0x7] %v1595
  %1612 = vst [vmem:[#allocation2 + $0x339] sm:$0x7] %v1596
  %1613 = vst [vmem:[#allocation2 + $0x3b9] sm:$0x7] %v1597
  %v1614 = vld [vmem:[%s0] sm:$0x77]
  %v1615 = vld [vmem:[%s0 + $0x8] sm:$0x77]
  %v1616 = vld [vmem:[%s0 + $0x10] sm:$0x77]
  %v1617 = vld [vmem:[%s0 + $0x18] sm:$0x77]
  %v1618 = vld [vmem:[%s0 + $0x20] sm:$0x77]
  %v1619 = vld [vmem:[%s0 + $0x28] sm:$0x77]
  %v1620 = vld [vmem:[%s0 + $0x30] sm:$0x77]
  %v1621 = vld [vmem:[%s0 + $0x38] sm:$0x77]
  %v1630 = vcombine.high %v1614, %v1614
  %v1631 = vcombine.high %v1615, %v1615
  %v1632 = vcombine.high %v1616, %v1616
  %v1633 = vcombine.high %v1617, %v1617
  %v1634 = vcombine.high %v1618, %v1618
  %v1635 = vcombine.high %v1619, %v1619
  %v1636 = vcombine.high %v1620, %v1620
  %v1637 = vcombine.high %v1621, %v1621
  %1638 = vrot.lane.b32.xlu0 %v1614, 98
  %v1639 = vpop.permute.xlu0 %1638
  %1640 = vrot.lane.b32.xlu0 %v1630, 98
  %v1641 = vpop.permute.xlu0 %1640
  %1642 = vrot.lane.b32.xlu0 %v1615, 98
  %v1643 = vpop.permute.xlu0 %1642
  %1644 = vrot.lane.b32.xlu0 %v1631, 98
  %v1645 = vpop.permute.xlu0 %1644
  %1646 = vrot.lane.b32.xlu0 %v1616, 98
  %v1647 = vpop.permute.xlu0 %1646
  %1648 = vrot.lane.b32.xlu0 %v1632, 98
  %v1649 = vpop.permute.xlu0 %1648
  %1650 = vrot.lane.b32.xlu0 %v1617, 98
  %v1651 = vpop.permute.xlu0 %1650
  %1652 = vrot.lane.b32.xlu0 %v1633, 98
  %v1653 = vpop.permute.xlu0 %1652
  %1654 = vrot.lane.b32.xlu0 %v1618, 98
  %v1655 = vpop.permute.xlu0 %1654
  %1656 = vrot.lane.b32.xlu0 %v1634, 98
  %v1657 = vpop.permute.xlu0 %1656
  %1658 = vrot.lane.b32.xlu0 %v1619, 98
  %v1659 = vpop.permute.xlu0 %1658
  %1660 = vrot.lane.b32.xlu0 %v1635, 98
  %v1661 = vpop.permute.xlu0 %1660
  %1662 = vrot.lane.b32.xlu0 %v1620, 98
  %v1663 = vpop.permute.xlu0 %1662
  %1664 = vrot.lane.b32.xlu0 %v1636, 98
  %v1665 = vpop.permute.xlu0 %1664
  %1666 = vrot.lane.b32.xlu0 %v1621, 98
  %v1667 = vpop.permute.xlu0 %1666
  %1668 = vrot.lane.b32.xlu0 %v1637, 98
  %v1669 = vpop.permute.xlu0 %1668
  %vm1670 = vcmask 801792
  %v1671 = vsel %vm1670, %v1639, %v1641
  %v1672 = vsel %vm1670, %v1643, %v1645
  %v1673 = vsel %vm1670, %v1647, %v1649
  %v1674 = vsel %vm1670, %v1651, %v1653
  %v1675 = vsel %vm1670, %v1655, %v1657
  %v1676 = vsel %vm1670, %v1659, %v1661
  %v1677 = vsel %vm1670, %v1663, %v1665
  %v1678 = vsel %vm1670, %v1667, %v1669
  %1687 = vst [vmem:[#allocation2 + $0x3c] sm:$0x7] %v1671
  %1688 = vst [vmem:[#allocation2 + $0xbc] sm:$0x7] %v1672
  %1689 = vst [vmem:[#allocation2 + $0x13c] sm:$0x7] %v1673
  %1690 = vst [vmem:[#allocation2 + $0x1bc] sm:$0x7] %v1674
  %1691 = vst [vmem:[#allocation2 + $0x23c] sm:$0x7] %v1675
  %1692 = vst [vmem:[#allocation2 + $0x2bc] sm:$0x7] %v1676
  %1693 = vst [vmem:[#allocation2 + $0x33c] sm:$0x7] %v1677
  %1694 = vst [vmem:[#allocation2 + $0x3bc] sm:$0x7] %v1678
  %v1695 = vld [vmem:[%s0] sm:$0x77]
  %v1696 = vld [vmem:[%s0 + $0x8] sm:$0x77]
  %v1697 = vld [vmem:[%s0 + $0x10] sm:$0x77]
  %v1698 = vld [vmem:[%s0 + $0x18] sm:$0x77]
  %v1699 = vld [vmem:[%s0 + $0x20] sm:$0x77]
  %v1700 = vld [vmem:[%s0 + $0x28] sm:$0x77]
  %v1701 = vld [vmem:[%s0 + $0x30] sm:$0x77]
  %v1702 = vld [vmem:[%s0 + $0x38] sm:$0x77]
  %v1711 = vcombine.high %v1695, %v1695
  %v1712 = vcombine.high %v1696, %v1696
  %v1713 = vcombine.high %v1697, %v1697
  %v1714 = vcombine.high %v1698, %v1698
  %v1715 = vcombine.high %v1699, %v1699
  %v1716 = vcombine.high %v1700, %v1700
  %v1717 = vcombine.high %v1701, %v1701
  %v1718 = vcombine.high %v1702, %v1702
  %1719 = vrot.lane.b32.xlu0 %v1695, 92
  %v1720 = vpop.permute.xlu0 %1719
  %1721 = vrot.lane.b32.xlu0 %v1711, 92
  %v1722 = vpop.permute.xlu0 %1721
  %1723 = vrot.lane.b32.xlu0 %v1696, 92
  %v1724 = vpop.permute.xlu0 %1723
  %1725 = vrot.lane.b32.xlu0 %v1712, 92
  %v1726 = vpop.permute.xlu0 %1725
  %1727 = vrot.lane.b32.xlu0 %v1697, 92
  %v1728 = vpop.permute.xlu0 %1727
  %1729 = vrot.lane.b32.xlu0 %v1713, 92
  %v1730 = vpop.permute.xlu0 %1729
  %1731 = vrot.lane.b32.xlu0 %v1698, 92
  %v1732 = vpop.permute.xlu0 %1731
  %1733 = vrot.lane.b32.xlu0 %v1714, 92
  %v1734 = vpop.permute.xlu0 %1733
  %1735 = vrot.lane.b32.xlu0 %v1699, 92
  %v1736 = vpop.permute.xlu0 %1735
  %1737 = vrot.lane.b32.xlu0 %v1715, 92
  %v1738 = vpop.permute.xlu0 %1737
  %1739 = vrot.lane.b32.xlu0 %v1700, 92
  %v1740 = vpop.permute.xlu0 %1739
  %1741 = vrot.lane.b32.xlu0 %v1716, 92
  %v1742 = vpop.permute.xlu0 %1741
  %1743 = vrot.lane.b32.xlu0 %v1701, 92
  %v1744 = vpop.permute.xlu0 %1743
  %1745 = vrot.lane.b32.xlu0 %v1717, 92
  %v1746 = vpop.permute.xlu0 %1745
  %1747 = vrot.lane.b32.xlu0 %v1702, 92
  %v1748 = vpop.permute.xlu0 %1747
  %1749 = vrot.lane.b32.xlu0 %v1718, 92
  %v1750 = vpop.permute.xlu0 %1749
  %vm1751 = vcmask 752640
  %v1752 = vsel %vm1751, %v1720, %v1722
  %v1753 = vsel %vm1751, %v1724, %v1726
  %v1754 = vsel %vm1751, %v1728, %v1730
  %v1755 = vsel %vm1751, %v1732, %v1734
  %v1756 = vsel %vm1751, %v1736, %v1738
  %v1757 = vsel %vm1751, %v1740, %v1742
  %v1758 = vsel %vm1751, %v1744, %v1746
  %v1759 = vsel %vm1751, %v1748, %v1750
  %1768 = vst [vmem:[#allocation2 + $0x3f] sm:$0x7] %v1752
  %1769 = vst [vmem:[#allocation2 + $0xbf] sm:$0x7] %v1753
  %1770 = vst [vmem:[#allocation2 + $0x13f] sm:$0x7] %v1754
  %1771 = vst [vmem:[#allocation2 + $0x1bf] sm:$0x7] %v1755
  %1772 = vst [vmem:[#allocation2 + $0x23f] sm:$0x7] %v1756
  %1773 = vst [vmem:[#allocation2 + $0x2bf] sm:$0x7] %v1757
  %1774 = vst [vmem:[#allocation2 + $0x33f] sm:$0x7] %v1758
  %1775 = vst [vmem:[#allocation2 + $0x3bf] sm:$0x7] %v1759
  %v1776 = vld [vmem:[%s0] sm:$0x77]
  %v1777 = vld [vmem:[%s0 + $0x8] sm:$0x77]
  %v1778 = vld [vmem:[%s0 + $0x10] sm:$0x77]
  %v1779 = vld [vmem:[%s0 + $0x18] sm:$0x77]
  %v1780 = vld [vmem:[%s0 + $0x20] sm:$0x77]
  %v1781 = vld [vmem:[%s0 + $0x28] sm:$0x77]
  %v1782 = vld [vmem:[%s0 + $0x30] sm:$0x77]
  %v1783 = vld [vmem:[%s0 + $0x38] sm:$0x77]
  %v1792 = vcombine.high %v1776, %v1776
  %v1793 = vcombine.high %v1777, %v1777
  %v1794 = vcombine.high %v1778, %v1778
  %v1795 = vcombine.high %v1779, %v1779
  %v1796 = vcombine.high %v1780, %v1780
  %v1797 = vcombine.high %v1781, %v1781
  %v1798 = vcombine.high %v1782, %v1782
  %v1799 = vcombine.high %v1783, %v1783
  %1800 = vrot.lane.b32.xlu0 %v1776, 91
  %v1801 = vpop.permute.xlu0 %1800
  %1802 = vrot.lane.b32.xlu0 %v1792, 91
  %v1803 = vpop.permute.xlu0 %1802
  %1804 = vrot.lane.b32.xlu0 %v1777, 91
  %v1805 = vpop.permute.xlu0 %1804
  %1806 = vrot.lane.b32.xlu0 %v1793, 91
  %v1807 = vpop.permute.xlu0 %1806
  %1808 = vrot.lane.b32.xlu0 %v1778, 91
  %v1809 = vpop.permute.xlu0 %1808
  %1810 = vrot.lane.b32.xlu0 %v1794, 91
  %v1811 = vpop.permute.xlu0 %1810
  %1812 = vrot.lane.b32.xlu0 %v1779, 91
  %v1813 = vpop.permute.xlu0 %1812
  %1814 = vrot.lane.b32.xlu0 %v1795, 91
  %v1815 = vpop.permute.xlu0 %1814
  %1816 = vrot.lane.b32.xlu0 %v1780, 91
  %v1817 = vpop.permute.xlu0 %1816
  %1818 = vrot.lane.b32.xlu0 %v1796, 91
  %v1819 = vpop.permute.xlu0 %1818
  %1820 = vrot.lane.b32.xlu0 %v1781, 91
  %v1821 = vpop.permute.xlu0 %1820
  %1822 = vrot.lane.b32.xlu0 %v1797, 91
  %v1823 = vpop.permute.xlu0 %1822
  %1824 = vrot.lane.b32.xlu0 %v1782, 91
  %v1825 = vpop.permute.xlu0 %1824
  %1826 = vrot.lane.b32.xlu0 %v1798, 91
  %v1827 = vpop.permute.xlu0 %1826
  %1828 = vrot.lane.b32.xlu0 %v1783, 91
  %v1829 = vpop.permute.xlu0 %1828
  %1830 = vrot.lane.b32.xlu0 %v1799, 91
  %v1831 = vpop.permute.xlu0 %1830
  %vm1832 = vcmask 744448
  %v1833 = vsel %vm1832, %v1801, %v1803
  %v1834 = vsel %vm1832, %v1805, %v1807
  %v1835 = vsel %vm1832, %v1809, %v1811
  %v1836 = vsel %vm1832, %v1813, %v1815
  %v1837 = vsel %vm1832, %v1817, %v1819
  %v1838 = vsel %vm1832, %v1821, %v1823
  %v1839 = vsel %vm1832, %v1825, %v1827
  %v1840 = vsel %vm1832, %v1829, %v1831
  %1849 = vst [vmem:[#allocation2 + $0x42] sm:$0x7] %v1833
  %1850 = vst [vmem:[#allocation2 + $0xc2] sm:$0x7] %v1834
  %1851 = vst [vmem:[#allocation2 + $0x142] sm:$0x7] %v1835
  %1852 = vst [vmem:[#allocation2 + $0x1c2] sm:$0x7] %v1836
  %1853 = vst [vmem:[#allocation2 + $0x242] sm:$0x7] %v1837
  %1854 = vst [vmem:[#allocation2 + $0x2c2] sm:$0x7] %v1838
  %1855 = vst [vmem:[#allocation2 + $0x342] sm:$0x7] %v1839
  %1856 = vst [vmem:[#allocation2 + $0x3c2] sm:$0x7] %v1840
  %v1857 = vld [vmem:[%s0] sm:$0x77]
  %v1858 = vld [vmem:[%s0 + $0x8] sm:$0x77]
  %v1859 = vld [vmem:[%s0 + $0x10] sm:$0x77]
  %v1860 = vld [vmem:[%s0 + $0x18] sm:$0x77]
  %v1861 = vld [vmem:[%s0 + $0x20] sm:$0x77]
  %v1862 = vld [vmem:[%s0 + $0x28] sm:$0x77]
  %v1863 = vld [vmem:[%s0 + $0x30] sm:$0x77]
  %v1864 = vld [vmem:[%s0 + $0x38] sm:$0x77]
  %v1873 = vcombine.high %v1857, %v1857
  %v1874 = vcombine.high %v1858, %v1858
  %v1875 = vcombine.high %v1859, %v1859
  %v1876 = vcombine.high %v1860, %v1860
  %v1877 = vcombine.high %v1861, %v1861
  %v1878 = vcombine.high %v1862, %v1862
  %v1879 = vcombine.high %v1863, %v1863
  %v1880 = vcombine.high %v1864, %v1864
  %1881 = vrot.lane.b32.xlu0 %v1857, 90
  %v1882 = vpop.permute.xlu0 %1881
  %1883 = vrot.lane.b32.xlu0 %v1873, 90
  %v1884 = vpop.permute.xlu0 %1883
  %1885 = vrot.lane.b32.xlu0 %v1858, 90
  %v1886 = vpop.permute.xlu0 %1885
  %1887 = vrot.lane.b32.xlu0 %v1874, 90
  %v1888 = vpop.permute.xlu0 %1887
  %1889 = vrot.lane.b32.xlu0 %v1859, 90
  %v1890 = vpop.permute.xlu0 %1889
  %1891 = vrot.lane.b32.xlu0 %v1875, 90
  %v1892 = vpop.permute.xlu0 %1891
  %1893 = vrot.lane.b32.xlu0 %v1860, 90
  %v1894 = vpop.permute.xlu0 %1893
  %1895 = vrot.lane.b32.xlu0 %v1876, 90
  %v1896 = vpop.permute.xlu0 %1895
  %1897 = vrot.lane.b32.xlu0 %v1861, 90
  %v1898 = vpop.permute.xlu0 %1897
  %1899 = vrot.lane.b32.xlu0 %v1877, 90
  %v1900 = vpop.permute.xlu0 %1899
  %1901 = vrot.lane.b32.xlu0 %v1862, 90
  %v1902 = vpop.permute.xlu0 %1901
  %1903 = vrot.lane.b32.xlu0 %v1878, 90
  %v1904 = vpop.permute.xlu0 %1903
  %1905 = vrot.lane.b32.xlu0 %v1863, 90
  %v1906 = vpop.permute.xlu0 %1905
  %1907 = vrot.lane.b32.xlu0 %v1879, 90
  %v1908 = vpop.permute.xlu0 %1907
  %1909 = vrot.lane.b32.xlu0 %v1864, 90
  %v1910 = vpop.permute.xlu0 %1909
  %1911 = vrot.lane.b32.xlu0 %v1880, 90
  %v1912 = vpop.permute.xlu0 %1911
  %vm1913 = vcmask 736256
  %v1914 = vsel %vm1913, %v1882, %v1884
  %v1915 = vsel %vm1913, %v1886, %v1888
  %v1916 = vsel %vm1913, %v1890, %v1892
  %v1917 = vsel %vm1913, %v1894, %v1896
  %v1918 = vsel %vm1913, %v1898, %v1900
  %v1919 = vsel %vm1913, %v1902, %v1904
  %v1920 = vsel %vm1913, %v1906, %v1908
  %v1921 = vsel %vm1913, %v1910, %v1912
  %1930 = vst [vmem:[#allocation2 + $0x45] sm:$0x7] %v1914
  %1931 = vst [vmem:[#allocation2 + $0xc5] sm:$0x7] %v1915
  %1932 = vst [vmem:[#allocation2 + $0x145] sm:$0x7] %v1916
  %1933 = vst [vmem:[#allocation2 + $0x1c5] sm:$0x7] %v1917
  %1934 = vst [vmem:[#allocation2 + $0x245] sm:$0x7] %v1918
  %1935 = vst [vmem:[#allocation2 + $0x2c5] sm:$0x7] %v1919
  %1936 = vst [vmem:[#allocation2 + $0x345] sm:$0x7] %v1920
  %1937 = vst [vmem:[#allocation2 + $0x3c5] sm:$0x7] %v1921
  %v1938 = vld [vmem:[%s0] sm:$0x77]
  %v1939 = vld [vmem:[%s0 + $0x8] sm:$0x77]
  %v1940 = vld [vmem:[%s0 + $0x10] sm:$0x77]
  %v1941 = vld [vmem:[%s0 + $0x18] sm:$0x77]
  %v1942 = vld [vmem:[%s0 + $0x20] sm:$0x77]
  %v1943 = vld [vmem:[%s0 + $0x28] sm:$0x77]
  %v1944 = vld [vmem:[%s0 + $0x30] sm:$0x77]
  %v1945 = vld [vmem:[%s0 + $0x38] sm:$0x77]
  %v1954 = vcombine.high %v1938, %v1938
  %v1955 = vcombine.high %v1939, %v1939
  %v1956 = vcombine.high %v1940, %v1940
  %v1957 = vcombine.high %v1941, %v1941
  %v1958 = vcombine.high %v1942, %v1942
  %v1959 = vcombine.high %v1943, %v1943
  %v1960 = vcombine.high %v1944, %v1944
  %v1961 = vcombine.high %v1945, %v1945
  %1962 = vrot.lane.b32.xlu0 %v1938, 89
  %v1963 = vpop.permute.xlu0 %1962
  %1964 = vrot.lane.b32.xlu0 %v1954, 89
  %v1965 = vpop.permute.xlu0 %1964
  %1966 = vrot.lane.b32.xlu0 %v1939, 89
  %v1967 = vpop.permute.xlu0 %1966
  %1968 = vrot.lane.b32.xlu0 %v1955, 89
  %v1969 = vpop.permute.xlu0 %1968
  %1970 = vrot.lane.b32.xlu0 %v1940, 89
  %v1971 = vpop.permute.xlu0 %1970
  %1972 = vrot.lane.b32.xlu0 %v1956, 89
  %v1973 = vpop.permute.xlu0 %1972
  %1974 = vrot.lane.b32.xlu0 %v1941, 89
  %v1975 = vpop.permute.xlu0 %1974
  %1976 = vrot.lane.b32.xlu0 %v1957, 89
  %v1977 = vpop.permute.xlu0 %1976
  %1978 = vrot.lane.b32.xlu0 %v1942, 89
  %v1979 = vpop.permute.xlu0 %1978
  %1980 = vrot.lane.b32.xlu0 %v1958, 89
  %v1981 = vpop.permute.xlu0 %1980
  %1982 = vrot.lane.b32.xlu0 %v1943, 89
  %v1983 = vpop.permute.xlu0 %1982
  %1984 = vrot.lane.b32.xlu0 %v1959, 89
  %v1985 = vpop.permute.xlu0 %1984
  %1986 = vrot.lane.b32.xlu0 %v1944, 89
  %v1987 = vpop.permute.xlu0 %1986
  %1988 = vrot.lane.b32.xlu0 %v1960, 89
  %v1989 = vpop.permute.xlu0 %1988
  %1990 = vrot.lane.b32.xlu0 %v1945, 89
  %v1991 = vpop.permute.xlu0 %1990
  %1992 = vrot.lane.b32.xlu0 %v1961, 89
  %v1993 = vpop.permute.xlu0 %1992
  %vm1994 = vcmask 728064
  %v1995 = vsel %vm1994, %v1963, %v1965
  %v1996 = vsel %vm1994, %v1967, %v1969
  %v1997 = vsel %vm1994, %v1971, %v1973
  %v1998 = vsel %vm1994, %v1975, %v1977
  %v1999 = vsel %vm1994, %v1979, %v1981
  %v2000 = vsel %vm1994, %v1983, %v1985
  %v2001 = vsel %vm1994, %v1987, %v1989
  %v2002 = vsel %vm1994, %v1991, %v1993
  %2011 = vst [vmem:[#allocation2 + $0x48] sm:$0x7] %v1995
  %2012 = vst [vmem:[#allocation2 + $0xc8] sm:$0x7] %v1996
  %2013 = vst [vmem:[#allocation2 + $0x148] sm:$0x7] %v1997
  %2014 = vst [vmem:[#allocation2 + $0x1c8] sm:$0x7] %v1998
  %2015 = vst [vmem:[#allocation2 + $0x248] sm:$0x7] %v1999
  %2016 = vst [vmem:[#allocation2 + $0x2c8] sm:$0x7] %v2000
  %2017 = vst [vmem:[#allocation2 + $0x348] sm:$0x7] %v2001
  %2018 = vst [vmem:[#allocation2 + $0x3c8] sm:$0x7] %v2002
  %v2019 = vld [vmem:[%s0] sm:$0x77]
  %v2020 = vld [vmem:[%s0 + $0x8] sm:$0x77]
  %v2021 = vld [vmem:[%s0 + $0x10] sm:$0x77]
  %v2022 = vld [vmem:[%s0 + $0x18] sm:$0x77]
  %v2023 = vld [vmem:[%s0 + $0x20] sm:$0x77]
  %v2024 = vld [vmem:[%s0 + $0x28] sm:$0x77]
  %v2025 = vld [vmem:[%s0 + $0x30] sm:$0x77]
  %v2026 = vld [vmem:[%s0 + $0x38] sm:$0x77]
  %v2035 = vcombine.high %v2019, %v2019
  %v2036 = vcombine.high %v2020, %v2020
  %v2037 = vcombine.high %v2021, %v2021
  %v2038 = vcombine.high %v2022, %v2022
  %v2039 = vcombine.high %v2023, %v2023
  %v2040 = vcombine.high %v2024, %v2024
  %v2041 = vcombine.high %v2025, %v2025
  %v2042 = vcombine.high %v2026, %v2026
  %2043 = vrot.lane.b32.xlu0 %v2019, 88
  %v2044 = vpop.permute.xlu0 %2043
  %2045 = vrot.lane.b32.xlu0 %v2035, 88
  %v2046 = vpop.permute.xlu0 %2045
  %2047 = vrot.lane.b32.xlu0 %v2020, 88
  %v2048 = vpop.permute.xlu0 %2047
  %2049 = vrot.lane.b32.xlu0 %v2036, 88
  %v2050 = vpop.permute.xlu0 %2049
  %2051 = vrot.lane.b32.xlu0 %v2021, 88
  %v2052 = vpop.permute.xlu0 %2051
  %2053 = vrot.lane.b32.xlu0 %v2037, 88
  %v2054 = vpop.permute.xlu0 %2053
  %2055 = vrot.lane.b32.xlu0 %v2022, 88
  %v2056 = vpop.permute.xlu0 %2055
  %2057 = vrot.lane.b32.xlu0 %v2038, 88
  %v2058 = vpop.permute.xlu0 %2057
  %2059 = vrot.lane.b32.xlu0 %v2023, 88
  %v2060 = vpop.permute.xlu0 %2059
  %2061 = vrot.lane.b32.xlu0 %v2039, 88
  %v2062 = vpop.permute.xlu0 %2061
  %2063 = vrot.lane.b32.xlu0 %v2024, 88
  %v2064 = vpop.permute.xlu0 %2063
  %2065 = vrot.lane.b32.xlu0 %v2040, 88
  %v2066 = vpop.permute.xlu0 %2065
  %2067 = vrot.lane.b32.xlu0 %v2025, 88
  %v2068 = vpop.permute.xlu0 %2067
  %2069 = vrot.lane.b32.xlu0 %v2041, 88
  %v2070 = vpop.permute.xlu0 %2069
  %2071 = vrot.lane.b32.xlu0 %v2026, 88
  %v2072 = vpop.permute.xlu0 %2071
  %2073 = vrot.lane.b32.xlu0 %v2042, 88
  %v2074 = vpop.permute.xlu0 %2073
  %vm2075 = vcmask 719872
  %v2076 = vsel %vm2075, %v2044, %v2046
  %v2077 = vsel %vm2075, %v2048, %v2050
  %v2078 = vsel %vm2075, %v2052, %v2054
  %v2079 = vsel %vm2075, %v2056, %v2058
  %v2080 = vsel %vm2075, %v2060, %v2062
  %v2081 = vsel %vm2075, %v2064, %v2066
  %v2082 = vsel %vm2075, %v2068, %v2070
  %v2083 = vsel %vm2075, %v2072, %v2074
  %2092 = vst [vmem:[#allocation2 + $0x4b] sm:$0x7] %v2076
  %2093 = vst [vmem:[#allocation2 + $0xcb] sm:$0x7] %v2077
  %2094 = vst [vmem:[#allocation2 + $0x14b] sm:$0x7] %v2078
  %2095 = vst [vmem:[#allocation2 + $0x1cb] sm:$0x7] %v2079
  %2096 = vst [vmem:[#allocation2 + $0x24b] sm:$0x7] %v2080
  %2097 = vst [vmem:[#allocation2 + $0x2cb] sm:$0x7] %v2081
  %2098 = vst [vmem:[#allocation2 + $0x34b] sm:$0x7] %v2082
  %2099 = vst [vmem:[#allocation2 + $0x3cb] sm:$0x7] %v2083
  %v2100 = vld [vmem:[%s0] sm:$0x77]
  %v2101 = vld [vmem:[%s0 + $0x8] sm:$0x77]
  %v2102 = vld [vmem:[%s0 + $0x10] sm:$0x77]
  %v2103 = vld [vmem:[%s0 + $0x18] sm:$0x77]
  %v2104 = vld [vmem:[%s0 + $0x20] sm:$0x77]
  %v2105 = vld [vmem:[%s0 + $0x28] sm:$0x77]
  %v2106 = vld [vmem:[%s0 + $0x30] sm:$0x77]
  %v2107 = vld [vmem:[%s0 + $0x38] sm:$0x77]
  %v2116 = vcombine.high %v2100, %v2100
  %v2117 = vcombine.high %v2101, %v2101
  %v2118 = vcombine.high %v2102, %v2102
  %v2119 = vcombine.high %v2103, %v2103
  %v2120 = vcombine.high %v2104, %v2104
  %v2121 = vcombine.high %v2105, %v2105
  %v2122 = vcombine.high %v2106, %v2106
  %v2123 = vcombine.high %v2107, %v2107
  %2124 = vrot.lane.b32.xlu0 %v2100, 87
  %v2125 = vpop.permute.xlu0 %2124
  %2126 = vrot.lane.b32.xlu0 %v2116, 87
  %v2127 = vpop.permute.xlu0 %2126
  %2128 = vrot.lane.b32.xlu0 %v2101, 87
  %v2129 = vpop.permute.xlu0 %2128
  %2130 = vrot.lane.b32.xlu0 %v2117, 87
  %v2131 = vpop.permute.xlu0 %2130
  %2132 = vrot.lane.b32.xlu0 %v2102, 87
  %v2133 = vpop.permute.xlu0 %2132
  %2134 = vrot.lane.b32.xlu0 %v2118, 87
  %v2135 = vpop.permute.xlu0 %2134
  %2136 = vrot.lane.b32.xlu0 %v2103, 87
  %v2137 = vpop.permute.xlu0 %2136
  %2138 = vrot.lane.b32.xlu0 %v2119, 87
  %v2139 = vpop.permute.xlu0 %2138
  %2140 = vrot.lane.b32.xlu0 %v2104, 87
  %v2141 = vpop.permute.xlu0 %2140
  %2142 = vrot.lane.b32.xlu0 %v2120, 87
  %v2143 = vpop.permute.xlu0 %2142
  %2144 = vrot.lane.b32.xlu0 %v2105, 87
  %v2145 = vpop.permute.xlu0 %2144
  %2146 = vrot.lane.b32.xlu0 %v2121, 87
  %v2147 = vpop.permute.xlu0 %2146
  %2148 = vrot.lane.b32.xlu0 %v2106, 87
  %v2149 = vpop.permute.xlu0 %2148
  %2150 = vrot.lane.b32.xlu0 %v2122, 87
  %v2151 = vpop.permute.xlu0 %2150
  %2152 = vrot.lane.b32.xlu0 %v2107, 87
  %v2153 = vpop.permute.xlu0 %2152
  %2154 = vrot.lane.b32.xlu0 %v2123, 87
  %v2155 = vpop.permute.xlu0 %2154
  %vm2156 = vcmask 711680
  %v2157 = vsel %vm2156, %v2125, %v2127
  %v2158 = vsel %vm2156, %v2129, %v2131
  %v2159 = vsel %vm2156, %v2133, %v2135
  %v2160 = vsel %vm2156, %v2137, %v2139
  %v2161 = vsel %vm2156, %v2141, %v2143
  %v2162 = vsel %vm2156, %v2145, %v2147
  %v2163 = vsel %vm2156, %v2149, %v2151
  %v2164 = vsel %vm2156, %v2153, %v2155
  %2173 = vst [vmem:[#allocation2 + $0x4e] sm:$0x7] %v2157
  %2174 = vst [vmem:[#allocation2 + $0xce] sm:$0x7] %v2158
  %2175 = vst [vmem:[#allocation2 + $0x14e] sm:$0x7] %v2159
  %2176 = vst [vmem:[#allocation2 + $0x1ce] sm:$0x7] %v2160
  %2177 = vst [vmem:[#allocation2 + $0x24e] sm:$0x7] %v2161
  %2178 = vst [vmem:[#allocation2 + $0x2ce] sm:$0x7] %v2162
  %2179 = vst [vmem:[#allocation2 + $0x34e] sm:$0x7] %v2163
  %2180 = vst [vmem:[#allocation2 + $0x3ce] sm:$0x7] %v2164
  %v2181 = vld [vmem:[%s0] sm:$0x77]
  %v2182 = vld [vmem:[%s0 + $0x8] sm:$0x77]
  %v2183 = vld [vmem:[%s0 + $0x10] sm:$0x77]
  %v2184 = vld [vmem:[%s0 + $0x18] sm:$0x77]
  %v2185 = vld [vmem:[%s0 + $0x20] sm:$0x77]
  %v2186 = vld [vmem:[%s0 + $0x28] sm:$0x77]
  %v2187 = vld [vmem:[%s0 + $0x30] sm:$0x77]
  %v2188 = vld [vmem:[%s0 + $0x38] sm:$0x77]
  %v2197 = vcombine.high %v2181, %v2181
  %v2198 = vcombine.high %v2182, %v2182
  %v2199 = vcombine.high %v2183, %v2183
  %v2200 = vcombine.high %v2184, %v2184
  %v2201 = vcombine.high %v2185, %v2185
  %v2202 = vcombine.high %v2186, %v2186
  %v2203 = vcombine.high %v2187, %v2187
  %v2204 = vcombine.high %v2188, %v2188
  %2205 = vrot.lane.b32.xlu0 %v2181, 86
  %v2206 = vpop.permute.xlu0 %2205
  %2207 = vrot.lane.b32.xlu0 %v2197, 86
  %v2208 = vpop.permute.xlu0 %2207
  %2209 = vrot.lane.b32.xlu0 %v2182, 86
  %v2210 = vpop.permute.xlu0 %2209
  %2211 = vrot.lane.b32.xlu0 %v2198, 86
  %v2212 = vpop.permute.xlu0 %2211
  %2213 = vrot.lane.b32.xlu0 %v2183, 86
  %v2214 = vpop.permute.xlu0 %2213
  %2215 = vrot.lane.b32.xlu0 %v2199, 86
  %v2216 = vpop.permute.xlu0 %2215
  %2217 = vrot.lane.b32.xlu0 %v2184, 86
  %v2218 = vpop.permute.xlu0 %2217
  %2219 = vrot.lane.b32.xlu0 %v2200, 86
  %v2220 = vpop.permute.xlu0 %2219
  %2221 = vrot.lane.b32.xlu0 %v2185, 86
  %v2222 = vpop.permute.xlu0 %2221
  %2223 = vrot.lane.b32.xlu0 %v2201, 86
  %v2224 = vpop.permute.xlu0 %2223
  %2225 = vrot.lane.b32.xlu0 %v2186, 86
  %v2226 = vpop.permute.xlu0 %2225
  %2227 = vrot.lane.b32.xlu0 %v2202, 86
  %v2228 = vpop.permute.xlu0 %2227
  %2229 = vrot.lane.b32.xlu0 %v2187, 86
  %v2230 = vpop.permute.xlu0 %2229
  %2231 = vrot.lane.b32.xlu0 %v2203, 86
  %v2232 = vpop.permute.xlu0 %2231
  %2233 = vrot.lane.b32.xlu0 %v2188, 86
  %v2234 = vpop.permute.xlu0 %2233
  %2235 = vrot.lane.b32.xlu0 %v2204, 86
  %v2236 = vpop.permute.xlu0 %2235
  %vm2237 = vcmask 703488
  %v2238 = vsel %vm2237, %v2206, %v2208
  %v2239 = vsel %vm2237, %v2210, %v2212
  %v2240 = vsel %vm2237, %v2214, %v2216
  %v2241 = vsel %vm2237, %v2218, %v2220
  %v2242 = vsel %vm2237, %v2222, %v2224
  %v2243 = vsel %vm2237, %v2226, %v2228
  %v2244 = vsel %vm2237, %v2230, %v2232
  %v2245 = vsel %vm2237, %v2234, %v2236
  %2254 = vst [vmem:[#allocation2 + $0x51] sm:$0x7] %v2238
  %2255 = vst [vmem:[#allocation2 + $0xd1] sm:$0x7] %v2239
  %2256 = vst [vmem:[#allocation2 + $0x151] sm:$0x7] %v2240
  %2257 = vst [vmem:[#allocation2 + $0x1d1] sm:$0x7] %v2241
  %2258 = vst [vmem:[#allocation2 + $0x251] sm:$0x7] %v2242
  %2259 = vst [vmem:[#allocation2 + $0x2d1] sm:$0x7] %v2243
  %2260 = vst [vmem:[#allocation2 + $0x351] sm:$0x7] %v2244
  %2261 = vst [vmem:[#allocation2 + $0x3d1] sm:$0x7] %v2245
  %v2262 = vld [vmem:[%s0] sm:$0x77]
  %v2263 = vld [vmem:[%s0 + $0x8] sm:$0x77]
  %v2264 = vld [vmem:[%s0 + $0x10] sm:$0x77]
  %v2265 = vld [vmem:[%s0 + $0x18] sm:$0x77]
  %v2266 = vld [vmem:[%s0 + $0x20] sm:$0x77]
  %v2267 = vld [vmem:[%s0 + $0x28] sm:$0x77]
  %v2268 = vld [vmem:[%s0 + $0x30] sm:$0x77]
  %v2269 = vld [vmem:[%s0 + $0x38] sm:$0x77]
  %v2278 = vcombine.high %v2262, %v2262
  %v2279 = vcombine.high %v2263, %v2263
  %v2280 = vcombine.high %v2264, %v2264
  %v2281 = vcombine.high %v2265, %v2265
  %v2282 = vcombine.high %v2266, %v2266
  %v2283 = vcombine.high %v2267, %v2267
  %v2284 = vcombine.high %v2268, %v2268
  %v2285 = vcombine.high %v2269, %v2269
  %2286 = vrot.lane.b32.xlu0 %v2262, 80
  %v2287 = vpop.permute.xlu0 %2286
  %2288 = vrot.lane.b32.xlu0 %v2278, 80
  %v2289 = vpop.permute.xlu0 %2288
  %2290 = vrot.lane.b32.xlu0 %v2263, 80
  %v2291 = vpop.permute.xlu0 %2290
  %2292 = vrot.lane.b32.xlu0 %v2279, 80
  %v2293 = vpop.permute.xlu0 %2292
  %2294 = vrot.lane.b32.xlu0 %v2264, 80
  %v2295 = vpop.permute.xlu0 %2294
  %2296 = vrot.lane.b32.xlu0 %v2280, 80
  %v2297 = vpop.permute.xlu0 %2296
  %2298 = vrot.lane.b32.xlu0 %v2265, 80
  %v2299 = vpop.permute.xlu0 %2298
  %2300 = vrot.lane.b32.xlu0 %v2281, 80
  %v2301 = vpop.permute.xlu0 %2300
  %2302 = vrot.lane.b32.xlu0 %v2266, 80
  %v2303 = vpop.permute.xlu0 %2302
  %2304 = vrot.lane.b32.xlu0 %v2282, 80
  %v2305 = vpop.permute.xlu0 %2304
  %2306 = vrot.lane.b32.xlu0 %v2267, 80
  %v2307 = vpop.permute.xlu0 %2306
  %2308 = vrot.lane.b32.xlu0 %v2283, 80
  %v2309 = vpop.permute.xlu0 %2308
  %2310 = vrot.lane.b32.xlu0 %v2268, 80
  %v2311 = vpop.permute.xlu0 %2310
  %2312 = vrot.lane.b32.xlu0 %v2284, 80
  %v2313 = vpop.permute.xlu0 %2312
  %2314 = vrot.lane.b32.xlu0 %v2269, 80
  %v2315 = vpop.permute.xlu0 %2314
  %2316 = vrot.lane.b32.xlu0 %v2285, 80
  %v2317 = vpop.permute.xlu0 %2316
  %vm2318 = vcmask 654336
  %v2319 = vsel %vm2318, %v2287, %v2289
  %v2320 = vsel %vm2318, %v2291, %v2293
  %v2321 = vsel %vm2318, %v2295, %v2297
  %v2322 = vsel %vm2318, %v2299, %v2301
  %v2323 = vsel %vm2318, %v2303, %v2305
  %v2324 = vsel %vm2318, %v2307, %v2309
  %v2325 = vsel %vm2318, %v2311, %v2313
  %v2326 = vsel %vm2318, %v2315, %v2317
  %2335 = vst [vmem:[#allocation2 + $0x54] sm:$0x7] %v2319
  %2336 = vst [vmem:[#allocation2 + $0xd4] sm:$0x7] %v2320
  %2337 = vst [vmem:[#allocation2 + $0x154] sm:$0x7] %v2321
  %2338 = vst [vmem:[#allocation2 + $0x1d4] sm:$0x7] %v2322
  %2339 = vst [vmem:[#allocation2 + $0x254] sm:$0x7] %v2323
  %2340 = vst [vmem:[#allocation2 + $0x2d4] sm:$0x7] %v2324
  %2341 = vst [vmem:[#allocation2 + $0x354] sm:$0x7] %v2325
  %2342 = vst [vmem:[#allocation2 + $0x3d4] sm:$0x7] %v2326
  %v2343 = vld [vmem:[%s0] sm:$0x77]
  %v2344 = vld [vmem:[%s0 + $0x8] sm:$0x77]
  %v2345 = vld [vmem:[%s0 + $0x10] sm:$0x77]
  %v2346 = vld [vmem:[%s0 + $0x18] sm:$0x77]
  %v2347 = vld [vmem:[%s0 + $0x20] sm:$0x77]
  %v2348 = vld [vmem:[%s0 + $0x28] sm:$0x77]
  %v2349 = vld [vmem:[%s0 + $0x30] sm:$0x77]
  %v2350 = vld [vmem:[%s0 + $0x38] sm:$0x77]
  %v2359 = vcombine.high %v2343, %v2343
  %v2360 = vcombine.high %v2344, %v2344
  %v2361 = vcombine.high %v2345, %v2345
  %v2362 = vcombine.high %v2346, %v2346
  %v2363 = vcombine.high %v2347, %v2347
  %v2364 = vcombine.high %v2348, %v2348
  %v2365 = vcombine.high %v2349, %v2349
  %v2366 = vcombine.high %v2350, %v2350
  %2367 = vrot.lane.b32.xlu0 %v2343, 79
  %v2368 = vpop.permute.xlu0 %2367
  %2369 = vrot.lane.b32.xlu0 %v2359, 79
  %v2370 = vpop.permute.xlu0 %2369
  %2371 = vrot.lane.b32.xlu0 %v2344, 79
  %v2372 = vpop.permute.xlu0 %2371
  %2373 = vrot.lane.b32.xlu0 %v2360, 79
  %v2374 = vpop.permute.xlu0 %2373
  %2375 = vrot.lane.b32.xlu0 %v2345, 79
  %v2376 = vpop.permute.xlu0 %2375
  %2377 = vrot.lane.b32.xlu0 %v2361, 79
  %v2378 = vpop.permute.xlu0 %2377
  %2379 = vrot.lane.b32.xlu0 %v2346, 79
  %v2380 = vpop.permute.xlu0 %2379
  %2381 = vrot.lane.b32.xlu0 %v2362, 79
  %v2382 = vpop.permute.xlu0 %2381
  %2383 = vrot.lane.b32.xlu0 %v2347, 79
  %v2384 = vpop.permute.xlu0 %2383
  %2385 = vrot.lane.b32.xlu0 %v2363, 79
  %v2386 = vpop.permute.xlu0 %2385
  %2387 = vrot.lane.b32.xlu0 %v2348, 79
  %v2388 = vpop.permute.xlu0 %2387
  %2389 = vrot.lane.b32.xlu0 %v2364, 79
  %v2390 = vpop.permute.xlu0 %2389
  %2391 = vrot.lane.b32.xlu0 %v2349, 79
  %v2392 = vpop.permute.xlu0 %2391
  %2393 = vrot.lane.b32.xlu0 %v2365, 79
  %v2394 = vpop.permute.xlu0 %2393
  %2395 = vrot.lane.b32.xlu0 %v2350, 79
  %v2396 = vpop.permute.xlu0 %2395
  %2397 = vrot.lane.b32.xlu0 %v2366, 79
  %v2398 = vpop.permute.xlu0 %2397
  %vm2399 = vcmask 646144
  %v2400 = vsel %vm2399, %v2368, %v2370
  %v2401 = vsel %vm2399, %v2372, %v2374
  %v2402 = vsel %vm2399, %v2376, %v2378
  %v2403 = vsel %vm2399, %v2380, %v2382
  %v2404 = vsel %vm2399, %v2384, %v2386
  %v2405 = vsel %vm2399, %v2388, %v2390
  %v2406 = vsel %vm2399, %v2392, %v2394
  %v2407 = vsel %vm2399, %v2396, %v2398
  %2416 = vst [vmem:[#allocation2 + $0x57] sm:$0x7] %v2400
  %2417 = vst [vmem:[#allocation2 + $0xd7] sm:$0x7] %v2401
  %2418 = vst [vmem:[#allocation2 + $0x157] sm:$0x7] %v2402
  %2419 = vst [vmem:[#allocation2 + $0x1d7] sm:$0x7] %v2403
  %2420 = vst [vmem:[#allocation2 + $0x257] sm:$0x7] %v2404
  %2421 = vst [vmem:[#allocation2 + $0x2d7] sm:$0x7] %v2405
  %2422 = vst [vmem:[#allocation2 + $0x357] sm:$0x7] %v2406
  %2423 = vst [vmem:[#allocation2 + $0x3d7] sm:$0x7] %v2407
  %v2424 = vld [vmem:[%s0] sm:$0x77]
  %v2425 = vld [vmem:[%s0 + $0x8] sm:$0x77]
  %v2426 = vld [vmem:[%s0 + $0x10] sm:$0x77]
  %v2427 = vld [vmem:[%s0 + $0x18] sm:$0x77]
  %v2428 = vld [vmem:[%s0 + $0x20] sm:$0x77]
  %v2429 = vld [vmem:[%s0 + $0x28] sm:$0x77]
  %v2430 = vld [vmem:[%s0 + $0x30] sm:$0x77]
  %v2431 = vld [vmem:[%s0 + $0x38] sm:$0x77]
  %v2440 = vcombine.high %v2424, %v2424
  %v2441 = vcombine.high %v2425, %v2425
  %v2442 = vcombine.high %v2426, %v2426
  %v2443 = vcombine.high %v2427, %v2427
  %v2444 = vcombine.high %v2428, %v2428
  %v2445 = vcombine.high %v2429, %v2429
  %v2446 = vcombine.high %v2430, %v2430
  %v2447 = vcombine.high %v2431, %v2431
  %2448 = vrot.lane.b32.xlu0 %v2424, 78
  %v2449 = vpop.permute.xlu0 %2448
  %2450 = vrot.lane.b32.xlu0 %v2440, 78
  %v2451 = vpop.permute.xlu0 %2450
  %2452 = vrot.lane.b32.xlu0 %v2425, 78
  %v2453 = vpop.permute.xlu0 %2452
  %2454 = vrot.lane.b32.xlu0 %v2441, 78
  %v2455 = vpop.permute.xlu0 %2454
  %2456 = vrot.lane.b32.xlu0 %v2426, 78
  %v2457 = vpop.permute.xlu0 %2456
  %2458 = vrot.lane.b32.xlu0 %v2442, 78
  %v2459 = vpop.permute.xlu0 %2458
  %2460 = vrot.lane.b32.xlu0 %v2427, 78
  %v2461 = vpop.permute.xlu0 %2460
  %2462 = vrot.lane.b32.xlu0 %v2443, 78
  %v2463 = vpop.permute.xlu0 %2462
  %2464 = vrot.lane.b32.xlu0 %v2428, 78
  %v2465 = vpop.permute.xlu0 %2464
  %2466 = vrot.lane.b32.xlu0 %v2444, 78
  %v2467 = vpop.permute.xlu0 %2466
  %2468 = vrot.lane.b32.xlu0 %v2429, 78
  %v2469 = vpop.permute.xlu0 %2468
  %2470 = vrot.lane.b32.xlu0 %v2445, 78
  %v2471 = vpop.permute.xlu0 %2470
  %2472 = vrot.lane.b32.xlu0 %v2430, 78
  %v2473 = vpop.permute.xlu0 %2472
  %2474 = vrot.lane.b32.xlu0 %v2446, 78
  %v2475 = vpop.permute.xlu0 %2474
  %2476 = vrot.lane.b32.xlu0 %v2431, 78
  %v2477 = vpop.permute.xlu0 %2476
  %2478 = vrot.lane.b32.xlu0 %v2447, 78
  %v2479 = vpop.permute.xlu0 %2478
  %vm2480 = vcmask 637952
  %v2481 = vsel %vm2480, %v2449, %v2451
  %v2482 = vsel %vm2480, %v2453, %v2455
  %v2483 = vsel %vm2480, %v2457, %v2459
  %v2484 = vsel %vm2480, %v2461, %v2463
  %v2485 = vsel %vm2480, %v2465, %v2467
  %v2486 = vsel %vm2480, %v2469, %v2471
  %v2487 = vsel %vm2480, %v2473, %v2475
  %v2488 = vsel %vm2480, %v2477, %v2479
  %2497 = vst [vmem:[#allocation2 + $0x5a] sm:$0x7] %v2481
  %2498 = vst [vmem:[#allocation2 + $0xda] sm:$0x7] %v2482
  %2499 = vst [vmem:[#allocation2 + $0x15a] sm:$0x7] %v2483
  %2500 = vst [vmem:[#allocation2 + $0x1da] sm:$0x7] %v2484
  %2501 = vst [vmem:[#allocation2 + $0x25a] sm:$0x7] %v2485
  %2502 = vst [vmem:[#allocation2 + $0x2da] sm:$0x7] %v2486
  %2503 = vst [vmem:[#allocation2 + $0x35a] sm:$0x7] %v2487
  %2504 = vst [vmem:[#allocation2 + $0x3da] sm:$0x7] %v2488
  %v2505 = vld [vmem:[%s0] sm:$0x77]
  %v2506 = vld [vmem:[%s0 + $0x8] sm:$0x77]
  %v2507 = vld [vmem:[%s0 + $0x10] sm:$0x77]
  %v2508 = vld [vmem:[%s0 + $0x18] sm:$0x77]
  %v2509 = vld [vmem:[%s0 + $0x20] sm:$0x77]
  %v2510 = vld [vmem:[%s0 + $0x28] sm:$0x77]
  %v2511 = vld [vmem:[%s0 + $0x30] sm:$0x77]
  %v2512 = vld [vmem:[%s0 + $0x38] sm:$0x77]
  %v2521 = vcombine.high %v2505, %v2505
  %v2522 = vcombine.high %v2506, %v2506
  %v2523 = vcombine.high %v2507, %v2507
  %v2524 = vcombine.high %v2508, %v2508
  %v2525 = vcombine.high %v2509, %v2509
  %v2526 = vcombine.high %v2510, %v2510
  %v2527 = vcombine.high %v2511, %v2511
  %v2528 = vcombine.high %v2512, %v2512
  %2529 = vrot.lane.b32.xlu0 %v2505, 77
  %v2530 = vpop.permute.xlu0 %2529
  %2531 = vrot.lane.b32.xlu0 %v2521, 77
  %v2532 = vpop.permute.xlu0 %2531
  %2533 = vrot.lane.b32.xlu0 %v2506, 77
  %v2534 = vpop.permute.xlu0 %2533
  %2535 = vrot.lane.b32.xlu0 %v2522, 77
  %v2536 = vpop.permute.xlu0 %2535
  %2537 = vrot.lane.b32.xlu0 %v2507, 77
  %v2538 = vpop.permute.xlu0 %2537
  %2539 = vrot.lane.b32.xlu0 %v2523, 77
  %v2540 = vpop.permute.xlu0 %2539
  %2541 = vrot.lane.b32.xlu0 %v2508, 77
  %v2542 = vpop.permute.xlu0 %2541
  %2543 = vrot.lane.b32.xlu0 %v2524, 77
  %v2544 = vpop.permute.xlu0 %2543
  %2545 = vrot.lane.b32.xlu0 %v2509, 77
  %v2546 = vpop.permute.xlu0 %2545
  %2547 = vrot.lane.b32.xlu0 %v2525, 77
  %v2548 = vpop.permute.xlu0 %2547
  %2549 = vrot.lane.b32.xlu0 %v2510, 77
  %v2550 = vpop.permute.xlu0 %2549
  %2551 = vrot.lane.b32.xlu0 %v2526, 77
  %v2552 = vpop.permute.xlu0 %2551
  %2553 = vrot.lane.b32.xlu0 %v2511, 77
  %v2554 = vpop.permute.xlu0 %2553
  %2555 = vrot.lane.b32.xlu0 %v2527, 77
  %v2556 = vpop.permute.xlu0 %2555
  %2557 = vrot.lane.b32.xlu0 %v2512, 77
  %v2558 = vpop.permute.xlu0 %2557
  %2559 = vrot.lane.b32.xlu0 %v2528, 77
  %v2560 = vpop.permute.xlu0 %2559
  %vm2561 = vcmask 629760
  %v2562 = vsel %vm2561, %v2530, %v2532
  %v2563 = vsel %vm2561, %v2534, %v2536
  %v2564 = vsel %vm2561, %v2538, %v2540
  %v2565 = vsel %vm2561, %v2542, %v2544
  %v2566 = vsel %vm2561, %v2546, %v2548
  %v2567 = vsel %vm2561, %v2550, %v2552
  %v2568 = vsel %vm2561, %v2554, %v2556
  %v2569 = vsel %vm2561, %v2558, %v2560
  %2578 = vst [vmem:[#allocation2 + $0x5d] sm:$0x7] %v2562
  %2579 = vst [vmem:[#allocation2 + $0xdd] sm:$0x7] %v2563
  %2580 = vst [vmem:[#allocation2 + $0x15d] sm:$0x7] %v2564
  %2581 = vst [vmem:[#allocation2 + $0x1dd] sm:$0x7] %v2565
  %2582 = vst [vmem:[#allocation2 + $0x25d] sm:$0x7] %v2566
  %2583 = vst [vmem:[#allocation2 + $0x2dd] sm:$0x7] %v2567
  %2584 = vst [vmem:[#allocation2 + $0x35d] sm:$0x7] %v2568
  %2585 = vst [vmem:[#allocation2 + $0x3dd] sm:$0x7] %v2569
  %v2586 = vld [vmem:[%s0] sm:$0x77]
  %v2587 = vld [vmem:[%s0 + $0x8] sm:$0x77]
  %v2588 = vld [vmem:[%s0 + $0x10] sm:$0x77]
  %v2589 = vld [vmem:[%s0 + $0x18] sm:$0x77]
  %v2590 = vld [vmem:[%s0 + $0x20] sm:$0x77]
  %v2591 = vld [vmem:[%s0 + $0x28] sm:$0x77]
  %v2592 = vld [vmem:[%s0 + $0x30] sm:$0x77]
  %v2593 = vld [vmem:[%s0 + $0x38] sm:$0x77]
  %v2602 = vcombine.high %v2586, %v2586
  %v2603 = vcombine.high %v2587, %v2587
  %v2604 = vcombine.high %v2588, %v2588
  %v2605 = vcombine.high %v2589, %v2589
  %v2606 = vcombine.high %v2590, %v2590
  %v2607 = vcombine.high %v2591, %v2591
  %v2608 = vcombine.high %v2592, %v2592
  %v2609 = vcombine.high %v2593, %v2593
  %2610 = vrot.lane.b32.xlu0 %v2586, 76
  %v2611 = vpop.permute.xlu0 %2610
  %2612 = vrot.lane.b32.xlu0 %v2602, 76
  %v2613 = vpop.permute.xlu0 %2612
  %2614 = vrot.lane.b32.xlu0 %v2587, 76
  %v2615 = vpop.permute.xlu0 %2614
  %2616 = vrot.lane.b32.xlu0 %v2603, 76
  %v2617 = vpop.permute.xlu0 %2616
  %2618 = vrot.lane.b32.xlu0 %v2588, 76
  %v2619 = vpop.permute.xlu0 %2618
  %2620 = vrot.lane.b32.xlu0 %v2604, 76
  %v2621 = vpop.permute.xlu0 %2620
  %2622 = vrot.lane.b32.xlu0 %v2589, 76
  %v2623 = vpop.permute.xlu0 %2622
  %2624 = vrot.lane.b32.xlu0 %v2605, 76
  %v2625 = vpop.permute.xlu0 %2624
  %2626 = vrot.lane.b32.xlu0 %v2590, 76
  %v2627 = vpop.permute.xlu0 %2626
  %2628 = vrot.lane.b32.xlu0 %v2606, 76
  %v2629 = vpop.permute.xlu0 %2628
  %2630 = vrot.lane.b32.xlu0 %v2591, 76
  %v2631 = vpop.permute.xlu0 %2630
  %2632 = vrot.lane.b32.xlu0 %v2607, 76
  %v2633 = vpop.permute.xlu0 %2632
  %2634 = vrot.lane.b32.xlu0 %v2592, 76
  %v2635 = vpop.permute.xlu0 %2634
  %2636 = vrot.lane.b32.xlu0 %v2608, 76
  %v2637 = vpop.permute.xlu0 %2636
  %2638 = vrot.lane.b32.xlu0 %v2593, 76
  %v2639 = vpop.permute.xlu0 %2638
  %2640 = vrot.lane.b32.xlu0 %v2609, 76
  %v2641 = vpop.permute.xlu0 %2640
  %vm2642 = vcmask 621568
  %v2643 = vsel %vm2642, %v2611, %v2613
  %v2644 = vsel %vm2642, %v2615, %v2617
  %v2645 = vsel %vm2642, %v2619, %v2621
  %v2646 = vsel %vm2642, %v2623, %v2625
  %v2647 = vsel %vm2642, %v2627, %v2629
  %v2648 = vsel %vm2642, %v2631, %v2633
  %v2649 = vsel %vm2642, %v2635, %v2637
  %v2650 = vsel %vm2642, %v2639, %v2641
  %2659 = vst [vmem:[#allocation2 + $0x60] sm:$0x7] %v2643
  %2660 = vst [vmem:[#allocation2 + $0xe0] sm:$0x7] %v2644
  %2661 = vst [vmem:[#allocation2 + $0x160] sm:$0x7] %v2645
  %2662 = vst [vmem:[#allocation2 + $0x1e0] sm:$0x7] %v2646
  %2663 = vst [vmem:[#allocation2 + $0x260] sm:$0x7] %v2647
  %2664 = vst [vmem:[#allocation2 + $0x2e0] sm:$0x7] %v2648
  %2665 = vst [vmem:[#allocation2 + $0x360] sm:$0x7] %v2649
  %2666 = vst [vmem:[#allocation2 + $0x3e0] sm:$0x7] %v2650
  %v2667 = vld [vmem:[%s0] sm:$0x77]
  %v2668 = vld [vmem:[%s0 + $0x8] sm:$0x77]
  %v2669 = vld [vmem:[%s0 + $0x10] sm:$0x77]
  %v2670 = vld [vmem:[%s0 + $0x18] sm:$0x77]
  %v2671 = vld [vmem:[%s0 + $0x20] sm:$0x77]
  %v2672 = vld [vmem:[%s0 + $0x28] sm:$0x77]
  %v2673 = vld [vmem:[%s0 + $0x30] sm:$0x77]
  %v2674 = vld [vmem:[%s0 + $0x38] sm:$0x77]
  %v2683 = vcombine.high %v2667, %v2667
  %v2684 = vcombine.high %v2668, %v2668
  %v2685 = vcombine.high %v2669, %v2669
  %v2686 = vcombine.high %v2670, %v2670
  %v2687 = vcombine.high %v2671, %v2671
  %v2688 = vcombine.high %v2672, %v2672
  %v2689 = vcombine.high %v2673, %v2673
  %v2690 = vcombine.high %v2674, %v2674
  %2691 = vrot.lane.b32.xlu0 %v2667, 75
  %v2692 = vpop.permute.xlu0 %2691
  %2693 = vrot.lane.b32.xlu0 %v2683, 75
  %v2694 = vpop.permute.xlu0 %2693
  %2695 = vrot.lane.b32.xlu0 %v2668, 75
  %v2696 = vpop.permute.xlu0 %2695
  %2697 = vrot.lane.b32.xlu0 %v2684, 75
  %v2698 = vpop.permute.xlu0 %2697
  %2699 = vrot.lane.b32.xlu0 %v2669, 75
  %v2700 = vpop.permute.xlu0 %2699
  %2701 = vrot.lane.b32.xlu0 %v2685, 75
  %v2702 = vpop.permute.xlu0 %2701
  %2703 = vrot.lane.b32.xlu0 %v2670, 75
  %v2704 = vpop.permute.xlu0 %2703
  %2705 = vrot.lane.b32.xlu0 %v2686, 75
  %v2706 = vpop.permute.xlu0 %2705
  %2707 = vrot.lane.b32.xlu0 %v2671, 75
  %v2708 = vpop.permute.xlu0 %2707
  %2709 = vrot.lane.b32.xlu0 %v2687, 75
  %v2710 = vpop.permute.xlu0 %2709
  %2711 = vrot.lane.b32.xlu0 %v2672, 75
  %v2712 = vpop.permute.xlu0 %2711
  %2713 = vrot.lane.b32.xlu0 %v2688, 75
  %v2714 = vpop.permute.xlu0 %2713
  %2715 = vrot.lane.b32.xlu0 %v2673, 75
  %v2716 = vpop.permute.xlu0 %2715
  %2717 = vrot.lane.b32.xlu0 %v2689, 75
  %v2718 = vpop.permute.xlu0 %2717
  %2719 = vrot.lane.b32.xlu0 %v2674, 75
  %v2720 = vpop.permute.xlu0 %2719
  %2721 = vrot.lane.b32.xlu0 %v2690, 75
  %v2722 = vpop.permute.xlu0 %2721
  %vm2723 = vcmask 613376
  %v2724 = vsel %vm2723, %v2692, %v2694
  %v2725 = vsel %vm2723, %v2696, %v2698
  %v2726 = vsel %vm2723, %v2700, %v2702
  %v2727 = vsel %vm2723, %v2704, %v2706
  %v2728 = vsel %vm2723, %v2708, %v2710
  %v2729 = vsel %vm2723, %v2712, %v2714
  %v2730 = vsel %vm2723, %v2716, %v2718
  %v2731 = vsel %vm2723, %v2720, %v2722
  %2740 = vst [vmem:[#allocation2 + $0x63] sm:$0x7] %v2724
  %2741 = vst [vmem:[#allocation2 + $0xe3] sm:$0x7] %v2725
  %2742 = vst [vmem:[#allocation2 + $0x163] sm:$0x7] %v2726
  %2743 = vst [vmem:[#allocation2 + $0x1e3] sm:$0x7] %v2727
  %2744 = vst [vmem:[#allocation2 + $0x263] sm:$0x7] %v2728
  %2745 = vst [vmem:[#allocation2 + $0x2e3] sm:$0x7] %v2729
  %2746 = vst [vmem:[#allocation2 + $0x363] sm:$0x7] %v2730
  %2747 = vst [vmem:[#allocation2 + $0x3e3] sm:$0x7] %v2731
  %v2748 = vld [vmem:[%s0] sm:$0x77]
  %v2749 = vld [vmem:[%s0 + $0x8] sm:$0x77]
  %v2750 = vld [vmem:[%s0 + $0x10] sm:$0x77]
  %v2751 = vld [vmem:[%s0 + $0x18] sm:$0x77]
  %v2752 = vld [vmem:[%s0 + $0x20] sm:$0x77]
  %v2753 = vld [vmem:[%s0 + $0x28] sm:$0x77]
  %v2754 = vld [vmem:[%s0 + $0x30] sm:$0x77]
  %v2755 = vld [vmem:[%s0 + $0x38] sm:$0x77]
  %v2764 = vcombine.high %v2748, %v2748
  %v2765 = vcombine.high %v2749, %v2749
  %v2766 = vcombine.high %v2750, %v2750
  %v2767 = vcombine.high %v2751, %v2751
  %v2768 = vcombine.high %v2752, %v2752
  %v2769 = vcombine.high %v2753, %v2753
  %v2770 = vcombine.high %v2754, %v2754
  %v2771 = vcombine.high %v2755, %v2755
  %2772 = vrot.lane.b32.xlu0 %v2748, 74
  %v2773 = vpop.permute.xlu0 %2772
  %2774 = vrot.lane.b32.xlu0 %v2764, 74
  %v2775 = vpop.permute.xlu0 %2774
  %2776 = vrot.lane.b32.xlu0 %v2749, 74
  %v2777 = vpop.permute.xlu0 %2776
  %2778 = vrot.lane.b32.xlu0 %v2765, 74
  %v2779 = vpop.permute.xlu0 %2778
  %2780 = vrot.lane.b32.xlu0 %v2750, 74
  %v2781 = vpop.permute.xlu0 %2780
  %2782 = vrot.lane.b32.xlu0 %v2766, 74
  %v2783 = vpop.permute.xlu0 %2782
  %2784 = vrot.lane.b32.xlu0 %v2751, 74
  %v2785 = vpop.permute.xlu0 %2784
  %2786 = vrot.lane.b32.xlu0 %v2767, 74
  %v2787 = vpop.permute.xlu0 %2786
  %2788 = vrot.lane.b32.xlu0 %v2752, 74
  %v2789 = vpop.permute.xlu0 %2788
  %2790 = vrot.lane.b32.xlu0 %v2768, 74
  %v2791 = vpop.permute.xlu0 %2790
  %2792 = vrot.lane.b32.xlu0 %v2753, 74
  %v2793 = vpop.permute.xlu0 %2792
  %2794 = vrot.lane.b32.xlu0 %v2769, 74
  %v2795 = vpop.permute.xlu0 %2794
  %2796 = vrot.lane.b32.xlu0 %v2754, 74
  %v2797 = vpop.permute.xlu0 %2796
  %2798 = vrot.lane.b32.xlu0 %v2770, 74
  %v2799 = vpop.permute.xlu0 %2798
  %2800 = vrot.lane.b32.xlu0 %v2755, 74
  %v2801 = vpop.permute.xlu0 %2800
  %2802 = vrot.lane.b32.xlu0 %v2771, 74
  %v2803 = vpop.permute.xlu0 %2802
  %vm2804 = vcmask 605184
  %v2805 = vsel %vm2804, %v2773, %v2775
  %v2806 = vsel %vm2804, %v2777, %v2779
  %v2807 = vsel %vm2804, %v2781, %v2783
  %v2808 = vsel %vm2804, %v2785, %v2787
  %v2809 = vsel %vm2804, %v2789, %v2791
  %v2810 = vsel %vm2804, %v2793, %v2795
  %v2811 = vsel %vm2804, %v2797, %v2799
  %v2812 = vsel %vm2804, %v2801, %v2803
  %2821 = vst [vmem:[#allocation2 + $0x66] sm:$0x7] %v2805
  %2822 = vst [vmem:[#allocation2 + $0xe6] sm:$0x7] %v2806
  %2823 = vst [vmem:[#allocation2 + $0x166] sm:$0x7] %v2807
  %2824 = vst [vmem:[#allocation2 + $0x1e6] sm:$0x7] %v2808
  %2825 = vst [vmem:[#allocation2 + $0x266] sm:$0x7] %v2809
  %2826 = vst [vmem:[#allocation2 + $0x2e6] sm:$0x7] %v2810
  %2827 = vst [vmem:[#allocation2 + $0x366] sm:$0x7] %v2811
  %2828 = vst [vmem:[#allocation2 + $0x3e6] sm:$0x7] %v2812
  %s2829 = scalar_lea.vmem %s0, 64
  %v2830 = vld [vmem:[%s2829] sm:$0x7]
  %v2831 = vld [vmem:[%s2829 + $0x8] sm:$0x7]
  %v2832 = vld [vmem:[%s2829 + $0x10] sm:$0x7]
  %v2833 = vld [vmem:[%s2829 + $0x18] sm:$0x7]
  %v2834 = vld [vmem:[%s2829 + $0x20] sm:$0x7]
  %v2835 = vld [vmem:[%s2829 + $0x28] sm:$0x7]
  %v2836 = vld [vmem:[%s2829 + $0x30] sm:$0x7]
  %v2837 = vld [vmem:[%s2829 + $0x38] sm:$0x7]
  %s2838 = scalar_lea.vmem [#allocation2], 1024
  %2839 = vst [vmem:[%s2838] sm:$0x7] %v2830
  %2840 = vst [vmem:[%s2838 + $0x80] sm:$0x7] %v2831
  %2841 = vst [vmem:[%s2838 + $0x100] sm:$0x7] %v2832
  %2842 = vst [vmem:[%s2838 + $0x180] sm:$0x7] %v2833
  %2843 = vst [vmem:[%s2838 + $0x200] sm:$0x7] %v2834
  %2844 = vst [vmem:[%s2838 + $0x280] sm:$0x7] %v2835
  %2845 = vst [vmem:[%s2838 + $0x300] sm:$0x7] %v2836
  %2846 = vst [vmem:[%s2838 + $0x380] sm:$0x7] %v2837
  %v2847 = vld [vmem:[%s2829] sm:$0x77]
  %v2848 = vld [vmem:[%s2829 + $0x8] sm:$0x77]
  %v2849 = vld [vmem:[%s2829 + $0x10] sm:$0x77]
  %v2850 = vld [vmem:[%s2829 + $0x18] sm:$0x77]
  %v2851 = vld [vmem:[%s2829 + $0x20] sm:$0x77]
  %v2852 = vld [vmem:[%s2829 + $0x28] sm:$0x77]
  %v2853 = vld [vmem:[%s2829 + $0x30] sm:$0x77]
  %v2854 = vld [vmem:[%s2829 + $0x38] sm:$0x77]
  %v2863 = vcombine.high %v2847, %v2847
  %v2864 = vcombine.high %v2848, %v2848
  %v2865 = vcombine.high %v2849, %v2849
  %v2866 = vcombine.high %v2850, %v2850
  %v2867 = vcombine.high %v2851, %v2851
  %v2868 = vcombine.high %v2852, %v2852
  %v2869 = vcombine.high %v2853, %v2853
  %v2870 = vcombine.high %v2854, %v2854
  %2871 = vrot.lane.b32.xlu0 %v2847, 127
  %v2872 = vpop.permute.xlu0 %2871
  %2873 = vrot.lane.b32.xlu0 %v2863, 127
  %v2874 = vpop.permute.xlu0 %2873
  %2875 = vrot.lane.b32.xlu0 %v2848, 127
  %v2876 = vpop.permute.xlu0 %2875
  %2877 = vrot.lane.b32.xlu0 %v2864, 127
  %v2878 = vpop.permute.xlu0 %2877
  %2879 = vrot.lane.b32.xlu0 %v2849, 127
  %v2880 = vpop.permute.xlu0 %2879
  %2881 = vrot.lane.b32.xlu0 %v2865, 127
  %v2882 = vpop.permute.xlu0 %2881
  %2883 = vrot.lane.b32.xlu0 %v2850, 127
  %v2884 = vpop.permute.xlu0 %2883
  %2885 = vrot.lane.b32.xlu0 %v2866, 127
  %v2886 = vpop.permute.xlu0 %2885
  %2887 = vrot.lane.b32.xlu0 %v2851, 127
  %v2888 = vpop.permute.xlu0 %2887
  %2889 = vrot.lane.b32.xlu0 %v2867, 127
  %v2890 = vpop.permute.xlu0 %2889
  %2891 = vrot.lane.b32.xlu0 %v2852, 127
  %v2892 = vpop.permute.xlu0 %2891
  %2893 = vrot.lane.b32.xlu0 %v2868, 127
  %v2894 = vpop.permute.xlu0 %2893
  %2895 = vrot.lane.b32.xlu0 %v2853, 127
  %v2896 = vpop.permute.xlu0 %2895
  %2897 = vrot.lane.b32.xlu0 %v2869, 127
  %v2898 = vpop.permute.xlu0 %2897
  %2899 = vrot.lane.b32.xlu0 %v2854, 127
  %v2900 = vpop.permute.xlu0 %2899
  %2901 = vrot.lane.b32.xlu0 %v2870, 127
  %v2902 = vpop.permute.xlu0 %2901
  %v2903 = vsel %vm131, %v2872, %v2874
  %v2904 = vsel %vm131, %v2876, %v2878
  %v2905 = vsel %vm131, %v2880, %v2882
  %v2906 = vsel %vm131, %v2884, %v2886
  %v2907 = vsel %vm131, %v2888, %v2890
  %v2908 = vsel %vm131, %v2892, %v2894
  %v2909 = vsel %vm131, %v2896, %v2898
  %v2910 = vsel %vm131, %v2900, %v2902
  %2919 = vst [vmem:[%s2838 + $0x3] sm:$0x7] %v2903
  %2920 = vst [vmem:[%s2838 + $0x83] sm:$0x7] %v2904
  %2921 = vst [vmem:[%s2838 + $0x103] sm:$0x7] %v2905
  %2922 = vst [vmem:[%s2838 + $0x183] sm:$0x7] %v2906
  %2923 = vst [vmem:[%s2838 + $0x203] sm:$0x7] %v2907
  %2924 = vst [vmem:[%s2838 + $0x283] sm:$0x7] %v2908
  %2925 = vst [vmem:[%s2838 + $0x303] sm:$0x7] %v2909
  %2926 = vst [vmem:[%s2838 + $0x383] sm:$0x7] %v2910
  %v2927 = vld [vmem:[%s2829] sm:$0x77]
  %v2928 = vld [vmem:[%s2829 + $0x8] sm:$0x77]
  %v2929 = vld [vmem:[%s2829 + $0x10] sm:$0x77]
  %v2930 = vld [vmem:[%s2829 + $0x18] sm:$0x77]
  %v2931 = vld [vmem:[%s2829 + $0x20] sm:$0x77]
  %v2932 = vld [vmem:[%s2829 + $0x28] sm:$0x77]
  %v2933 = vld [vmem:[%s2829 + $0x30] sm:$0x77]
  %v2934 = vld [vmem:[%s2829 + $0x38] sm:$0x77]
  %v2943 = vcombine.high %v2927, %v2927
  %v2944 = vcombine.high %v2928, %v2928
  %v2945 = vcombine.high %v2929, %v2929
  %v2946 = vcombine.high %v2930, %v2930
  %v2947 = vcombine.high %v2931, %v2931
  %v2948 = vcombine.high %v2932, %v2932
  %v2949 = vcombine.high %v2933, %v2933
  %v2950 = vcombine.high %v2934, %v2934
  %2951 = vrot.lane.b32.xlu0 %v2927, 126
  %v2952 = vpop.permute.xlu0 %2951
  %2953 = vrot.lane.b32.xlu0 %v2943, 126
  %v2954 = vpop.permute.xlu0 %2953
  %2955 = vrot.lane.b32.xlu0 %v2928, 126
  %v2956 = vpop.permute.xlu0 %2955
  %2957 = vrot.lane.b32.xlu0 %v2944, 126
  %v2958 = vpop.permute.xlu0 %2957
  %2959 = vrot.lane.b32.xlu0 %v2929, 126
  %v2960 = vpop.permute.xlu0 %2959
  %2961 = vrot.lane.b32.xlu0 %v2945, 126
  %v2962 = vpop.permute.xlu0 %2961
  %2963 = vrot.lane.b32.xlu0 %v2930, 126
  %v2964 = vpop.permute.xlu0 %2963
  %2965 = vrot.lane.b32.xlu0 %v2946, 126
  %v2966 = vpop.permute.xlu0 %2965
  %2967 = vrot.lane.b32.xlu0 %v2931, 126
  %v2968 = vpop.permute.xlu0 %2967
  %2969 = vrot.lane.b32.xlu0 %v2947, 126
  %v2970 = vpop.permute.xlu0 %2969
  %2971 = vrot.lane.b32.xlu0 %v2932, 126
  %v2972 = vpop.permute.xlu0 %2971
  %2973 = vrot.lane.b32.xlu0 %v2948, 126
  %v2974 = vpop.permute.xlu0 %2973
  %2975 = vrot.lane.b32.xlu0 %v2933, 126
  %v2976 = vpop.permute.xlu0 %2975
  %2977 = vrot.lane.b32.xlu0 %v2949, 126
  %v2978 = vpop.permute.xlu0 %2977
  %2979 = vrot.lane.b32.xlu0 %v2934, 126
  %v2980 = vpop.permute.xlu0 %2979
  %2981 = vrot.lane.b32.xlu0 %v2950, 126
  %v2982 = vpop.permute.xlu0 %2981
  %v2983 = vsel %vm212, %v2952, %v2954
  %v2984 = vsel %vm212, %v2956, %v2958
  %v2985 = vsel %vm212, %v2960, %v2962
  %v2986 = vsel %vm212, %v2964, %v2966
  %v2987 = vsel %vm212, %v2968, %v2970
  %v2988 = vsel %vm212, %v2972, %v2974
  %v2989 = vsel %vm212, %v2976, %v2978
  %v2990 = vsel %vm212, %v2980, %v2982
  %2999 = vst [vmem:[%s2838 + $0x6] sm:$0x7] %v2983
  %3000 = vst [vmem:[%s2838 + $0x86] sm:$0x7] %v2984
  %3001 = vst [vmem:[%s2838 + $0x106] sm:$0x7] %v2985
  %3002 = vst [vmem:[%s2838 + $0x186] sm:$0x7] %v2986
  %3003 = vst [vmem:[%s2838 + $0x206] sm:$0x7] %v2987
  %3004 = vst [vmem:[%s2838 + $0x286] sm:$0x7] %v2988
  %3005 = vst [vmem:[%s2838 + $0x306] sm:$0x7] %v2989
  %3006 = vst [vmem:[%s2838 + $0x386] sm:$0x7] %v2990
  %v3007 = vld [vmem:[%s2829] sm:$0x77]
  %v3008 = vld [vmem:[%s2829 + $0x8] sm:$0x77]
  %v3009 = vld [vmem:[%s2829 + $0x10] sm:$0x77]
  %v3010 = vld [vmem:[%s2829 + $0x18] sm:$0x77]
  %v3011 = vld [vmem:[%s2829 + $0x20] sm:$0x77]
  %v3012 = vld [vmem:[%s2829 + $0x28] sm:$0x77]
  %v3013 = vld [vmem:[%s2829 + $0x30] sm:$0x77]
  %v3014 = vld [vmem:[%s2829 + $0x38] sm:$0x77]
  %v3023 = vcombine.high %v3007, %v3007
  %v3024 = vcombine.high %v3008, %v3008
  %v3025 = vcombine.high %v3009, %v3009
  %v3026 = vcombine.high %v3010, %v3010
  %v3027 = vcombine.high %v3011, %v3011
  %v3028 = vcombine.high %v3012, %v3012
  %v3029 = vcombine.high %v3013, %v3013
  %v3030 = vcombine.high %v3014, %v3014
  %3031 = vrot.lane.b32.xlu0 %v3007, 125
  %v3032 = vpop.permute.xlu0 %3031
  %3033 = vrot.lane.b32.xlu0 %v3023, 125
  %v3034 = vpop.permute.xlu0 %3033
  %3035 = vrot.lane.b32.xlu0 %v3008, 125
  %v3036 = vpop.permute.xlu0 %3035
  %3037 = vrot.lane.b32.xlu0 %v3024, 125
  %v3038 = vpop.permute.xlu0 %3037
  %3039 = vrot.lane.b32.xlu0 %v3009, 125
  %v3040 = vpop.permute.xlu0 %3039
  %3041 = vrot.lane.b32.xlu0 %v3025, 125
  %v3042 = vpop.permute.xlu0 %3041
  %3043 = vrot.lane.b32.xlu0 %v3010, 125
  %v3044 = vpop.permute.xlu0 %3043
  %3045 = vrot.lane.b32.xlu0 %v3026, 125
  %v3046 = vpop.permute.xlu0 %3045
  %3047 = vrot.lane.b32.xlu0 %v3011, 125
  %v3048 = vpop.permute.xlu0 %3047
  %3049 = vrot.lane.b32.xlu0 %v3027, 125
  %v3050 = vpop.permute.xlu0 %3049
  %3051 = vrot.lane.b32.xlu0 %v3012, 125
  %v3052 = vpop.permute.xlu0 %3051
  %3053 = vrot.lane.b32.xlu0 %v3028, 125
  %v3054 = vpop.permute.xlu0 %3053
  %3055 = vrot.lane.b32.xlu0 %v3013, 125
  %v3056 = vpop.permute.xlu0 %3055
  %3057 = vrot.lane.b32.xlu0 %v3029, 125
  %v3058 = vpop.permute.xlu0 %3057
  %3059 = vrot.lane.b32.xlu0 %v3014, 125
  %v3060 = vpop.permute.xlu0 %3059
  %3061 = vrot.lane.b32.xlu0 %v3030, 125
  %v3062 = vpop.permute.xlu0 %3061
  %v3063 = vsel %vm293, %v3032, %v3034
  %v3064 = vsel %vm293, %v3036, %v3038
  %v3065 = vsel %vm293, %v3040, %v3042
  %v3066 = vsel %vm293, %v3044, %v3046
  %v3067 = vsel %vm293, %v3048, %v3050
  %v3068 = vsel %vm293, %v3052, %v3054
  %v3069 = vsel %vm293, %v3056, %v3058
  %v3070 = vsel %vm293, %v3060, %v3062
  %3079 = vst [vmem:[%s2838 + $0x9] sm:$0x7] %v3063
  %3080 = vst [vmem:[%s2838 + $0x89] sm:$0x7] %v3064
  %3081 = vst [vmem:[%s2838 + $0x109] sm:$0x7] %v3065
  %3082 = vst [vmem:[%s2838 + $0x189] sm:$0x7] %v3066
  %3083 = vst [vmem:[%s2838 + $0x209] sm:$0x7] %v3067
  %3084 = vst [vmem:[%s2838 + $0x289] sm:$0x7] %v3068
  %3085 = vst [vmem:[%s2838 + $0x309] sm:$0x7] %v3069
  %3086 = vst [vmem:[%s2838 + $0x389] sm:$0x7] %v3070
  %v3087 = vld [vmem:[%s2829] sm:$0x77]
  %v3088 = vld [vmem:[%s2829 + $0x8] sm:$0x77]
  %v3089 = vld [vmem:[%s2829 + $0x10] sm:$0x77]
  %v3090 = vld [vmem:[%s2829 + $0x18] sm:$0x77]
  %v3091 = vld [vmem:[%s2829 + $0x20] sm:$0x77]
  %v3092 = vld [vmem:[%s2829 + $0x28] sm:$0x77]
  %v3093 = vld [vmem:[%s2829 + $0x30] sm:$0x77]
  %v3094 = vld [vmem:[%s2829 + $0x38] sm:$0x77]
  %v3103 = vcombine.high %v3087, %v3087
  %v3104 = vcombine.high %v3088, %v3088
  %v3105 = vcombine.high %v3089, %v3089
  %v3106 = vcombine.high %v3090, %v3090
  %v3107 = vcombine.high %v3091, %v3091
  %v3108 = vcombine.high %v3092, %v3092
  %v3109 = vcombine.high %v3093, %v3093
  %v3110 = vcombine.high %v3094, %v3094
  %3111 = vrot.lane.b32.xlu0 %v3087, 124
  %v3112 = vpop.permute.xlu0 %3111
  %3113 = vrot.lane.b32.xlu0 %v3103, 124
  %v3114 = vpop.permute.xlu0 %3113
  %3115 = vrot.lane.b32.xlu0 %v3088, 124
  %v3116 = vpop.permute.xlu0 %3115
  %3117 = vrot.lane.b32.xlu0 %v3104, 124
  %v3118 = vpop.permute.xlu0 %3117
  %3119 = vrot.lane.b32.xlu0 %v3089, 124
  %v3120 = vpop.permute.xlu0 %3119
  %3121 = vrot.lane.b32.xlu0 %v3105, 124
  %v3122 = vpop.permute.xlu0 %3121
  %3123 = vrot.lane.b32.xlu0 %v3090, 124
  %v3124 = vpop.permute.xlu0 %3123
  %3125 = vrot.lane.b32.xlu0 %v3106, 124
  %v3126 = vpop.permute.xlu0 %3125
  %3127 = vrot.lane.b32.xlu0 %v3091, 124
  %v3128 = vpop.permute.xlu0 %3127
  %3129 = vrot.lane.b32.xlu0 %v3107, 124
  %v3130 = vpop.permute.xlu0 %3129
  %3131 = vrot.lane.b32.xlu0 %v3092, 124
  %v3132 = vpop.permute.xlu0 %3131
  %3133 = vrot.lane.b32.xlu0 %v3108, 124
  %v3134 = vpop.permute.xlu0 %3133
  %3135 = vrot.lane.b32.xlu0 %v3093, 124
  %v3136 = vpop.permute.xlu0 %3135
  %3137 = vrot.lane.b32.xlu0 %v3109, 124
  %v3138 = vpop.permute.xlu0 %3137
  %3139 = vrot.lane.b32.xlu0 %v3094, 124
  %v3140 = vpop.permute.xlu0 %3139
  %3141 = vrot.lane.b32.xlu0 %v3110, 124
  %v3142 = vpop.permute.xlu0 %3141
  %v3143 = vsel %vm374, %v3112, %v3114
  %v3144 = vsel %vm374, %v3116, %v3118
  %v3145 = vsel %vm374, %v3120, %v3122
  %v3146 = vsel %vm374, %v3124, %v3126
  %v3147 = vsel %vm374, %v3128, %v3130
  %v3148 = vsel %vm374, %v3132, %v3134
  %v3149 = vsel %vm374, %v3136, %v3138
  %v3150 = vsel %vm374, %v3140, %v3142
  %3159 = vst [vmem:[%s2838 + $0xc] sm:$0x7] %v3143
  %3160 = vst [vmem:[%s2838 + $0x8c] sm:$0x7] %v3144
  %3161 = vst [vmem:[%s2838 + $0x10c] sm:$0x7] %v3145
  %3162 = vst [vmem:[%s2838 + $0x18c] sm:$0x7] %v3146
  %3163 = vst [vmem:[%s2838 + $0x20c] sm:$0x7] %v3147
  %3164 = vst [vmem:[%s2838 + $0x28c] sm:$0x7] %v3148
  %3165 = vst [vmem:[%s2838 + $0x30c] sm:$0x7] %v3149
  %3166 = vst [vmem:[%s2838 + $0x38c] sm:$0x7] %v3150
  %v3167 = vld [vmem:[%s2829] sm:$0x77]
  %v3168 = vld [vmem:[%s2829 + $0x8] sm:$0x77]
  %v3169 = vld [vmem:[%s2829 + $0x10] sm:$0x77]
  %v3170 = vld [vmem:[%s2829 + $0x18] sm:$0x77]
  %v3171 = vld [vmem:[%s2829 + $0x20] sm:$0x77]
  %v3172 = vld [vmem:[%s2829 + $0x28] sm:$0x77]
  %v3173 = vld [vmem:[%s2829 + $0x30] sm:$0x77]
  %v3174 = vld [vmem:[%s2829 + $0x38] sm:$0x77]
  %v3183 = vcombine.high %v3167, %v3167
  %v3184 = vcombine.high %v3168, %v3168
  %v3185 = vcombine.high %v3169, %v3169
  %v3186 = vcombine.high %v3170, %v3170
  %v3187 = vcombine.high %v3171, %v3171
  %v3188 = vcombine.high %v3172, %v3172
  %v3189 = vcombine.high %v3173, %v3173
  %v3190 = vcombine.high %v3174, %v3174
  %3191 = vrot.lane.b32.xlu0 %v3167, 123
  %v3192 = vpop.permute.xlu0 %3191
  %3193 = vrot.lane.b32.xlu0 %v3183, 123
  %v3194 = vpop.permute.xlu0 %3193
  %3195 = vrot.lane.b32.xlu0 %v3168, 123
  %v3196 = vpop.permute.xlu0 %3195
  %3197 = vrot.lane.b32.xlu0 %v3184, 123
  %v3198 = vpop.permute.xlu0 %3197
  %3199 = vrot.lane.b32.xlu0 %v3169, 123
  %v3200 = vpop.permute.xlu0 %3199
  %3201 = vrot.lane.b32.xlu0 %v3185, 123
  %v3202 = vpop.permute.xlu0 %3201
  %3203 = vrot.lane.b32.xlu0 %v3170, 123
  %v3204 = vpop.permute.xlu0 %3203
  %3205 = vrot.lane.b32.xlu0 %v3186, 123
  %v3206 = vpop.permute.xlu0 %3205
  %3207 = vrot.lane.b32.xlu0 %v3171, 123
  %v3208 = vpop.permute.xlu0 %3207
  %3209 = vrot.lane.b32.xlu0 %v3187, 123
  %v3210 = vpop.permute.xlu0 %3209
  %3211 = vrot.lane.b32.xlu0 %v3172, 123
  %v3212 = vpop.permute.xlu0 %3211
  %3213 = vrot.lane.b32.xlu0 %v3188, 123
  %v3214 = vpop.permute.xlu0 %3213
  %3215 = vrot.lane.b32.xlu0 %v3173, 123
  %v3216 = vpop.permute.xlu0 %3215
  %3217 = vrot.lane.b32.xlu0 %v3189, 123
  %v3218 = vpop.permute.xlu0 %3217
  %3219 = vrot.lane.b32.xlu0 %v3174, 123
  %v3220 = vpop.permute.xlu0 %3219
  %3221 = vrot.lane.b32.xlu0 %v3190, 123
  %v3222 = vpop.permute.xlu0 %3221
  %v3223 = vsel %vm455, %v3192, %v3194
  %v3224 = vsel %vm455, %v3196, %v3198
  %v3225 = vsel %vm455, %v3200, %v3202
  %v3226 = vsel %vm455, %v3204, %v3206
  %v3227 = vsel %vm455, %v3208, %v3210
  %v3228 = vsel %vm455, %v3212, %v3214
  %v3229 = vsel %vm455, %v3216, %v3218
  %v3230 = vsel %vm455, %v3220, %v3222
  %3239 = vst [vmem:[%s2838 + $0xf] sm:$0x7] %v3223
  %3240 = vst [vmem:[%s2838 + $0x8f] sm:$0x7] %v3224
  %3241 = vst [vmem:[%s2838 + $0x10f] sm:$0x7] %v3225
  %3242 = vst [vmem:[%s2838 + $0x18f] sm:$0x7] %v3226
  %3243 = vst [vmem:[%s2838 + $0x20f] sm:$0x7] %v3227
  %3244 = vst [vmem:[%s2838 + $0x28f] sm:$0x7] %v3228
  %3245 = vst [vmem:[%s2838 + $0x30f] sm:$0x7] %v3229
  %3246 = vst [vmem:[%s2838 + $0x38f] sm:$0x7] %v3230
  %v3247 = vld [vmem:[%s2829] sm:$0x77]
  %v3248 = vld [vmem:[%s2829 + $0x8] sm:$0x77]
  %v3249 = vld [vmem:[%s2829 + $0x10] sm:$0x77]
  %v3250 = vld [vmem:[%s2829 + $0x18] sm:$0x77]
  %v3251 = vld [vmem:[%s2829 + $0x20] sm:$0x77]
  %v3252 = vld [vmem:[%s2829 + $0x28] sm:$0x77]
  %v3253 = vld [vmem:[%s2829 + $0x30] sm:$0x77]
  %v3254 = vld [vmem:[%s2829 + $0x38] sm:$0x77]
  %v3263 = vcombine.high %v3247, %v3247
  %v3264 = vcombine.high %v3248, %v3248
  %v3265 = vcombine.high %v3249, %v3249
  %v3266 = vcombine.high %v3250, %v3250
  %v3267 = vcombine.high %v3251, %v3251
  %v3268 = vcombine.high %v3252, %v3252
  %v3269 = vcombine.high %v3253, %v3253
  %v3270 = vcombine.high %v3254, %v3254
  %3271 = vrot.lane.b32.xlu0 %v3247, 122
  %v3272 = vpop.permute.xlu0 %3271
  %3273 = vrot.lane.b32.xlu0 %v3263, 122
  %v3274 = vpop.permute.xlu0 %3273
  %3275 = vrot.lane.b32.xlu0 %v3248, 122
  %v3276 = vpop.permute.xlu0 %3275
  %3277 = vrot.lane.b32.xlu0 %v3264, 122
  %v3278 = vpop.permute.xlu0 %3277
  %3279 = vrot.lane.b32.xlu0 %v3249, 122
  %v3280 = vpop.permute.xlu0 %3279
  %3281 = vrot.lane.b32.xlu0 %v3265, 122
  %v3282 = vpop.permute.xlu0 %3281
  %3283 = vrot.lane.b32.xlu0 %v3250, 122
  %v3284 = vpop.permute.xlu0 %3283
  %3285 = vrot.lane.b32.xlu0 %v3266, 122
  %v3286 = vpop.permute.xlu0 %3285
  %3287 = vrot.lane.b32.xlu0 %v3251, 122
  %v3288 = vpop.permute.xlu0 %3287
  %3289 = vrot.lane.b32.xlu0 %v3267, 122
  %v3290 = vpop.permute.xlu0 %3289
  %3291 = vrot.lane.b32.xlu0 %v3252, 122
  %v3292 = vpop.permute.xlu0 %3291
  %3293 = vrot.lane.b32.xlu0 %v3268, 122
  %v3294 = vpop.permute.xlu0 %3293
  %3295 = vrot.lane.b32.xlu0 %v3253, 122
  %v3296 = vpop.permute.xlu0 %3295
  %3297 = vrot.lane.b32.xlu0 %v3269, 122
  %v3298 = vpop.permute.xlu0 %3297
  %3299 = vrot.lane.b32.xlu0 %v3254, 122
  %v3300 = vpop.permute.xlu0 %3299
  %3301 = vrot.lane.b32.xlu0 %v3270, 122
  %v3302 = vpop.permute.xlu0 %3301
  %v3303 = vsel %vm536, %v3272, %v3274
  %v3304 = vsel %vm536, %v3276, %v3278
  %v3305 = vsel %vm536, %v3280, %v3282
  %v3306 = vsel %vm536, %v3284, %v3286
  %v3307 = vsel %vm536, %v3288, %v3290
  %v3308 = vsel %vm536, %v3292, %v3294
  %v3309 = vsel %vm536, %v3296, %v3298
  %v3310 = vsel %vm536, %v3300, %v3302
  %3319 = vst [vmem:[%s2838 + $0x12] sm:$0x7] %v3303
  %3320 = vst [vmem:[%s2838 + $0x92] sm:$0x7] %v3304
  %3321 = vst [vmem:[%s2838 + $0x112] sm:$0x7] %v3305
  %3322 = vst [vmem:[%s2838 + $0x192] sm:$0x7] %v3306
  %3323 = vst [vmem:[%s2838 + $0x212] sm:$0x7] %v3307
  %3324 = vst [vmem:[%s2838 + $0x292] sm:$0x7] %v3308
  %3325 = vst [vmem:[%s2838 + $0x312] sm:$0x7] %v3309
  %3326 = vst [vmem:[%s2838 + $0x392] sm:$0x7] %v3310
  %v3327 = vld [vmem:[%s2829] sm:$0x77]
  %v3328 = vld [vmem:[%s2829 + $0x8] sm:$0x77]
  %v3329 = vld [vmem:[%s2829 + $0x10] sm:$0x77]
  %v3330 = vld [vmem:[%s2829 + $0x18] sm:$0x77]
  %v3331 = vld [vmem:[%s2829 + $0x20] sm:$0x77]
  %v3332 = vld [vmem:[%s2829 + $0x28] sm:$0x77]
  %v3333 = vld [vmem:[%s2829 + $0x30] sm:$0x77]
  %v3334 = vld [vmem:[%s2829 + $0x38] sm:$0x77]
  %v3343 = vcombine.high %v3327, %v3327
  %v3344 = vcombine.high %v3328, %v3328
  %v3345 = vcombine.high %v3329, %v3329
  %v3346 = vcombine.high %v3330, %v3330
  %v3347 = vcombine.high %v3331, %v3331
  %v3348 = vcombine.high %v3332, %v3332
  %v3349 = vcombine.high %v3333, %v3333
  %v3350 = vcombine.high %v3334, %v3334
  %3351 = vrot.lane.b32.xlu0 %v3327, 116
  %v3352 = vpop.permute.xlu0 %3351
  %3353 = vrot.lane.b32.xlu0 %v3343, 116
  %v3354 = vpop.permute.xlu0 %3353
  %3355 = vrot.lane.b32.xlu0 %v3328, 116
  %v3356 = vpop.permute.xlu0 %3355
  %3357 = vrot.lane.b32.xlu0 %v3344, 116
  %v3358 = vpop.permute.xlu0 %3357
  %3359 = vrot.lane.b32.xlu0 %v3329, 116
  %v3360 = vpop.permute.xlu0 %3359
  %3361 = vrot.lane.b32.xlu0 %v3345, 116
  %v3362 = vpop.permute.xlu0 %3361
  %3363 = vrot.lane.b32.xlu0 %v3330, 116
  %v3364 = vpop.permute.xlu0 %3363
  %3365 = vrot.lane.b32.xlu0 %v3346, 116
  %v3366 = vpop.permute.xlu0 %3365
  %3367 = vrot.lane.b32.xlu0 %v3331, 116
  %v3368 = vpop.permute.xlu0 %3367
  %3369 = vrot.lane.b32.xlu0 %v3347, 116
  %v3370 = vpop.permute.xlu0 %3369
  %3371 = vrot.lane.b32.xlu0 %v3332, 116
  %v3372 = vpop.permute.xlu0 %3371
  %3373 = vrot.lane.b32.xlu0 %v3348, 116
  %v3374 = vpop.permute.xlu0 %3373
  %3375 = vrot.lane.b32.xlu0 %v3333, 116
  %v3376 = vpop.permute.xlu0 %3375
  %3377 = vrot.lane.b32.xlu0 %v3349, 116
  %v3378 = vpop.permute.xlu0 %3377
  %3379 = vrot.lane.b32.xlu0 %v3334, 116
  %v3380 = vpop.permute.xlu0 %3379
  %3381 = vrot.lane.b32.xlu0 %v3350, 116
  %v3382 = vpop.permute.xlu0 %3381
  %v3383 = vsel %vm617, %v3352, %v3354
  %v3384 = vsel %vm617, %v3356, %v3358
  %v3385 = vsel %vm617, %v3360, %v3362
  %v3386 = vsel %vm617, %v3364, %v3366
  %v3387 = vsel %vm617, %v3368, %v3370
  %v3388 = vsel %vm617, %v3372, %v3374
  %v3389 = vsel %vm617, %v3376, %v3378
  %v3390 = vsel %vm617, %v3380, %v3382
  %3399 = vst [vmem:[%s2838 + $0x15] sm:$0x7] %v3383
  %3400 = vst [vmem:[%s2838 + $0x95] sm:$0x7] %v3384
  %3401 = vst [vmem:[%s2838 + $0x115] sm:$0x7] %v3385
  %3402 = vst [vmem:[%s2838 + $0x195] sm:$0x7] %v3386
  %3403 = vst [vmem:[%s2838 + $0x215] sm:$0x7] %v3387
  %3404 = vst [vmem:[%s2838 + $0x295] sm:$0x7] %v3388
  %3405 = vst [vmem:[%s2838 + $0x315] sm:$0x7] %v3389
  %3406 = vst [vmem:[%s2838 + $0x395] sm:$0x7] %v3390
  %v3407 = vld [vmem:[%s2829] sm:$0x77]
  %v3408 = vld [vmem:[%s2829 + $0x8] sm:$0x77]
  %v3409 = vld [vmem:[%s2829 + $0x10] sm:$0x77]
  %v3410 = vld [vmem:[%s2829 + $0x18] sm:$0x77]
  %v3411 = vld [vmem:[%s2829 + $0x20] sm:$0x77]
  %v3412 = vld [vmem:[%s2829 + $0x28] sm:$0x77]
  %v3413 = vld [vmem:[%s2829 + $0x30] sm:$0x77]
  %v3414 = vld [vmem:[%s2829 + $0x38] sm:$0x77]
  %v3423 = vcombine.high %v3407, %v3407
  %v3424 = vcombine.high %v3408, %v3408
  %v3425 = vcombine.high %v3409, %v3409
  %v3426 = vcombine.high %v3410, %v3410
  %v3427 = vcombine.high %v3411, %v3411
  %v3428 = vcombine.high %v3412, %v3412
  %v3429 = vcombine.high %v3413, %v3413
  %v3430 = vcombine.high %v3414, %v3414
  %3431 = vrot.lane.b32.xlu0 %v3407, 115
  %v3432 = vpop.permute.xlu0 %3431
  %3433 = vrot.lane.b32.xlu0 %v3423, 115
  %v3434 = vpop.permute.xlu0 %3433
  %3435 = vrot.lane.b32.xlu0 %v3408, 115
  %v3436 = vpop.permute.xlu0 %3435
  %3437 = vrot.lane.b32.xlu0 %v3424, 115
  %v3438 = vpop.permute.xlu0 %3437
  %3439 = vrot.lane.b32.xlu0 %v3409, 115
  %v3440 = vpop.permute.xlu0 %3439
  %3441 = vrot.lane.b32.xlu0 %v3425, 115
  %v3442 = vpop.permute.xlu0 %3441
  %3443 = vrot.lane.b32.xlu0 %v3410, 115
  %v3444 = vpop.permute.xlu0 %3443
  %3445 = vrot.lane.b32.xlu0 %v3426, 115
  %v3446 = vpop.permute.xlu0 %3445
  %3447 = vrot.lane.b32.xlu0 %v3411, 115
  %v3448 = vpop.permute.xlu0 %3447
  %3449 = vrot.lane.b32.xlu0 %v3427, 115
  %v3450 = vpop.permute.xlu0 %3449
  %3451 = vrot.lane.b32.xlu0 %v3412, 115
  %v3452 = vpop.permute.xlu0 %3451
  %3453 = vrot.lane.b32.xlu0 %v3428, 115
  %v3454 = vpop.permute.xlu0 %3453
  %3455 = vrot.lane.b32.xlu0 %v3413, 115
  %v3456 = vpop.permute.xlu0 %3455
  %3457 = vrot.lane.b32.xlu0 %v3429, 115
  %v3458 = vpop.permute.xlu0 %3457
  %3459 = vrot.lane.b32.xlu0 %v3414, 115
  %v3460 = vpop.permute.xlu0 %3459
  %3461 = vrot.lane.b32.xlu0 %v3430, 115
  %v3462 = vpop.permute.xlu0 %3461
  %v3463 = vsel %vm698, %v3432, %v3434
  %v3464 = vsel %vm698, %v3436, %v3438
  %v3465 = vsel %vm698, %v3440, %v3442
  %v3466 = vsel %vm698, %v3444, %v3446
  %v3467 = vsel %vm698, %v3448, %v3450
  %v3468 = vsel %vm698, %v3452, %v3454
  %v3469 = vsel %vm698, %v3456, %v3458
  %v3470 = vsel %vm698, %v3460, %v3462
  %3479 = vst [vmem:[%s2838 + $0x18] sm:$0x7] %v3463
  %3480 = vst [vmem:[%s2838 + $0x98] sm:$0x7] %v3464
  %3481 = vst [vmem:[%s2838 + $0x118] sm:$0x7] %v3465
  %3482 = vst [vmem:[%s2838 + $0x198] sm:$0x7] %v3466
  %3483 = vst [vmem:[%s2838 + $0x218] sm:$0x7] %v3467
  %3484 = vst [vmem:[%s2838 + $0x298] sm:$0x7] %v3468
  %3485 = vst [vmem:[%s2838 + $0x318] sm:$0x7] %v3469
  %3486 = vst [vmem:[%s2838 + $0x398] sm:$0x7] %v3470
  %v3487 = vld [vmem:[%s2829] sm:$0x77]
  %v3488 = vld [vmem:[%s2829 + $0x8] sm:$0x77]
  %v3489 = vld [vmem:[%s2829 + $0x10] sm:$0x77]
  %v3490 = vld [vmem:[%s2829 + $0x18] sm:$0x77]
  %v3491 = vld [vmem:[%s2829 + $0x20] sm:$0x77]
  %v3492 = vld [vmem:[%s2829 + $0x28] sm:$0x77]
  %v3493 = vld [vmem:[%s2829 + $0x30] sm:$0x77]
  %v3494 = vld [vmem:[%s2829 + $0x38] sm:$0x77]
  %v3503 = vcombine.high %v3487, %v3487
  %v3504 = vcombine.high %v3488, %v3488
  %v3505 = vcombine.high %v3489, %v3489
  %v3506 = vcombine.high %v3490, %v3490
  %v3507 = vcombine.high %v3491, %v3491
  %v3508 = vcombine.high %v3492, %v3492
  %v3509 = vcombine.high %v3493, %v3493
  %v3510 = vcombine.high %v3494, %v3494
  %3511 = vrot.lane.b32.xlu0 %v3487, 114
  %v3512 = vpop.permute.xlu0 %3511
  %3513 = vrot.lane.b32.xlu0 %v3503, 114
  %v3514 = vpop.permute.xlu0 %3513
  %3515 = vrot.lane.b32.xlu0 %v3488, 114
  %v3516 = vpop.permute.xlu0 %3515
  %3517 = vrot.lane.b32.xlu0 %v3504, 114
  %v3518 = vpop.permute.xlu0 %3517
  %3519 = vrot.lane.b32.xlu0 %v3489, 114
  %v3520 = vpop.permute.xlu0 %3519
  %3521 = vrot.lane.b32.xlu0 %v3505, 114
  %v3522 = vpop.permute.xlu0 %3521
  %3523 = vrot.lane.b32.xlu0 %v3490, 114
  %v3524 = vpop.permute.xlu0 %3523
  %3525 = vrot.lane.b32.xlu0 %v3506, 114
  %v3526 = vpop.permute.xlu0 %3525
  %3527 = vrot.lane.b32.xlu0 %v3491, 114
  %v3528 = vpop.permute.xlu0 %3527
  %3529 = vrot.lane.b32.xlu0 %v3507, 114
  %v3530 = vpop.permute.xlu0 %3529
  %3531 = vrot.lane.b32.xlu0 %v3492, 114
  %v3532 = vpop.permute.xlu0 %3531
  %3533 = vrot.lane.b32.xlu0 %v3508, 114
  %v3534 = vpop.permute.xlu0 %3533
  %3535 = vrot.lane.b32.xlu0 %v3493, 114
  %v3536 = vpop.permute.xlu0 %3535
  %3537 = vrot.lane.b32.xlu0 %v3509, 114
  %v3538 = vpop.permute.xlu0 %3537
  %3539 = vrot.lane.b32.xlu0 %v3494, 114
  %v3540 = vpop.permute.xlu0 %3539
  %3541 = vrot.lane.b32.xlu0 %v3510, 114
  %v3542 = vpop.permute.xlu0 %3541
  %v3543 = vsel %vm779, %v3512, %v3514
  %v3544 = vsel %vm779, %v3516, %v3518
  %v3545 = vsel %vm779, %v3520, %v3522
  %v3546 = vsel %vm779, %v3524, %v3526
  %v3547 = vsel %vm779, %v3528, %v3530
  %v3548 = vsel %vm779, %v3532, %v3534
  %v3549 = vsel %vm779, %v3536, %v3538
  %v3550 = vsel %vm779, %v3540, %v3542
  %3559 = vst [vmem:[%s2838 + $0x1b] sm:$0x7] %v3543
  %3560 = vst [vmem:[%s2838 + $0x9b] sm:$0x7] %v3544
  %3561 = vst [vmem:[%s2838 + $0x11b] sm:$0x7] %v3545
  %3562 = vst [vmem:[%s2838 + $0x19b] sm:$0x7] %v3546
  %3563 = vst [vmem:[%s2838 + $0x21b] sm:$0x7] %v3547
  %3564 = vst [vmem:[%s2838 + $0x29b] sm:$0x7] %v3548
  %3565 = vst [vmem:[%s2838 + $0x31b] sm:$0x7] %v3549
  %3566 = vst [vmem:[%s2838 + $0x39b] sm:$0x7] %v3550
  %v3567 = vld [vmem:[%s2829] sm:$0x77]
  %v3568 = vld [vmem:[%s2829 + $0x8] sm:$0x77]
  %v3569 = vld [vmem:[%s2829 + $0x10] sm:$0x77]
  %v3570 = vld [vmem:[%s2829 + $0x18] sm:$0x77]
  %v3571 = vld [vmem:[%s2829 + $0x20] sm:$0x77]
  %v3572 = vld [vmem:[%s2829 + $0x28] sm:$0x77]
  %v3573 = vld [vmem:[%s2829 + $0x30] sm:$0x77]
  %v3574 = vld [vmem:[%s2829 + $0x38] sm:$0x77]
  %v3583 = vcombine.high %v3567, %v3567
  %v3584 = vcombine.high %v3568, %v3568
  %v3585 = vcombine.high %v3569, %v3569
  %v3586 = vcombine.high %v3570, %v3570
  %v3587 = vcombine.high %v3571, %v3571
  %v3588 = vcombine.high %v3572, %v3572
  %v3589 = vcombine.high %v3573, %v3573
  %v3590 = vcombine.high %v3574, %v3574
  %3591 = vrot.lane.b32.xlu0 %v3567, 113
  %v3592 = vpop.permute.xlu0 %3591
  %3593 = vrot.lane.b32.xlu0 %v3583, 113
  %v3594 = vpop.permute.xlu0 %3593
  %3595 = vrot.lane.b32.xlu0 %v3568, 113
  %v3596 = vpop.permute.xlu0 %3595
  %3597 = vrot.lane.b32.xlu0 %v3584, 113
  %v3598 = vpop.permute.xlu0 %3597
  %3599 = vrot.lane.b32.xlu0 %v3569, 113
  %v3600 = vpop.permute.xlu0 %3599
  %3601 = vrot.lane.b32.xlu0 %v3585, 113
  %v3602 = vpop.permute.xlu0 %3601
  %3603 = vrot.lane.b32.xlu0 %v3570, 113
  %v3604 = vpop.permute.xlu0 %3603
  %3605 = vrot.lane.b32.xlu0 %v3586, 113
  %v3606 = vpop.permute.xlu0 %3605
  %3607 = vrot.lane.b32.xlu0 %v3571, 113
  %v3608 = vpop.permute.xlu0 %3607
  %3609 = vrot.lane.b32.xlu0 %v3587, 113
  %v3610 = vpop.permute.xlu0 %3609
  %3611 = vrot.lane.b32.xlu0 %v3572, 113
  %v3612 = vpop.permute.xlu0 %3611
  %3613 = vrot.lane.b32.xlu0 %v3588, 113
  %v3614 = vpop.permute.xlu0 %3613
  %3615 = vrot.lane.b32.xlu0 %v3573, 113
  %v3616 = vpop.permute.xlu0 %3615
  %3617 = vrot.lane.b32.xlu0 %v3589, 113
  %v3618 = vpop.permute.xlu0 %3617
  %3619 = vrot.lane.b32.xlu0 %v3574, 113
  %v3620 = vpop.permute.xlu0 %3619
  %3621 = vrot.lane.b32.xlu0 %v3590, 113
  %v3622 = vpop.permute.xlu0 %3621
  %v3623 = vsel %vm860, %v3592, %v3594
  %v3624 = vsel %vm860, %v3596, %v3598
  %v3625 = vsel %vm860, %v3600, %v3602
  %v3626 = vsel %vm860, %v3604, %v3606
  %v3627 = vsel %vm860, %v3608, %v3610
  %v3628 = vsel %vm860, %v3612, %v3614
  %v3629 = vsel %vm860, %v3616, %v3618
  %v3630 = vsel %vm860, %v3620, %v3622
  %3639 = vst [vmem:[%s2838 + $0x1e] sm:$0x7] %v3623
  %3640 = vst [vmem:[%s2838 + $0x9e] sm:$0x7] %v3624
  %3641 = vst [vmem:[%s2838 + $0x11e] sm:$0x7] %v3625
  %3642 = vst [vmem:[%s2838 + $0x19e] sm:$0x7] %v3626
  %3643 = vst [vmem:[%s2838 + $0x21e] sm:$0x7] %v3627
  %3644 = vst [vmem:[%s2838 + $0x29e] sm:$0x7] %v3628
  %3645 = vst [vmem:[%s2838 + $0x31e] sm:$0x7] %v3629
  %3646 = vst [vmem:[%s2838 + $0x39e] sm:$0x7] %v3630
  %v3647 = vld [vmem:[%s2829] sm:$0x77]
  %v3648 = vld [vmem:[%s2829 + $0x8] sm:$0x77]
  %v3649 = vld [vmem:[%s2829 + $0x10] sm:$0x77]
  %v3650 = vld [vmem:[%s2829 + $0x18] sm:$0x77]
  %v3651 = vld [vmem:[%s2829 + $0x20] sm:$0x77]
  %v3652 = vld [vmem:[%s2829 + $0x28] sm:$0x77]
  %v3653 = vld [vmem:[%s2829 + $0x30] sm:$0x77]
  %v3654 = vld [vmem:[%s2829 + $0x38] sm:$0x77]
  %v3663 = vcombine.high %v3647, %v3647
  %v3664 = vcombine.high %v3648, %v3648
  %v3665 = vcombine.high %v3649, %v3649
  %v3666 = vcombine.high %v3650, %v3650
  %v3667 = vcombine.high %v3651, %v3651
  %v3668 = vcombine.high %v3652, %v3652
  %v3669 = vcombine.high %v3653, %v3653
  %v3670 = vcombine.high %v3654, %v3654
  %3671 = vrot.lane.b32.xlu0 %v3647, 112
  %v3672 = vpop.permute.xlu0 %3671
  %3673 = vrot.lane.b32.xlu0 %v3663, 112
  %v3674 = vpop.permute.xlu0 %3673
  %3675 = vrot.lane.b32.xlu0 %v3648, 112
  %v3676 = vpop.permute.xlu0 %3675
  %3677 = vrot.lane.b32.xlu0 %v3664, 112
  %v3678 = vpop.permute.xlu0 %3677
  %3679 = vrot.lane.b32.xlu0 %v3649, 112
  %v3680 = vpop.permute.xlu0 %3679
  %3681 = vrot.lane.b32.xlu0 %v3665, 112
  %v3682 = vpop.permute.xlu0 %3681
  %3683 = vrot.lane.b32.xlu0 %v3650, 112
  %v3684 = vpop.permute.xlu0 %3683
  %3685 = vrot.lane.b32.xlu0 %v3666, 112
  %v3686 = vpop.permute.xlu0 %3685
  %3687 = vrot.lane.b32.xlu0 %v3651, 112
  %v3688 = vpop.permute.xlu0 %3687
  %3689 = vrot.lane.b32.xlu0 %v3667, 112
  %v3690 = vpop.permute.xlu0 %3689
  %3691 = vrot.lane.b32.xlu0 %v3652, 112
  %v3692 = vpop.permute.xlu0 %3691
  %3693 = vrot.lane.b32.xlu0 %v3668, 112
  %v3694 = vpop.permute.xlu0 %3693
  %3695 = vrot.lane.b32.xlu0 %v3653, 112
  %v3696 = vpop.permute.xlu0 %3695
  %3697 = vrot.lane.b32.xlu0 %v3669, 112
  %v3698 = vpop.permute.xlu0 %3697
  %3699 = vrot.lane.b32.xlu0 %v3654, 112
  %v3700 = vpop.permute.xlu0 %3699
  %3701 = vrot.lane.b32.xlu0 %v3670, 112
  %v3702 = vpop.permute.xlu0 %3701
  %v3703 = vsel %vm941, %v3672, %v3674
  %v3704 = vsel %vm941, %v3676, %v3678
  %v3705 = vsel %vm941, %v3680, %v3682
  %v3706 = vsel %vm941, %v3684, %v3686
  %v3707 = vsel %vm941, %v3688, %v3690
  %v3708 = vsel %vm941, %v3692, %v3694
  %v3709 = vsel %vm941, %v3696, %v3698
  %v3710 = vsel %vm941, %v3700, %v3702
  %3719 = vst [vmem:[%s2838 + $0x21] sm:$0x7] %v3703
  %3720 = vst [vmem:[%s2838 + $0xa1] sm:$0x7] %v3704
  %3721 = vst [vmem:[%s2838 + $0x121] sm:$0x7] %v3705
  %3722 = vst [vmem:[%s2838 + $0x1a1] sm:$0x7] %v3706
  %3723 = vst [vmem:[%s2838 + $0x221] sm:$0x7] %v3707
  %3724 = vst [vmem:[%s2838 + $0x2a1] sm:$0x7] %v3708
  %3725 = vst [vmem:[%s2838 + $0x321] sm:$0x7] %v3709
  %3726 = vst [vmem:[%s2838 + $0x3a1] sm:$0x7] %v3710
  %v3727 = vld [vmem:[%s2829] sm:$0x77]
  %v3728 = vld [vmem:[%s2829 + $0x8] sm:$0x77]
  %v3729 = vld [vmem:[%s2829 + $0x10] sm:$0x77]
  %v3730 = vld [vmem:[%s2829 + $0x18] sm:$0x77]
  %v3731 = vld [vmem:[%s2829 + $0x20] sm:$0x77]
  %v3732 = vld [vmem:[%s2829 + $0x28] sm:$0x77]
  %v3733 = vld [vmem:[%s2829 + $0x30] sm:$0x77]
  %v3734 = vld [vmem:[%s2829 + $0x38] sm:$0x77]
  %v3743 = vcombine.high %v3727, %v3727
  %v3744 = vcombine.high %v3728, %v3728
  %v3745 = vcombine.high %v3729, %v3729
  %v3746 = vcombine.high %v3730, %v3730
  %v3747 = vcombine.high %v3731, %v3731
  %v3748 = vcombine.high %v3732, %v3732
  %v3749 = vcombine.high %v3733, %v3733
  %v3750 = vcombine.high %v3734, %v3734
  %3751 = vrot.lane.b32.xlu0 %v3727, 111
  %v3752 = vpop.permute.xlu0 %3751
  %3753 = vrot.lane.b32.xlu0 %v3743, 111
  %v3754 = vpop.permute.xlu0 %3753
  %3755 = vrot.lane.b32.xlu0 %v3728, 111
  %v3756 = vpop.permute.xlu0 %3755
  %3757 = vrot.lane.b32.xlu0 %v3744, 111
  %v3758 = vpop.permute.xlu0 %3757
  %3759 = vrot.lane.b32.xlu0 %v3729, 111
  %v3760 = vpop.permute.xlu0 %3759
  %3761 = vrot.lane.b32.xlu0 %v3745, 111
  %v3762 = vpop.permute.xlu0 %3761
  %3763 = vrot.lane.b32.xlu0 %v3730, 111
  %v3764 = vpop.permute.xlu0 %3763
  %3765 = vrot.lane.b32.xlu0 %v3746, 111
  %v3766 = vpop.permute.xlu0 %3765
  %3767 = vrot.lane.b32.xlu0 %v3731, 111
  %v3768 = vpop.permute.xlu0 %3767
  %3769 = vrot.lane.b32.xlu0 %v3747, 111
  %v3770 = vpop.permute.xlu0 %3769
  %3771 = vrot.lane.b32.xlu0 %v3732, 111
  %v3772 = vpop.permute.xlu0 %3771
  %3773 = vrot.lane.b32.xlu0 %v3748, 111
  %v3774 = vpop.permute.xlu0 %3773
  %3775 = vrot.lane.b32.xlu0 %v3733, 111
  %v3776 = vpop.permute.xlu0 %3775
  %3777 = vrot.lane.b32.xlu0 %v3749, 111
  %v3778 = vpop.permute.xlu0 %3777
  %3779 = vrot.lane.b32.xlu0 %v3734, 111
  %v3780 = vpop.permute.xlu0 %3779
  %3781 = vrot.lane.b32.xlu0 %v3750, 111
  %v3782 = vpop.permute.xlu0 %3781
  %v3783 = vsel %vm1022, %v3752, %v3754
  %v3784 = vsel %vm1022, %v3756, %v3758
  %v3785 = vsel %vm1022, %v3760, %v3762
  %v3786 = vsel %vm1022, %v3764, %v3766
  %v3787 = vsel %vm1022, %v3768, %v3770
  %v3788 = vsel %vm1022, %v3772, %v3774
  %v3789 = vsel %vm1022, %v3776, %v3778
  %v3790 = vsel %vm1022, %v3780, %v3782
  %3799 = vst [vmem:[%s2838 + $0x24] sm:$0x7] %v3783
  %3800 = vst [vmem:[%s2838 + $0xa4] sm:$0x7] %v3784
  %3801 = vst [vmem:[%s2838 + $0x124] sm:$0x7] %v3785
  %3802 = vst [vmem:[%s2838 + $0x1a4] sm:$0x7] %v3786
  %3803 = vst [vmem:[%s2838 + $0x224] sm:$0x7] %v3787
  %3804 = vst [vmem:[%s2838 + $0x2a4] sm:$0x7] %v3788
  %3805 = vst [vmem:[%s2838 + $0x324] sm:$0x7] %v3789
  %3806 = vst [vmem:[%s2838 + $0x3a4] sm:$0x7] %v3790
  %v3807 = vld [vmem:[%s2829] sm:$0x77]
  %v3808 = vld [vmem:[%s2829 + $0x8] sm:$0x77]
  %v3809 = vld [vmem:[%s2829 + $0x10] sm:$0x77]
  %v3810 = vld [vmem:[%s2829 + $0x18] sm:$0x77]
  %v3811 = vld [vmem:[%s2829 + $0x20] sm:$0x77]
  %v3812 = vld [vmem:[%s2829 + $0x28] sm:$0x77]
  %v3813 = vld [vmem:[%s2829 + $0x30] sm:$0x77]
  %v3814 = vld [vmem:[%s2829 + $0x38] sm:$0x77]
  %v3823 = vcombine.high %v3807, %v3807
  %v3824 = vcombine.high %v3808, %v3808
  %v3825 = vcombine.high %v3809, %v3809
  %v3826 = vcombine.high %v3810, %v3810
  %v3827 = vcombine.high %v3811, %v3811
  %v3828 = vcombine.high %v3812, %v3812
  %v3829 = vcombine.high %v3813, %v3813
  %v3830 = vcombine.high %v3814, %v3814
  %3831 = vrot.lane.b32.xlu0 %v3807, 110
  %v3832 = vpop.permute.xlu0 %3831
  %3833 = vrot.lane.b32.xlu0 %v3823, 110
  %v3834 = vpop.permute.xlu0 %3833
  %3835 = vrot.lane.b32.xlu0 %v3808, 110
  %v3836 = vpop.permute.xlu0 %3835
  %3837 = vrot.lane.b32.xlu0 %v3824, 110
  %v3838 = vpop.permute.xlu0 %3837
  %3839 = vrot.lane.b32.xlu0 %v3809, 110
  %v3840 = vpop.permute.xlu0 %3839
  %3841 = vrot.lane.b32.xlu0 %v3825, 110
  %v3842 = vpop.permute.xlu0 %3841
  %3843 = vrot.lane.b32.xlu0 %v3810, 110
  %v3844 = vpop.permute.xlu0 %3843
  %3845 = vrot.lane.b32.xlu0 %v3826, 110
  %v3846 = vpop.permute.xlu0 %3845
  %3847 = vrot.lane.b32.xlu0 %v3811, 110
  %v3848 = vpop.permute.xlu0 %3847
  %3849 = vrot.lane.b32.xlu0 %v3827, 110
  %v3850 = vpop.permute.xlu0 %3849
  %3851 = vrot.lane.b32.xlu0 %v3812, 110
  %v3852 = vpop.permute.xlu0 %3851
  %3853 = vrot.lane.b32.xlu0 %v3828, 110
  %v3854 = vpop.permute.xlu0 %3853
  %3855 = vrot.lane.b32.xlu0 %v3813, 110
  %v3856 = vpop.permute.xlu0 %3855
  %3857 = vrot.lane.b32.xlu0 %v3829, 110
  %v3858 = vpop.permute.xlu0 %3857
  %3859 = vrot.lane.b32.xlu0 %v3814, 110
  %v3860 = vpop.permute.xlu0 %3859
  %3861 = vrot.lane.b32.xlu0 %v3830, 110
  %v3862 = vpop.permute.xlu0 %3861
  %v3863 = vsel %vm1103, %v3832, %v3834
  %v3864 = vsel %vm1103, %v3836, %v3838
  %v3865 = vsel %vm1103, %v3840, %v3842
  %v3866 = vsel %vm1103, %v3844, %v3846
  %v3867 = vsel %vm1103, %v3848, %v3850
  %v3868 = vsel %vm1103, %v3852, %v3854
  %v3869 = vsel %vm1103, %v3856, %v3858
  %v3870 = vsel %vm1103, %v3860, %v3862
  %3879 = vst [vmem:[%s2838 + $0x27] sm:$0x7] %v3863
  %3880 = vst [vmem:[%s2838 + $0xa7] sm:$0x7] %v3864
  %3881 = vst [vmem:[%s2838 + $0x127] sm:$0x7] %v3865
  %3882 = vst [vmem:[%s2838 + $0x1a7] sm:$0x7] %v3866
  %3883 = vst [vmem:[%s2838 + $0x227] sm:$0x7] %v3867
  %3884 = vst [vmem:[%s2838 + $0x2a7] sm:$0x7] %v3868
  %3885 = vst [vmem:[%s2838 + $0x327] sm:$0x7] %v3869
  %3886 = vst [vmem:[%s2838 + $0x3a7] sm:$0x7] %v3870
  %v3887 = vld [vmem:[%s2829] sm:$0x77]
  %v3888 = vld [vmem:[%s2829 + $0x8] sm:$0x77]
  %v3889 = vld [vmem:[%s2829 + $0x10] sm:$0x77]
  %v3890 = vld [vmem:[%s2829 + $0x18] sm:$0x77]
  %v3891 = vld [vmem:[%s2829 + $0x20] sm:$0x77]
  %v3892 = vld [vmem:[%s2829 + $0x28] sm:$0x77]
  %v3893 = vld [vmem:[%s2829 + $0x30] sm:$0x77]
  %v3894 = vld [vmem:[%s2829 + $0x38] sm:$0x77]
  %v3903 = vcombine.high %v3887, %v3887
  %v3904 = vcombine.high %v3888, %v3888
  %v3905 = vcombine.high %v3889, %v3889
  %v3906 = vcombine.high %v3890, %v3890
  %v3907 = vcombine.high %v3891, %v3891
  %v3908 = vcombine.high %v3892, %v3892
  %v3909 = vcombine.high %v3893, %v3893
  %v3910 = vcombine.high %v3894, %v3894
  %3911 = vrot.lane.b32.xlu0 %v3887, 104
  %v3912 = vpop.permute.xlu0 %3911
  %3913 = vrot.lane.b32.xlu0 %v3903, 104
  %v3914 = vpop.permute.xlu0 %3913
  %3915 = vrot.lane.b32.xlu0 %v3888, 104
  %v3916 = vpop.permute.xlu0 %3915
  %3917 = vrot.lane.b32.xlu0 %v3904, 104
  %v3918 = vpop.permute.xlu0 %3917
  %3919 = vrot.lane.b32.xlu0 %v3889, 104
  %v3920 = vpop.permute.xlu0 %3919
  %3921 = vrot.lane.b32.xlu0 %v3905, 104
  %v3922 = vpop.permute.xlu0 %3921
  %3923 = vrot.lane.b32.xlu0 %v3890, 104
  %v3924 = vpop.permute.xlu0 %3923
  %3925 = vrot.lane.b32.xlu0 %v3906, 104
  %v3926 = vpop.permute.xlu0 %3925
  %3927 = vrot.lane.b32.xlu0 %v3891, 104
  %v3928 = vpop.permute.xlu0 %3927
  %3929 = vrot.lane.b32.xlu0 %v3907, 104
  %v3930 = vpop.permute.xlu0 %3929
  %3931 = vrot.lane.b32.xlu0 %v3892, 104
  %v3932 = vpop.permute.xlu0 %3931
  %3933 = vrot.lane.b32.xlu0 %v3908, 104
  %v3934 = vpop.permute.xlu0 %3933
  %3935 = vrot.lane.b32.xlu0 %v3893, 104
  %v3936 = vpop.permute.xlu0 %3935
  %3937 = vrot.lane.b32.xlu0 %v3909, 104
  %v3938 = vpop.permute.xlu0 %3937
  %3939 = vrot.lane.b32.xlu0 %v3894, 104
  %v3940 = vpop.permute.xlu0 %3939
  %3941 = vrot.lane.b32.xlu0 %v3910, 104
  %v3942 = vpop.permute.xlu0 %3941
  %v3943 = vsel %vm1184, %v3912, %v3914
  %v3944 = vsel %vm1184, %v3916, %v3918
  %v3945 = vsel %vm1184, %v3920, %v3922
  %v3946 = vsel %vm1184, %v3924, %v3926
  %v3947 = vsel %vm1184, %v3928, %v3930
  %v3948 = vsel %vm1184, %v3932, %v3934
  %v3949 = vsel %vm1184, %v3936, %v3938
  %v3950 = vsel %vm1184, %v3940, %v3942
  %3959 = vst [vmem:[%s2838 + $0x2a] sm:$0x7] %v3943
  %3960 = vst [vmem:[%s2838 + $0xaa] sm:$0x7] %v3944
  %3961 = vst [vmem:[%s2838 + $0x12a] sm:$0x7] %v3945
  %3962 = vst [vmem:[%s2838 + $0x1aa] sm:$0x7] %v3946
  %3963 = vst [vmem:[%s2838 + $0x22a] sm:$0x7] %v3947
  %3964 = vst [vmem:[%s2838 + $0x2aa] sm:$0x7] %v3948
  %3965 = vst [vmem:[%s2838 + $0x32a] sm:$0x7] %v3949
  %3966 = vst [vmem:[%s2838 + $0x3aa] sm:$0x7] %v3950
  %v3967 = vld [vmem:[%s2829] sm:$0x77]
  %v3968 = vld [vmem:[%s2829 + $0x8] sm:$0x77]
  %v3969 = vld [vmem:[%s2829 + $0x10] sm:$0x77]
  %v3970 = vld [vmem:[%s2829 + $0x18] sm:$0x77]
  %v3971 = vld [vmem:[%s2829 + $0x20] sm:$0x77]
  %v3972 = vld [vmem:[%s2829 + $0x28] sm:$0x77]
  %v3973 = vld [vmem:[%s2829 + $0x30] sm:$0x77]
  %v3974 = vld [vmem:[%s2829 + $0x38] sm:$0x77]
  %v3983 = vcombine.high %v3967, %v3967
  %v3984 = vcombine.high %v3968, %v3968
  %v3985 = vcombine.high %v3969, %v3969
  %v3986 = vcombine.high %v3970, %v3970
  %v3987 = vcombine.high %v3971, %v3971
  %v3988 = vcombine.high %v3972, %v3972
  %v3989 = vcombine.high %v3973, %v3973
  %v3990 = vcombine.high %v3974, %v3974
  %3991 = vrot.lane.b32.xlu0 %v3967, 103
  %v3992 = vpop.permute.xlu0 %3991
  %3993 = vrot.lane.b32.xlu0 %v3983, 103
  %v3994 = vpop.permute.xlu0 %3993
  %3995 = vrot.lane.b32.xlu0 %v3968, 103
  %v3996 = vpop.permute.xlu0 %3995
  %3997 = vrot.lane.b32.xlu0 %v3984, 103
  %v3998 = vpop.permute.xlu0 %3997
  %3999 = vrot.lane.b32.xlu0 %v3969, 103
  %v4000 = vpop.permute.xlu0 %3999
  %4001 = vrot.lane.b32.xlu0 %v3985, 103
  %v4002 = vpop.permute.xlu0 %4001
  %4003 = vrot.lane.b32.xlu0 %v3970, 103
  %v4004 = vpop.permute.xlu0 %4003
  %4005 = vrot.lane.b32.xlu0 %v3986, 103
  %v4006 = vpop.permute.xlu0 %4005
  %4007 = vrot.lane.b32.xlu0 %v3971, 103
  %v4008 = vpop.permute.xlu0 %4007
  %4009 = vrot.lane.b32.xlu0 %v3987, 103
  %v4010 = vpop.permute.xlu0 %4009
  %4011 = vrot.lane.b32.xlu0 %v3972, 103
  %v4012 = vpop.permute.xlu0 %4011
  %4013 = vrot.lane.b32.xlu0 %v3988, 103
  %v4014 = vpop.permute.xlu0 %4013
  %4015 = vrot.lane.b32.xlu0 %v3973, 103
  %v4016 = vpop.permute.xlu0 %4015
  %4017 = vrot.lane.b32.xlu0 %v3989, 103
  %v4018 = vpop.permute.xlu0 %4017
  %4019 = vrot.lane.b32.xlu0 %v3974, 103
  %v4020 = vpop.permute.xlu0 %4019
  %4021 = vrot.lane.b32.xlu0 %v3990, 103
  %v4022 = vpop.permute.xlu0 %4021
  %v4023 = vsel %vm1265, %v3992, %v3994
  %v4024 = vsel %vm1265, %v3996, %v3998
  %v4025 = vsel %vm1265, %v4000, %v4002
  %v4026 = vsel %vm1265, %v4004, %v4006
  %v4027 = vsel %vm1265, %v4008, %v4010
  %v4028 = vsel %vm1265, %v4012, %v4014
  %v4029 = vsel %vm1265, %v4016, %v4018
  %v4030 = vsel %vm1265, %v4020, %v4022
  %4039 = vst [vmem:[%s2838 + $0x2d] sm:$0x7] %v4023
  %4040 = vst [vmem:[%s2838 + $0xad] sm:$0x7] %v4024
  %4041 = vst [vmem:[%s2838 + $0x12d] sm:$0x7] %v4025
  %4042 = vst [vmem:[%s2838 + $0x1ad] sm:$0x7] %v4026
  %4043 = vst [vmem:[%s2838 + $0x22d] sm:$0x7] %v4027
  %4044 = vst [vmem:[%s2838 + $0x2ad] sm:$0x7] %v4028
  %4045 = vst [vmem:[%s2838 + $0x32d] sm:$0x7] %v4029
  %4046 = vst [vmem:[%s2838 + $0x3ad] sm:$0x7] %v4030
  %v4047 = vld [vmem:[%s2829] sm:$0x77]
  %v4048 = vld [vmem:[%s2829 + $0x8] sm:$0x77]
  %v4049 = vld [vmem:[%s2829 + $0x10] sm:$0x77]
  %v4050 = vld [vmem:[%s2829 + $0x18] sm:$0x77]
  %v4051 = vld [vmem:[%s2829 + $0x20] sm:$0x77]
  %v4052 = vld [vmem:[%s2829 + $0x28] sm:$0x77]
  %v4053 = vld [vmem:[%s2829 + $0x30] sm:$0x77]
  %v4054 = vld [vmem:[%s2829 + $0x38] sm:$0x77]
  %v4063 = vcombine.high %v4047, %v4047
  %v4064 = vcombine.high %v4048, %v4048
  %v4065 = vcombine.high %v4049, %v4049
  %v4066 = vcombine.high %v4050, %v4050
  %v4067 = vcombine.high %v4051, %v4051
  %v4068 = vcombine.high %v4052, %v4052
  %v4069 = vcombine.high %v4053, %v4053
  %v4070 = vcombine.high %v4054, %v4054
  %4071 = vrot.lane.b32.xlu0 %v4047, 102
  %v4072 = vpop.permute.xlu0 %4071
  %4073 = vrot.lane.b32.xlu0 %v4063, 102
  %v4074 = vpop.permute.xlu0 %4073
  %4075 = vrot.lane.b32.xlu0 %v4048, 102
  %v4076 = vpop.permute.xlu0 %4075
  %4077 = vrot.lane.b32.xlu0 %v4064, 102
  %v4078 = vpop.permute.xlu0 %4077
  %4079 = vrot.lane.b32.xlu0 %v4049, 102
  %v4080 = vpop.permute.xlu0 %4079
  %4081 = vrot.lane.b32.xlu0 %v4065, 102
  %v4082 = vpop.permute.xlu0 %4081
  %4083 = vrot.lane.b32.xlu0 %v4050, 102
  %v4084 = vpop.permute.xlu0 %4083
  %4085 = vrot.lane.b32.xlu0 %v4066, 102
  %v4086 = vpop.permute.xlu0 %4085
  %4087 = vrot.lane.b32.xlu0 %v4051, 102
  %v4088 = vpop.permute.xlu0 %4087
  %4089 = vrot.lane.b32.xlu0 %v4067, 102
  %v4090 = vpop.permute.xlu0 %4089
  %4091 = vrot.lane.b32.xlu0 %v4052, 102
  %v4092 = vpop.permute.xlu0 %4091
  %4093 = vrot.lane.b32.xlu0 %v4068, 102
  %v4094 = vpop.permute.xlu0 %4093
  %4095 = vrot.lane.b32.xlu0 %v4053, 102
  %v4096 = vpop.permute.xlu0 %4095
  %4097 = vrot.lane.b32.xlu0 %v4069, 102
  %v4098 = vpop.permute.xlu0 %4097
  %4099 = vrot.lane.b32.xlu0 %v4054, 102
  %v4100 = vpop.permute.xlu0 %4099
  %4101 = vrot.lane.b32.xlu0 %v4070, 102
  %v4102 = vpop.permute.xlu0 %4101
  %v4103 = vsel %vm1346, %v4072, %v4074
  %v4104 = vsel %vm1346, %v4076, %v4078
  %v4105 = vsel %vm1346, %v4080, %v4082
  %v4106 = vsel %vm1346, %v4084, %v4086
  %v4107 = vsel %vm1346, %v4088, %v4090
  %v4108 = vsel %vm1346, %v4092, %v4094
  %v4109 = vsel %vm1346, %v4096, %v4098
  %v4110 = vsel %vm1346, %v4100, %v4102
  %4119 = vst [vmem:[%s2838 + $0x30] sm:$0x7] %v4103
  %4120 = vst [vmem:[%s2838 + $0xb0] sm:$0x7] %v4104
  %4121 = vst [vmem:[%s2838 + $0x130] sm:$0x7] %v4105
  %4122 = vst [vmem:[%s2838 + $0x1b0] sm:$0x7] %v4106
  %4123 = vst [vmem:[%s2838 + $0x230] sm:$0x7] %v4107
  %4124 = vst [vmem:[%s2838 + $0x2b0] sm:$0x7] %v4108
  %4125 = vst [vmem:[%s2838 + $0x330] sm:$0x7] %v4109
  %4126 = vst [vmem:[%s2838 + $0x3b0] sm:$0x7] %v4110
  %v4127 = vld [vmem:[%s2829] sm:$0x77]
  %v4128 = vld [vmem:[%s2829 + $0x8] sm:$0x77]
  %v4129 = vld [vmem:[%s2829 + $0x10] sm:$0x77]
  %v4130 = vld [vmem:[%s2829 + $0x18] sm:$0x77]
  %v4131 = vld [vmem:[%s2829 + $0x20] sm:$0x77]
  %v4132 = vld [vmem:[%s2829 + $0x28] sm:$0x77]
  %v4133 = vld [vmem:[%s2829 + $0x30] sm:$0x77]
  %v4134 = vld [vmem:[%s2829 + $0x38] sm:$0x77]
  %v4143 = vcombine.high %v4127, %v4127
  %v4144 = vcombine.high %v4128, %v4128
  %v4145 = vcombine.high %v4129, %v4129
  %v4146 = vcombine.high %v4130, %v4130
  %v4147 = vcombine.high %v4131, %v4131
  %v4148 = vcombine.high %v4132, %v4132
  %v4149 = vcombine.high %v4133, %v4133
  %v4150 = vcombine.high %v4134, %v4134
  %4151 = vrot.lane.b32.xlu0 %v4127, 101
  %v4152 = vpop.permute.xlu0 %4151
  %4153 = vrot.lane.b32.xlu0 %v4143, 101
  %v4154 = vpop.permute.xlu0 %4153
  %4155 = vrot.lane.b32.xlu0 %v4128, 101
  %v4156 = vpop.permute.xlu0 %4155
  %4157 = vrot.lane.b32.xlu0 %v4144, 101
  %v4158 = vpop.permute.xlu0 %4157
  %4159 = vrot.lane.b32.xlu0 %v4129, 101
  %v4160 = vpop.permute.xlu0 %4159
  %4161 = vrot.lane.b32.xlu0 %v4145, 101
  %v4162 = vpop.permute.xlu0 %4161
  %4163 = vrot.lane.b32.xlu0 %v4130, 101
  %v4164 = vpop.permute.xlu0 %4163
  %4165 = vrot.lane.b32.xlu0 %v4146, 101
  %v4166 = vpop.permute.xlu0 %4165
  %4167 = vrot.lane.b32.xlu0 %v4131, 101
  %v4168 = vpop.permute.xlu0 %4167
  %4169 = vrot.lane.b32.xlu0 %v4147, 101
  %v4170 = vpop.permute.xlu0 %4169
  %4171 = vrot.lane.b32.xlu0 %v4132, 101
  %v4172 = vpop.permute.xlu0 %4171
  %4173 = vrot.lane.b32.xlu0 %v4148, 101
  %v4174 = vpop.permute.xlu0 %4173
  %4175 = vrot.lane.b32.xlu0 %v4133, 101
  %v4176 = vpop.permute.xlu0 %4175
  %4177 = vrot.lane.b32.xlu0 %v4149, 101
  %v4178 = vpop.permute.xlu0 %4177
  %4179 = vrot.lane.b32.xlu0 %v4134, 101
  %v4180 = vpop.permute.xlu0 %4179
  %4181 = vrot.lane.b32.xlu0 %v4150, 101
  %v4182 = vpop.permute.xlu0 %4181
  %v4183 = vsel %vm1427, %v4152, %v4154
  %v4184 = vsel %vm1427, %v4156, %v4158
  %v4185 = vsel %vm1427, %v4160, %v4162
  %v4186 = vsel %vm1427, %v4164, %v4166
  %v4187 = vsel %vm1427, %v4168, %v4170
  %v4188 = vsel %vm1427, %v4172, %v4174
  %v4189 = vsel %vm1427, %v4176, %v4178
  %v4190 = vsel %vm1427, %v4180, %v4182
  %4199 = vst [vmem:[%s2838 + $0x33] sm:$0x7] %v4183
  %4200 = vst [vmem:[%s2838 + $0xb3] sm:$0x7] %v4184
  %4201 = vst [vmem:[%s2838 + $0x133] sm:$0x7] %v4185
  %4202 = vst [vmem:[%s2838 + $0x1b3] sm:$0x7] %v4186
  %4203 = vst [vmem:[%s2838 + $0x233] sm:$0x7] %v4187
  %4204 = vst [vmem:[%s2838 + $0x2b3] sm:$0x7] %v4188
  %4205 = vst [vmem:[%s2838 + $0x333] sm:$0x7] %v4189
  %4206 = vst [vmem:[%s2838 + $0x3b3] sm:$0x7] %v4190
  %v4207 = vld [vmem:[%s2829] sm:$0x77]
  %v4208 = vld [vmem:[%s2829 + $0x8] sm:$0x77]
  %v4209 = vld [vmem:[%s2829 + $0x10] sm:$0x77]
  %v4210 = vld [vmem:[%s2829 + $0x18] sm:$0x77]
  %v4211 = vld [vmem:[%s2829 + $0x20] sm:$0x77]
  %v4212 = vld [vmem:[%s2829 + $0x28] sm:$0x77]
  %v4213 = vld [vmem:[%s2829 + $0x30] sm:$0x77]
  %v4214 = vld [vmem:[%s2829 + $0x38] sm:$0x77]
  %v4223 = vcombine.high %v4207, %v4207
  %v4224 = vcombine.high %v4208, %v4208
  %v4225 = vcombine.high %v4209, %v4209
  %v4226 = vcombine.high %v4210, %v4210
  %v4227 = vcombine.high %v4211, %v4211
  %v4228 = vcombine.high %v4212, %v4212
  %v4229 = vcombine.high %v4213, %v4213
  %v4230 = vcombine.high %v4214, %v4214
  %4231 = vrot.lane.b32.xlu0 %v4207, 100
  %v4232 = vpop.permute.xlu0 %4231
  %4233 = vrot.lane.b32.xlu0 %v4223, 100
  %v4234 = vpop.permute.xlu0 %4233
  %4235 = vrot.lane.b32.xlu0 %v4208, 100
  %v4236 = vpop.permute.xlu0 %4235
  %4237 = vrot.lane.b32.xlu0 %v4224, 100
  %v4238 = vpop.permute.xlu0 %4237
  %4239 = vrot.lane.b32.xlu0 %v4209, 100
  %v4240 = vpop.permute.xlu0 %4239
  %4241 = vrot.lane.b32.xlu0 %v4225, 100
  %v4242 = vpop.permute.xlu0 %4241
  %4243 = vrot.lane.b32.xlu0 %v4210, 100
  %v4244 = vpop.permute.xlu0 %4243
  %4245 = vrot.lane.b32.xlu0 %v4226, 100
  %v4246 = vpop.permute.xlu0 %4245
  %4247 = vrot.lane.b32.xlu0 %v4211, 100
  %v4248 = vpop.permute.xlu0 %4247
  %4249 = vrot.lane.b32.xlu0 %v4227, 100
  %v4250 = vpop.permute.xlu0 %4249
  %4251 = vrot.lane.b32.xlu0 %v4212, 100
  %v4252 = vpop.permute.xlu0 %4251
  %4253 = vrot.lane.b32.xlu0 %v4228, 100
  %v4254 = vpop.permute.xlu0 %4253
  %4255 = vrot.lane.b32.xlu0 %v4213, 100
  %v4256 = vpop.permute.xlu0 %4255
  %4257 = vrot.lane.b32.xlu0 %v4229, 100
  %v4258 = vpop.permute.xlu0 %4257
  %4259 = vrot.lane.b32.xlu0 %v4214, 100
  %v4260 = vpop.permute.xlu0 %4259
  %4261 = vrot.lane.b32.xlu0 %v4230, 100
  %v4262 = vpop.permute.xlu0 %4261
  %v4263 = vsel %vm1508, %v4232, %v4234
  %v4264 = vsel %vm1508, %v4236, %v4238
  %v4265 = vsel %vm1508, %v4240, %v4242
  %v4266 = vsel %vm1508, %v4244, %v4246
  %v4267 = vsel %vm1508, %v4248, %v4250
  %v4268 = vsel %vm1508, %v4252, %v4254
  %v4269 = vsel %vm1508, %v4256, %v4258
  %v4270 = vsel %vm1508, %v4260, %v4262
  %4279 = vst [vmem:[%s2838 + $0x36] sm:$0x7] %v4263
  %4280 = vst [vmem:[%s2838 + $0xb6] sm:$0x7] %v4264
  %4281 = vst [vmem:[%s2838 + $0x136] sm:$0x7] %v4265
  %4282 = vst [vmem:[%s2838 + $0x1b6] sm:$0x7] %v4266
  %4283 = vst [vmem:[%s2838 + $0x236] sm:$0x7] %v4267
  %4284 = vst [vmem:[%s2838 + $0x2b6] sm:$0x7] %v4268
  %4285 = vst [vmem:[%s2838 + $0x336] sm:$0x7] %v4269
  %4286 = vst [vmem:[%s2838 + $0x3b6] sm:$0x7] %v4270
  %v4287 = vld [vmem:[%s2829] sm:$0x77]
  %v4288 = vld [vmem:[%s2829 + $0x8] sm:$0x77]
  %v4289 = vld [vmem:[%s2829 + $0x10] sm:$0x77]
  %v4290 = vld [vmem:[%s2829 + $0x18] sm:$0x77]
  %v4291 = vld [vmem:[%s2829 + $0x20] sm:$0x77]
  %v4292 = vld [vmem:[%s2829 + $0x28] sm:$0x77]
  %v4293 = vld [vmem:[%s2829 + $0x30] sm:$0x77]
  %v4294 = vld [vmem:[%s2829 + $0x38] sm:$0x77]
  %v4303 = vcombine.high %v4287, %v4287
  %v4304 = vcombine.high %v4288, %v4288
  %v4305 = vcombine.high %v4289, %v4289
  %v4306 = vcombine.high %v4290, %v4290
  %v4307 = vcombine.high %v4291, %v4291
  %v4308 = vcombine.high %v4292, %v4292
  %v4309 = vcombine.high %v4293, %v4293
  %v4310 = vcombine.high %v4294, %v4294
  %4311 = vrot.lane.b32.xlu0 %v4287, 99
  %v4312 = vpop.permute.xlu0 %4311
  %4313 = vrot.lane.b32.xlu0 %v4303, 99
  %v4314 = vpop.permute.xlu0 %4313
  %4315 = vrot.lane.b32.xlu0 %v4288, 99
  %v4316 = vpop.permute.xlu0 %4315
  %4317 = vrot.lane.b32.xlu0 %v4304, 99
  %v4318 = vpop.permute.xlu0 %4317
  %4319 = vrot.lane.b32.xlu0 %v4289, 99
  %v4320 = vpop.permute.xlu0 %4319
  %4321 = vrot.lane.b32.xlu0 %v4305, 99
  %v4322 = vpop.permute.xlu0 %4321
  %4323 = vrot.lane.b32.xlu0 %v4290, 99
  %v4324 = vpop.permute.xlu0 %4323
  %4325 = vrot.lane.b32.xlu0 %v4306, 99
  %v4326 = vpop.permute.xlu0 %4325
  %4327 = vrot.lane.b32.xlu0 %v4291, 99
  %v4328 = vpop.permute.xlu0 %4327
  %4329 = vrot.lane.b32.xlu0 %v4307, 99
  %v4330 = vpop.permute.xlu0 %4329
  %4331 = vrot.lane.b32.xlu0 %v4292, 99
  %v4332 = vpop.permute.xlu0 %4331
  %4333 = vrot.lane.b32.xlu0 %v4308, 99
  %v4334 = vpop.permute.xlu0 %4333
  %4335 = vrot.lane.b32.xlu0 %v4293, 99
  %v4336 = vpop.permute.xlu0 %4335
  %4337 = vrot.lane.b32.xlu0 %v4309, 99
  %v4338 = vpop.permute.xlu0 %4337
  %4339 = vrot.lane.b32.xlu0 %v4294, 99
  %v4340 = vpop.permute.xlu0 %4339
  %4341 = vrot.lane.b32.xlu0 %v4310, 99
  %v4342 = vpop.permute.xlu0 %4341
  %v4343 = vsel %vm1589, %v4312, %v4314
  %v4344 = vsel %vm1589, %v4316, %v4318
  %v4345 = vsel %vm1589, %v4320, %v4322
  %v4346 = vsel %vm1589, %v4324, %v4326
  %v4347 = vsel %vm1589, %v4328, %v4330
  %v4348 = vsel %vm1589, %v4332, %v4334
  %v4349 = vsel %vm1589, %v4336, %v4338
  %v4350 = vsel %vm1589, %v4340, %v4342
  %4359 = vst [vmem:[%s2838 + $0x39] sm:$0x7] %v4343
  %4360 = vst [vmem:[%s2838 + $0xb9] sm:$0x7] %v4344
  %4361 = vst [vmem:[%s2838 + $0x139] sm:$0x7] %v4345
  %4362 = vst [vmem:[%s2838 + $0x1b9] sm:$0x7] %v4346
  %4363 = vst [vmem:[%s2838 + $0x239] sm:$0x7] %v4347
  %4364 = vst [vmem:[%s2838 + $0x2b9] sm:$0x7] %v4348
  %4365 = vst [vmem:[%s2838 + $0x339] sm:$0x7] %v4349
  %4366 = vst [vmem:[%s2838 + $0x3b9] sm:$0x7] %v4350
  %v4367 = vld [vmem:[%s2829] sm:$0x77]
  %v4368 = vld [vmem:[%s2829 + $0x8] sm:$0x77]
  %v4369 = vld [vmem:[%s2829 + $0x10] sm:$0x77]
  %v4370 = vld [vmem:[%s2829 + $0x18] sm:$0x77]
  %v4371 = vld [vmem:[%s2829 + $0x20] sm:$0x77]
  %v4372 = vld [vmem:[%s2829 + $0x28] sm:$0x77]
  %v4373 = vld [vmem:[%s2829 + $0x30] sm:$0x77]
  %v4374 = vld [vmem:[%s2829 + $0x38] sm:$0x77]
  %v4383 = vcombine.high %v4367, %v4367
  %v4384 = vcombine.high %v4368, %v4368
  %v4385 = vcombine.high %v4369, %v4369
  %v4386 = vcombine.high %v4370, %v4370
  %v4387 = vcombine.high %v4371, %v4371
  %v4388 = vcombine.high %v4372, %v4372
  %v4389 = vcombine.high %v4373, %v4373
  %v4390 = vcombine.high %v4374, %v4374
  %4391 = vrot.lane.b32.xlu0 %v4367, 98
  %v4392 = vpop.permute.xlu0 %4391
  %4393 = vrot.lane.b32.xlu0 %v4383, 98
  %v4394 = vpop.permute.xlu0 %4393
  %4395 = vrot.lane.b32.xlu0 %v4368, 98
  %v4396 = vpop.permute.xlu0 %4395
  %4397 = vrot.lane.b32.xlu0 %v4384, 98
  %v4398 = vpop.permute.xlu0 %4397
  %4399 = vrot.lane.b32.xlu0 %v4369, 98
  %v4400 = vpop.permute.xlu0 %4399
  %4401 = vrot.lane.b32.xlu0 %v4385, 98
  %v4402 = vpop.permute.xlu0 %4401
  %4403 = vrot.lane.b32.xlu0 %v4370, 98
  %v4404 = vpop.permute.xlu0 %4403
  %4405 = vrot.lane.b32.xlu0 %v4386, 98
  %v4406 = vpop.permute.xlu0 %4405
  %4407 = vrot.lane.b32.xlu0 %v4371, 98
  %v4408 = vpop.permute.xlu0 %4407
  %4409 = vrot.lane.b32.xlu0 %v4387, 98
  %v4410 = vpop.permute.xlu0 %4409
  %4411 = vrot.lane.b32.xlu0 %v4372, 98
  %v4412 = vpop.permute.xlu0 %4411
  %4413 = vrot.lane.b32.xlu0 %v4388, 98
  %v4414 = vpop.permute.xlu0 %4413
  %4415 = vrot.lane.b32.xlu0 %v4373, 98
  %v4416 = vpop.permute.xlu0 %4415
  %4417 = vrot.lane.b32.xlu0 %v4389, 98
  %v4418 = vpop.permute.xlu0 %4417
  %4419 = vrot.lane.b32.xlu0 %v4374, 98
  %v4420 = vpop.permute.xlu0 %4419
  %4421 = vrot.lane.b32.xlu0 %v4390, 98
  %v4422 = vpop.permute.xlu0 %4421
  %v4423 = vsel %vm1670, %v4392, %v4394
  %v4424 = vsel %vm1670, %v4396, %v4398
  %v4425 = vsel %vm1670, %v4400, %v4402
  %v4426 = vsel %vm1670, %v4404, %v4406
  %v4427 = vsel %vm1670, %v4408, %v4410
  %v4428 = vsel %vm1670, %v4412, %v4414
  %v4429 = vsel %vm1670, %v4416, %v4418
  %v4430 = vsel %vm1670, %v4420, %v4422
  %4439 = vst [vmem:[%s2838 + $0x3c] sm:$0x7] %v4423
  %4440 = vst [vmem:[%s2838 + $0xbc] sm:$0x7] %v4424
  %4441 = vst [vmem:[%s2838 + $0x13c] sm:$0x7] %v4425
  %4442 = vst [vmem:[%s2838 + $0x1bc] sm:$0x7] %v4426
  %4443 = vst [vmem:[%s2838 + $0x23c] sm:$0x7] %v4427
  %4444 = vst [vmem:[%s2838 + $0x2bc] sm:$0x7] %v4428
  %4445 = vst [vmem:[%s2838 + $0x33c] sm:$0x7] %v4429
  %4446 = vst [vmem:[%s2838 + $0x3bc] sm:$0x7] %v4430
  %v4447 = vld [vmem:[%s2829] sm:$0x77]
  %v4448 = vld [vmem:[%s2829 + $0x8] sm:$0x77]
  %v4449 = vld [vmem:[%s2829 + $0x10] sm:$0x77]
  %v4450 = vld [vmem:[%s2829 + $0x18] sm:$0x77]
  %v4451 = vld [vmem:[%s2829 + $0x20] sm:$0x77]
  %v4452 = vld [vmem:[%s2829 + $0x28] sm:$0x77]
  %v4453 = vld [vmem:[%s2829 + $0x30] sm:$0x77]
  %v4454 = vld [vmem:[%s2829 + $0x38] sm:$0x77]
  %v4463 = vcombine.high %v4447, %v4447
  %v4464 = vcombine.high %v4448, %v4448
  %v4465 = vcombine.high %v4449, %v4449
  %v4466 = vcombine.high %v4450, %v4450
  %v4467 = vcombine.high %v4451, %v4451
  %v4468 = vcombine.high %v4452, %v4452
  %v4469 = vcombine.high %v4453, %v4453
  %v4470 = vcombine.high %v4454, %v4454
  %4471 = vrot.lane.b32.xlu0 %v4447, 92
  %v4472 = vpop.permute.xlu0 %4471
  %4473 = vrot.lane.b32.xlu0 %v4463, 92
  %v4474 = vpop.permute.xlu0 %4473
  %4475 = vrot.lane.b32.xlu0 %v4448, 92
  %v4476 = vpop.permute.xlu0 %4475
  %4477 = vrot.lane.b32.xlu0 %v4464, 92
  %v4478 = vpop.permute.xlu0 %4477
  %4479 = vrot.lane.b32.xlu0 %v4449, 92
  %v4480 = vpop.permute.xlu0 %4479
  %4481 = vrot.lane.b32.xlu0 %v4465, 92
  %v4482 = vpop.permute.xlu0 %4481
  %4483 = vrot.lane.b32.xlu0 %v4450, 92
  %v4484 = vpop.permute.xlu0 %4483
  %4485 = vrot.lane.b32.xlu0 %v4466, 92
  %v4486 = vpop.permute.xlu0 %4485
  %4487 = vrot.lane.b32.xlu0 %v4451, 92
  %v4488 = vpop.permute.xlu0 %4487
  %4489 = vrot.lane.b32.xlu0 %v4467, 92
  %v4490 = vpop.permute.xlu0 %4489
  %4491 = vrot.lane.b32.xlu0 %v4452, 92
  %v4492 = vpop.permute.xlu0 %4491
  %4493 = vrot.lane.b32.xlu0 %v4468, 92
  %v4494 = vpop.permute.xlu0 %4493
  %4495 = vrot.lane.b32.xlu0 %v4453, 92
  %v4496 = vpop.permute.xlu0 %4495
  %4497 = vrot.lane.b32.xlu0 %v4469, 92
  %v4498 = vpop.permute.xlu0 %4497
  %4499 = vrot.lane.b32.xlu0 %v4454, 92
  %v4500 = vpop.permute.xlu0 %4499
  %4501 = vrot.lane.b32.xlu0 %v4470, 92
  %v4502 = vpop.permute.xlu0 %4501
  %v4503 = vsel %vm1751, %v4472, %v4474
  %v4504 = vsel %vm1751, %v4476, %v4478
  %v4505 = vsel %vm1751, %v4480, %v4482
  %v4506 = vsel %vm1751, %v4484, %v4486
  %v4507 = vsel %vm1751, %v4488, %v4490
  %v4508 = vsel %vm1751, %v4492, %v4494
  %v4509 = vsel %vm1751, %v4496, %v4498
  %v4510 = vsel %vm1751, %v4500, %v4502
  %4519 = vst [vmem:[%s2838 + $0x3f] sm:$0x7] %v4503
  %4520 = vst [vmem:[%s2838 + $0xbf] sm:$0x7] %v4504
  %4521 = vst [vmem:[%s2838 + $0x13f] sm:$0x7] %v4505
  %4522 = vst [vmem:[%s2838 + $0x1bf] sm:$0x7] %v4506
  %4523 = vst [vmem:[%s2838 + $0x23f] sm:$0x7] %v4507
  %4524 = vst [vmem:[%s2838 + $0x2bf] sm:$0x7] %v4508
  %4525 = vst [vmem:[%s2838 + $0x33f] sm:$0x7] %v4509
  %4526 = vst [vmem:[%s2838 + $0x3bf] sm:$0x7] %v4510
  %v4527 = vld [vmem:[%s2829] sm:$0x77]
  %v4528 = vld [vmem:[%s2829 + $0x8] sm:$0x77]
  %v4529 = vld [vmem:[%s2829 + $0x10] sm:$0x77]
  %v4530 = vld [vmem:[%s2829 + $0x18] sm:$0x77]
  %v4531 = vld [vmem:[%s2829 + $0x20] sm:$0x77]
  %v4532 = vld [vmem:[%s2829 + $0x28] sm:$0x77]
  %v4533 = vld [vmem:[%s2829 + $0x30] sm:$0x77]
  %v4534 = vld [vmem:[%s2829 + $0x38] sm:$0x77]
  %v4543 = vcombine.high %v4527, %v4527
  %v4544 = vcombine.high %v4528, %v4528
  %v4545 = vcombine.high %v4529, %v4529
  %v4546 = vcombine.high %v4530, %v4530
  %v4547 = vcombine.high %v4531, %v4531
  %v4548 = vcombine.high %v4532, %v4532
  %v4549 = vcombine.high %v4533, %v4533
  %v4550 = vcombine.high %v4534, %v4534
  %4551 = vrot.lane.b32.xlu0 %v4527, 91
  %v4552 = vpop.permute.xlu0 %4551
  %4553 = vrot.lane.b32.xlu0 %v4543, 91
  %v4554 = vpop.permute.xlu0 %4553
  %4555 = vrot.lane.b32.xlu0 %v4528, 91
  %v4556 = vpop.permute.xlu0 %4555
  %4557 = vrot.lane.b32.xlu0 %v4544, 91
  %v4558 = vpop.permute.xlu0 %4557
  %4559 = vrot.lane.b32.xlu0 %v4529, 91
  %v4560 = vpop.permute.xlu0 %4559
  %4561 = vrot.lane.b32.xlu0 %v4545, 91
  %v4562 = vpop.permute.xlu0 %4561
  %4563 = vrot.lane.b32.xlu0 %v4530, 91
  %v4564 = vpop.permute.xlu0 %4563
  %4565 = vrot.lane.b32.xlu0 %v4546, 91
  %v4566 = vpop.permute.xlu0 %4565
  %4567 = vrot.lane.b32.xlu0 %v4531, 91
  %v4568 = vpop.permute.xlu0 %4567
  %4569 = vrot.lane.b32.xlu0 %v4547, 91
  %v4570 = vpop.permute.xlu0 %4569
  %4571 = vrot.lane.b32.xlu0 %v4532, 91
  %v4572 = vpop.permute.xlu0 %4571
  %4573 = vrot.lane.b32.xlu0 %v4548, 91
  %v4574 = vpop.permute.xlu0 %4573
  %4575 = vrot.lane.b32.xlu0 %v4533, 91
  %v4576 = vpop.permute.xlu0 %4575
  %4577 = vrot.lane.b32.xlu0 %v4549, 91
  %v4578 = vpop.permute.xlu0 %4577
  %4579 = vrot.lane.b32.xlu0 %v4534, 91
  %v4580 = vpop.permute.xlu0 %4579
  %4581 = vrot.lane.b32.xlu0 %v4550, 91
  %v4582 = vpop.permute.xlu0 %4581
  %v4583 = vsel %vm1832, %v4552, %v4554
  %v4584 = vsel %vm1832, %v4556, %v4558
  %v4585 = vsel %vm1832, %v4560, %v4562
  %v4586 = vsel %vm1832, %v4564, %v4566
  %v4587 = vsel %vm1832, %v4568, %v4570
  %v4588 = vsel %vm1832, %v4572, %v4574
  %v4589 = vsel %vm1832, %v4576, %v4578
  %v4590 = vsel %vm1832, %v4580, %v4582
  %4599 = vst [vmem:[%s2838 + $0x42] sm:$0x7] %v4583
  %4600 = vst [vmem:[%s2838 + $0xc2] sm:$0x7] %v4584
  %4601 = vst [vmem:[%s2838 + $0x142] sm:$0x7] %v4585
  %4602 = vst [vmem:[%s2838 + $0x1c2] sm:$0x7] %v4586
  %4603 = vst [vmem:[%s2838 + $0x242] sm:$0x7] %v4587
  %4604 = vst [vmem:[%s2838 + $0x2c2] sm:$0x7] %v4588
  %4605 = vst [vmem:[%s2838 + $0x342] sm:$0x7] %v4589
  %4606 = vst [vmem:[%s2838 + $0x3c2] sm:$0x7] %v4590
  %v4607 = vld [vmem:[%s2829] sm:$0x77]
  %v4608 = vld [vmem:[%s2829 + $0x8] sm:$0x77]
  %v4609 = vld [vmem:[%s2829 + $0x10] sm:$0x77]
  %v4610 = vld [vmem:[%s2829 + $0x18] sm:$0x77]
  %v4611 = vld [vmem:[%s2829 + $0x20] sm:$0x77]
  %v4612 = vld [vmem:[%s2829 + $0x28] sm:$0x77]
  %v4613 = vld [vmem:[%s2829 + $0x30] sm:$0x77]
  %v4614 = vld [vmem:[%s2829 + $0x38] sm:$0x77]
  %v4623 = vcombine.high %v4607, %v4607
  %v4624 = vcombine.high %v4608, %v4608
  %v4625 = vcombine.high %v4609, %v4609
  %v4626 = vcombine.high %v4610, %v4610
  %v4627 = vcombine.high %v4611, %v4611
  %v4628 = vcombine.high %v4612, %v4612
  %v4629 = vcombine.high %v4613, %v4613
  %v4630 = vcombine.high %v4614, %v4614
  %4631 = vrot.lane.b32.xlu0 %v4607, 90
  %v4632 = vpop.permute.xlu0 %4631
  %4633 = vrot.lane.b32.xlu0 %v4623, 90
  %v4634 = vpop.permute.xlu0 %4633
  %4635 = vrot.lane.b32.xlu0 %v4608, 90
  %v4636 = vpop.permute.xlu0 %4635
  %4637 = vrot.lane.b32.xlu0 %v4624, 90
  %v4638 = vpop.permute.xlu0 %4637
  %4639 = vrot.lane.b32.xlu0 %v4609, 90
  %v4640 = vpop.permute.xlu0 %4639
  %4641 = vrot.lane.b32.xlu0 %v4625, 90
  %v4642 = vpop.permute.xlu0 %4641
  %4643 = vrot.lane.b32.xlu0 %v4610, 90
  %v4644 = vpop.permute.xlu0 %4643
  %4645 = vrot.lane.b32.xlu0 %v4626, 90
  %v4646 = vpop.permute.xlu0 %4645
  %4647 = vrot.lane.b32.xlu0 %v4611, 90
  %v4648 = vpop.permute.xlu0 %4647
  %4649 = vrot.lane.b32.xlu0 %v4627, 90
  %v4650 = vpop.permute.xlu0 %4649
  %4651 = vrot.lane.b32.xlu0 %v4612, 90
  %v4652 = vpop.permute.xlu0 %4651
  %4653 = vrot.lane.b32.xlu0 %v4628, 90
  %v4654 = vpop.permute.xlu0 %4653
  %4655 = vrot.lane.b32.xlu0 %v4613, 90
  %v4656 = vpop.permute.xlu0 %4655
  %4657 = vrot.lane.b32.xlu0 %v4629, 90
  %v4658 = vpop.permute.xlu0 %4657
  %4659 = vrot.lane.b32.xlu0 %v4614, 90
  %v4660 = vpop.permute.xlu0 %4659
  %4661 = vrot.lane.b32.xlu0 %v4630, 90
  %v4662 = vpop.permute.xlu0 %4661
  %v4663 = vsel %vm1913, %v4632, %v4634
  %v4664 = vsel %vm1913, %v4636, %v4638
  %v4665 = vsel %vm1913, %v4640, %v4642
  %v4666 = vsel %vm1913, %v4644, %v4646
  %v4667 = vsel %vm1913, %v4648, %v4650
  %v4668 = vsel %vm1913, %v4652, %v4654
  %v4669 = vsel %vm1913, %v4656, %v4658
  %v4670 = vsel %vm1913, %v4660, %v4662
  %4679 = vst [vmem:[%s2838 + $0x45] sm:$0x7] %v4663
  %4680 = vst [vmem:[%s2838 + $0xc5] sm:$0x7] %v4664
  %4681 = vst [vmem:[%s2838 + $0x145] sm:$0x7] %v4665
  %4682 = vst [vmem:[%s2838 + $0x1c5] sm:$0x7] %v4666
  %4683 = vst [vmem:[%s2838 + $0x245] sm:$0x7] %v4667
  %4684 = vst [vmem:[%s2838 + $0x2c5] sm:$0x7] %v4668
  %4685 = vst [vmem:[%s2838 + $0x345] sm:$0x7] %v4669
  %4686 = vst [vmem:[%s2838 + $0x3c5] sm:$0x7] %v4670
  %v4687 = vld [vmem:[%s2829] sm:$0x77]
  %v4688 = vld [vmem:[%s2829 + $0x8] sm:$0x77]
  %v4689 = vld [vmem:[%s2829 + $0x10] sm:$0x77]
  %v4690 = vld [vmem:[%s2829 + $0x18] sm:$0x77]
  %v4691 = vld [vmem:[%s2829 + $0x20] sm:$0x77]
  %v4692 = vld [vmem:[%s2829 + $0x28] sm:$0x77]
  %v4693 = vld [vmem:[%s2829 + $0x30] sm:$0x77]
  %v4694 = vld [vmem:[%s2829 + $0x38] sm:$0x77]
  %v4703 = vcombine.high %v4687, %v4687
  %v4704 = vcombine.high %v4688, %v4688
  %v4705 = vcombine.high %v4689, %v4689
  %v4706 = vcombine.high %v4690, %v4690
  %v4707 = vcombine.high %v4691, %v4691
  %v4708 = vcombine.high %v4692, %v4692
  %v4709 = vcombine.high %v4693, %v4693
  %v4710 = vcombine.high %v4694, %v4694
  %4711 = vrot.lane.b32.xlu0 %v4687, 89
  %v4712 = vpop.permute.xlu0 %4711
  %4713 = vrot.lane.b32.xlu0 %v4703, 89
  %v4714 = vpop.permute.xlu0 %4713
  %4715 = vrot.lane.b32.xlu0 %v4688, 89
  %v4716 = vpop.permute.xlu0 %4715
  %4717 = vrot.lane.b32.xlu0 %v4704, 89
  %v4718 = vpop.permute.xlu0 %4717
  %4719 = vrot.lane.b32.xlu0 %v4689, 89
  %v4720 = vpop.permute.xlu0 %4719
  %4721 = vrot.lane.b32.xlu0 %v4705, 89
  %v4722 = vpop.permute.xlu0 %4721
  %4723 = vrot.lane.b32.xlu0 %v4690, 89
  %v4724 = vpop.permute.xlu0 %4723
  %4725 = vrot.lane.b32.xlu0 %v4706, 89
  %v4726 = vpop.permute.xlu0 %4725
  %4727 = vrot.lane.b32.xlu0 %v4691, 89
  %v4728 = vpop.permute.xlu0 %4727
  %4729 = vrot.lane.b32.xlu0 %v4707, 89
  %v4730 = vpop.permute.xlu0 %4729
  %4731 = vrot.lane.b32.xlu0 %v4692, 89
  %v4732 = vpop.permute.xlu0 %4731
  %4733 = vrot.lane.b32.xlu0 %v4708, 89
  %v4734 = vpop.permute.xlu0 %4733
  %4735 = vrot.lane.b32.xlu0 %v4693, 89
  %v4736 = vpop.permute.xlu0 %4735
  %4737 = vrot.lane.b32.xlu0 %v4709, 89
  %v4738 = vpop.permute.xlu0 %4737
  %4739 = vrot.lane.b32.xlu0 %v4694, 89
  %v4740 = vpop.permute.xlu0 %4739
  %4741 = vrot.lane.b32.xlu0 %v4710, 89
  %v4742 = vpop.permute.xlu0 %4741
  %v4743 = vsel %vm1994, %v4712, %v4714
  %v4744 = vsel %vm1994, %v4716, %v4718
  %v4745 = vsel %vm1994, %v4720, %v4722
  %v4746 = vsel %vm1994, %v4724, %v4726
  %v4747 = vsel %vm1994, %v4728, %v4730
  %v4748 = vsel %vm1994, %v4732, %v4734
  %v4749 = vsel %vm1994, %v4736, %v4738
  %v4750 = vsel %vm1994, %v4740, %v4742
  %4759 = vst [vmem:[%s2838 + $0x48] sm:$0x7] %v4743
  %4760 = vst [vmem:[%s2838 + $0xc8] sm:$0x7] %v4744
  %4761 = vst [vmem:[%s2838 + $0x148] sm:$0x7] %v4745
  %4762 = vst [vmem:[%s2838 + $0x1c8] sm:$0x7] %v4746
  %4763 = vst [vmem:[%s2838 + $0x248] sm:$0x7] %v4747
  %4764 = vst [vmem:[%s2838 + $0x2c8] sm:$0x7] %v4748
  %4765 = vst [vmem:[%s2838 + $0x348] sm:$0x7] %v4749
  %4766 = vst [vmem:[%s2838 + $0x3c8] sm:$0x7] %v4750
  %v4767 = vld [vmem:[%s2829] sm:$0x77]
  %v4768 = vld [vmem:[%s2829 + $0x8] sm:$0x77]
  %v4769 = vld [vmem:[%s2829 + $0x10] sm:$0x77]
  %v4770 = vld [vmem:[%s2829 + $0x18] sm:$0x77]
  %v4771 = vld [vmem:[%s2829 + $0x20] sm:$0x77]
  %v4772 = vld [vmem:[%s2829 + $0x28] sm:$0x77]
  %v4773 = vld [vmem:[%s2829 + $0x30] sm:$0x77]
  %v4774 = vld [vmem:[%s2829 + $0x38] sm:$0x77]
  %v4783 = vcombine.high %v4767, %v4767
  %v4784 = vcombine.high %v4768, %v4768
  %v4785 = vcombine.high %v4769, %v4769
  %v4786 = vcombine.high %v4770, %v4770
  %v4787 = vcombine.high %v4771, %v4771
  %v4788 = vcombine.high %v4772, %v4772
  %v4789 = vcombine.high %v4773, %v4773
  %v4790 = vcombine.high %v4774, %v4774
  %4791 = vrot.lane.b32.xlu0 %v4767, 88
  %v4792 = vpop.permute.xlu0 %4791
  %4793 = vrot.lane.b32.xlu0 %v4783, 88
  %v4794 = vpop.permute.xlu0 %4793
  %4795 = vrot.lane.b32.xlu0 %v4768, 88
  %v4796 = vpop.permute.xlu0 %4795
  %4797 = vrot.lane.b32.xlu0 %v4784, 88
  %v4798 = vpop.permute.xlu0 %4797
  %4799 = vrot.lane.b32.xlu0 %v4769, 88
  %v4800 = vpop.permute.xlu0 %4799
  %4801 = vrot.lane.b32.xlu0 %v4785, 88
  %v4802 = vpop.permute.xlu0 %4801
  %4803 = vrot.lane.b32.xlu0 %v4770, 88
  %v4804 = vpop.permute.xlu0 %4803
  %4805 = vrot.lane.b32.xlu0 %v4786, 88
  %v4806 = vpop.permute.xlu0 %4805
  %4807 = vrot.lane.b32.xlu0 %v4771, 88
  %v4808 = vpop.permute.xlu0 %4807
  %4809 = vrot.lane.b32.xlu0 %v4787, 88
  %v4810 = vpop.permute.xlu0 %4809
  %4811 = vrot.lane.b32.xlu0 %v4772, 88
  %v4812 = vpop.permute.xlu0 %4811
  %4813 = vrot.lane.b32.xlu0 %v4788, 88
  %v4814 = vpop.permute.xlu0 %4813
  %4815 = vrot.lane.b32.xlu0 %v4773, 88
  %v4816 = vpop.permute.xlu0 %4815
  %4817 = vrot.lane.b32.xlu0 %v4789, 88
  %v4818 = vpop.permute.xlu0 %4817
  %4819 = vrot.lane.b32.xlu0 %v4774, 88
  %v4820 = vpop.permute.xlu0 %4819
  %4821 = vrot.lane.b32.xlu0 %v4790, 88
  %v4822 = vpop.permute.xlu0 %4821
  %v4823 = vsel %vm2075, %v4792, %v4794
  %v4824 = vsel %vm2075, %v4796, %v4798
  %v4825 = vsel %vm2075, %v4800, %v4802
  %v4826 = vsel %vm2075, %v4804, %v4806
  %v4827 = vsel %vm2075, %v4808, %v4810
  %v4828 = vsel %vm2075, %v4812, %v4814
  %v4829 = vsel %vm2075, %v4816, %v4818
  %v4830 = vsel %vm2075, %v4820, %v4822
  %4839 = vst [vmem:[%s2838 + $0x4b] sm:$0x7] %v4823
  %4840 = vst [vmem:[%s2838 + $0xcb] sm:$0x7] %v4824
  %4841 = vst [vmem:[%s2838 + $0x14b] sm:$0x7] %v4825
  %4842 = vst [vmem:[%s2838 + $0x1cb] sm:$0x7] %v4826
  %4843 = vst [vmem:[%s2838 + $0x24b] sm:$0x7] %v4827
  %4844 = vst [vmem:[%s2838 + $0x2cb] sm:$0x7] %v4828
  %4845 = vst [vmem:[%s2838 + $0x34b] sm:$0x7] %v4829
  %4846 = vst [vmem:[%s2838 + $0x3cb] sm:$0x7] %v4830
  %v4847 = vld [vmem:[%s2829] sm:$0x77]
  %v4848 = vld [vmem:[%s2829 + $0x8] sm:$0x77]
  %v4849 = vld [vmem:[%s2829 + $0x10] sm:$0x77]
  %v4850 = vld [vmem:[%s2829 + $0x18] sm:$0x77]
  %v4851 = vld [vmem:[%s2829 + $0x20] sm:$0x77]
  %v4852 = vld [vmem:[%s2829 + $0x28] sm:$0x77]
  %v4853 = vld [vmem:[%s2829 + $0x30] sm:$0x77]
  %v4854 = vld [vmem:[%s2829 + $0x38] sm:$0x77]
  %v4863 = vcombine.high %v4847, %v4847
  %v4864 = vcombine.high %v4848, %v4848
  %v4865 = vcombine.high %v4849, %v4849
  %v4866 = vcombine.high %v4850, %v4850
  %v4867 = vcombine.high %v4851, %v4851
  %v4868 = vcombine.high %v4852, %v4852
  %v4869 = vcombine.high %v4853, %v4853
  %v4870 = vcombine.high %v4854, %v4854
  %4871 = vrot.lane.b32.xlu0 %v4847, 87
  %v4872 = vpop.permute.xlu0 %4871
  %4873 = vrot.lane.b32.xlu0 %v4863, 87
  %v4874 = vpop.permute.xlu0 %4873
  %4875 = vrot.lane.b32.xlu0 %v4848, 87
  %v4876 = vpop.permute.xlu0 %4875
  %4877 = vrot.lane.b32.xlu0 %v4864, 87
  %v4878 = vpop.permute.xlu0 %4877
  %4879 = vrot.lane.b32.xlu0 %v4849, 87
  %v4880 = vpop.permute.xlu0 %4879
  %4881 = vrot.lane.b32.xlu0 %v4865, 87
  %v4882 = vpop.permute.xlu0 %4881
  %4883 = vrot.lane.b32.xlu0 %v4850, 87
  %v4884 = vpop.permute.xlu0 %4883
  %4885 = vrot.lane.b32.xlu0 %v4866, 87
  %v4886 = vpop.permute.xlu0 %4885
  %4887 = vrot.lane.b32.xlu0 %v4851, 87
  %v4888 = vpop.permute.xlu0 %4887
  %4889 = vrot.lane.b32.xlu0 %v4867, 87
  %v4890 = vpop.permute.xlu0 %4889
  %4891 = vrot.lane.b32.xlu0 %v4852, 87
  %v4892 = vpop.permute.xlu0 %4891
  %4893 = vrot.lane.b32.xlu0 %v4868, 87
  %v4894 = vpop.permute.xlu0 %4893
  %4895 = vrot.lane.b32.xlu0 %v4853, 87
  %v4896 = vpop.permute.xlu0 %4895
  %4897 = vrot.lane.b32.xlu0 %v4869, 87
  %v4898 = vpop.permute.xlu0 %4897
  %4899 = vrot.lane.b32.xlu0 %v4854, 87
  %v4900 = vpop.permute.xlu0 %4899
  %4901 = vrot.lane.b32.xlu0 %v4870, 87
  %v4902 = vpop.permute.xlu0 %4901
  %v4903 = vsel %vm2156, %v4872, %v4874
  %v4904 = vsel %vm2156, %v4876, %v4878
  %v4905 = vsel %vm2156, %v4880, %v4882
  %v4906 = vsel %vm2156, %v4884, %v4886
  %v4907 = vsel %vm2156, %v4888, %v4890
  %v4908 = vsel %vm2156, %v4892, %v4894
  %v4909 = vsel %vm2156, %v4896, %v4898
  %v4910 = vsel %vm2156, %v4900, %v4902
  %4919 = vst [vmem:[%s2838 + $0x4e] sm:$0x7] %v4903
  %4920 = vst [vmem:[%s2838 + $0xce] sm:$0x7] %v4904
  %4921 = vst [vmem:[%s2838 + $0x14e] sm:$0x7] %v4905
  %4922 = vst [vmem:[%s2838 + $0x1ce] sm:$0x7] %v4906
  %4923 = vst [vmem:[%s2838 + $0x24e] sm:$0x7] %v4907
  %4924 = vst [vmem:[%s2838 + $0x2ce] sm:$0x7] %v4908
  %4925 = vst [vmem:[%s2838 + $0x34e] sm:$0x7] %v4909
  %4926 = vst [vmem:[%s2838 + $0x3ce] sm:$0x7] %v4910
  %v4927 = vld [vmem:[%s2829] sm:$0x77]
  %v4928 = vld [vmem:[%s2829 + $0x8] sm:$0x77]
  %v4929 = vld [vmem:[%s2829 + $0x10] sm:$0x77]
  %v4930 = vld [vmem:[%s2829 + $0x18] sm:$0x77]
  %v4931 = vld [vmem:[%s2829 + $0x20] sm:$0x77]
  %v4932 = vld [vmem:[%s2829 + $0x28] sm:$0x77]
  %v4933 = vld [vmem:[%s2829 + $0x30] sm:$0x77]
  %v4934 = vld [vmem:[%s2829 + $0x38] sm:$0x77]
  %v4943 = vcombine.high %v4927, %v4927
  %v4944 = vcombine.high %v4928, %v4928
  %v4945 = vcombine.high %v4929, %v4929
  %v4946 = vcombine.high %v4930, %v4930
  %v4947 = vcombine.high %v4931, %v4931
  %v4948 = vcombine.high %v4932, %v4932
  %v4949 = vcombine.high %v4933, %v4933
  %v4950 = vcombine.high %v4934, %v4934
  %4951 = vrot.lane.b32.xlu0 %v4927, 86
  %v4952 = vpop.permute.xlu0 %4951
  %4953 = vrot.lane.b32.xlu0 %v4943, 86
  %v4954 = vpop.permute.xlu0 %4953
  %4955 = vrot.lane.b32.xlu0 %v4928, 86
  %v4956 = vpop.permute.xlu0 %4955
  %4957 = vrot.lane.b32.xlu0 %v4944, 86
  %v4958 = vpop.permute.xlu0 %4957
  %4959 = vrot.lane.b32.xlu0 %v4929, 86
  %v4960 = vpop.permute.xlu0 %4959
  %4961 = vrot.lane.b32.xlu0 %v4945, 86
  %v4962 = vpop.permute.xlu0 %4961
  %4963 = vrot.lane.b32.xlu0 %v4930, 86
  %v4964 = vpop.permute.xlu0 %4963
  %4965 = vrot.lane.b32.xlu0 %v4946, 86
  %v4966 = vpop.permute.xlu0 %4965
  %4967 = vrot.lane.b32.xlu0 %v4931, 86
  %v4968 = vpop.permute.xlu0 %4967
  %4969 = vrot.lane.b32.xlu0 %v4947, 86
  %v4970 = vpop.permute.xlu0 %4969
  %4971 = vrot.lane.b32.xlu0 %v4932, 86
  %v4972 = vpop.permute.xlu0 %4971
  %4973 = vrot.lane.b32.xlu0 %v4948, 86
  %v4974 = vpop.permute.xlu0 %4973
  %4975 = vrot.lane.b32.xlu0 %v4933, 86
  %v4976 = vpop.permute.xlu0 %4975
  %4977 = vrot.lane.b32.xlu0 %v4949, 86
  %v4978 = vpop.permute.xlu0 %4977
  %4979 = vrot.lane.b32.xlu0 %v4934, 86
  %v4980 = vpop.permute.xlu0 %4979
  %4981 = vrot.lane.b32.xlu0 %v4950, 86
  %v4982 = vpop.permute.xlu0 %4981
  %v4983 = vsel %vm2237, %v4952, %v4954
  %v4984 = vsel %vm2237, %v4956, %v4958
  %v4985 = vsel %vm2237, %v4960, %v4962
  %v4986 = vsel %vm2237, %v4964, %v4966
  %v4987 = vsel %vm2237, %v4968, %v4970
  %v4988 = vsel %vm2237, %v4972, %v4974
  %v4989 = vsel %vm2237, %v4976, %v4978
  %v4990 = vsel %vm2237, %v4980, %v4982
  %4999 = vst [vmem:[%s2838 + $0x51] sm:$0x7] %v4983
  %5000 = vst [vmem:[%s2838 + $0xd1] sm:$0x7] %v4984
  %5001 = vst [vmem:[%s2838 + $0x151] sm:$0x7] %v4985
  %5002 = vst [vmem:[%s2838 + $0x1d1] sm:$0x7] %v4986
  %5003 = vst [vmem:[%s2838 + $0x251] sm:$0x7] %v4987
  %5004 = vst [vmem:[%s2838 + $0x2d1] sm:$0x7] %v4988
  %5005 = vst [vmem:[%s2838 + $0x351] sm:$0x7] %v4989
  %5006 = vst [vmem:[%s2838 + $0x3d1] sm:$0x7] %v4990
  %v5007 = vld [vmem:[%s2829] sm:$0x77]
  %v5008 = vld [vmem:[%s2829 + $0x8] sm:$0x77]
  %v5009 = vld [vmem:[%s2829 + $0x10] sm:$0x77]
  %v5010 = vld [vmem:[%s2829 + $0x18] sm:$0x77]
  %v5011 = vld [vmem:[%s2829 + $0x20] sm:$0x77]
  %v5012 = vld [vmem:[%s2829 + $0x28] sm:$0x77]
  %v5013 = vld [vmem:[%s2829 + $0x30] sm:$0x77]
  %v5014 = vld [vmem:[%s2829 + $0x38] sm:$0x77]
  %v5023 = vcombine.high %v5007, %v5007
  %v5024 = vcombine.high %v5008, %v5008
  %v5025 = vcombine.high %v5009, %v5009
  %v5026 = vcombine.high %v5010, %v5010
  %v5027 = vcombine.high %v5011, %v5011
  %v5028 = vcombine.high %v5012, %v5012
  %v5029 = vcombine.high %v5013, %v5013
  %v5030 = vcombine.high %v5014, %v5014
  %5031 = vrot.lane.b32.xlu0 %v5007, 80
  %v5032 = vpop.permute.xlu0 %5031
  %5033 = vrot.lane.b32.xlu0 %v5023, 80
  %v5034 = vpop.permute.xlu0 %5033
  %5035 = vrot.lane.b32.xlu0 %v5008, 80
  %v5036 = vpop.permute.xlu0 %5035
  %5037 = vrot.lane.b32.xlu0 %v5024, 80
  %v5038 = vpop.permute.xlu0 %5037
  %5039 = vrot.lane.b32.xlu0 %v5009, 80
  %v5040 = vpop.permute.xlu0 %5039
  %5041 = vrot.lane.b32.xlu0 %v5025, 80
  %v5042 = vpop.permute.xlu0 %5041
  %5043 = vrot.lane.b32.xlu0 %v5010, 80
  %v5044 = vpop.permute.xlu0 %5043
  %5045 = vrot.lane.b32.xlu0 %v5026, 80
  %v5046 = vpop.permute.xlu0 %5045
  %5047 = vrot.lane.b32.xlu0 %v5011, 80
  %v5048 = vpop.permute.xlu0 %5047
  %5049 = vrot.lane.b32.xlu0 %v5027, 80
  %v5050 = vpop.permute.xlu0 %5049
  %5051 = vrot.lane.b32.xlu0 %v5012, 80
  %v5052 = vpop.permute.xlu0 %5051
  %5053 = vrot.lane.b32.xlu0 %v5028, 80
  %v5054 = vpop.permute.xlu0 %5053
  %5055 = vrot.lane.b32.xlu0 %v5013, 80
  %v5056 = vpop.permute.xlu0 %5055
  %5057 = vrot.lane.b32.xlu0 %v5029, 80
  %v5058 = vpop.permute.xlu0 %5057
  %5059 = vrot.lane.b32.xlu0 %v5014, 80
  %v5060 = vpop.permute.xlu0 %5059
  %5061 = vrot.lane.b32.xlu0 %v5030, 80
  %v5062 = vpop.permute.xlu0 %5061
  %v5063 = vsel %vm2318, %v5032, %v5034
  %v5064 = vsel %vm2318, %v5036, %v5038
  %v5065 = vsel %vm2318, %v5040, %v5042
  %v5066 = vsel %vm2318, %v5044, %v5046
  %v5067 = vsel %vm2318, %v5048, %v5050
  %v5068 = vsel %vm2318, %v5052, %v5054
  %v5069 = vsel %vm2318, %v5056, %v5058
  %v5070 = vsel %vm2318, %v5060, %v5062
  %5079 = vst [vmem:[%s2838 + $0x54] sm:$0x7] %v5063
  %5080 = vst [vmem:[%s2838 + $0xd4] sm:$0x7] %v5064
  %5081 = vst [vmem:[%s2838 + $0x154] sm:$0x7] %v5065
  %5082 = vst [vmem:[%s2838 + $0x1d4] sm:$0x7] %v5066
  %5083 = vst [vmem:[%s2838 + $0x254] sm:$0x7] %v5067
  %5084 = vst [vmem:[%s2838 + $0x2d4] sm:$0x7] %v5068
  %5085 = vst [vmem:[%s2838 + $0x354] sm:$0x7] %v5069
  %5086 = vst [vmem:[%s2838 + $0x3d4] sm:$0x7] %v5070
  %v5087 = vld [vmem:[%s2829] sm:$0x77]
  %v5088 = vld [vmem:[%s2829 + $0x8] sm:$0x77]
  %v5089 = vld [vmem:[%s2829 + $0x10] sm:$0x77]
  %v5090 = vld [vmem:[%s2829 + $0x18] sm:$0x77]
  %v5091 = vld [vmem:[%s2829 + $0x20] sm:$0x77]
  %v5092 = vld [vmem:[%s2829 + $0x28] sm:$0x77]
  %v5093 = vld [vmem:[%s2829 + $0x30] sm:$0x77]
  %v5094 = vld [vmem:[%s2829 + $0x38] sm:$0x77]
  %v5103 = vcombine.high %v5087, %v5087
  %v5104 = vcombine.high %v5088, %v5088
  %v5105 = vcombine.high %v5089, %v5089
  %v5106 = vcombine.high %v5090, %v5090
  %v5107 = vcombine.high %v5091, %v5091
  %v5108 = vcombine.high %v5092, %v5092
  %v5109 = vcombine.high %v5093, %v5093
  %v5110 = vcombine.high %v5094, %v5094
  %5111 = vrot.lane.b32.xlu0 %v5087, 79
  %v5112 = vpop.permute.xlu0 %5111
  %5113 = vrot.lane.b32.xlu0 %v5103, 79
  %v5114 = vpop.permute.xlu0 %5113
  %5115 = vrot.lane.b32.xlu0 %v5088, 79
  %v5116 = vpop.permute.xlu0 %5115
  %5117 = vrot.lane.b32.xlu0 %v5104, 79
  %v5118 = vpop.permute.xlu0 %5117
  %5119 = vrot.lane.b32.xlu0 %v5089, 79
  %v5120 = vpop.permute.xlu0 %5119
  %5121 = vrot.lane.b32.xlu0 %v5105, 79
  %v5122 = vpop.permute.xlu0 %5121
  %5123 = vrot.lane.b32.xlu0 %v5090, 79
  %v5124 = vpop.permute.xlu0 %5123
  %5125 = vrot.lane.b32.xlu0 %v5106, 79
  %v5126 = vpop.permute.xlu0 %5125
  %5127 = vrot.lane.b32.xlu0 %v5091, 79
  %v5128 = vpop.permute.xlu0 %5127
  %5129 = vrot.lane.b32.xlu0 %v5107, 79
  %v5130 = vpop.permute.xlu0 %5129
  %5131 = vrot.lane.b32.xlu0 %v5092, 79
  %v5132 = vpop.permute.xlu0 %5131
  %5133 = vrot.lane.b32.xlu0 %v5108, 79
  %v5134 = vpop.permute.xlu0 %5133
  %5135 = vrot.lane.b32.xlu0 %v5093, 79
  %v5136 = vpop.permute.xlu0 %5135
  %5137 = vrot.lane.b32.xlu0 %v5109, 79
  %v5138 = vpop.permute.xlu0 %5137
  %5139 = vrot.lane.b32.xlu0 %v5094, 79
  %v5140 = vpop.permute.xlu0 %5139
  %5141 = vrot.lane.b32.xlu0 %v5110, 79
  %v5142 = vpop.permute.xlu0 %5141
  %v5143 = vsel %vm2399, %v5112, %v5114
  %v5144 = vsel %vm2399, %v5116, %v5118
  %v5145 = vsel %vm2399, %v5120, %v5122
  %v5146 = vsel %vm2399, %v5124, %v5126
  %v5147 = vsel %vm2399, %v5128, %v5130
  %v5148 = vsel %vm2399, %v5132, %v5134
  %v5149 = vsel %vm2399, %v5136, %v5138
  %v5150 = vsel %vm2399, %v5140, %v5142
  %5159 = vst [vmem:[%s2838 + $0x57] sm:$0x7] %v5143
  %5160 = vst [vmem:[%s2838 + $0xd7] sm:$0x7] %v5144
  %5161 = vst [vmem:[%s2838 + $0x157] sm:$0x7] %v5145
  %5162 = vst [vmem:[%s2838 + $0x1d7] sm:$0x7] %v5146
  %5163 = vst [vmem:[%s2838 + $0x257] sm:$0x7] %v5147
  %5164 = vst [vmem:[%s2838 + $0x2d7] sm:$0x7] %v5148
  %5165 = vst [vmem:[%s2838 + $0x357] sm:$0x7] %v5149
  %5166 = vst [vmem:[%s2838 + $0x3d7] sm:$0x7] %v5150
  %v5167 = vld [vmem:[%s2829] sm:$0x77]
  %v5168 = vld [vmem:[%s2829 + $0x8] sm:$0x77]
  %v5169 = vld [vmem:[%s2829 + $0x10] sm:$0x77]
  %v5170 = vld [vmem:[%s2829 + $0x18] sm:$0x77]
  %v5171 = vld [vmem:[%s2829 + $0x20] sm:$0x77]
  %v5172 = vld [vmem:[%s2829 + $0x28] sm:$0x77]
  %v5173 = vld [vmem:[%s2829 + $0x30] sm:$0x77]
  %v5174 = vld [vmem:[%s2829 + $0x38] sm:$0x77]
  %v5183 = vcombine.high %v5167, %v5167
  %v5184 = vcombine.high %v5168, %v5168
  %v5185 = vcombine.high %v5169, %v5169
  %v5186 = vcombine.high %v5170, %v5170
  %v5187 = vcombine.high %v5171, %v5171
  %v5188 = vcombine.high %v5172, %v5172
  %v5189 = vcombine.high %v5173, %v5173
  %v5190 = vcombine.high %v5174, %v5174
  %5191 = vrot.lane.b32.xlu0 %v5167, 78
  %v5192 = vpop.permute.xlu0 %5191
  %5193 = vrot.lane.b32.xlu0 %v5183, 78
  %v5194 = vpop.permute.xlu0 %5193
  %5195 = vrot.lane.b32.xlu0 %v5168, 78
  %v5196 = vpop.permute.xlu0 %5195
  %5197 = vrot.lane.b32.xlu0 %v5184, 78
  %v5198 = vpop.permute.xlu0 %5197
  %5199 = vrot.lane.b32.xlu0 %v5169, 78
  %v5200 = vpop.permute.xlu0 %5199
  %5201 = vrot.lane.b32.xlu0 %v5185, 78
  %v5202 = vpop.permute.xlu0 %5201
  %5203 = vrot.lane.b32.xlu0 %v5170, 78
  %v5204 = vpop.permute.xlu0 %5203
  %5205 = vrot.lane.b32.xlu0 %v5186, 78
  %v5206 = vpop.permute.xlu0 %5205
  %5207 = vrot.lane.b32.xlu0 %v5171, 78
  %v5208 = vpop.permute.xlu0 %5207
  %5209 = vrot.lane.b32.xlu0 %v5187, 78
  %v5210 = vpop.permute.xlu0 %5209
  %5211 = vrot.lane.b32.xlu0 %v5172, 78
  %v5212 = vpop.permute.xlu0 %5211
  %5213 = vrot.lane.b32.xlu0 %v5188, 78
  %v5214 = vpop.permute.xlu0 %5213
  %5215 = vrot.lane.b32.xlu0 %v5173, 78
  %v5216 = vpop.permute.xlu0 %5215
  %5217 = vrot.lane.b32.xlu0 %v5189, 78
  %v5218 = vpop.permute.xlu0 %5217
  %5219 = vrot.lane.b32.xlu0 %v5174, 78
  %v5220 = vpop.permute.xlu0 %5219
  %5221 = vrot.lane.b32.xlu0 %v5190, 78
  %v5222 = vpop.permute.xlu0 %5221
  %v5223 = vsel %vm2480, %v5192, %v5194
  %v5224 = vsel %vm2480, %v5196, %v5198
  %v5225 = vsel %vm2480, %v5200, %v5202
  %v5226 = vsel %vm2480, %v5204, %v5206
  %v5227 = vsel %vm2480, %v5208, %v5210
  %v5228 = vsel %vm2480, %v5212, %v5214
  %v5229 = vsel %vm2480, %v5216, %v5218
  %v5230 = vsel %vm2480, %v5220, %v5222
  %5239 = vst [vmem:[%s2838 + $0x5a] sm:$0x7] %v5223
  %5240 = vst [vmem:[%s2838 + $0xda] sm:$0x7] %v5224
  %5241 = vst [vmem:[%s2838 + $0x15a] sm:$0x7] %v5225
  %5242 = vst [vmem:[%s2838 + $0x1da] sm:$0x7] %v5226
  %5243 = vst [vmem:[%s2838 + $0x25a] sm:$0x7] %v5227
  %5244 = vst [vmem:[%s2838 + $0x2da] sm:$0x7] %v5228
  %5245 = vst [vmem:[%s2838 + $0x35a] sm:$0x7] %v5229
  %5246 = vst [vmem:[%s2838 + $0x3da] sm:$0x7] %v5230
  %v5247 = vld [vmem:[%s2829] sm:$0x77]
  %v5248 = vld [vmem:[%s2829 + $0x8] sm:$0x77]
  %v5249 = vld [vmem:[%s2829 + $0x10] sm:$0x77]
  %v5250 = vld [vmem:[%s2829 + $0x18] sm:$0x77]
  %v5251 = vld [vmem:[%s2829 + $0x20] sm:$0x77]
  %v5252 = vld [vmem:[%s2829 + $0x28] sm:$0x77]
  %v5253 = vld [vmem:[%s2829 + $0x30] sm:$0x77]
  %v5254 = vld [vmem:[%s2829 + $0x38] sm:$0x77]
  %v5263 = vcombine.high %v5247, %v5247
  %v5264 = vcombine.high %v5248, %v5248
  %v5265 = vcombine.high %v5249, %v5249
  %v5266 = vcombine.high %v5250, %v5250
  %v5267 = vcombine.high %v5251, %v5251
  %v5268 = vcombine.high %v5252, %v5252
  %v5269 = vcombine.high %v5253, %v5253
  %v5270 = vcombine.high %v5254, %v5254
  %5271 = vrot.lane.b32.xlu0 %v5247, 77
  %v5272 = vpop.permute.xlu0 %5271
  %5273 = vrot.lane.b32.xlu0 %v5263, 77
  %v5274 = vpop.permute.xlu0 %5273
  %5275 = vrot.lane.b32.xlu0 %v5248, 77
  %v5276 = vpop.permute.xlu0 %5275
  %5277 = vrot.lane.b32.xlu0 %v5264, 77
  %v5278 = vpop.permute.xlu0 %5277
  %5279 = vrot.lane.b32.xlu0 %v5249, 77
  %v5280 = vpop.permute.xlu0 %5279
  %5281 = vrot.lane.b32.xlu0 %v5265, 77
  %v5282 = vpop.permute.xlu0 %5281
  %5283 = vrot.lane.b32.xlu0 %v5250, 77
  %v5284 = vpop.permute.xlu0 %5283
  %5285 = vrot.lane.b32.xlu0 %v5266, 77
  %v5286 = vpop.permute.xlu0 %5285
  %5287 = vrot.lane.b32.xlu0 %v5251, 77
  %v5288 = vpop.permute.xlu0 %5287
  %5289 = vrot.lane.b32.xlu0 %v5267, 77
  %v5290 = vpop.permute.xlu0 %5289
  %5291 = vrot.lane.b32.xlu0 %v5252, 77
  %v5292 = vpop.permute.xlu0 %5291
  %5293 = vrot.lane.b32.xlu0 %v5268, 77
  %v5294 = vpop.permute.xlu0 %5293
  %5295 = vrot.lane.b32.xlu0 %v5253, 77
  %v5296 = vpop.permute.xlu0 %5295
  %5297 = vrot.lane.b32.xlu0 %v5269, 77
  %v5298 = vpop.permute.xlu0 %5297
  %5299 = vrot.lane.b32.xlu0 %v5254, 77
  %v5300 = vpop.permute.xlu0 %5299
  %5301 = vrot.lane.b32.xlu0 %v5270, 77
  %v5302 = vpop.permute.xlu0 %5301
  %v5303 = vsel %vm2561, %v5272, %v5274
  %v5304 = vsel %vm2561, %v5276, %v5278
  %v5305 = vsel %vm2561, %v5280, %v5282
  %v5306 = vsel %vm2561, %v5284, %v5286
  %v5307 = vsel %vm2561, %v5288, %v5290
  %v5308 = vsel %vm2561, %v5292, %v5294
  %v5309 = vsel %vm2561, %v5296, %v5298
  %v5310 = vsel %vm2561, %v5300, %v5302
  %5319 = vst [vmem:[%s2838 + $0x5d] sm:$0x7] %v5303
  %5320 = vst [vmem:[%s2838 + $0xdd] sm:$0x7] %v5304
  %5321 = vst [vmem:[%s2838 + $0x15d] sm:$0x7] %v5305
  %5322 = vst [vmem:[%s2838 + $0x1dd] sm:$0x7] %v5306
  %5323 = vst [vmem:[%s2838 + $0x25d] sm:$0x7] %v5307
  %5324 = vst [vmem:[%s2838 + $0x2dd] sm:$0x7] %v5308
  %5325 = vst [vmem:[%s2838 + $0x35d] sm:$0x7] %v5309
  %5326 = vst [vmem:[%s2838 + $0x3dd] sm:$0x7] %v5310
  %v5327 = vld [vmem:[%s2829] sm:$0x77]
  %v5328 = vld [vmem:[%s2829 + $0x8] sm:$0x77]
  %v5329 = vld [vmem:[%s2829 + $0x10] sm:$0x77]
  %v5330 = vld [vmem:[%s2829 + $0x18] sm:$0x77]
  %v5331 = vld [vmem:[%s2829 + $0x20] sm:$0x77]
  %v5332 = vld [vmem:[%s2829 + $0x28] sm:$0x77]
  %v5333 = vld [vmem:[%s2829 + $0x30] sm:$0x77]
  %v5334 = vld [vmem:[%s2829 + $0x38] sm:$0x77]
  %v5343 = vcombine.high %v5327, %v5327
  %v5344 = vcombine.high %v5328, %v5328
  %v5345 = vcombine.high %v5329, %v5329
  %v5346 = vcombine.high %v5330, %v5330
  %v5347 = vcombine.high %v5331, %v5331
  %v5348 = vcombine.high %v5332, %v5332
  %v5349 = vcombine.high %v5333, %v5333
  %v5350 = vcombine.high %v5334, %v5334
  %5351 = vrot.lane.b32.xlu0 %v5327, 76
  %v5352 = vpop.permute.xlu0 %5351
  %5353 = vrot.lane.b32.xlu0 %v5343, 76
  %v5354 = vpop.permute.xlu0 %5353
  %5355 = vrot.lane.b32.xlu0 %v5328, 76
  %v5356 = vpop.permute.xlu0 %5355
  %5357 = vrot.lane.b32.xlu0 %v5344, 76
  %v5358 = vpop.permute.xlu0 %5357
  %5359 = vrot.lane.b32.xlu0 %v5329, 76
  %v5360 = vpop.permute.xlu0 %5359
  %5361 = vrot.lane.b32.xlu0 %v5345, 76
  %v5362 = vpop.permute.xlu0 %5361
  %5363 = vrot.lane.b32.xlu0 %v5330, 76
  %v5364 = vpop.permute.xlu0 %5363
  %5365 = vrot.lane.b32.xlu0 %v5346, 76
  %v5366 = vpop.permute.xlu0 %5365
  %5367 = vrot.lane.b32.xlu0 %v5331, 76
  %v5368 = vpop.permute.xlu0 %5367
  %5369 = vrot.lane.b32.xlu0 %v5347, 76
  %v5370 = vpop.permute.xlu0 %5369
  %5371 = vrot.lane.b32.xlu0 %v5332, 76
  %v5372 = vpop.permute.xlu0 %5371
  %5373 = vrot.lane.b32.xlu0 %v5348, 76
  %v5374 = vpop.permute.xlu0 %5373
  %5375 = vrot.lane.b32.xlu0 %v5333, 76
  %v5376 = vpop.permute.xlu0 %5375
  %5377 = vrot.lane.b32.xlu0 %v5349, 76
  %v5378 = vpop.permute.xlu0 %5377
  %5379 = vrot.lane.b32.xlu0 %v5334, 76
  %v5380 = vpop.permute.xlu0 %5379
  %5381 = vrot.lane.b32.xlu0 %v5350, 76
  %v5382 = vpop.permute.xlu0 %5381
  %v5383 = vsel %vm2642, %v5352, %v5354
  %v5384 = vsel %vm2642, %v5356, %v5358
  %v5385 = vsel %vm2642, %v5360, %v5362
  %v5386 = vsel %vm2642, %v5364, %v5366
  %v5387 = vsel %vm2642, %v5368, %v5370
  %v5388 = vsel %vm2642, %v5372, %v5374
  %v5389 = vsel %vm2642, %v5376, %v5378
  %v5390 = vsel %vm2642, %v5380, %v5382
  %5399 = vst [vmem:[%s2838 + $0x60] sm:$0x7] %v5383
  %5400 = vst [vmem:[%s2838 + $0xe0] sm:$0x7] %v5384
  %5401 = vst [vmem:[%s2838 + $0x160] sm:$0x7] %v5385
  %5402 = vst [vmem:[%s2838 + $0x1e0] sm:$0x7] %v5386
  %5403 = vst [vmem:[%s2838 + $0x260] sm:$0x7] %v5387
  %5404 = vst [vmem:[%s2838 + $0x2e0] sm:$0x7] %v5388
  %5405 = vst [vmem:[%s2838 + $0x360] sm:$0x7] %v5389
  %5406 = vst [vmem:[%s2838 + $0x3e0] sm:$0x7] %v5390
  %v5407 = vld [vmem:[%s2829] sm:$0x77]
  %v5408 = vld [vmem:[%s2829 + $0x8] sm:$0x77]
  %v5409 = vld [vmem:[%s2829 + $0x10] sm:$0x77]
  %v5410 = vld [vmem:[%s2829 + $0x18] sm:$0x77]
  %v5411 = vld [vmem:[%s2829 + $0x20] sm:$0x77]
  %v5412 = vld [vmem:[%s2829 + $0x28] sm:$0x77]
  %v5413 = vld [vmem:[%s2829 + $0x30] sm:$0x77]
  %v5414 = vld [vmem:[%s2829 + $0x38] sm:$0x77]
  %v5423 = vcombine.high %v5407, %v5407
  %v5424 = vcombine.high %v5408, %v5408
  %v5425 = vcombine.high %v5409, %v5409
  %v5426 = vcombine.high %v5410, %v5410
  %v5427 = vcombine.high %v5411, %v5411
  %v5428 = vcombine.high %v5412, %v5412
  %v5429 = vcombine.high %v5413, %v5413
  %v5430 = vcombine.high %v5414, %v5414
  %5431 = vrot.lane.b32.xlu0 %v5407, 75
  %v5432 = vpop.permute.xlu0 %5431
  %5433 = vrot.lane.b32.xlu0 %v5423, 75
  %v5434 = vpop.permute.xlu0 %5433
  %5435 = vrot.lane.b32.xlu0 %v5408, 75
  %v5436 = vpop.permute.xlu0 %5435
  %5437 = vrot.lane.b32.xlu0 %v5424, 75
  %v5438 = vpop.permute.xlu0 %5437
  %5439 = vrot.lane.b32.xlu0 %v5409, 75
  %v5440 = vpop.permute.xlu0 %5439
  %5441 = vrot.lane.b32.xlu0 %v5425, 75
  %v5442 = vpop.permute.xlu0 %5441
  %5443 = vrot.lane.b32.xlu0 %v5410, 75
  %v5444 = vpop.permute.xlu0 %5443
  %5445 = vrot.lane.b32.xlu0 %v5426, 75
  %v5446 = vpop.permute.xlu0 %5445
  %5447 = vrot.lane.b32.xlu0 %v5411, 75
  %v5448 = vpop.permute.xlu0 %5447
  %5449 = vrot.lane.b32.xlu0 %v5427, 75
  %v5450 = vpop.permute.xlu0 %5449
  %5451 = vrot.lane.b32.xlu0 %v5412, 75
  %v5452 = vpop.permute.xlu0 %5451
  %5453 = vrot.lane.b32.xlu0 %v5428, 75
  %v5454 = vpop.permute.xlu0 %5453
  %5455 = vrot.lane.b32.xlu0 %v5413, 75
  %v5456 = vpop.permute.xlu0 %5455
  %5457 = vrot.lane.b32.xlu0 %v5429, 75
  %v5458 = vpop.permute.xlu0 %5457
  %5459 = vrot.lane.b32.xlu0 %v5414, 75
  %v5460 = vpop.permute.xlu0 %5459
  %5461 = vrot.lane.b32.xlu0 %v5430, 75
  %v5462 = vpop.permute.xlu0 %5461
  %v5463 = vsel %vm2723, %v5432, %v5434
  %v5464 = vsel %vm2723, %v5436, %v5438
  %v5465 = vsel %vm2723, %v5440, %v5442
  %v5466 = vsel %vm2723, %v5444, %v5446
  %v5467 = vsel %vm2723, %v5448, %v5450
  %v5468 = vsel %vm2723, %v5452, %v5454
  %v5469 = vsel %vm2723, %v5456, %v5458
  %v5470 = vsel %vm2723, %v5460, %v5462
  %5479 = vst [vmem:[%s2838 + $0x63] sm:$0x7] %v5463
  %5480 = vst [vmem:[%s2838 + $0xe3] sm:$0x7] %v5464
  %5481 = vst [vmem:[%s2838 + $0x163] sm:$0x7] %v5465
  %5482 = vst [vmem:[%s2838 + $0x1e3] sm:$0x7] %v5466
  %5483 = vst [vmem:[%s2838 + $0x263] sm:$0x7] %v5467
  %5484 = vst [vmem:[%s2838 + $0x2e3] sm:$0x7] %v5468
  %5485 = vst [vmem:[%s2838 + $0x363] sm:$0x7] %v5469
  %5486 = vst [vmem:[%s2838 + $0x3e3] sm:$0x7] %v5470
  %v5487 = vld [vmem:[%s2829] sm:$0x77]
  %v5488 = vld [vmem:[%s2829 + $0x8] sm:$0x77]
  %v5489 = vld [vmem:[%s2829 + $0x10] sm:$0x77]
  %v5490 = vld [vmem:[%s2829 + $0x18] sm:$0x77]
  %v5491 = vld [vmem:[%s2829 + $0x20] sm:$0x77]
  %v5492 = vld [vmem:[%s2829 + $0x28] sm:$0x77]
  %v5493 = vld [vmem:[%s2829 + $0x30] sm:$0x77]
  %v5494 = vld [vmem:[%s2829 + $0x38] sm:$0x77]
  %v5503 = vcombine.high %v5487, %v5487
  %v5504 = vcombine.high %v5488, %v5488
  %v5505 = vcombine.high %v5489, %v5489
  %v5506 = vcombine.high %v5490, %v5490
  %v5507 = vcombine.high %v5491, %v5491
  %v5508 = vcombine.high %v5492, %v5492
  %v5509 = vcombine.high %v5493, %v5493
  %v5510 = vcombine.high %v5494, %v5494
  %5511 = vrot.lane.b32.xlu0 %v5487, 74
  %v5512 = vpop.permute.xlu0 %5511
  %5513 = vrot.lane.b32.xlu0 %v5503, 74
  %v5514 = vpop.permute.xlu0 %5513
  %5515 = vrot.lane.b32.xlu0 %v5488, 74
  %v5516 = vpop.permute.xlu0 %5515
  %5517 = vrot.lane.b32.xlu0 %v5504, 74
  %v5518 = vpop.permute.xlu0 %5517
  %5519 = vrot.lane.b32.xlu0 %v5489, 74
  %v5520 = vpop.permute.xlu0 %5519
  %5521 = vrot.lane.b32.xlu0 %v5505, 74
  %v5522 = vpop.permute.xlu0 %5521
  %5523 = vrot.lane.b32.xlu0 %v5490, 74
  %v5524 = vpop.permute.xlu0 %5523
  %5525 = vrot.lane.b32.xlu0 %v5506, 74
  %v5526 = vpop.permute.xlu0 %5525
  %5527 = vrot.lane.b32.xlu0 %v5491, 74
  %v5528 = vpop.permute.xlu0 %5527
  %5529 = vrot.lane.b32.xlu0 %v5507, 74
  %v5530 = vpop.permute.xlu0 %5529
  %5531 = vrot.lane.b32.xlu0 %v5492, 74
  %v5532 = vpop.permute.xlu0 %5531
  %5533 = vrot.lane.b32.xlu0 %v5508, 74
  %v5534 = vpop.permute.xlu0 %5533
  %5535 = vrot.lane.b32.xlu0 %v5493, 74
  %v5536 = vpop.permute.xlu0 %5535
  %5537 = vrot.lane.b32.xlu0 %v5509, 74
  %v5538 = vpop.permute.xlu0 %5537
  %5539 = vrot.lane.b32.xlu0 %v5494, 74
  %v5540 = vpop.permute.xlu0 %5539
  %5541 = vrot.lane.b32.xlu0 %v5510, 74
  %v5542 = vpop.permute.xlu0 %5541
  %v5543 = vsel %vm2804, %v5512, %v5514
  %v5544 = vsel %vm2804, %v5516, %v5518
  %v5545 = vsel %vm2804, %v5520, %v5522
  %v5546 = vsel %vm2804, %v5524, %v5526
  %v5547 = vsel %vm2804, %v5528, %v5530
  %v5548 = vsel %vm2804, %v5532, %v5534
  %v5549 = vsel %vm2804, %v5536, %v5538
  %v5550 = vsel %vm2804, %v5540, %v5542
  %5559 = vst [vmem:[%s2838 + $0x66] sm:$0x7] %v5543
  %5560 = vst [vmem:[%s2838 + $0xe6] sm:$0x7] %v5544
  %5561 = vst [vmem:[%s2838 + $0x166] sm:$0x7] %v5545
  %5562 = vst [vmem:[%s2838 + $0x1e6] sm:$0x7] %v5546
  %5563 = vst [vmem:[%s2838 + $0x266] sm:$0x7] %v5547
  %5564 = vst [vmem:[%s2838 + $0x2e6] sm:$0x7] %v5548
  %5565 = vst [vmem:[%s2838 + $0x366] sm:$0x7] %v5549
  %5566 = vst [vmem:[%s2838 + $0x3e6] sm:$0x7] %v5550
  %v5567 = vld [vmem:[%s1] sm:$0xff]
  %v5568 = vld [vmem:[%s1 + $0x8] sm:$0xff]
  %v5569 = vld [vmem:[%s1 + $0x10] sm:$0xff]
  %v5570 = vld [vmem:[%s1 + $0x18] sm:$0xff]
  %v5571 = vld [vmem:[%s1 + $0x20] sm:$0xff]
  %v5572 = vld [vmem:[%s1 + $0x28] sm:$0xff]
  %v5573 = vld [vmem:[%s1 + $0x30] sm:$0xff]
  %v5574 = vld [vmem:[%s1 + $0x38] sm:$0xff]
  %s5575 = scalar_lea.vmem %s1, 64
  %v5576 = vld [vmem:[%s5575] sm:$0xff]
  %v5577 = vld [vmem:[%s5575 + $0x8] sm:$0xff]
  %v5578 = vld [vmem:[%s5575 + $0x10] sm:$0xff]
  %v5579 = vld [vmem:[%s5575 + $0x18] sm:$0xff]
  %v5580 = vld [vmem:[%s5575 + $0x20] sm:$0xff]
  %v5581 = vld [vmem:[%s5575 + $0x28] sm:$0xff]
  %v5582 = vld [vmem:[%s5575 + $0x30] sm:$0xff]
  %v5583 = vld [vmem:[%s5575 + $0x38] sm:$0xff]
  %s5584 = scalar_lea.vmem %s1, 128
  %v5585 = vld [vmem:[%s5584] sm:$0xff]
  %v5586 = vld [vmem:[%s5584 + $0x8] sm:$0xff]
  %v5587 = vld [vmem:[%s5584 + $0x10] sm:$0xff]
  %v5588 = vld [vmem:[%s5584 + $0x18] sm:$0xff]
  %v5589 = vld [vmem:[%s5584 + $0x20] sm:$0xff]
  %v5590 = vld [vmem:[%s5584 + $0x28] sm:$0xff]
  %v5591 = vld [vmem:[%s5584 + $0x30] sm:$0xff]
  %v5592 = vld [vmem:[%s5584 + $0x38] sm:$0xff]
  %v5593 = vld [vmem:[#allocation2] sm:$0xff]
  %v5594 = vld [vmem:[#allocation2 + $0x8] sm:$0xff]
  %v5595 = vld [vmem:[#allocation2 + $0x10] sm:$0xff]
  %v5596 = vld [vmem:[#allocation2 + $0x18] sm:$0xff]
  %v5597 = vld [vmem:[#allocation2 + $0x20] sm:$0xff]
  %v5598 = vld [vmem:[#allocation2 + $0x28] sm:$0xff]
  %v5599 = vld [vmem:[#allocation2 + $0x30] sm:$0xff]
  %v5600 = vld [vmem:[#allocation2 + $0x38] sm:$0xff]
  %v5601 = vld [vmem:[#allocation2 + $0x40] sm:$0xff]
  %v5602 = vld [vmem:[#allocation2 + $0x48] sm:$0xff]
  %v5603 = vld [vmem:[#allocation2 + $0x50] sm:$0xff]
  %v5604 = vld [vmem:[#allocation2 + $0x58] sm:$0xff]
  %v5605 = vld [vmem:[#allocation2 + $0x60] sm:$0xff]
  %v5606 = vld [vmem:[#allocation2 + $0x68] sm:$0xff]
  %v5607 = vld [vmem:[#allocation2 + $0x70] sm:$0xff]
  %v5608 = vld [vmem:[#allocation2 + $0x78] sm:$0xff]
  %s5609 = scalar_lea.vmem [#allocation2], 128
  %v5610 = vld [vmem:[%s5609] sm:$0xff]
  %v5611 = vld [vmem:[%s5609 + $0x8] sm:$0xff]
  %v5612 = vld [vmem:[%s5609 + $0x10] sm:$0xff]
  %v5613 = vld [vmem:[%s5609 + $0x18] sm:$0xff]
  %v5614 = vld [vmem:[%s5609 + $0x20] sm:$0xff]
  %v5615 = vld [vmem:[%s5609 + $0x28] sm:$0xff]
  %v5616 = vld [vmem:[%s5609 + $0x30] sm:$0xff]
  %v5617 = vld [vmem:[%s5609 + $0x38] sm:$0xff]
  %v5618 = vld [vmem:[%s5609 + $0x40] sm:$0xff]
  %v5619 = vld [vmem:[%s5609 + $0x48] sm:$0xff]
  %v5620 = vld [vmem:[%s5609 + $0x50] sm:$0xff]
  %v5621 = vld [vmem:[%s5609 + $0x58] sm:$0xff]
  %v5622 = vld [vmem:[%s5609 + $0x60] sm:$0xff]
  %v5623 = vld [vmem:[%s5609 + $0x68] sm:$0xff]
  %v5624 = vld [vmem:[%s5609 + $0x70] sm:$0xff]
  %v5625 = vld [vmem:[%s5609 + $0x78] sm:$0xff]
  %5626 = vmatprep.subr.mxu0 0.0
  %5627 = vmatpush1.msra.mxu0 %v5625
  %5628 = vmatprep.subr.mxu0 0.0
  %5629 = vmatpush1.msra.mxu0 %v5624
  %5630 = vmatprep.subr.mxu0 0.0
  %5631 = vmatpush1.msra.mxu0 %v5623
  %5632 = vmatprep.subr.mxu0 0.0
  %5633 = vmatpush1.msra.mxu0 %v5622
  %5634 = vmatprep.subr.mxu0 0.0
  %5635 = vmatpush1.msra.mxu0 %v5621
  %5636 = vmatprep.subr.mxu0 0.0
  %5637 = vmatpush1.msra.mxu0 %v5620
  %5638 = vmatprep.subr.mxu0 0.0
  %5639 = vmatpush1.msra.mxu0 %v5619
  %5640 = vmatprep.subr.mxu0 0.0
  %5641 = vmatpush1.msra.mxu0 %v5618
  %5642 = vmatprep.subr.mxu0 0.0
  %5643 = vmatpush1.msra.mxu0 %v5617
  %5644 = vmatprep.subr.mxu0 0.0
  %5645 = vmatpush1.msra.mxu0 %v5616
  %5646 = vmatprep.subr.mxu0 0.0
  %5647 = vmatpush1.msra.mxu0 %v5615
  %5648 = vmatprep.subr.mxu0 0.0
  %5649 = vmatpush1.msra.mxu0 %v5614
  %5650 = vmatprep.subr.mxu0 0.0
  %5651 = vmatpush1.msra.mxu0 %v5613
  %5652 = vmatprep.subr.mxu0 0.0
  %5653 = vmatpush1.msra.mxu0 %v5612
  %5654 = vmatprep.subr.mxu0 0.0
  %5655 = vmatpush1.msra.mxu0 %v5611
  %5656 = vmatprep.subr.mxu0 0.0
  %5657 = vmatpush1.msra.mxu0 %v5610
  %5658 = vmatprep.subr.mxu0 0.0
  %5659 = vmatpush2.msra.mxu0 0.0
  %5660 = vmatprep.subr.mxu0 0.0
  %5661 = vmatpush2.msra.mxu0 0.0
  %5662 = vmatprep.subr.mxu0 0.0
  %5663 = vmatpush2.msra.mxu0 0.0
  %5664 = vmatprep.subr.mxu0 0.0
  %5665 = vmatpush2.msra.mxu0 0.0
  %5666 = vmatprep.subr.mxu0 0.0
  %5667 = vmatpush2.msra.mxu0 0.0
  %5668 = vmatprep.subr.mxu0 0.0
  %5669 = vmatpush2.msra.mxu0 0.0
  %5670 = vmatprep.subr.mxu0 0.0
  %5671 = vmatpush2.msra.mxu0 0.0
  %5672 = vmatprep.subr.mxu0 0.0
  %5673 = vmatpush2.msra.mxu0 0.0
  %5674 = vmatprep.subr.mxu0 0.0
  %5675 = vmatpush2.msra.mxu0 0.0
  %5676 = vmatprep.subr.mxu0 0.0
  %5677 = vmatpush2.msra.mxu0 0.0
  %5678 = vmatprep.subr.mxu0 0.0
  %5679 = vmatpush2.msra.mxu0 0.0
  %5680 = vmatprep.subr.mxu0 0.0
  %5681 = vmatpush2.msra.mxu0 0.0
  %5682 = vmatprep.subr.mxu0 0.0
  %5683 = vmatpush2.msra.mxu0 0.0
  %5684 = vmatprep.subr.mxu0 0.0
  %5685 = vmatpush2.msra.mxu0 0.0
  %5686 = vmatprep.subr.mxu0 0.0
  %5687 = vmatpush2.msra.mxu0 0.0
  %5688 = vmatprep.subr.mxu0 0.0
  %5689 = vmatpush2.msra.mxu0 0.0
  %5690 = vmatprep.mubr.f32.mxu0 0.0
  %5691 = vmatmul.mubr.f32.gmra.mxu0 %v5576
  %v5692 = vpop.f32.mrf.mxu0
  %v5693 = vadd.f32 0.0, %v5692
  %v5694 = vpop.f32.mrf.mxu0
  %5695 = vmatprep.mubr.f32.mxu0 0.0
  %5696 = vmatmul.mubr.f32.gmra.mxu0 %v5577
  %v5697 = vpop.f32.mrf.mxu0
  %v5698 = vadd.f32 0.0, %v5697
  %v5699 = vpop.f32.mrf.mxu0
  %5700 = vmatprep.mubr.f32.mxu0 0.0
  %5701 = vmatmul.mubr.f32.gmra.mxu0 %v5578
  %v5702 = vpop.f32.mrf.mxu0
  %v5703 = vadd.f32 0.0, %v5702
  %v5704 = vpop.f32.mrf.mxu0
  %5705 = vmatprep.mubr.f32.mxu0 0.0
  %5706 = vmatmul.mubr.f32.gmra.mxu0 %v5579
  %v5707 = vpop.f32.mrf.mxu0
  %v5708 = vadd.f32 0.0, %v5707
  %v5709 = vpop.f32.mrf.mxu0
  %5710 = vmatprep.mubr.f32.mxu0 0.0
  %5711 = vmatmul.mubr.f32.gmra.mxu0 %v5580
  %v5712 = vpop.f32.mrf.mxu0
  %v5713 = vadd.f32 0.0, %v5712
  %v5714 = vpop.f32.mrf.mxu0
  %5715 = vmatprep.mubr.f32.mxu0 0.0
  %5716 = vmatmul.mubr.f32.gmra.mxu0 %v5581
  %v5717 = vpop.f32.mrf.mxu0
  %v5718 = vadd.f32 0.0, %v5717
  %v5719 = vpop.f32.mrf.mxu0
  %5720 = vmatprep.mubr.f32.mxu0 0.0
  %5721 = vmatmul.mubr.f32.gmra.mxu0 %v5582
  %v5722 = vpop.f32.mrf.mxu0
  %v5723 = vadd.f32 0.0, %v5722
  %v5724 = vpop.f32.mrf.mxu0
  %5725 = vmatprep.mubr.f32.mxu0 0.0
  %5726 = vmatmul.mubr.f32.gmra.mxu0 %v5583
  %v5727 = vpop.f32.mrf.mxu0
  %v5728 = vadd.f32 0.0, %v5727
  %v5729 = vpop.f32.mrf.mxu0
  %5730 = vdwg.mxu0
  %5731 = vmatprep.subr.mxu0 0.0
  %5732 = vmatpush1.msra.mxu0 %v5608
  %5733 = vmatprep.subr.mxu0 0.0
  %5734 = vmatpush1.msra.mxu0 %v5607
  %5735 = vmatprep.subr.mxu0 0.0
  %5736 = vmatpush1.msra.mxu0 %v5606
  %5737 = vmatprep.subr.mxu0 0.0
  %5738 = vmatpush1.msra.mxu0 %v5605
  %5739 = vmatprep.subr.mxu0 0.0
  %5740 = vmatpush1.msra.mxu0 %v5604
  %5741 = vmatprep.subr.mxu0 0.0
  %5742 = vmatpush1.msra.mxu0 %v5603
  %5743 = vmatprep.subr.mxu0 0.0
  %5744 = vmatpush1.msra.mxu0 %v5602
  %5745 = vmatprep.subr.mxu0 0.0
  %5746 = vmatpush1.msra.mxu0 %v5601
  %5747 = vmatprep.subr.mxu0 0.0
  %5748 = vmatpush1.msra.mxu0 %v5600
  %5749 = vmatprep.subr.mxu0 0.0
  %5750 = vmatpush1.msra.mxu0 %v5599
  %5751 = vmatprep.subr.mxu0 0.0
  %5752 = vmatpush1.msra.mxu0 %v5598
  %5753 = vmatprep.subr.mxu0 0.0
  %5754 = vmatpush1.msra.mxu0 %v5597
  %5755 = vmatprep.subr.mxu0 0.0
  %5756 = vmatpush1.msra.mxu0 %v5596
  %5757 = vmatprep.subr.mxu0 0.0
  %5758 = vmatpush1.msra.mxu0 %v5595
  %5759 = vmatprep.subr.mxu0 0.0
  %5760 = vmatpush1.msra.mxu0 %v5594
  %5761 = vmatprep.subr.mxu0 0.0
  %5762 = vmatpush1.msra.mxu0 %v5593
  %5763 = vmatprep.subr.mxu0 0.0
  %5764 = vmatpush2.msra.mxu0 0.0
  %5765 = vmatprep.subr.mxu0 0.0
  %5766 = vmatpush2.msra.mxu0 0.0
  %5767 = vmatprep.subr.mxu0 0.0
  %5768 = vmatpush2.msra.mxu0 0.0
  %5769 = vmatprep.subr.mxu0 0.0
  %5770 = vmatpush2.msra.mxu0 0.0
  %5771 = vmatprep.subr.mxu0 0.0
  %5772 = vmatpush2.msra.mxu0 0.0
  %5773 = vmatprep.subr.mxu0 0.0
  %5774 = vmatpush2.msra.mxu0 0.0
  %5775 = vmatprep.subr.mxu0 0.0
  %5776 = vmatpush2.msra.mxu0 0.0
  %5777 = vmatprep.subr.mxu0 0.0
  %5778 = vmatpush2.msra.mxu0 0.0
  %5779 = vmatprep.subr.mxu0 0.0
  %5780 = vmatpush2.msra.mxu0 0.0
  %5781 = vmatprep.subr.mxu0 0.0
  %5782 = vmatpush2.msra.mxu0 0.0
  %5783 = vmatprep.subr.mxu0 0.0
  %5784 = vmatpush2.msra.mxu0 0.0
  %5785 = vmatprep.subr.mxu0 0.0
  %5786 = vmatpush2.msra.mxu0 0.0
  %5787 = vmatprep.subr.mxu0 0.0
  %5788 = vmatpush2.msra.mxu0 0.0
  %5789 = vmatprep.subr.mxu0 0.0
  %5790 = vmatpush2.msra.mxu0 0.0
  %5791 = vmatprep.subr.mxu0 0.0
  %5792 = vmatpush2.msra.mxu0 0.0
  %5793 = vmatprep.subr.mxu0 0.0
  %5794 = vmatpush2.msra.mxu0 0.0
  %5795 = vmatprep.mubr.f32.mxu0 0.0
  %5796 = vmatmul.mubr.f32.gmra.mxu0 %v5567
  %v5797 = vpop.f32.mrf.mxu0
  %v5798 = vadd.f32 %v5693, %v5797
  %v5799 = vpop.f32.mrf.mxu0
  %5800 = vmatprep.mubr.f32.mxu0 0.0
  %5801 = vmatmul.mubr.f32.gmra.mxu0 %v5568
  %v5802 = vpop.f32.mrf.mxu0
  %v5803 = vadd.f32 %v5698, %v5802
  %v5804 = vpop.f32.mrf.mxu0
  %5805 = vmatprep.mubr.f32.mxu0 0.0
  %5806 = vmatmul.mubr.f32.gmra.mxu0 %v5569
  %v5807 = vpop.f32.mrf.mxu0
  %v5808 = vadd.f32 %v5703, %v5807
  %v5809 = vpop.f32.mrf.mxu0
  %5810 = vmatprep.mubr.f32.mxu0 0.0
  %5811 = vmatmul.mubr.f32.gmra.mxu0 %v5570
  %v5812 = vpop.f32.mrf.mxu0
  %v5813 = vadd.f32 %v5708, %v5812
  %v5814 = vpop.f32.mrf.mxu0
  %5815 = vmatprep.mubr.f32.mxu0 0.0
  %5816 = vmatmul.mubr.f32.gmra.mxu0 %v5571
  %v5817 = vpop.f32.mrf.mxu0
  %v5818 = vadd.f32 %v5713, %v5817
  %v5819 = vpop.f32.mrf.mxu0
  %5820 = vmatprep.mubr.f32.mxu0 0.0
  %5821 = vmatmul.mubr.f32.gmra.mxu0 %v5572
  %v5822 = vpop.f32.mrf.mxu0
  %v5823 = vadd.f32 %v5718, %v5822
  %v5824 = vpop.f32.mrf.mxu0
  %5825 = vmatprep.mubr.f32.mxu0 0.0
  %5826 = vmatmul.mubr.f32.gmra.mxu0 %v5573
  %v5827 = vpop.f32.mrf.mxu0
  %v5828 = vadd.f32 %v5723, %v5827
  %v5829 = vpop.f32.mrf.mxu0
  %5830 = vmatprep.mubr.f32.mxu0 0.0
  %5831 = vmatmul.mubr.f32.gmra.mxu0 %v5574
  %v5832 = vpop.f32.mrf.mxu0
  %v5833 = vadd.f32 %v5728, %v5832
  %v5834 = vpop.f32.mrf.mxu0
  %5835 = vdwg.mxu0
  %s5836 = scalar_lea.vmem [#allocation2], 256
  %v5837 = vld [vmem:[%s5836] sm:$0xff]
  %v5838 = vld [vmem:[%s5836 + $0x8] sm:$0xff]
  %v5839 = vld [vmem:[%s5836 + $0x10] sm:$0xff]
  %v5840 = vld [vmem:[%s5836 + $0x18] sm:$0xff]
  %v5841 = vld [vmem:[%s5836 + $0x20] sm:$0xff]
  %v5842 = vld [vmem:[%s5836 + $0x28] sm:$0xff]
  %v5843 = vld [vmem:[%s5836 + $0x30] sm:$0xff]
  %v5844 = vld [vmem:[%s5836 + $0x38] sm:$0xff]
  %v5845 = vld [vmem:[%s5836 + $0x40] sm:$0xff]
  %v5846 = vld [vmem:[%s5836 + $0x48] sm:$0xff]
  %v5847 = vld [vmem:[%s5836 + $0x50] sm:$0xff]
  %v5848 = vld [vmem:[%s5836 + $0x58] sm:$0xff]
  %v5849 = vld [vmem:[%s5836 + $0x60] sm:$0xff]
  %v5850 = vld [vmem:[%s5836 + $0x68] sm:$0xff]
  %v5851 = vld [vmem:[%s5836 + $0x70] sm:$0xff]
  %v5852 = vld [vmem:[%s5836 + $0x78] sm:$0xff]
  %5853 = vmatprep.subr.mxu0 0.0
  %5854 = vmatpush1.msra.mxu0 %v5852
  %5855 = vmatprep.subr.mxu0 0.0
  %5856 = vmatpush1.msra.mxu0 %v5851
  %5857 = vmatprep.subr.mxu0 0.0
  %5858 = vmatpush1.msra.mxu0 %v5850
  %5859 = vmatprep.subr.mxu0 0.0
  %5860 = vmatpush1.msra.mxu0 %v5849
  %5861 = vmatprep.subr.mxu0 0.0
  %5862 = vmatpush1.msra.mxu0 %v5848
  %5863 = vmatprep.subr.mxu0 0.0
  %5864 = vmatpush1.msra.mxu0 %v5847
  %5865 = vmatprep.subr.mxu0 0.0
  %5866 = vmatpush1.msra.mxu0 %v5846
  %5867 = vmatprep.subr.mxu0 0.0
  %5868 = vmatpush1.msra.mxu0 %v5845
  %5869 = vmatprep.subr.mxu0 0.0
  %5870 = vmatpush1.msra.mxu0 %v5844
  %5871 = vmatprep.subr.mxu0 0.0
  %5872 = vmatpush1.msra.mxu0 %v5843
  %5873 = vmatprep.subr.mxu0 0.0
  %5874 = vmatpush1.msra.mxu0 %v5842
  %5875 = vmatprep.subr.mxu0 0.0
  %5876 = vmatpush1.msra.mxu0 %v5841
  %5877 = vmatprep.subr.mxu0 0.0
  %5878 = vmatpush1.msra.mxu0 %v5840
  %5879 = vmatprep.subr.mxu0 0.0
  %5880 = vmatpush1.msra.mxu0 %v5839
  %5881 = vmatprep.subr.mxu0 0.0
  %5882 = vmatpush1.msra.mxu0 %v5838
  %5883 = vmatprep.subr.mxu0 0.0
  %5884 = vmatpush1.msra.mxu0 %v5837
  %5885 = vmatprep.subr.mxu0 0.0
  %5886 = vmatpush2.msra.mxu0 0.0
  %5887 = vmatprep.subr.mxu0 0.0
  %5888 = vmatpush2.msra.mxu0 0.0
  %5889 = vmatprep.subr.mxu0 0.0
  %5890 = vmatpush2.msra.mxu0 0.0
  %5891 = vmatprep.subr.mxu0 0.0
  %5892 = vmatpush2.msra.mxu0 0.0
  %5893 = vmatprep.subr.mxu0 0.0
  %5894 = vmatpush2.msra.mxu0 0.0
  %5895 = vmatprep.subr.mxu0 0.0
  %5896 = vmatpush2.msra.mxu0 0.0
  %5897 = vmatprep.subr.mxu0 0.0
  %5898 = vmatpush2.msra.mxu0 0.0
  %5899 = vmatprep.subr.mxu0 0.0
  %5900 = vmatpush2.msra.mxu0 0.0
  %5901 = vmatprep.subr.mxu0 0.0
  %5902 = vmatpush2.msra.mxu0 0.0
  %5903 = vmatprep.subr.mxu0 0.0
  %5904 = vmatpush2.msra.mxu0 0.0
  %5905 = vmatprep.subr.mxu0 0.0
  %5906 = vmatpush2.msra.mxu0 0.0
  %5907 = vmatprep.subr.mxu0 0.0
  %5908 = vmatpush2.msra.mxu0 0.0
  %5909 = vmatprep.subr.mxu0 0.0
  %5910 = vmatpush2.msra.mxu0 0.0
  %5911 = vmatprep.subr.mxu0 0.0
  %5912 = vmatpush2.msra.mxu0 0.0
  %5913 = vmatprep.subr.mxu0 0.0
  %5914 = vmatpush2.msra.mxu0 0.0
  %5915 = vmatprep.subr.mxu0 0.0
  %5916 = vmatpush2.msra.mxu0 0.0
  %5917 = vmatprep.mubr.f32.mxu0 0.0
  %5918 = vmatmul.mubr.f32.gmra.mxu0 %v5585
  %v5919 = vpop.f32.mrf.mxu0
  %v5920 = vadd.f32 0.0, %v5919
  %v5921 = vpop.f32.mrf.mxu0
  %5922 = vmatprep.mubr.f32.mxu0 0.0
  %5923 = vmatmul.mubr.f32.gmra.mxu0 %v5586
  %v5924 = vpop.f32.mrf.mxu0
  %v5925 = vadd.f32 0.0, %v5924
  %v5926 = vpop.f32.mrf.mxu0
  %5927 = vmatprep.mubr.f32.mxu0 0.0
  %5928 = vmatmul.mubr.f32.gmra.mxu0 %v5587
  %v5929 = vpop.f32.mrf.mxu0
  %v5930 = vadd.f32 0.0, %v5929
  %v5931 = vpop.f32.mrf.mxu0
  %5932 = vmatprep.mubr.f32.mxu0 0.0
  %5933 = vmatmul.mubr.f32.gmra.mxu0 %v5588
  %v5934 = vpop.f32.mrf.mxu0
  %v5935 = vadd.f32 0.0, %v5934
  %v5936 = vpop.f32.mrf.mxu0
  %5937 = vmatprep.mubr.f32.mxu0 0.0
  %5938 = vmatmul.mubr.f32.gmra.mxu0 %v5589
  %v5939 = vpop.f32.mrf.mxu0
  %v5940 = vadd.f32 0.0, %v5939
  %v5941 = vpop.f32.mrf.mxu0
  %5942 = vmatprep.mubr.f32.mxu0 0.0
  %5943 = vmatmul.mubr.f32.gmra.mxu0 %v5590
  %v5944 = vpop.f32.mrf.mxu0
  %v5945 = vadd.f32 0.0, %v5944
  %v5946 = vpop.f32.mrf.mxu0
  %5947 = vmatprep.mubr.f32.mxu0 0.0
  %5948 = vmatmul.mubr.f32.gmra.mxu0 %v5591
  %v5949 = vpop.f32.mrf.mxu0
  %v5950 = vadd.f32 0.0, %v5949
  %v5951 = vpop.f32.mrf.mxu0
  %5952 = vmatprep.mubr.f32.mxu0 0.0
  %5953 = vmatmul.mubr.f32.gmra.mxu0 %v5592
  %v5954 = vpop.f32.mrf.mxu0
  %v5955 = vadd.f32 0.0, %v5954
  %v5956 = vpop.f32.mrf.mxu0
  %5957 = vdwg.mxu0
  %v5958 = vadd.f32 %v5798, %v5920
  %v5959 = vadd.f32 %v5803, %v5925
  %v5960 = vadd.f32 %v5808, %v5930
  %v5961 = vadd.f32 %v5813, %v5935
  %v5962 = vadd.f32 %v5818, %v5940
  %v5963 = vadd.f32 %v5823, %v5945
  %v5964 = vadd.f32 %v5828, %v5950
  %v5965 = vadd.f32 %v5833, %v5955
  %5966 = vst [vmem:[%s2] sm:$0xff] %v5958
  %5967 = vst [vmem:[%s2 + $0x8] sm:$0xff] %v5959
  %5968 = vst [vmem:[%s2 + $0x10] sm:$0xff] %v5960
  %5969 = vst [vmem:[%s2 + $0x18] sm:$0xff] %v5961
  %5970 = vst [vmem:[%s2 + $0x20] sm:$0xff] %v5962
  %5971 = vst [vmem:[%s2 + $0x28] sm:$0xff] %v5963
  %5972 = vst [vmem:[%s2 + $0x30] sm:$0xff] %v5964
  %5973 = vst [vmem:[%s2 + $0x38] sm:$0xff] %v5965
  %v5974 = vld [vmem:[%s5609] sm:$0xff]
  %v5975 = vld [vmem:[%s5609 + $0x8] sm:$0xff]
  %v5976 = vld [vmem:[%s5609 + $0x10] sm:$0xff]
  %v5977 = vld [vmem:[%s5609 + $0x18] sm:$0xff]
  %v5978 = vld [vmem:[%s5609 + $0x20] sm:$0xff]
  %v5979 = vld [vmem:[%s5609 + $0x28] sm:$0xff]
  %v5980 = vld [vmem:[%s5609 + $0x30] sm:$0xff]
  %v5981 = vld [vmem:[%s5609 + $0x38] sm:$0xff]
  %v5982 = vld [vmem:[%s5609 + $0x40] sm:$0xff]
  %v5983 = vld [vmem:[%s5609 + $0x48] sm:$0xff]
  %v5984 = vld [vmem:[%s5609 + $0x50] sm:$0xff]
  %v5985 = vld [vmem:[%s5609 + $0x58] sm:$0xff]
  %v5986 = vld [vmem:[%s5609 + $0x60] sm:$0xff]
  %v5987 = vld [vmem:[%s5609 + $0x68] sm:$0xff]
  %v5988 = vld [vmem:[%s5609 + $0x70] sm:$0xff]
  %v5989 = vld [vmem:[%s5609 + $0x78] sm:$0xff]
  %v5990 = vld [vmem:[%s5836] sm:$0xff]
  %v5991 = vld [vmem:[%s5836 + $0x8] sm:$0xff]
  %v5992 = vld [vmem:[%s5836 + $0x10] sm:$0xff]
  %v5993 = vld [vmem:[%s5836 + $0x18] sm:$0xff]
  %v5994 = vld [vmem:[%s5836 + $0x20] sm:$0xff]
  %v5995 = vld [vmem:[%s5836 + $0x28] sm:$0xff]
  %v5996 = vld [vmem:[%s5836 + $0x30] sm:$0xff]
  %v5997 = vld [vmem:[%s5836 + $0x38] sm:$0xff]
  %v5998 = vld [vmem:[%s5836 + $0x40] sm:$0xff]
  %v5999 = vld [vmem:[%s5836 + $0x48] sm:$0xff]
  %v6000 = vld [vmem:[%s5836 + $0x50] sm:$0xff]
  %v6001 = vld [vmem:[%s5836 + $0x58] sm:$0xff]
  %v6002 = vld [vmem:[%s5836 + $0x60] sm:$0xff]
  %v6003 = vld [vmem:[%s5836 + $0x68] sm:$0xff]
  %v6004 = vld [vmem:[%s5836 + $0x70] sm:$0xff]
  %v6005 = vld [vmem:[%s5836 + $0x78] sm:$0xff]
  %6006 = vmatprep.subr.mxu0 0.0
  %6007 = vmatpush1.msra.mxu0 %v6005
  %6008 = vmatprep.subr.mxu0 0.0
  %6009 = vmatpush1.msra.mxu0 %v6004
  %6010 = vmatprep.subr.mxu0 0.0
  %6011 = vmatpush1.msra.mxu0 %v6003
  %6012 = vmatprep.subr.mxu0 0.0
  %6013 = vmatpush1.msra.mxu0 %v6002
  %6014 = vmatprep.subr.mxu0 0.0
  %6015 = vmatpush1.msra.mxu0 %v6001
  %6016 = vmatprep.subr.mxu0 0.0
  %6017 = vmatpush1.msra.mxu0 %v6000
  %6018 = vmatprep.subr.mxu0 0.0
  %6019 = vmatpush1.msra.mxu0 %v5999
  %6020 = vmatprep.subr.mxu0 0.0
  %6021 = vmatpush1.msra.mxu0 %v5998
  %6022 = vmatprep.subr.mxu0 0.0
  %6023 = vmatpush1.msra.mxu0 %v5997
  %6024 = vmatprep.subr.mxu0 0.0
  %6025 = vmatpush1.msra.mxu0 %v5996
  %6026 = vmatprep.subr.mxu0 0.0
  %6027 = vmatpush1.msra.mxu0 %v5995
  %6028 = vmatprep.subr.mxu0 0.0
  %6029 = vmatpush1.msra.mxu0 %v5994
  %6030 = vmatprep.subr.mxu0 0.0
  %6031 = vmatpush1.msra.mxu0 %v5993
  %6032 = vmatprep.subr.mxu0 0.0
  %6033 = vmatpush1.msra.mxu0 %v5992
  %6034 = vmatprep.subr.mxu0 0.0
  %6035 = vmatpush1.msra.mxu0 %v5991
  %6036 = vmatprep.subr.mxu0 0.0
  %6037 = vmatpush1.msra.mxu0 %v5990
  %6038 = vmatprep.subr.mxu0 0.0
  %6039 = vmatpush2.msra.mxu0 0.0
  %6040 = vmatprep.subr.mxu0 0.0
  %6041 = vmatpush2.msra.mxu0 0.0
  %6042 = vmatprep.subr.mxu0 0.0
  %6043 = vmatpush2.msra.mxu0 0.0
  %6044 = vmatprep.subr.mxu0 0.0
  %6045 = vmatpush2.msra.mxu0 0.0
  %6046 = vmatprep.subr.mxu0 0.0
  %6047 = vmatpush2.msra.mxu0 0.0
  %6048 = vmatprep.subr.mxu0 0.0
  %6049 = vmatpush2.msra.mxu0 0.0
  %6050 = vmatprep.subr.mxu0 0.0
  %6051 = vmatpush2.msra.mxu0 0.0
  %6052 = vmatprep.subr.mxu0 0.0
  %6053 = vmatpush2.msra.mxu0 0.0
  %6054 = vmatprep.subr.mxu0 0.0
  %6055 = vmatpush2.msra.mxu0 0.0
  %6056 = vmatprep.subr.mxu0 0.0
  %6057 = vmatpush2.msra.mxu0 0.0
  %6058 = vmatprep.subr.mxu0 0.0
  %6059 = vmatpush2.msra.mxu0 0.0
  %6060 = vmatprep.subr.mxu0 0.0
  %6061 = vmatpush2.msra.mxu0 0.0
  %6062 = vmatprep.subr.mxu0 0.0
  %6063 = vmatpush2.msra.mxu0 0.0
  %6064 = vmatprep.subr.mxu0 0.0
  %6065 = vmatpush2.msra.mxu0 0.0
  %6066 = vmatprep.subr.mxu0 0.0
  %6067 = vmatpush2.msra.mxu0 0.0
  %6068 = vmatprep.subr.mxu0 0.0
  %6069 = vmatpush2.msra.mxu0 0.0
  %6070 = vmatprep.mubr.f32.mxu0 0.0
  %6071 = vmatmul.mubr.f32.gmra.mxu0 %v5576
  %v6072 = vpop.f32.mrf.mxu0
  %v6073 = vadd.f32 0.0, %v6072
  %v6074 = vpop.f32.mrf.mxu0
  %6075 = vmatprep.mubr.f32.mxu0 0.0
  %6076 = vmatmul.mubr.f32.gmra.mxu0 %v5577
  %v6077 = vpop.f32.mrf.mxu0
  %v6078 = vadd.f32 0.0, %v6077
  %v6079 = vpop.f32.mrf.mxu0
  %6080 = vmatprep.mubr.f32.mxu0 0.0
  %6081 = vmatmul.mubr.f32.gmra.mxu0 %v5578
  %v6082 = vpop.f32.mrf.mxu0
  %v6083 = vadd.f32 0.0, %v6082
  %v6084 = vpop.f32.mrf.mxu0
  %6085 = vmatprep.mubr.f32.mxu0 0.0
  %6086 = vmatmul.mubr.f32.gmra.mxu0 %v5579
  %v6087 = vpop.f32.mrf.mxu0
  %v6088 = vadd.f32 0.0, %v6087
  %v6089 = vpop.f32.mrf.mxu0
  %6090 = vmatprep.mubr.f32.mxu0 0.0
  %6091 = vmatmul.mubr.f32.gmra.mxu0 %v5580
  %v6092 = vpop.f32.mrf.mxu0
  %v6093 = vadd.f32 0.0, %v6092
  %v6094 = vpop.f32.mrf.mxu0
  %6095 = vmatprep.mubr.f32.mxu0 0.0
  %6096 = vmatmul.mubr.f32.gmra.mxu0 %v5581
  %v6097 = vpop.f32.mrf.mxu0
  %v6098 = vadd.f32 0.0, %v6097
  %v6099 = vpop.f32.mrf.mxu0
  %6100 = vmatprep.mubr.f32.mxu0 0.0
  %6101 = vmatmul.mubr.f32.gmra.mxu0 %v5582
  %v6102 = vpop.f32.mrf.mxu0
  %v6103 = vadd.f32 0.0, %v6102
  %v6104 = vpop.f32.mrf.mxu0
  %6105 = vmatprep.mubr.f32.mxu0 0.0
  %6106 = vmatmul.mubr.f32.gmra.mxu0 %v5583
  %v6107 = vpop.f32.mrf.mxu0
  %v6108 = vadd.f32 0.0, %v6107
  %v6109 = vpop.f32.mrf.mxu0
  %6110 = vdwg.mxu0
  %6111 = vmatprep.subr.mxu0 0.0
  %6112 = vmatpush1.msra.mxu0 %v5989
  %6113 = vmatprep.subr.mxu0 0.0
  %6114 = vmatpush1.msra.mxu0 %v5988
  %6115 = vmatprep.subr.mxu0 0.0
  %6116 = vmatpush1.msra.mxu0 %v5987
  %6117 = vmatprep.subr.mxu0 0.0
  %6118 = vmatpush1.msra.mxu0 %v5986
  %6119 = vmatprep.subr.mxu0 0.0
  %6120 = vmatpush1.msra.mxu0 %v5985
  %6121 = vmatprep.subr.mxu0 0.0
  %6122 = vmatpush1.msra.mxu0 %v5984
  %6123 = vmatprep.subr.mxu0 0.0
  %6124 = vmatpush1.msra.mxu0 %v5983
  %6125 = vmatprep.subr.mxu0 0.0
  %6126 = vmatpush1.msra.mxu0 %v5982
  %6127 = vmatprep.subr.mxu0 0.0
  %6128 = vmatpush1.msra.mxu0 %v5981
  %6129 = vmatprep.subr.mxu0 0.0
  %6130 = vmatpush1.msra.mxu0 %v5980
  %6131 = vmatprep.subr.mxu0 0.0
  %6132 = vmatpush1.msra.mxu0 %v5979
  %6133 = vmatprep.subr.mxu0 0.0
  %6134 = vmatpush1.msra.mxu0 %v5978
  %6135 = vmatprep.subr.mxu0 0.0
  %6136 = vmatpush1.msra.mxu0 %v5977
  %6137 = vmatprep.subr.mxu0 0.0
  %6138 = vmatpush1.msra.mxu0 %v5976
  %6139 = vmatprep.subr.mxu0 0.0
  %6140 = vmatpush1.msra.mxu0 %v5975
  %6141 = vmatprep.subr.mxu0 0.0
  %6142 = vmatpush1.msra.mxu0 %v5974
  %6143 = vmatprep.subr.mxu0 0.0
  %6144 = vmatpush2.msra.mxu0 0.0
  %6145 = vmatprep.subr.mxu0 0.0
  %6146 = vmatpush2.msra.mxu0 0.0
  %6147 = vmatprep.subr.mxu0 0.0
  %6148 = vmatpush2.msra.mxu0 0.0
  %6149 = vmatprep.subr.mxu0 0.0
  %6150 = vmatpush2.msra.mxu0 0.0
  %6151 = vmatprep.subr.mxu0 0.0
  %6152 = vmatpush2.msra.mxu0 0.0
  %6153 = vmatprep.subr.mxu0 0.0
  %6154 = vmatpush2.msra.mxu0 0.0
  %6155 = vmatprep.subr.mxu0 0.0
  %6156 = vmatpush2.msra.mxu0 0.0
  %6157 = vmatprep.subr.mxu0 0.0
  %6158 = vmatpush2.msra.mxu0 0.0
  %6159 = vmatprep.subr.mxu0 0.0
  %6160 = vmatpush2.msra.mxu0 0.0
  %6161 = vmatprep.subr.mxu0 0.0
  %6162 = vmatpush2.msra.mxu0 0.0
  %6163 = vmatprep.subr.mxu0 0.0
  %6164 = vmatpush2.msra.mxu0 0.0
  %6165 = vmatprep.subr.mxu0 0.0
  %6166 = vmatpush2.msra.mxu0 0.0
  %6167 = vmatprep.subr.mxu0 0.0
  %6168 = vmatpush2.msra.mxu0 0.0
  %6169 = vmatprep.subr.mxu0 0.0
  %6170 = vmatpush2.msra.mxu0 0.0
  %6171 = vmatprep.subr.mxu0 0.0
  %6172 = vmatpush2.msra.mxu0 0.0
  %6173 = vmatprep.subr.mxu0 0.0
  %6174 = vmatpush2.msra.mxu0 0.0
  %6175 = vmatprep.mubr.f32.mxu0 0.0
  %6176 = vmatmul.mubr.f32.gmra.mxu0 %v5567
  %v6177 = vpop.f32.mrf.mxu0
  %v6178 = vadd.f32 %v6073, %v6177
  %v6179 = vpop.f32.mrf.mxu0
  %6180 = vmatprep.mubr.f32.mxu0 0.0
  %6181 = vmatmul.mubr.f32.gmra.mxu0 %v5568
  %v6182 = vpop.f32.mrf.mxu0
  %v6183 = vadd.f32 %v6078, %v6182
  %v6184 = vpop.f32.mrf.mxu0
  %6185 = vmatprep.mubr.f32.mxu0 0.0
  %6186 = vmatmul.mubr.f32.gmra.mxu0 %v5569
  %v6187 = vpop.f32.mrf.mxu0
  %v6188 = vadd.f32 %v6083, %v6187
  %v6189 = vpop.f32.mrf.mxu0
  %6190 = vmatprep.mubr.f32.mxu0 0.0
  %6191 = vmatmul.mubr.f32.gmra.mxu0 %v5570
  %v6192 = vpop.f32.mrf.mxu0
  %v6193 = vadd.f32 %v6088, %v6192
  %v6194 = vpop.f32.mrf.mxu0
  %6195 = vmatprep.mubr.f32.mxu0 0.0
  %6196 = vmatmul.mubr.f32.gmra.mxu0 %v5571
  %v6197 = vpop.f32.mrf.mxu0
  %v6198 = vadd.f32 %v6093, %v6197
  %v6199 = vpop.f32.mrf.mxu0
  %6200 = vmatprep.mubr.f32.mxu0 0.0
  %6201 = vmatmul.mubr.f32.gmra.mxu0 %v5572
  %v6202 = vpop.f32.mrf.mxu0
  %v6203 = vadd.f32 %v6098, %v6202
  %v6204 = vpop.f32.mrf.mxu0
  %6205 = vmatprep.mubr.f32.mxu0 0.0
  %6206 = vmatmul.mubr.f32.gmra.mxu0 %v5573
  %v6207 = vpop.f32.mrf.mxu0
  %v6208 = vadd.f32 %v6103, %v6207
  %v6209 = vpop.f32.mrf.mxu0
  %6210 = vmatprep.mubr.f32.mxu0 0.0
  %6211 = vmatmul.mubr.f32.gmra.mxu0 %v5574
  %v6212 = vpop.f32.mrf.mxu0
  %v6213 = vadd.f32 %v6108, %v6212
  %v6214 = vpop.f32.mrf.mxu0
  %6215 = vdwg.mxu0
  %s6216 = scalar_lea.vmem [#allocation2], 384
  %v6217 = vld [vmem:[%s6216] sm:$0xff]
  %v6218 = vld [vmem:[%s6216 + $0x8] sm:$0xff]
  %v6219 = vld [vmem:[%s6216 + $0x10] sm:$0xff]
  %v6220 = vld [vmem:[%s6216 + $0x18] sm:$0xff]
  %v6221 = vld [vmem:[%s6216 + $0x20] sm:$0xff]
  %v6222 = vld [vmem:[%s6216 + $0x28] sm:$0xff]
  %v6223 = vld [vmem:[%s6216 + $0x30] sm:$0xff]
  %v6224 = vld [vmem:[%s6216 + $0x38] sm:$0xff]
  %v6225 = vld [vmem:[%s6216 + $0x40] sm:$0xff]
  %v6226 = vld [vmem:[%s6216 + $0x48] sm:$0xff]
  %v6227 = vld [vmem:[%s6216 + $0x50] sm:$0xff]
  %v6228 = vld [vmem:[%s6216 + $0x58] sm:$0xff]
  %v6229 = vld [vmem:[%s6216 + $0x60] sm:$0xff]
  %v6230 = vld [vmem:[%s6216 + $0x68] sm:$0xff]
  %v6231 = vld [vmem:[%s6216 + $0x70] sm:$0xff]
  %v6232 = vld [vmem:[%s6216 + $0x78] sm:$0xff]
  %6233 = vmatprep.subr.mxu0 0.0
  %6234 = vmatpush1.msra.mxu0 %v6232
  %6235 = vmatprep.subr.mxu0 0.0
  %6236 = vmatpush1.msra.mxu0 %v6231
  %6237 = vmatprep.subr.mxu0 0.0
  %6238 = vmatpush1.msra.mxu0 %v6230
  %6239 = vmatprep.subr.mxu0 0.0
  %6240 = vmatpush1.msra.mxu0 %v6229
  %6241 = vmatprep.subr.mxu0 0.0
  %6242 = vmatpush1.msra.mxu0 %v6228
  %6243 = vmatprep.subr.mxu0 0.0
  %6244 = vmatpush1.msra.mxu0 %v6227
  %6245 = vmatprep.subr.mxu0 0.0
  %6246 = vmatpush1.msra.mxu0 %v6226
  %6247 = vmatprep.subr.mxu0 0.0
  %6248 = vmatpush1.msra.mxu0 %v6225
  %6249 = vmatprep.subr.mxu0 0.0
  %6250 = vmatpush1.msra.mxu0 %v6224
  %6251 = vmatprep.subr.mxu0 0.0
  %6252 = vmatpush1.msra.mxu0 %v6223
  %6253 = vmatprep.subr.mxu0 0.0
  %6254 = vmatpush1.msra.mxu0 %v6222
  %6255 = vmatprep.subr.mxu0 0.0
  %6256 = vmatpush1.msra.mxu0 %v6221
  %6257 = vmatprep.subr.mxu0 0.0
  %6258 = vmatpush1.msra.mxu0 %v6220
  %6259 = vmatprep.subr.mxu0 0.0
  %6260 = vmatpush1.msra.mxu0 %v6219
  %6261 = vmatprep.subr.mxu0 0.0
  %6262 = vmatpush1.msra.mxu0 %v6218
  %6263 = vmatprep.subr.mxu0 0.0
  %6264 = vmatpush1.msra.mxu0 %v6217
  %6265 = vmatprep.subr.mxu0 0.0
  %6266 = vmatpush2.msra.mxu0 0.0
  %6267 = vmatprep.subr.mxu0 0.0
  %6268 = vmatpush2.msra.mxu0 0.0
  %6269 = vmatprep.subr.mxu0 0.0
  %6270 = vmatpush2.msra.mxu0 0.0
  %6271 = vmatprep.subr.mxu0 0.0
  %6272 = vmatpush2.msra.mxu0 0.0
  %6273 = vmatprep.subr.mxu0 0.0
  %6274 = vmatpush2.msra.mxu0 0.0
  %6275 = vmatprep.subr.mxu0 0.0
  %6276 = vmatpush2.msra.mxu0 0.0
  %6277 = vmatprep.subr.mxu0 0.0
  %6278 = vmatpush2.msra.mxu0 0.0
  %6279 = vmatprep.subr.mxu0 0.0
  %6280 = vmatpush2.msra.mxu0 0.0
  %6281 = vmatprep.subr.mxu0 0.0
  %6282 = vmatpush2.msra.mxu0 0.0
  %6283 = vmatprep.subr.mxu0 0.0
  %6284 = vmatpush2.msra.mxu0 0.0
  %6285 = vmatprep.subr.mxu0 0.0
  %6286 = vmatpush2.msra.mxu0 0.0
  %6287 = vmatprep.subr.mxu0 0.0
  %6288 = vmatpush2.msra.mxu0 0.0
  %6289 = vmatprep.subr.mxu0 0.0
  %6290 = vmatpush2.msra.mxu0 0.0
  %6291 = vmatprep.subr.mxu0 0.0
  %6292 = vmatpush2.msra.mxu0 0.0
  %6293 = vmatprep.subr.mxu0 0.0
  %6294 = vmatpush2.msra.mxu0 0.0
  %6295 = vmatprep.subr.mxu0 0.0
  %6296 = vmatpush2.msra.mxu0 0.0
  %6297 = vmatprep.mubr.f32.mxu0 0.0
  %6298 = vmatmul.mubr.f32.gmra.mxu0 %v5585
  %v6299 = vpop.f32.mrf.mxu0
  %v6300 = vadd.f32 0.0, %v6299
  %v6301 = vpop.f32.mrf.mxu0
  %6302 = vmatprep.mubr.f32.mxu0 0.0
  %6303 = vmatmul.mubr.f32.gmra.mxu0 %v5586
  %v6304 = vpop.f32.mrf.mxu0
  %v6305 = vadd.f32 0.0, %v6304
  %v6306 = vpop.f32.mrf.mxu0
  %6307 = vmatprep.mubr.f32.mxu0 0.0
  %6308 = vmatmul.mubr.f32.gmra.mxu0 %v5587
  %v6309 = vpop.f32.mrf.mxu0
  %v6310 = vadd.f32 0.0, %v6309
  %v6311 = vpop.f32.mrf.mxu0
  %6312 = vmatprep.mubr.f32.mxu0 0.0
  %6313 = vmatmul.mubr.f32.gmra.mxu0 %v5588
  %v6314 = vpop.f32.mrf.mxu0
  %v6315 = vadd.f32 0.0, %v6314
  %v6316 = vpop.f32.mrf.mxu0
  %6317 = vmatprep.mubr.f32.mxu0 0.0
  %6318 = vmatmul.mubr.f32.gmra.mxu0 %v5589
  %v6319 = vpop.f32.mrf.mxu0
  %v6320 = vadd.f32 0.0, %v6319
  %v6321 = vpop.f32.mrf.mxu0
  %6322 = vmatprep.mubr.f32.mxu0 0.0
  %6323 = vmatmul.mubr.f32.gmra.mxu0 %v5590
  %v6324 = vpop.f32.mrf.mxu0
  %v6325 = vadd.f32 0.0, %v6324
  %v6326 = vpop.f32.mrf.mxu0
  %6327 = vmatprep.mubr.f32.mxu0 0.0
  %6328 = vmatmul.mubr.f32.gmra.mxu0 %v5591
  %v6329 = vpop.f32.mrf.mxu0
  %v6330 = vadd.f32 0.0, %v6329
  %v6331 = vpop.f32.mrf.mxu0
  %6332 = vmatprep.mubr.f32.mxu0 0.0
  %6333 = vmatmul.mubr.f32.gmra.mxu0 %v5592
  %v6334 = vpop.f32.mrf.mxu0
  %v6335 = vadd.f32 0.0, %v6334
  %v6336 = vpop.f32.mrf.mxu0
  %6337 = vdwg.mxu0
  %v6338 = vadd.f32 %v6178, %v6300
  %v6339 = vadd.f32 %v6183, %v6305
  %v6340 = vadd.f32 %v6188, %v6310
  %v6341 = vadd.f32 %v6193, %v6315
  %v6342 = vadd.f32 %v6198, %v6320
  %v6343 = vadd.f32 %v6203, %v6325
  %v6344 = vadd.f32 %v6208, %v6330
  %v6345 = vadd.f32 %v6213, %v6335
  %s6346 = scalar_lea.vmem %s2, 64
  %6347 = vst [vmem:[%s6346] sm:$0xff] %v6338
  %6348 = vst [vmem:[%s6346 + $0x8] sm:$0xff] %v6339
  %6349 = vst [vmem:[%s6346 + $0x10] sm:$0xff] %v6340
  %6350 = vst [vmem:[%s6346 + $0x18] sm:$0xff] %v6341
  %6351 = vst [vmem:[%s6346 + $0x20] sm:$0xff] %v6342
  %6352 = vst [vmem:[%s6346 + $0x28] sm:$0xff] %v6343
  %6353 = vst [vmem:[%s6346 + $0x30] sm:$0xff] %v6344
  %6354 = vst [vmem:[%s6346 + $0x38] sm:$0xff] %v6345
  %v6355 = vld [vmem:[%s5836] sm:$0xff]
  %v6356 = vld [vmem:[%s5836 + $0x8] sm:$0xff]
  %v6357 = vld [vmem:[%s5836 + $0x10] sm:$0xff]
  %v6358 = vld [vmem:[%s5836 + $0x18] sm:$0xff]
  %v6359 = vld [vmem:[%s5836 + $0x20] sm:$0xff]
  %v6360 = vld [vmem:[%s5836 + $0x28] sm:$0xff]
  %v6361 = vld [vmem:[%s5836 + $0x30] sm:$0xff]
  %v6362 = vld [vmem:[%s5836 + $0x38] sm:$0xff]
  %v6363 = vld [vmem:[%s5836 + $0x40] sm:$0xff]
  %v6364 = vld [vmem:[%s5836 + $0x48] sm:$0xff]
  %v6365 = vld [vmem:[%s5836 + $0x50] sm:$0xff]
  %v6366 = vld [vmem:[%s5836 + $0x58] sm:$0xff]
  %v6367 = vld [vmem:[%s5836 + $0x60] sm:$0xff]
  %v6368 = vld [vmem:[%s5836 + $0x68] sm:$0xff]
  %v6369 = vld [vmem:[%s5836 + $0x70] sm:$0xff]
  %v6370 = vld [vmem:[%s5836 + $0x78] sm:$0xff]
  %v6371 = vld [vmem:[%s6216] sm:$0xff]
  %v6372 = vld [vmem:[%s6216 + $0x8] sm:$0xff]
  %v6373 = vld [vmem:[%s6216 + $0x10] sm:$0xff]
  %v6374 = vld [vmem:[%s6216 + $0x18] sm:$0xff]
  %v6375 = vld [vmem:[%s6216 + $0x20] sm:$0xff]
  %v6376 = vld [vmem:[%s6216 + $0x28] sm:$0xff]
  %v6377 = vld [vmem:[%s6216 + $0x30] sm:$0xff]
  %v6378 = vld [vmem:[%s6216 + $0x38] sm:$0xff]
  %v6379 = vld [vmem:[%s6216 + $0x40] sm:$0xff]
  %v6380 = vld [vmem:[%s6216 + $0x48] sm:$0xff]
  %v6381 = vld [vmem:[%s6216 + $0x50] sm:$0xff]
  %v6382 = vld [vmem:[%s6216 + $0x58] sm:$0xff]
  %v6383 = vld [vmem:[%s6216 + $0x60] sm:$0xff]
  %v6384 = vld [vmem:[%s6216 + $0x68] sm:$0xff]
  %v6385 = vld [vmem:[%s6216 + $0x70] sm:$0xff]
  %v6386 = vld [vmem:[%s6216 + $0x78] sm:$0xff]
  %6387 = vmatprep.subr.mxu0 0.0
  %6388 = vmatpush1.msra.mxu0 %v6386
  %6389 = vmatprep.subr.mxu0 0.0
  %6390 = vmatpush1.msra.mxu0 %v6385
  %6391 = vmatprep.subr.mxu0 0.0
  %6392 = vmatpush1.msra.mxu0 %v6384
  %6393 = vmatprep.subr.mxu0 0.0
  %6394 = vmatpush1.msra.mxu0 %v6383
  %6395 = vmatprep.subr.mxu0 0.0
  %6396 = vmatpush1.msra.mxu0 %v6382
  %6397 = vmatprep.subr.mxu0 0.0
  %6398 = vmatpush1.msra.mxu0 %v6381
  %6399 = vmatprep.subr.mxu0 0.0
  %6400 = vmatpush1.msra.mxu0 %v6380
  %6401 = vmatprep.subr.mxu0 0.0
  %6402 = vmatpush1.msra.mxu0 %v6379
  %6403 = vmatprep.subr.mxu0 0.0
  %6404 = vmatpush1.msra.mxu0 %v6378
  %6405 = vmatprep.subr.mxu0 0.0
  %6406 = vmatpush1.msra.mxu0 %v6377
  %6407 = vmatprep.subr.mxu0 0.0
  %6408 = vmatpush1.msra.mxu0 %v6376
  %6409 = vmatprep.subr.mxu0 0.0
  %6410 = vmatpush1.msra.mxu0 %v6375
  %6411 = vmatprep.subr.mxu0 0.0
  %6412 = vmatpush1.msra.mxu0 %v6374
  %6413 = vmatprep.subr.mxu0 0.0
  %6414 = vmatpush1.msra.mxu0 %v6373
  %6415 = vmatprep.subr.mxu0 0.0
  %6416 = vmatpush1.msra.mxu0 %v6372
  %6417 = vmatprep.subr.mxu0 0.0
  %6418 = vmatpush1.msra.mxu0 %v6371
  %6419 = vmatprep.subr.mxu0 0.0
  %6420 = vmatpush2.msra.mxu0 0.0
  %6421 = vmatprep.subr.mxu0 0.0
  %6422 = vmatpush2.msra.mxu0 0.0
  %6423 = vmatprep.subr.mxu0 0.0
  %6424 = vmatpush2.msra.mxu0 0.0
  %6425 = vmatprep.subr.mxu0 0.0
  %6426 = vmatpush2.msra.mxu0 0.0
  %6427 = vmatprep.subr.mxu0 0.0
  %6428 = vmatpush2.msra.mxu0 0.0
  %6429 = vmatprep.subr.mxu0 0.0
  %6430 = vmatpush2.msra.mxu0 0.0
  %6431 = vmatprep.subr.mxu0 0.0
  %6432 = vmatpush2.msra.mxu0 0.0
  %6433 = vmatprep.subr.mxu0 0.0
  %6434 = vmatpush2.msra.mxu0 0.0
  %6435 = vmatprep.subr.mxu0 0.0
  %6436 = vmatpush2.msra.mxu0 0.0
  %6437 = vmatprep.subr.mxu0 0.0
  %6438 = vmatpush2.msra.mxu0 0.0
  %6439 = vmatprep.subr.mxu0 0.0
  %6440 = vmatpush2.msra.mxu0 0.0
  %6441 = vmatprep.subr.mxu0 0.0
  %6442 = vmatpush2.msra.mxu0 0.0
  %6443 = vmatprep.subr.mxu0 0.0
  %6444 = vmatpush2.msra.mxu0 0.0
  %6445 = vmatprep.subr.mxu0 0.0
  %6446 = vmatpush2.msra.mxu0 0.0
  %6447 = vmatprep.subr.mxu0 0.0
  %6448 = vmatpush2.msra.mxu0 0.0
  %6449 = vmatprep.subr.mxu0 0.0
  %6450 = vmatpush2.msra.mxu0 0.0
  %6451 = vmatprep.mubr.f32.mxu0 0.0
  %6452 = vmatmul.mubr.f32.gmra.mxu0 %v5576
  %v6453 = vpop.f32.mrf.mxu0
  %v6454 = vadd.f32 0.0, %v6453
  %v6455 = vpop.f32.mrf.mxu0
  %6456 = vmatprep.mubr.f32.mxu0 0.0
  %6457 = vmatmul.mubr.f32.gmra.mxu0 %v5577
  %v6458 = vpop.f32.mrf.mxu0
  %v6459 = vadd.f32 0.0, %v6458
  %v6460 = vpop.f32.mrf.mxu0
  %6461 = vmatprep.mubr.f32.mxu0 0.0
  %6462 = vmatmul.mubr.f32.gmra.mxu0 %v5578
  %v6463 = vpop.f32.mrf.mxu0
  %v6464 = vadd.f32 0.0, %v6463
  %v6465 = vpop.f32.mrf.mxu0
  %6466 = vmatprep.mubr.f32.mxu0 0.0
  %6467 = vmatmul.mubr.f32.gmra.mxu0 %v5579
  %v6468 = vpop.f32.mrf.mxu0
  %v6469 = vadd.f32 0.0, %v6468
  %v6470 = vpop.f32.mrf.mxu0
  %6471 = vmatprep.mubr.f32.mxu0 0.0
  %6472 = vmatmul.mubr.f32.gmra.mxu0 %v5580
  %v6473 = vpop.f32.mrf.mxu0
  %v6474 = vadd.f32 0.0, %v6473
  %v6475 = vpop.f32.mrf.mxu0
  %6476 = vmatprep.mubr.f32.mxu0 0.0
  %6477 = vmatmul.mubr.f32.gmra.mxu0 %v5581
  %v6478 = vpop.f32.mrf.mxu0
  %v6479 = vadd.f32 0.0, %v6478
  %v6480 = vpop.f32.mrf.mxu0
  %6481 = vmatprep.mubr.f32.mxu0 0.0
  %6482 = vmatmul.mubr.f32.gmra.mxu0 %v5582
  %v6483 = vpop.f32.mrf.mxu0
  %v6484 = vadd.f32 0.0, %v6483
  %v6485 = vpop.f32.mrf.mxu0
  %6486 = vmatprep.mubr.f32.mxu0 0.0
  %6487 = vmatmul.mubr.f32.gmra.mxu0 %v5583
  %v6488 = vpop.f32.mrf.mxu0
  %v6489 = vadd.f32 0.0, %v6488
  %v6490 = vpop.f32.mrf.mxu0
  %6491 = vdwg.mxu0
  %6492 = vmatprep.subr.mxu0 0.0
  %6493 = vmatpush1.msra.mxu0 %v6370
  %6494 = vmatprep.subr.mxu0 0.0
  %6495 = vmatpush1.msra.mxu0 %v6369
  %6496 = vmatprep.subr.mxu0 0.0
  %6497 = vmatpush1.msra.mxu0 %v6368
  %6498 = vmatprep.subr.mxu0 0.0
  %6499 = vmatpush1.msra.mxu0 %v6367
  %6500 = vmatprep.subr.mxu0 0.0
  %6501 = vmatpush1.msra.mxu0 %v6366
  %6502 = vmatprep.subr.mxu0 0.0
  %6503 = vmatpush1.msra.mxu0 %v6365
  %6504 = vmatprep.subr.mxu0 0.0
  %6505 = vmatpush1.msra.mxu0 %v6364
  %6506 = vmatprep.subr.mxu0 0.0
  %6507 = vmatpush1.msra.mxu0 %v6363
  %6508 = vmatprep.subr.mxu0 0.0
  %6509 = vmatpush1.msra.mxu0 %v6362
  %6510 = vmatprep.subr.mxu0 0.0
  %6511 = vmatpush1.msra.mxu0 %v6361
  %6512 = vmatprep.subr.mxu0 0.0
  %6513 = vmatpush1.msra.mxu0 %v6360
  %6514 = vmatprep.subr.mxu0 0.0
  %6515 = vmatpush1.msra.mxu0 %v6359
  %6516 = vmatprep.subr.mxu0 0.0
  %6517 = vmatpush1.msra.mxu0 %v6358
  %6518 = vmatprep.subr.mxu0 0.0
  %6519 = vmatpush1.msra.mxu0 %v6357
  %6520 = vmatprep.subr.mxu0 0.0
  %6521 = vmatpush1.msra.mxu0 %v6356
  %6522 = vmatprep.subr.mxu0 0.0
  %6523 = vmatpush1.msra.mxu0 %v6355
  %6524 = vmatprep.subr.mxu0 0.0
  %6525 = vmatpush2.msra.mxu0 0.0
  %6526 = vmatprep.subr.mxu0 0.0
  %6527 = vmatpush2.msra.mxu0 0.0
  %6528 = vmatprep.subr.mxu0 0.0
  %6529 = vmatpush2.msra.mxu0 0.0
  %6530 = vmatprep.subr.mxu0 0.0
  %6531 = vmatpush2.msra.mxu0 0.0
  %6532 = vmatprep.subr.mxu0 0.0
  %6533 = vmatpush2.msra.mxu0 0.0
  %6534 = vmatprep.subr.mxu0 0.0
  %6535 = vmatpush2.msra.mxu0 0.0
  %6536 = vmatprep.subr.mxu0 0.0
  %6537 = vmatpush2.msra.mxu0 0.0
  %6538 = vmatprep.subr.mxu0 0.0
  %6539 = vmatpush2.msra.mxu0 0.0
  %6540 = vmatprep.subr.mxu0 0.0
  %6541 = vmatpush2.msra.mxu0 0.0
  %6542 = vmatprep.subr.mxu0 0.0
  %6543 = vmatpush2.msra.mxu0 0.0
  %6544 = vmatprep.subr.mxu0 0.0
  %6545 = vmatpush2.msra.mxu0 0.0
  %6546 = vmatprep.subr.mxu0 0.0
  %6547 = vmatpush2.msra.mxu0 0.0
  %6548 = vmatprep.subr.mxu0 0.0
  %6549 = vmatpush2.msra.mxu0 0.0
  %6550 = vmatprep.subr.mxu0 0.0
  %6551 = vmatpush2.msra.mxu0 0.0
  %6552 = vmatprep.subr.mxu0 0.0
  %6553 = vmatpush2.msra.mxu0 0.0
  %6554 = vmatprep.subr.mxu0 0.0
  %6555 = vmatpush2.msra.mxu0 0.0
  %6556 = vmatprep.mubr.f32.mxu0 0.0
  %6557 = vmatmul.mubr.f32.gmra.mxu0 %v5567
  %v6558 = vpop.f32.mrf.mxu0
  %v6559 = vadd.f32 %v6454, %v6558
  %v6560 = vpop.f32.mrf.mxu0
  %6561 = vmatprep.mubr.f32.mxu0 0.0
  %6562 = vmatmul.mubr.f32.gmra.mxu0 %v5568
  %v6563 = vpop.f32.mrf.mxu0
  %v6564 = vadd.f32 %v6459, %v6563
  %v6565 = vpop.f32.mrf.mxu0
  %6566 = vmatprep.mubr.f32.mxu0 0.0
  %6567 = vmatmul.mubr.f32.gmra.mxu0 %v5569
  %v6568 = vpop.f32.mrf.mxu0
  %v6569 = vadd.f32 %v6464, %v6568
  %v6570 = vpop.f32.mrf.mxu0
  %6571 = vmatprep.mubr.f32.mxu0 0.0
  %6572 = vmatmul.mubr.f32.gmra.mxu0 %v5570
  %v6573 = vpop.f32.mrf.mxu0
  %v6574 = vadd.f32 %v6469, %v6573
  %v6575 = vpop.f32.mrf.mxu0
  %6576 = vmatprep.mubr.f32.mxu0 0.0
  %6577 = vmatmul.mubr.f32.gmra.mxu0 %v5571
  %v6578 = vpop.f32.mrf.mxu0
  %v6579 = vadd.f32 %v6474, %v6578
  %v6580 = vpop.f32.mrf.mxu0
  %6581 = vmatprep.mubr.f32.mxu0 0.0
  %6582 = vmatmul.mubr.f32.gmra.mxu0 %v5572
  %v6583 = vpop.f32.mrf.mxu0
  %v6584 = vadd.f32 %v6479, %v6583
  %v6585 = vpop.f32.mrf.mxu0
  %6586 = vmatprep.mubr.f32.mxu0 0.0
  %6587 = vmatmul.mubr.f32.gmra.mxu0 %v5573
  %v6588 = vpop.f32.mrf.mxu0
  %v6589 = vadd.f32 %v6484, %v6588
  %v6590 = vpop.f32.mrf.mxu0
  %6591 = vmatprep.mubr.f32.mxu0 0.0
  %6592 = vmatmul.mubr.f32.gmra.mxu0 %v5574
  %v6593 = vpop.f32.mrf.mxu0
  %v6594 = vadd.f32 %v6489, %v6593
  %v6595 = vpop.f32.mrf.mxu0
  %6596 = vdwg.mxu0
  %s6597 = scalar_lea.vmem [#allocation2], 512
  %v6598 = vld [vmem:[%s6597] sm:$0xff]
  %v6599 = vld [vmem:[%s6597 + $0x8] sm:$0xff]
  %v6600 = vld [vmem:[%s6597 + $0x10] sm:$0xff]
  %v6601 = vld [vmem:[%s6597 + $0x18] sm:$0xff]
  %v6602 = vld [vmem:[%s6597 + $0x20] sm:$0xff]
  %v6603 = vld [vmem:[%s6597 + $0x28] sm:$0xff]
  %v6604 = vld [vmem:[%s6597 + $0x30] sm:$0xff]
  %v6605 = vld [vmem:[%s6597 + $0x38] sm:$0xff]
  %v6606 = vld [vmem:[%s6597 + $0x40] sm:$0xff]
  %v6607 = vld [vmem:[%s6597 + $0x48] sm:$0xff]
  %v6608 = vld [vmem:[%s6597 + $0x50] sm:$0xff]
  %v6609 = vld [vmem:[%s6597 + $0x58] sm:$0xff]
  %v6610 = vld [vmem:[%s6597 + $0x60] sm:$0xff]
  %v6611 = vld [vmem:[%s6597 + $0x68] sm:$0xff]
  %v6612 = vld [vmem:[%s6597 + $0x70] sm:$0xff]
  %v6613 = vld [vmem:[%s6597 + $0x78] sm:$0xff]
  %6614 = vmatprep.subr.mxu0 0.0
  %6615 = vmatpush1.msra.mxu0 %v6613
  %6616 = vmatprep.subr.mxu0 0.0
  %6617 = vmatpush1.msra.mxu0 %v6612
  %6618 = vmatprep.subr.mxu0 0.0
  %6619 = vmatpush1.msra.mxu0 %v6611
  %6620 = vmatprep.subr.mxu0 0.0
  %6621 = vmatpush1.msra.mxu0 %v6610
  %6622 = vmatprep.subr.mxu0 0.0
  %6623 = vmatpush1.msra.mxu0 %v6609
  %6624 = vmatprep.subr.mxu0 0.0
  %6625 = vmatpush1.msra.mxu0 %v6608
  %6626 = vmatprep.subr.mxu0 0.0
  %6627 = vmatpush1.msra.mxu0 %v6607
  %6628 = vmatprep.subr.mxu0 0.0
  %6629 = vmatpush1.msra.mxu0 %v6606
  %6630 = vmatprep.subr.mxu0 0.0
  %6631 = vmatpush1.msra.mxu0 %v6605
  %6632 = vmatprep.subr.mxu0 0.0
  %6633 = vmatpush1.msra.mxu0 %v6604
  %6634 = vmatprep.subr.mxu0 0.0
  %6635 = vmatpush1.msra.mxu0 %v6603
  %6636 = vmatprep.subr.mxu0 0.0
  %6637 = vmatpush1.msra.mxu0 %v6602
  %6638 = vmatprep.subr.mxu0 0.0
  %6639 = vmatpush1.msra.mxu0 %v6601
  %6640 = vmatprep.subr.mxu0 0.0
  %6641 = vmatpush1.msra.mxu0 %v6600
  %6642 = vmatprep.subr.mxu0 0.0
  %6643 = vmatpush1.msra.mxu0 %v6599
  %6644 = vmatprep.subr.mxu0 0.0
  %6645 = vmatpush1.msra.mxu0 %v6598
  %6646 = vmatprep.subr.mxu0 0.0
  %6647 = vmatpush2.msra.mxu0 0.0
  %6648 = vmatprep.subr.mxu0 0.0
  %6649 = vmatpush2.msra.mxu0 0.0
  %6650 = vmatprep.subr.mxu0 0.0
  %6651 = vmatpush2.msra.mxu0 0.0
  %6652 = vmatprep.subr.mxu0 0.0
  %6653 = vmatpush2.msra.mxu0 0.0
  %6654 = vmatprep.subr.mxu0 0.0
  %6655 = vmatpush2.msra.mxu0 0.0
  %6656 = vmatprep.subr.mxu0 0.0
  %6657 = vmatpush2.msra.mxu0 0.0
  %6658 = vmatprep.subr.mxu0 0.0
  %6659 = vmatpush2.msra.mxu0 0.0
  %6660 = vmatprep.subr.mxu0 0.0
  %6661 = vmatpush2.msra.mxu0 0.0
  %6662 = vmatprep.subr.mxu0 0.0
  %6663 = vmatpush2.msra.mxu0 0.0
  %6664 = vmatprep.subr.mxu0 0.0
  %6665 = vmatpush2.msra.mxu0 0.0
  %6666 = vmatprep.subr.mxu0 0.0
  %6667 = vmatpush2.msra.mxu0 0.0
  %6668 = vmatprep.subr.mxu0 0.0
  %6669 = vmatpush2.msra.mxu0 0.0
  %6670 = vmatprep.subr.mxu0 0.0
  %6671 = vmatpush2.msra.mxu0 0.0
  %6672 = vmatprep.subr.mxu0 0.0
  %6673 = vmatpush2.msra.mxu0 0.0
  %6674 = vmatprep.subr.mxu0 0.0
  %6675 = vmatpush2.msra.mxu0 0.0
  %6676 = vmatprep.subr.mxu0 0.0
  %6677 = vmatpush2.msra.mxu0 0.0
  %6678 = vmatprep.mubr.f32.mxu0 0.0
  %6679 = vmatmul.mubr.f32.gmra.mxu0 %v5585
  %v6680 = vpop.f32.mrf.mxu0
  %v6681 = vadd.f32 0.0, %v6680
  %v6682 = vpop.f32.mrf.mxu0
  %6683 = vmatprep.mubr.f32.mxu0 0.0
  %6684 = vmatmul.mubr.f32.gmra.mxu0 %v5586
  %v6685 = vpop.f32.mrf.mxu0
  %v6686 = vadd.f32 0.0, %v6685
  %v6687 = vpop.f32.mrf.mxu0
  %6688 = vmatprep.mubr.f32.mxu0 0.0
  %6689 = vmatmul.mubr.f32.gmra.mxu0 %v5587
  %v6690 = vpop.f32.mrf.mxu0
  %v6691 = vadd.f32 0.0, %v6690
  %v6692 = vpop.f32.mrf.mxu0
  %6693 = vmatprep.mubr.f32.mxu0 0.0
  %6694 = vmatmul.mubr.f32.gmra.mxu0 %v5588
  %v6695 = vpop.f32.mrf.mxu0
  %v6696 = vadd.f32 0.0, %v6695
  %v6697 = vpop.f32.mrf.mxu0
  %6698 = vmatprep.mubr.f32.mxu0 0.0
  %6699 = vmatmul.mubr.f32.gmra.mxu0 %v5589
  %v6700 = vpop.f32.mrf.mxu0
  %v6701 = vadd.f32 0.0, %v6700
  %v6702 = vpop.f32.mrf.mxu0
  %6703 = vmatprep.mubr.f32.mxu0 0.0
  %6704 = vmatmul.mubr.f32.gmra.mxu0 %v5590
  %v6705 = vpop.f32.mrf.mxu0
  %v6706 = vadd.f32 0.0, %v6705
  %v6707 = vpop.f32.mrf.mxu0
  %6708 = vmatprep.mubr.f32.mxu0 0.0
  %6709 = vmatmul.mubr.f32.gmra.mxu0 %v5591
  %v6710 = vpop.f32.mrf.mxu0
  %v6711 = vadd.f32 0.0, %v6710
  %v6712 = vpop.f32.mrf.mxu0
  %6713 = vmatprep.mubr.f32.mxu0 0.0
  %6714 = vmatmul.mubr.f32.gmra.mxu0 %v5592
  %v6715 = vpop.f32.mrf.mxu0
  %v6716 = vadd.f32 0.0, %v6715
  %v6717 = vpop.f32.mrf.mxu0
  %6718 = vdwg.mxu0
  %v6719 = vadd.f32 %v6559, %v6681
  %v6720 = vadd.f32 %v6564, %v6686
  %v6721 = vadd.f32 %v6569, %v6691
  %v6722 = vadd.f32 %v6574, %v6696
  %v6723 = vadd.f32 %v6579, %v6701
  %v6724 = vadd.f32 %v6584, %v6706
  %v6725 = vadd.f32 %v6589, %v6711
  %v6726 = vadd.f32 %v6594, %v6716
  %s6727 = scalar_lea.vmem %s2, 128
  %6728 = vst [vmem:[%s6727] sm:$0xff] %v6719
  %6729 = vst [vmem:[%s6727 + $0x8] sm:$0xff] %v6720
  %6730 = vst [vmem:[%s6727 + $0x10] sm:$0xff] %v6721
  %6731 = vst [vmem:[%s6727 + $0x18] sm:$0xff] %v6722
  %6732 = vst [vmem:[%s6727 + $0x20] sm:$0xff] %v6723
  %6733 = vst [vmem:[%s6727 + $0x28] sm:$0xff] %v6724
  %6734 = vst [vmem:[%s6727 + $0x30] sm:$0xff] %v6725
  %6735 = vst [vmem:[%s6727 + $0x38] sm:$0xff] %v6726
  %v6736 = vld [vmem:[%s6216] sm:$0xff]
  %v6737 = vld [vmem:[%s6216 + $0x8] sm:$0xff]
  %v6738 = vld [vmem:[%s6216 + $0x10] sm:$0xff]
  %v6739 = vld [vmem:[%s6216 + $0x18] sm:$0xff]
  %v6740 = vld [vmem:[%s6216 + $0x20] sm:$0xff]
  %v6741 = vld [vmem:[%s6216 + $0x28] sm:$0xff]
  %v6742 = vld [vmem:[%s6216 + $0x30] sm:$0xff]
  %v6743 = vld [vmem:[%s6216 + $0x38] sm:$0xff]
  %v6744 = vld [vmem:[%s6216 + $0x40] sm:$0xff]
  %v6745 = vld [vmem:[%s6216 + $0x48] sm:$0xff]
  %v6746 = vld [vmem:[%s6216 + $0x50] sm:$0xff]
  %v6747 = vld [vmem:[%s6216 + $0x58] sm:$0xff]
  %v6748 = vld [vmem:[%s6216 + $0x60] sm:$0xff]
  %v6749 = vld [vmem:[%s6216 + $0x68] sm:$0xff]
  %v6750 = vld [vmem:[%s6216 + $0x70] sm:$0xff]
  %v6751 = vld [vmem:[%s6216 + $0x78] sm:$0xff]
  %v6752 = vld [vmem:[%s6597] sm:$0xff]
  %v6753 = vld [vmem:[%s6597 + $0x8] sm:$0xff]
  %v6754 = vld [vmem:[%s6597 + $0x10] sm:$0xff]
  %v6755 = vld [vmem:[%s6597 + $0x18] sm:$0xff]
  %v6756 = vld [vmem:[%s6597 + $0x20] sm:$0xff]
  %v6757 = vld [vmem:[%s6597 + $0x28] sm:$0xff]
  %v6758 = vld [vmem:[%s6597 + $0x30] sm:$0xff]
  %v6759 = vld [vmem:[%s6597 + $0x38] sm:$0xff]
  %v6760 = vld [vmem:[%s6597 + $0x40] sm:$0xff]
  %v6761 = vld [vmem:[%s6597 + $0x48] sm:$0xff]
  %v6762 = vld [vmem:[%s6597 + $0x50] sm:$0xff]
  %v6763 = vld [vmem:[%s6597 + $0x58] sm:$0xff]
  %v6764 = vld [vmem:[%s6597 + $0x60] sm:$0xff]
  %v6765 = vld [vmem:[%s6597 + $0x68] sm:$0xff]
  %v6766 = vld [vmem:[%s6597 + $0x70] sm:$0xff]
  %v6767 = vld [vmem:[%s6597 + $0x78] sm:$0xff]
  %6768 = vmatprep.subr.mxu0 0.0
  %6769 = vmatpush1.msra.mxu0 %v6767
  %6770 = vmatprep.subr.mxu0 0.0
  %6771 = vmatpush1.msra.mxu0 %v6766
  %6772 = vmatprep.subr.mxu0 0.0
  %6773 = vmatpush1.msra.mxu0 %v6765
  %6774 = vmatprep.subr.mxu0 0.0
  %6775 = vmatpush1.msra.mxu0 %v6764
  %6776 = vmatprep.subr.mxu0 0.0
  %6777 = vmatpush1.msra.mxu0 %v6763
  %6778 = vmatprep.subr.mxu0 0.0
  %6779 = vmatpush1.msra.mxu0 %v6762
  %6780 = vmatprep.subr.mxu0 0.0
  %6781 = vmatpush1.msra.mxu0 %v6761
  %6782 = vmatprep.subr.mxu0 0.0
  %6783 = vmatpush1.msra.mxu0 %v6760
  %6784 = vmatprep.subr.mxu0 0.0
  %6785 = vmatpush1.msra.mxu0 %v6759
  %6786 = vmatprep.subr.mxu0 0.0
  %6787 = vmatpush1.msra.mxu0 %v6758
  %6788 = vmatprep.subr.mxu0 0.0
  %6789 = vmatpush1.msra.mxu0 %v6757
  %6790 = vmatprep.subr.mxu0 0.0
  %6791 = vmatpush1.msra.mxu0 %v6756
  %6792 = vmatprep.subr.mxu0 0.0
  %6793 = vmatpush1.msra.mxu0 %v6755
  %6794 = vmatprep.subr.mxu0 0.0
  %6795 = vmatpush1.msra.mxu0 %v6754
  %6796 = vmatprep.subr.mxu0 0.0
  %6797 = vmatpush1.msra.mxu0 %v6753
  %6798 = vmatprep.subr.mxu0 0.0
  %6799 = vmatpush1.msra.mxu0 %v6752
  %6800 = vmatprep.subr.mxu0 0.0
  %6801 = vmatpush2.msra.mxu0 0.0
  %6802 = vmatprep.subr.mxu0 0.0
  %6803 = vmatpush2.msra.mxu0 0.0
  %6804 = vmatprep.subr.mxu0 0.0
  %6805 = vmatpush2.msra.mxu0 0.0
  %6806 = vmatprep.subr.mxu0 0.0
  %6807 = vmatpush2.msra.mxu0 0.0
  %6808 = vmatprep.subr.mxu0 0.0
  %6809 = vmatpush2.msra.mxu0 0.0
  %6810 = vmatprep.subr.mxu0 0.0
  %6811 = vmatpush2.msra.mxu0 0.0
  %6812 = vmatprep.subr.mxu0 0.0
  %6813 = vmatpush2.msra.mxu0 0.0
  %6814 = vmatprep.subr.mxu0 0.0
  %6815 = vmatpush2.msra.mxu0 0.0
  %6816 = vmatprep.subr.mxu0 0.0
  %6817 = vmatpush2.msra.mxu0 0.0
  %6818 = vmatprep.subr.mxu0 0.0
  %6819 = vmatpush2.msra.mxu0 0.0
  %6820 = vmatprep.subr.mxu0 0.0
  %6821 = vmatpush2.msra.mxu0 0.0
  %6822 = vmatprep.subr.mxu0 0.0
  %6823 = vmatpush2.msra.mxu0 0.0
  %6824 = vmatprep.subr.mxu0 0.0
  %6825 = vmatpush2.msra.mxu0 0.0
  %6826 = vmatprep.subr.mxu0 0.0
  %6827 = vmatpush2.msra.mxu0 0.0
  %6828 = vmatprep.subr.mxu0 0.0
  %6829 = vmatpush2.msra.mxu0 0.0
  %6830 = vmatprep.subr.mxu0 0.0
  %6831 = vmatpush2.msra.mxu0 0.0
  %6832 = vmatprep.mubr.f32.mxu0 0.0
  %6833 = vmatmul.mubr.f32.gmra.mxu0 %v5576
  %v6834 = vpop.f32.mrf.mxu0
  %v6835 = vadd.f32 0.0, %v6834
  %v6836 = vpop.f32.mrf.mxu0
  %6837 = vmatprep.mubr.f32.mxu0 0.0
  %6838 = vmatmul.mubr.f32.gmra.mxu0 %v5577
  %v6839 = vpop.f32.mrf.mxu0
  %v6840 = vadd.f32 0.0, %v6839
  %v6841 = vpop.f32.mrf.mxu0
  %6842 = vmatprep.mubr.f32.mxu0 0.0
  %6843 = vmatmul.mubr.f32.gmra.mxu0 %v5578
  %v6844 = vpop.f32.mrf.mxu0
  %v6845 = vadd.f32 0.0, %v6844
  %v6846 = vpop.f32.mrf.mxu0
  %6847 = vmatprep.mubr.f32.mxu0 0.0
  %6848 = vmatmul.mubr.f32.gmra.mxu0 %v5579
  %v6849 = vpop.f32.mrf.mxu0
  %v6850 = vadd.f32 0.0, %v6849
  %v6851 = vpop.f32.mrf.mxu0
  %6852 = vmatprep.mubr.f32.mxu0 0.0
  %6853 = vmatmul.mubr.f32.gmra.mxu0 %v5580
  %v6854 = vpop.f32.mrf.mxu0
  %v6855 = vadd.f32 0.0, %v6854
  %v6856 = vpop.f32.mrf.mxu0
  %6857 = vmatprep.mubr.f32.mxu0 0.0
  %6858 = vmatmul.mubr.f32.gmra.mxu0 %v5581
  %v6859 = vpop.f32.mrf.mxu0
  %v6860 = vadd.f32 0.0, %v6859
  %v6861 = vpop.f32.mrf.mxu0
  %6862 = vmatprep.mubr.f32.mxu0 0.0
  %6863 = vmatmul.mubr.f32.gmra.mxu0 %v5582
  %v6864 = vpop.f32.mrf.mxu0
  %v6865 = vadd.f32 0.0, %v6864
  %v6866 = vpop.f32.mrf.mxu0
  %6867 = vmatprep.mubr.f32.mxu0 0.0
  %6868 = vmatmul.mubr.f32.gmra.mxu0 %v5583
  %v6869 = vpop.f32.mrf.mxu0
  %v6870 = vadd.f32 0.0, %v6869
  %v6871 = vpop.f32.mrf.mxu0
  %6872 = vdwg.mxu0
  %6873 = vmatprep.subr.mxu0 0.0
  %6874 = vmatpush1.msra.mxu0 %v6751
  %6875 = vmatprep.subr.mxu0 0.0
  %6876 = vmatpush1.msra.mxu0 %v6750
  %6877 = vmatprep.subr.mxu0 0.0
  %6878 = vmatpush1.msra.mxu0 %v6749
  %6879 = vmatprep.subr.mxu0 0.0
  %6880 = vmatpush1.msra.mxu0 %v6748
  %6881 = vmatprep.subr.mxu0 0.0
  %6882 = vmatpush1.msra.mxu0 %v6747
  %6883 = vmatprep.subr.mxu0 0.0
  %6884 = vmatpush1.msra.mxu0 %v6746
  %6885 = vmatprep.subr.mxu0 0.0
  %6886 = vmatpush1.msra.mxu0 %v6745
  %6887 = vmatprep.subr.mxu0 0.0
  %6888 = vmatpush1.msra.mxu0 %v6744
  %6889 = vmatprep.subr.mxu0 0.0
  %6890 = vmatpush1.msra.mxu0 %v6743
  %6891 = vmatprep.subr.mxu0 0.0
  %6892 = vmatpush1.msra.mxu0 %v6742
  %6893 = vmatprep.subr.mxu0 0.0
  %6894 = vmatpush1.msra.mxu0 %v6741
  %6895 = vmatprep.subr.mxu0 0.0
  %6896 = vmatpush1.msra.mxu0 %v6740
  %6897 = vmatprep.subr.mxu0 0.0
  %6898 = vmatpush1.msra.mxu0 %v6739
  %6899 = vmatprep.subr.mxu0 0.0
  %6900 = vmatpush1.msra.mxu0 %v6738
  %6901 = vmatprep.subr.mxu0 0.0
  %6902 = vmatpush1.msra.mxu0 %v6737
  %6903 = vmatprep.subr.mxu0 0.0
  %6904 = vmatpush1.msra.mxu0 %v6736
  %6905 = vmatprep.subr.mxu0 0.0
  %6906 = vmatpush2.msra.mxu0 0.0
  %6907 = vmatprep.subr.mxu0 0.0
  %6908 = vmatpush2.msra.mxu0 0.0
  %6909 = vmatprep.subr.mxu0 0.0
  %6910 = vmatpush2.msra.mxu0 0.0
  %6911 = vmatprep.subr.mxu0 0.0
  %6912 = vmatpush2.msra.mxu0 0.0
  %6913 = vmatprep.subr.mxu0 0.0
  %6914 = vmatpush2.msra.mxu0 0.0
  %6915 = vmatprep.subr.mxu0 0.0
  %6916 = vmatpush2.msra.mxu0 0.0
  %6917 = vmatprep.subr.mxu0 0.0
  %6918 = vmatpush2.msra.mxu0 0.0
  %6919 = vmatprep.subr.mxu0 0.0
  %6920 = vmatpush2.msra.mxu0 0.0
  %6921 = vmatprep.subr.mxu0 0.0
  %6922 = vmatpush2.msra.mxu0 0.0
  %6923 = vmatprep.subr.mxu0 0.0
  %6924 = vmatpush2.msra.mxu0 0.0
  %6925 = vmatprep.subr.mxu0 0.0
  %6926 = vmatpush2.msra.mxu0 0.0
  %6927 = vmatprep.subr.mxu0 0.0
  %6928 = vmatpush2.msra.mxu0 0.0
  %6929 = vmatprep.subr.mxu0 0.0
  %6930 = vmatpush2.msra.mxu0 0.0
  %6931 = vmatprep.subr.mxu0 0.0
  %6932 = vmatpush2.msra.mxu0 0.0
  %6933 = vmatprep.subr.mxu0 0.0
  %6934 = vmatpush2.msra.mxu0 0.0
  %6935 = vmatprep.subr.mxu0 0.0
  %6936 = vmatpush2.msra.mxu0 0.0
  %6937 = vmatprep.mubr.f32.mxu0 0.0
  %6938 = vmatmul.mubr.f32.gmra.mxu0 %v5567
  %v6939 = vpop.f32.mrf.mxu0
  %v6940 = vadd.f32 %v6835, %v6939
  %v6941 = vpop.f32.mrf.mxu0
  %6942 = vmatprep.mubr.f32.mxu0 0.0
  %6943 = vmatmul.mubr.f32.gmra.mxu0 %v5568
  %v6944 = vpop.f32.mrf.mxu0
  %v6945 = vadd.f32 %v6840, %v6944
  %v6946 = vpop.f32.mrf.mxu0
  %6947 = vmatprep.mubr.f32.mxu0 0.0
  %6948 = vmatmul.mubr.f32.gmra.mxu0 %v5569
  %v6949 = vpop.f32.mrf.mxu0
  %v6950 = vadd.f32 %v6845, %v6949
  %v6951 = vpop.f32.mrf.mxu0
  %6952 = vmatprep.mubr.f32.mxu0 0.0
  %6953 = vmatmul.mubr.f32.gmra.mxu0 %v5570
  %v6954 = vpop.f32.mrf.mxu0
  %v6955 = vadd.f32 %v6850, %v6954
  %v6956 = vpop.f32.mrf.mxu0
  %6957 = vmatprep.mubr.f32.mxu0 0.0
  %6958 = vmatmul.mubr.f32.gmra.mxu0 %v5571
  %v6959 = vpop.f32.mrf.mxu0
  %v6960 = vadd.f32 %v6855, %v6959
  %v6961 = vpop.f32.mrf.mxu0
  %6962 = vmatprep.mubr.f32.mxu0 0.0
  %6963 = vmatmul.mubr.f32.gmra.mxu0 %v5572
  %v6964 = vpop.f32.mrf.mxu0
  %v6965 = vadd.f32 %v6860, %v6964
  %v6966 = vpop.f32.mrf.mxu0
  %6967 = vmatprep.mubr.f32.mxu0 0.0
  %6968 = vmatmul.mubr.f32.gmra.mxu0 %v5573
  %v6969 = vpop.f32.mrf.mxu0
  %v6970 = vadd.f32 %v6865, %v6969
  %v6971 = vpop.f32.mrf.mxu0
  %6972 = vmatprep.mubr.f32.mxu0 0.0
  %6973 = vmatmul.mubr.f32.gmra.mxu0 %v5574
  %v6974 = vpop.f32.mrf.mxu0
  %v6975 = vadd.f32 %v6870, %v6974
  %v6976 = vpop.f32.mrf.mxu0
  %6977 = vdwg.mxu0
  %s6978 = scalar_lea.vmem [#allocation2], 640
  %v6979 = vld [vmem:[%s6978] sm:$0xff]
  %v6980 = vld [vmem:[%s6978 + $0x8] sm:$0xff]
  %v6981 = vld [vmem:[%s6978 + $0x10] sm:$0xff]
  %v6982 = vld [vmem:[%s6978 + $0x18] sm:$0xff]
  %v6983 = vld [vmem:[%s6978 + $0x20] sm:$0xff]
  %v6984 = vld [vmem:[%s6978 + $0x28] sm:$0xff]
  %v6985 = vld [vmem:[%s6978 + $0x30] sm:$0xff]
  %v6986 = vld [vmem:[%s6978 + $0x38] sm:$0xff]
  %v6987 = vld [vmem:[%s6978 + $0x40] sm:$0xff]
  %v6988 = vld [vmem:[%s6978 + $0x48] sm:$0xff]
  %v6989 = vld [vmem:[%s6978 + $0x50] sm:$0xff]
  %v6990 = vld [vmem:[%s6978 + $0x58] sm:$0xff]
  %v6991 = vld [vmem:[%s6978 + $0x60] sm:$0xff]
  %v6992 = vld [vmem:[%s6978 + $0x68] sm:$0xff]
  %v6993 = vld [vmem:[%s6978 + $0x70] sm:$0xff]
  %v6994 = vld [vmem:[%s6978 + $0x78] sm:$0xff]
  %6995 = vmatprep.subr.mxu0 0.0
  %6996 = vmatpush1.msra.mxu0 %v6994
  %6997 = vmatprep.subr.mxu0 0.0
  %6998 = vmatpush1.msra.mxu0 %v6993
  %6999 = vmatprep.subr.mxu0 0.0
  %7000 = vmatpush1.msra.mxu0 %v6992
  %7001 = vmatprep.subr.mxu0 0.0
  %7002 = vmatpush1.msra.mxu0 %v6991
  %7003 = vmatprep.subr.mxu0 0.0
  %7004 = vmatpush1.msra.mxu0 %v6990
  %7005 = vmatprep.subr.mxu0 0.0
  %7006 = vmatpush1.msra.mxu0 %v6989
  %7007 = vmatprep.subr.mxu0 0.0
  %7008 = vmatpush1.msra.mxu0 %v6988
  %7009 = vmatprep.subr.mxu0 0.0
  %7010 = vmatpush1.msra.mxu0 %v6987
  %7011 = vmatprep.subr.mxu0 0.0
  %7012 = vmatpush1.msra.mxu0 %v6986
  %7013 = vmatprep.subr.mxu0 0.0
  %7014 = vmatpush1.msra.mxu0 %v6985
  %7015 = vmatprep.subr.mxu0 0.0
  %7016 = vmatpush1.msra.mxu0 %v6984
  %7017 = vmatprep.subr.mxu0 0.0
  %7018 = vmatpush1.msra.mxu0 %v6983
  %7019 = vmatprep.subr.mxu0 0.0
  %7020 = vmatpush1.msra.mxu0 %v6982
  %7021 = vmatprep.subr.mxu0 0.0
  %7022 = vmatpush1.msra.mxu0 %v6981
  %7023 = vmatprep.subr.mxu0 0.0
  %7024 = vmatpush1.msra.mxu0 %v6980
  %7025 = vmatprep.subr.mxu0 0.0
  %7026 = vmatpush1.msra.mxu0 %v6979
  %7027 = vmatprep.subr.mxu0 0.0
  %7028 = vmatpush2.msra.mxu0 0.0
  %7029 = vmatprep.subr.mxu0 0.0
  %7030 = vmatpush2.msra.mxu0 0.0
  %7031 = vmatprep.subr.mxu0 0.0
  %7032 = vmatpush2.msra.mxu0 0.0
  %7033 = vmatprep.subr.mxu0 0.0
  %7034 = vmatpush2.msra.mxu0 0.0
  %7035 = vmatprep.subr.mxu0 0.0
  %7036 = vmatpush2.msra.mxu0 0.0
  %7037 = vmatprep.subr.mxu0 0.0
  %7038 = vmatpush2.msra.mxu0 0.0
  %7039 = vmatprep.subr.mxu0 0.0
  %7040 = vmatpush2.msra.mxu0 0.0
  %7041 = vmatprep.subr.mxu0 0.0
  %7042 = vmatpush2.msra.mxu0 0.0
  %7043 = vmatprep.subr.mxu0 0.0
  %7044 = vmatpush2.msra.mxu0 0.0
  %7045 = vmatprep.subr.mxu0 0.0
  %7046 = vmatpush2.msra.mxu0 0.0
  %7047 = vmatprep.subr.mxu0 0.0
  %7048 = vmatpush2.msra.mxu0 0.0
  %7049 = vmatprep.subr.mxu0 0.0
  %7050 = vmatpush2.msra.mxu0 0.0
  %7051 = vmatprep.subr.mxu0 0.0
  %7052 = vmatpush2.msra.mxu0 0.0
  %7053 = vmatprep.subr.mxu0 0.0
  %7054 = vmatpush2.msra.mxu0 0.0
  %7055 = vmatprep.subr.mxu0 0.0
  %7056 = vmatpush2.msra.mxu0 0.0
  %7057 = vmatprep.subr.mxu0 0.0
  %7058 = vmatpush2.msra.mxu0 0.0
  %7059 = vmatprep.mubr.f32.mxu0 0.0
  %7060 = vmatmul.mubr.f32.gmra.mxu0 %v5585
  %v7061 = vpop.f32.mrf.mxu0
  %v7062 = vadd.f32 0.0, %v7061
  %v7063 = vpop.f32.mrf.mxu0
  %7064 = vmatprep.mubr.f32.mxu0 0.0
  %7065 = vmatmul.mubr.f32.gmra.mxu0 %v5586
  %v7066 = vpop.f32.mrf.mxu0
  %v7067 = vadd.f32 0.0, %v7066
  %v7068 = vpop.f32.mrf.mxu0
  %7069 = vmatprep.mubr.f32.mxu0 0.0
  %7070 = vmatmul.mubr.f32.gmra.mxu0 %v5587
  %v7071 = vpop.f32.mrf.mxu0
  %v7072 = vadd.f32 0.0, %v7071
  %v7073 = vpop.f32.mrf.mxu0
  %7074 = vmatprep.mubr.f32.mxu0 0.0
  %7075 = vmatmul.mubr.f32.gmra.mxu0 %v5588
  %v7076 = vpop.f32.mrf.mxu0
  %v7077 = vadd.f32 0.0, %v7076
  %v7078 = vpop.f32.mrf.mxu0
  %7079 = vmatprep.mubr.f32.mxu0 0.0
  %7080 = vmatmul.mubr.f32.gmra.mxu0 %v5589
  %v7081 = vpop.f32.mrf.mxu0
  %v7082 = vadd.f32 0.0, %v7081
  %v7083 = vpop.f32.mrf.mxu0
  %7084 = vmatprep.mubr.f32.mxu0 0.0
  %7085 = vmatmul.mubr.f32.gmra.mxu0 %v5590
  %v7086 = vpop.f32.mrf.mxu0
  %v7087 = vadd.f32 0.0, %v7086
  %v7088 = vpop.f32.mrf.mxu0
  %7089 = vmatprep.mubr.f32.mxu0 0.0
  %7090 = vmatmul.mubr.f32.gmra.mxu0 %v5591
  %v7091 = vpop.f32.mrf.mxu0
  %v7092 = vadd.f32 0.0, %v7091
  %v7093 = vpop.f32.mrf.mxu0
  %7094 = vmatprep.mubr.f32.mxu0 0.0
  %7095 = vmatmul.mubr.f32.gmra.mxu0 %v5592
  %v7096 = vpop.f32.mrf.mxu0
  %v7097 = vadd.f32 0.0, %v7096
  %v7098 = vpop.f32.mrf.mxu0
  %7099 = vdwg.mxu0
  %v7100 = vadd.f32 %v6940, %v7062
  %v7101 = vadd.f32 %v6945, %v7067
  %v7102 = vadd.f32 %v6950, %v7072
  %v7103 = vadd.f32 %v6955, %v7077
  %v7104 = vadd.f32 %v6960, %v7082
  %v7105 = vadd.f32 %v6965, %v7087
  %v7106 = vadd.f32 %v6970, %v7092
  %v7107 = vadd.f32 %v6975, %v7097
  %s7108 = scalar_lea.vmem %s2, 192
  %7109 = vst [vmem:[%s7108] sm:$0xff] %v7100
  %7110 = vst [vmem:[%s7108 + $0x8] sm:$0xff] %v7101
  %7111 = vst [vmem:[%s7108 + $0x10] sm:$0xff] %v7102
  %7112 = vst [vmem:[%s7108 + $0x18] sm:$0xff] %v7103
  %7113 = vst [vmem:[%s7108 + $0x20] sm:$0xff] %v7104
  %7114 = vst [vmem:[%s7108 + $0x28] sm:$0xff] %v7105
  %7115 = vst [vmem:[%s7108 + $0x30] sm:$0xff] %v7106
  %7116 = vst [vmem:[%s7108 + $0x38] sm:$0xff] %v7107
  %v7117 = vld [vmem:[%s6597] sm:$0xff]
  %v7118 = vld [vmem:[%s6597 + $0x8] sm:$0xff]
  %v7119 = vld [vmem:[%s6597 + $0x10] sm:$0xff]
  %v7120 = vld [vmem:[%s6597 + $0x18] sm:$0xff]
  %v7121 = vld [vmem:[%s6597 + $0x20] sm:$0xff]
  %v7122 = vld [vmem:[%s6597 + $0x28] sm:$0xff]
  %v7123 = vld [vmem:[%s6597 + $0x30] sm:$0xff]
  %v7124 = vld [vmem:[%s6597 + $0x38] sm:$0xff]
  %v7125 = vld [vmem:[%s6597 + $0x40] sm:$0xff]
  %v7126 = vld [vmem:[%s6597 + $0x48] sm:$0xff]
  %v7127 = vld [vmem:[%s6597 + $0x50] sm:$0xff]
  %v7128 = vld [vmem:[%s6597 + $0x58] sm:$0xff]
  %v7129 = vld [vmem:[%s6597 + $0x60] sm:$0xff]
  %v7130 = vld [vmem:[%s6597 + $0x68] sm:$0xff]
  %v7131 = vld [vmem:[%s6597 + $0x70] sm:$0xff]
  %v7132 = vld [vmem:[%s6597 + $0x78] sm:$0xff]
  %v7133 = vld [vmem:[%s6978] sm:$0xff]
  %v7134 = vld [vmem:[%s6978 + $0x8] sm:$0xff]
  %v7135 = vld [vmem:[%s6978 + $0x10] sm:$0xff]
  %v7136 = vld [vmem:[%s6978 + $0x18] sm:$0xff]
  %v7137 = vld [vmem:[%s6978 + $0x20] sm:$0xff]
  %v7138 = vld [vmem:[%s6978 + $0x28] sm:$0xff]
  %v7139 = vld [vmem:[%s6978 + $0x30] sm:$0xff]
  %v7140 = vld [vmem:[%s6978 + $0x38] sm:$0xff]
  %v7141 = vld [vmem:[%s6978 + $0x40] sm:$0xff]
  %v7142 = vld [vmem:[%s6978 + $0x48] sm:$0xff]
  %v7143 = vld [vmem:[%s6978 + $0x50] sm:$0xff]
  %v7144 = vld [vmem:[%s6978 + $0x58] sm:$0xff]
  %v7145 = vld [vmem:[%s6978 + $0x60] sm:$0xff]
  %v7146 = vld [vmem:[%s6978 + $0x68] sm:$0xff]
  %v7147 = vld [vmem:[%s6978 + $0x70] sm:$0xff]
  %v7148 = vld [vmem:[%s6978 + $0x78] sm:$0xff]
  %7149 = vmatprep.subr.mxu0 0.0
  %7150 = vmatpush1.msra.mxu0 %v7148
  %7151 = vmatprep.subr.mxu0 0.0
  %7152 = vmatpush1.msra.mxu0 %v7147
  %7153 = vmatprep.subr.mxu0 0.0
  %7154 = vmatpush1.msra.mxu0 %v7146
  %7155 = vmatprep.subr.mxu0 0.0
  %7156 = vmatpush1.msra.mxu0 %v7145
  %7157 = vmatprep.subr.mxu0 0.0
  %7158 = vmatpush1.msra.mxu0 %v7144
  %7159 = vmatprep.subr.mxu0 0.0
  %7160 = vmatpush1.msra.mxu0 %v7143
  %7161 = vmatprep.subr.mxu0 0.0
  %7162 = vmatpush1.msra.mxu0 %v7142
  %7163 = vmatprep.subr.mxu0 0.0
  %7164 = vmatpush1.msra.mxu0 %v7141
  %7165 = vmatprep.subr.mxu0 0.0
  %7166 = vmatpush1.msra.mxu0 %v7140
  %7167 = vmatprep.subr.mxu0 0.0
  %7168 = vmatpush1.msra.mxu0 %v7139
  %7169 = vmatprep.subr.mxu0 0.0
  %7170 = vmatpush1.msra.mxu0 %v7138
  %7171 = vmatprep.subr.mxu0 0.0
  %7172 = vmatpush1.msra.mxu0 %v7137
  %7173 = vmatprep.subr.mxu0 0.0
  %7174 = vmatpush1.msra.mxu0 %v7136
  %7175 = vmatprep.subr.mxu0 0.0
  %7176 = vmatpush1.msra.mxu0 %v7135
  %7177 = vmatprep.subr.mxu0 0.0
  %7178 = vmatpush1.msra.mxu0 %v7134
  %7179 = vmatprep.subr.mxu0 0.0
  %7180 = vmatpush1.msra.mxu0 %v7133
  %7181 = vmatprep.subr.mxu0 0.0
  %7182 = vmatpush2.msra.mxu0 0.0
  %7183 = vmatprep.subr.mxu0 0.0
  %7184 = vmatpush2.msra.mxu0 0.0
  %7185 = vmatprep.subr.mxu0 0.0
  %7186 = vmatpush2.msra.mxu0 0.0
  %7187 = vmatprep.subr.mxu0 0.0
  %7188 = vmatpush2.msra.mxu0 0.0
  %7189 = vmatprep.subr.mxu0 0.0
  %7190 = vmatpush2.msra.mxu0 0.0
  %7191 = vmatprep.subr.mxu0 0.0
  %7192 = vmatpush2.msra.mxu0 0.0
  %7193 = vmatprep.subr.mxu0 0.0
  %7194 = vmatpush2.msra.mxu0 0.0
  %7195 = vmatprep.subr.mxu0 0.0
  %7196 = vmatpush2.msra.mxu0 0.0
  %7197 = vmatprep.subr.mxu0 0.0
  %7198 = vmatpush2.msra.mxu0 0.0
  %7199 = vmatprep.subr.mxu0 0.0
  %7200 = vmatpush2.msra.mxu0 0.0
  %7201 = vmatprep.subr.mxu0 0.0
  %7202 = vmatpush2.msra.mxu0 0.0
  %7203 = vmatprep.subr.mxu0 0.0
  %7204 = vmatpush2.msra.mxu0 0.0
  %7205 = vmatprep.subr.mxu0 0.0
  %7206 = vmatpush2.msra.mxu0 0.0
  %7207 = vmatprep.subr.mxu0 0.0
  %7208 = vmatpush2.msra.mxu0 0.0
  %7209 = vmatprep.subr.mxu0 0.0
  %7210 = vmatpush2.msra.mxu0 0.0
  %7211 = vmatprep.subr.mxu0 0.0
  %7212 = vmatpush2.msra.mxu0 0.0
  %7213 = vmatprep.mubr.f32.mxu0 0.0
  %7214 = vmatmul.mubr.f32.gmra.mxu0 %v5576
  %v7215 = vpop.f32.mrf.mxu0
  %v7216 = vadd.f32 0.0, %v7215
  %v7217 = vpop.f32.mrf.mxu0
  %7218 = vmatprep.mubr.f32.mxu0 0.0
  %7219 = vmatmul.mubr.f32.gmra.mxu0 %v5577
  %v7220 = vpop.f32.mrf.mxu0
  %v7221 = vadd.f32 0.0, %v7220
  %v7222 = vpop.f32.mrf.mxu0
  %7223 = vmatprep.mubr.f32.mxu0 0.0
  %7224 = vmatmul.mubr.f32.gmra.mxu0 %v5578
  %v7225 = vpop.f32.mrf.mxu0
  %v7226 = vadd.f32 0.0, %v7225
  %v7227 = vpop.f32.mrf.mxu0
  %7228 = vmatprep.mubr.f32.mxu0 0.0
  %7229 = vmatmul.mubr.f32.gmra.mxu0 %v5579
  %v7230 = vpop.f32.mrf.mxu0
  %v7231 = vadd.f32 0.0, %v7230
  %v7232 = vpop.f32.mrf.mxu0
  %7233 = vmatprep.mubr.f32.mxu0 0.0
  %7234 = vmatmul.mubr.f32.gmra.mxu0 %v5580
  %v7235 = vpop.f32.mrf.mxu0
  %v7236 = vadd.f32 0.0, %v7235
  %v7237 = vpop.f32.mrf.mxu0
  %7238 = vmatprep.mubr.f32.mxu0 0.0
  %7239 = vmatmul.mubr.f32.gmra.mxu0 %v5581
  %v7240 = vpop.f32.mrf.mxu0
  %v7241 = vadd.f32 0.0, %v7240
  %v7242 = vpop.f32.mrf.mxu0
  %7243 = vmatprep.mubr.f32.mxu0 0.0
  %7244 = vmatmul.mubr.f32.gmra.mxu0 %v5582
  %v7245 = vpop.f32.mrf.mxu0
  %v7246 = vadd.f32 0.0, %v7245
  %v7247 = vpop.f32.mrf.mxu0
  %7248 = vmatprep.mubr.f32.mxu0 0.0
  %7249 = vmatmul.mubr.f32.gmra.mxu0 %v5583
  %v7250 = vpop.f32.mrf.mxu0
  %v7251 = vadd.f32 0.0, %v7250
  %v7252 = vpop.f32.mrf.mxu0
  %7253 = vdwg.mxu0
  %7254 = vmatprep.subr.mxu0 0.0
  %7255 = vmatpush1.msra.mxu0 %v7132
  %7256 = vmatprep.subr.mxu0 0.0
  %7257 = vmatpush1.msra.mxu0 %v7131
  %7258 = vmatprep.subr.mxu0 0.0
  %7259 = vmatpush1.msra.mxu0 %v7130
  %7260 = vmatprep.subr.mxu0 0.0
  %7261 = vmatpush1.msra.mxu0 %v7129
  %7262 = vmatprep.subr.mxu0 0.0
  %7263 = vmatpush1.msra.mxu0 %v7128
  %7264 = vmatprep.subr.mxu0 0.0
  %7265 = vmatpush1.msra.mxu0 %v7127
  %7266 = vmatprep.subr.mxu0 0.0
  %7267 = vmatpush1.msra.mxu0 %v7126
  %7268 = vmatprep.subr.mxu0 0.0
  %7269 = vmatpush1.msra.mxu0 %v7125
  %7270 = vmatprep.subr.mxu0 0.0
  %7271 = vmatpush1.msra.mxu0 %v7124
  %7272 = vmatprep.subr.mxu0 0.0
  %7273 = vmatpush1.msra.mxu0 %v7123
  %7274 = vmatprep.subr.mxu0 0.0
  %7275 = vmatpush1.msra.mxu0 %v7122
  %7276 = vmatprep.subr.mxu0 0.0
  %7277 = vmatpush1.msra.mxu0 %v7121
  %7278 = vmatprep.subr.mxu0 0.0
  %7279 = vmatpush1.msra.mxu0 %v7120
  %7280 = vmatprep.subr.mxu0 0.0
  %7281 = vmatpush1.msra.mxu0 %v7119
  %7282 = vmatprep.subr.mxu0 0.0
  %7283 = vmatpush1.msra.mxu0 %v7118
  %7284 = vmatprep.subr.mxu0 0.0
  %7285 = vmatpush1.msra.mxu0 %v7117
  %7286 = vmatprep.subr.mxu0 0.0
  %7287 = vmatpush2.msra.mxu0 0.0
  %7288 = vmatprep.subr.mxu0 0.0
  %7289 = vmatpush2.msra.mxu0 0.0
  %7290 = vmatprep.subr.mxu0 0.0
  %7291 = vmatpush2.msra.mxu0 0.0
  %7292 = vmatprep.subr.mxu0 0.0
  %7293 = vmatpush2.msra.mxu0 0.0
  %7294 = vmatprep.subr.mxu0 0.0
  %7295 = vmatpush2.msra.mxu0 0.0
  %7296 = vmatprep.subr.mxu0 0.0
  %7297 = vmatpush2.msra.mxu0 0.0
  %7298 = vmatprep.subr.mxu0 0.0
  %7299 = vmatpush2.msra.mxu0 0.0
  %7300 = vmatprep.subr.mxu0 0.0
  %7301 = vmatpush2.msra.mxu0 0.0
  %7302 = vmatprep.subr.mxu0 0.0
  %7303 = vmatpush2.msra.mxu0 0.0
  %7304 = vmatprep.subr.mxu0 0.0
  %7305 = vmatpush2.msra.mxu0 0.0
  %7306 = vmatprep.subr.mxu0 0.0
  %7307 = vmatpush2.msra.mxu0 0.0
  %7308 = vmatprep.subr.mxu0 0.0
  %7309 = vmatpush2.msra.mxu0 0.0
  %7310 = vmatprep.subr.mxu0 0.0
  %7311 = vmatpush2.msra.mxu0 0.0
  %7312 = vmatprep.subr.mxu0 0.0
  %7313 = vmatpush2.msra.mxu0 0.0
  %7314 = vmatprep.subr.mxu0 0.0
  %7315 = vmatpush2.msra.mxu0 0.0
  %7316 = vmatprep.subr.mxu0 0.0
  %7317 = vmatpush2.msra.mxu0 0.0
  %7318 = vmatprep.mubr.f32.mxu0 0.0
  %7319 = vmatmul.mubr.f32.gmra.mxu0 %v5567
  %v7320 = vpop.f32.mrf.mxu0
  %v7321 = vadd.f32 %v7216, %v7320
  %v7322 = vpop.f32.mrf.mxu0
  %7323 = vmatprep.mubr.f32.mxu0 0.0
  %7324 = vmatmul.mubr.f32.gmra.mxu0 %v5568
  %v7325 = vpop.f32.mrf.mxu0
  %v7326 = vadd.f32 %v7221, %v7325
  %v7327 = vpop.f32.mrf.mxu0
  %7328 = vmatprep.mubr.f32.mxu0 0.0
  %7329 = vmatmul.mubr.f32.gmra.mxu0 %v5569
  %v7330 = vpop.f32.mrf.mxu0
  %v7331 = vadd.f32 %v7226, %v7330
  %v7332 = vpop.f32.mrf.mxu0
  %7333 = vmatprep.mubr.f32.mxu0 0.0
  %7334 = vmatmul.mubr.f32.gmra.mxu0 %v5570
  %v7335 = vpop.f32.mrf.mxu0
  %v7336 = vadd.f32 %v7231, %v7335
  %v7337 = vpop.f32.mrf.mxu0
  %7338 = vmatprep.mubr.f32.mxu0 0.0
  %7339 = vmatmul.mubr.f32.gmra.mxu0 %v5571
  %v7340 = vpop.f32.mrf.mxu0
  %v7341 = vadd.f32 %v7236, %v7340
  %v7342 = vpop.f32.mrf.mxu0
  %7343 = vmatprep.mubr.f32.mxu0 0.0
  %7344 = vmatmul.mubr.f32.gmra.mxu0 %v5572
  %v7345 = vpop.f32.mrf.mxu0
  %v7346 = vadd.f32 %v7241, %v7345
  %v7347 = vpop.f32.mrf.mxu0
  %7348 = vmatprep.mubr.f32.mxu0 0.0
  %7349 = vmatmul.mubr.f32.gmra.mxu0 %v5573
  %v7350 = vpop.f32.mrf.mxu0
  %v7351 = vadd.f32 %v7246, %v7350
  %v7352 = vpop.f32.mrf.mxu0
  %7353 = vmatprep.mubr.f32.mxu0 0.0
  %7354 = vmatmul.mubr.f32.gmra.mxu0 %v5574
  %v7355 = vpop.f32.mrf.mxu0
  %v7356 = vadd.f32 %v7251, %v7355
  %v7357 = vpop.f32.mrf.mxu0
  %7358 = vdwg.mxu0
  %s7359 = scalar_lea.vmem [#allocation2], 768
  %v7360 = vld [vmem:[%s7359] sm:$0xff]
  %v7361 = vld [vmem:[%s7359 + $0x8] sm:$0xff]
  %v7362 = vld [vmem:[%s7359 + $0x10] sm:$0xff]
  %v7363 = vld [vmem:[%s7359 + $0x18] sm:$0xff]
  %v7364 = vld [vmem:[%s7359 + $0x20] sm:$0xff]
  %v7365 = vld [vmem:[%s7359 + $0x28] sm:$0xff]
  %v7366 = vld [vmem:[%s7359 + $0x30] sm:$0xff]
  %v7367 = vld [vmem:[%s7359 + $0x38] sm:$0xff]
  %v7368 = vld [vmem:[%s7359 + $0x40] sm:$0xff]
  %v7369 = vld [vmem:[%s7359 + $0x48] sm:$0xff]
  %v7370 = vld [vmem:[%s7359 + $0x50] sm:$0xff]
  %v7371 = vld [vmem:[%s7359 + $0x58] sm:$0xff]
  %v7372 = vld [vmem:[%s7359 + $0x60] sm:$0xff]
  %v7373 = vld [vmem:[%s7359 + $0x68] sm:$0xff]
  %v7374 = vld [vmem:[%s7359 + $0x70] sm:$0xff]
  %v7375 = vld [vmem:[%s7359 + $0x78] sm:$0xff]
  %7376 = vmatprep.subr.mxu0 0.0
  %7377 = vmatpush1.msra.mxu0 %v7375
  %7378 = vmatprep.subr.mxu0 0.0
  %7379 = vmatpush1.msra.mxu0 %v7374
  %7380 = vmatprep.subr.mxu0 0.0
  %7381 = vmatpush1.msra.mxu0 %v7373
  %7382 = vmatprep.subr.mxu0 0.0
  %7383 = vmatpush1.msra.mxu0 %v7372
  %7384 = vmatprep.subr.mxu0 0.0
  %7385 = vmatpush1.msra.mxu0 %v7371
  %7386 = vmatprep.subr.mxu0 0.0
  %7387 = vmatpush1.msra.mxu0 %v7370
  %7388 = vmatprep.subr.mxu0 0.0
  %7389 = vmatpush1.msra.mxu0 %v7369
  %7390 = vmatprep.subr.mxu0 0.0
  %7391 = vmatpush1.msra.mxu0 %v7368
  %7392 = vmatprep.subr.mxu0 0.0
  %7393 = vmatpush1.msra.mxu0 %v7367
  %7394 = vmatprep.subr.mxu0 0.0
  %7395 = vmatpush1.msra.mxu0 %v7366
  %7396 = vmatprep.subr.mxu0 0.0
  %7397 = vmatpush1.msra.mxu0 %v7365
  %7398 = vmatprep.subr.mxu0 0.0
  %7399 = vmatpush1.msra.mxu0 %v7364
  %7400 = vmatprep.subr.mxu0 0.0
  %7401 = vmatpush1.msra.mxu0 %v7363
  %7402 = vmatprep.subr.mxu0 0.0
  %7403 = vmatpush1.msra.mxu0 %v7362
  %7404 = vmatprep.subr.mxu0 0.0
  %7405 = vmatpush1.msra.mxu0 %v7361
  %7406 = vmatprep.subr.mxu0 0.0
  %7407 = vmatpush1.msra.mxu0 %v7360
  %7408 = vmatprep.subr.mxu0 0.0
  %7409 = vmatpush2.msra.mxu0 0.0
  %7410 = vmatprep.subr.mxu0 0.0
  %7411 = vmatpush2.msra.mxu0 0.0
  %7412 = vmatprep.subr.mxu0 0.0
  %7413 = vmatpush2.msra.mxu0 0.0
  %7414 = vmatprep.subr.mxu0 0.0
  %7415 = vmatpush2.msra.mxu0 0.0
  %7416 = vmatprep.subr.mxu0 0.0
  %7417 = vmatpush2.msra.mxu0 0.0
  %7418 = vmatprep.subr.mxu0 0.0
  %7419 = vmatpush2.msra.mxu0 0.0
  %7420 = vmatprep.subr.mxu0 0.0
  %7421 = vmatpush2.msra.mxu0 0.0
  %7422 = vmatprep.subr.mxu0 0.0
  %7423 = vmatpush2.msra.mxu0 0.0
  %7424 = vmatprep.subr.mxu0 0.0
  %7425 = vmatpush2.msra.mxu0 0.0
  %7426 = vmatprep.subr.mxu0 0.0
  %7427 = vmatpush2.msra.mxu0 0.0
  %7428 = vmatprep.subr.mxu0 0.0
  %7429 = vmatpush2.msra.mxu0 0.0
  %7430 = vmatprep.subr.mxu0 0.0
  %7431 = vmatpush2.msra.mxu0 0.0
  %7432 = vmatprep.subr.mxu0 0.0
  %7433 = vmatpush2.msra.mxu0 0.0
  %7434 = vmatprep.subr.mxu0 0.0
  %7435 = vmatpush2.msra.mxu0 0.0
  %7436 = vmatprep.subr.mxu0 0.0
  %7437 = vmatpush2.msra.mxu0 0.0
  %7438 = vmatprep.subr.mxu0 0.0
  %7439 = vmatpush2.msra.mxu0 0.0
  %7440 = vmatprep.mubr.f32.mxu0 0.0
  %7441 = vmatmul.mubr.f32.gmra.mxu0 %v5585
  %v7442 = vpop.f32.mrf.mxu0
  %v7443 = vadd.f32 0.0, %v7442
  %v7444 = vpop.f32.mrf.mxu0
  %7445 = vmatprep.mubr.f32.mxu0 0.0
  %7446 = vmatmul.mubr.f32.gmra.mxu0 %v5586
  %v7447 = vpop.f32.mrf.mxu0
  %v7448 = vadd.f32 0.0, %v7447
  %v7449 = vpop.f32.mrf.mxu0
  %7450 = vmatprep.mubr.f32.mxu0 0.0
  %7451 = vmatmul.mubr.f32.gmra.mxu0 %v5587
  %v7452 = vpop.f32.mrf.mxu0
  %v7453 = vadd.f32 0.0, %v7452
  %v7454 = vpop.f32.mrf.mxu0
  %7455 = vmatprep.mubr.f32.mxu0 0.0
  %7456 = vmatmul.mubr.f32.gmra.mxu0 %v5588
  %v7457 = vpop.f32.mrf.mxu0
  %v7458 = vadd.f32 0.0, %v7457
  %v7459 = vpop.f32.mrf.mxu0
  %7460 = vmatprep.mubr.f32.mxu0 0.0
  %7461 = vmatmul.mubr.f32.gmra.mxu0 %v5589
  %v7462 = vpop.f32.mrf.mxu0
  %v7463 = vadd.f32 0.0, %v7462
  %v7464 = vpop.f32.mrf.mxu0
  %7465 = vmatprep.mubr.f32.mxu0 0.0
  %7466 = vmatmul.mubr.f32.gmra.mxu0 %v5590
  %v7467 = vpop.f32.mrf.mxu0
  %v7468 = vadd.f32 0.0, %v7467
  %v7469 = vpop.f32.mrf.mxu0
  %7470 = vmatprep.mubr.f32.mxu0 0.0
  %7471 = vmatmul.mubr.f32.gmra.mxu0 %v5591
  %v7472 = vpop.f32.mrf.mxu0
  %v7473 = vadd.f32 0.0, %v7472
  %v7474 = vpop.f32.mrf.mxu0
  %7475 = vmatprep.mubr.f32.mxu0 0.0
  %7476 = vmatmul.mubr.f32.gmra.mxu0 %v5592
  %v7477 = vpop.f32.mrf.mxu0
  %v7478 = vadd.f32 0.0, %v7477
  %v7479 = vpop.f32.mrf.mxu0
  %7480 = vdwg.mxu0
  %v7481 = vadd.f32 %v7321, %v7443
  %v7482 = vadd.f32 %v7326, %v7448
  %v7483 = vadd.f32 %v7331, %v7453
  %v7484 = vadd.f32 %v7336, %v7458
  %v7485 = vadd.f32 %v7341, %v7463
  %v7486 = vadd.f32 %v7346, %v7468
  %v7487 = vadd.f32 %v7351, %v7473
  %v7488 = vadd.f32 %v7356, %v7478
  %s7489 = scalar_lea.vmem %s2, 256
  %7490 = vst [vmem:[%s7489] sm:$0xff] %v7481
  %7491 = vst [vmem:[%s7489 + $0x8] sm:$0xff] %v7482
  %7492 = vst [vmem:[%s7489 + $0x10] sm:$0xff] %v7483
  %7493 = vst [vmem:[%s7489 + $0x18] sm:$0xff] %v7484
  %7494 = vst [vmem:[%s7489 + $0x20] sm:$0xff] %v7485
  %7495 = vst [vmem:[%s7489 + $0x28] sm:$0xff] %v7486
  %7496 = vst [vmem:[%s7489 + $0x30] sm:$0xff] %v7487
  %7497 = vst [vmem:[%s7489 + $0x38] sm:$0xff] %v7488
  %v7498 = vld [vmem:[%s6978] sm:$0xff]
  %v7499 = vld [vmem:[%s6978 + $0x8] sm:$0xff]
  %v7500 = vld [vmem:[%s6978 + $0x10] sm:$0xff]
  %v7501 = vld [vmem:[%s6978 + $0x18] sm:$0xff]
  %v7502 = vld [vmem:[%s6978 + $0x20] sm:$0xff]
  %v7503 = vld [vmem:[%s6978 + $0x28] sm:$0xff]
  %v7504 = vld [vmem:[%s6978 + $0x30] sm:$0xff]
  %v7505 = vld [vmem:[%s6978 + $0x38] sm:$0xff]
  %v7506 = vld [vmem:[%s6978 + $0x40] sm:$0xff]
  %v7507 = vld [vmem:[%s6978 + $0x48] sm:$0xff]
  %v7508 = vld [vmem:[%s6978 + $0x50] sm:$0xff]
  %v7509 = vld [vmem:[%s6978 + $0x58] sm:$0xff]
  %v7510 = vld [vmem:[%s6978 + $0x60] sm:$0xff]
  %v7511 = vld [vmem:[%s6978 + $0x68] sm:$0xff]
  %v7512 = vld [vmem:[%s6978 + $0x70] sm:$0xff]
  %v7513 = vld [vmem:[%s6978 + $0x78] sm:$0xff]
  %v7514 = vld [vmem:[%s7359] sm:$0xff]
  %v7515 = vld [vmem:[%s7359 + $0x8] sm:$0xff]
  %v7516 = vld [vmem:[%s7359 + $0x10] sm:$0xff]
  %v7517 = vld [vmem:[%s7359 + $0x18] sm:$0xff]
  %v7518 = vld [vmem:[%s7359 + $0x20] sm:$0xff]
  %v7519 = vld [vmem:[%s7359 + $0x28] sm:$0xff]
  %v7520 = vld [vmem:[%s7359 + $0x30] sm:$0xff]
  %v7521 = vld [vmem:[%s7359 + $0x38] sm:$0xff]
  %v7522 = vld [vmem:[%s7359 + $0x40] sm:$0xff]
  %v7523 = vld [vmem:[%s7359 + $0x48] sm:$0xff]
  %v7524 = vld [vmem:[%s7359 + $0x50] sm:$0xff]
  %v7525 = vld [vmem:[%s7359 + $0x58] sm:$0xff]
  %v7526 = vld [vmem:[%s7359 + $0x60] sm:$0xff]
  %v7527 = vld [vmem:[%s7359 + $0x68] sm:$0xff]
  %v7528 = vld [vmem:[%s7359 + $0x70] sm:$0xff]
  %v7529 = vld [vmem:[%s7359 + $0x78] sm:$0xff]
  %7530 = vmatprep.subr.mxu0 0.0
  %7531 = vmatpush1.msra.mxu0 %v7529
  %7532 = vmatprep.subr.mxu0 0.0
  %7533 = vmatpush1.msra.mxu0 %v7528
  %7534 = vmatprep.subr.mxu0 0.0
  %7535 = vmatpush1.msra.mxu0 %v7527
  %7536 = vmatprep.subr.mxu0 0.0
  %7537 = vmatpush1.msra.mxu0 %v7526
  %7538 = vmatprep.subr.mxu0 0.0
  %7539 = vmatpush1.msra.mxu0 %v7525
  %7540 = vmatprep.subr.mxu0 0.0
  %7541 = vmatpush1.msra.mxu0 %v7524
  %7542 = vmatprep.subr.mxu0 0.0
  %7543 = vmatpush1.msra.mxu0 %v7523
  %7544 = vmatprep.subr.mxu0 0.0
  %7545 = vmatpush1.msra.mxu0 %v7522
  %7546 = vmatprep.subr.mxu0 0.0
  %7547 = vmatpush1.msra.mxu0 %v7521
  %7548 = vmatprep.subr.mxu0 0.0
  %7549 = vmatpush1.msra.mxu0 %v7520
  %7550 = vmatprep.subr.mxu0 0.0
  %7551 = vmatpush1.msra.mxu0 %v7519
  %7552 = vmatprep.subr.mxu0 0.0
  %7553 = vmatpush1.msra.mxu0 %v7518
  %7554 = vmatprep.subr.mxu0 0.0
  %7555 = vmatpush1.msra.mxu0 %v7517
  %7556 = vmatprep.subr.mxu0 0.0
  %7557 = vmatpush1.msra.mxu0 %v7516
  %7558 = vmatprep.subr.mxu0 0.0
  %7559 = vmatpush1.msra.mxu0 %v7515
  %7560 = vmatprep.subr.mxu0 0.0
  %7561 = vmatpush1.msra.mxu0 %v7514
  %7562 = vmatprep.subr.mxu0 0.0
  %7563 = vmatpush2.msra.mxu0 0.0
  %7564 = vmatprep.subr.mxu0 0.0
  %7565 = vmatpush2.msra.mxu0 0.0
  %7566 = vmatprep.subr.mxu0 0.0
  %7567 = vmatpush2.msra.mxu0 0.0
  %7568 = vmatprep.subr.mxu0 0.0
  %7569 = vmatpush2.msra.mxu0 0.0
  %7570 = vmatprep.subr.mxu0 0.0
  %7571 = vmatpush2.msra.mxu0 0.0
  %7572 = vmatprep.subr.mxu0 0.0
  %7573 = vmatpush2.msra.mxu0 0.0
  %7574 = vmatprep.subr.mxu0 0.0
  %7575 = vmatpush2.msra.mxu0 0.0
  %7576 = vmatprep.subr.mxu0 0.0
  %7577 = vmatpush2.msra.mxu0 0.0
  %7578 = vmatprep.subr.mxu0 0.0
  %7579 = vmatpush2.msra.mxu0 0.0
  %7580 = vmatprep.subr.mxu0 0.0
  %7581 = vmatpush2.msra.mxu0 0.0
  %7582 = vmatprep.subr.mxu0 0.0
  %7583 = vmatpush2.msra.mxu0 0.0
  %7584 = vmatprep.subr.mxu0 0.0
  %7585 = vmatpush2.msra.mxu0 0.0
  %7586 = vmatprep.subr.mxu0 0.0
  %7587 = vmatpush2.msra.mxu0 0.0
  %7588 = vmatprep.subr.mxu0 0.0
  %7589 = vmatpush2.msra.mxu0 0.0
  %7590 = vmatprep.subr.mxu0 0.0
  %7591 = vmatpush2.msra.mxu0 0.0
  %7592 = vmatprep.subr.mxu0 0.0
  %7593 = vmatpush2.msra.mxu0 0.0
  %7594 = vmatprep.mubr.f32.mxu0 0.0
  %7595 = vmatmul.mubr.f32.gmra.mxu0 %v5576
  %v7596 = vpop.f32.mrf.mxu0
  %v7597 = vadd.f32 0.0, %v7596
  %v7598 = vpop.f32.mrf.mxu0
  %7599 = vmatprep.mubr.f32.mxu0 0.0
  %7600 = vmatmul.mubr.f32.gmra.mxu0 %v5577
  %v7601 = vpop.f32.mrf.mxu0
  %v7602 = vadd.f32 0.0, %v7601
  %v7603 = vpop.f32.mrf.mxu0
  %7604 = vmatprep.mubr.f32.mxu0 0.0
  %7605 = vmatmul.mubr.f32.gmra.mxu0 %v5578
  %v7606 = vpop.f32.mrf.mxu0
  %v7607 = vadd.f32 0.0, %v7606
  %v7608 = vpop.f32.mrf.mxu0
  %7609 = vmatprep.mubr.f32.mxu0 0.0
  %7610 = vmatmul.mubr.f32.gmra.mxu0 %v5579
  %v7611 = vpop.f32.mrf.mxu0
  %v7612 = vadd.f32 0.0, %v7611
  %v7613 = vpop.f32.mrf.mxu0
  %7614 = vmatprep.mubr.f32.mxu0 0.0
  %7615 = vmatmul.mubr.f32.gmra.mxu0 %v5580
  %v7616 = vpop.f32.mrf.mxu0
  %v7617 = vadd.f32 0.0, %v7616
  %v7618 = vpop.f32.mrf.mxu0
  %7619 = vmatprep.mubr.f32.mxu0 0.0
  %7620 = vmatmul.mubr.f32.gmra.mxu0 %v5581
  %v7621 = vpop.f32.mrf.mxu0
  %v7622 = vadd.f32 0.0, %v7621
  %v7623 = vpop.f32.mrf.mxu0
  %7624 = vmatprep.mubr.f32.mxu0 0.0
  %7625 = vmatmul.mubr.f32.gmra.mxu0 %v5582
  %v7626 = vpop.f32.mrf.mxu0
  %v7627 = vadd.f32 0.0, %v7626
  %v7628 = vpop.f32.mrf.mxu0
  %7629 = vmatprep.mubr.f32.mxu0 0.0
  %7630 = vmatmul.mubr.f32.gmra.mxu0 %v5583
  %v7631 = vpop.f32.mrf.mxu0
  %v7632 = vadd.f32 0.0, %v7631
  %v7633 = vpop.f32.mrf.mxu0
  %7634 = vdwg.mxu0
  %7635 = vmatprep.subr.mxu0 0.0
  %7636 = vmatpush1.msra.mxu0 %v7513
  %7637 = vmatprep.subr.mxu0 0.0
  %7638 = vmatpush1.msra.mxu0 %v7512
  %7639 = vmatprep.subr.mxu0 0.0
  %7640 = vmatpush1.msra.mxu0 %v7511
  %7641 = vmatprep.subr.mxu0 0.0
  %7642 = vmatpush1.msra.mxu0 %v7510
  %7643 = vmatprep.subr.mxu0 0.0
  %7644 = vmatpush1.msra.mxu0 %v7509
  %7645 = vmatprep.subr.mxu0 0.0
  %7646 = vmatpush1.msra.mxu0 %v7508
  %7647 = vmatprep.subr.mxu0 0.0
  %7648 = vmatpush1.msra.mxu0 %v7507
  %7649 = vmatprep.subr.mxu0 0.0
  %7650 = vmatpush1.msra.mxu0 %v7506
  %7651 = vmatprep.subr.mxu0 0.0
  %7652 = vmatpush1.msra.mxu0 %v7505
  %7653 = vmatprep.subr.mxu0 0.0
  %7654 = vmatpush1.msra.mxu0 %v7504
  %7655 = vmatprep.subr.mxu0 0.0
  %7656 = vmatpush1.msra.mxu0 %v7503
  %7657 = vmatprep.subr.mxu0 0.0
  %7658 = vmatpush1.msra.mxu0 %v7502
  %7659 = vmatprep.subr.mxu0 0.0
  %7660 = vmatpush1.msra.mxu0 %v7501
  %7661 = vmatprep.subr.mxu0 0.0
  %7662 = vmatpush1.msra.mxu0 %v7500
  %7663 = vmatprep.subr.mxu0 0.0
  %7664 = vmatpush1.msra.mxu0 %v7499
  %7665 = vmatprep.subr.mxu0 0.0
  %7666 = vmatpush1.msra.mxu0 %v7498
  %7667 = vmatprep.subr.mxu0 0.0
  %7668 = vmatpush2.msra.mxu0 0.0
  %7669 = vmatprep.subr.mxu0 0.0
  %7670 = vmatpush2.msra.mxu0 0.0
  %7671 = vmatprep.subr.mxu0 0.0
  %7672 = vmatpush2.msra.mxu0 0.0
  %7673 = vmatprep.subr.mxu0 0.0
  %7674 = vmatpush2.msra.mxu0 0.0
  %7675 = vmatprep.subr.mxu0 0.0
  %7676 = vmatpush2.msra.mxu0 0.0
  %7677 = vmatprep.subr.mxu0 0.0
  %7678 = vmatpush2.msra.mxu0 0.0
  %7679 = vmatprep.subr.mxu0 0.0
  %7680 = vmatpush2.msra.mxu0 0.0
  %7681 = vmatprep.subr.mxu0 0.0
  %7682 = vmatpush2.msra.mxu0 0.0
  %7683 = vmatprep.subr.mxu0 0.0
  %7684 = vmatpush2.msra.mxu0 0.0
  %7685 = vmatprep.subr.mxu0 0.0
  %7686 = vmatpush2.msra.mxu0 0.0
  %7687 = vmatprep.subr.mxu0 0.0
  %7688 = vmatpush2.msra.mxu0 0.0
  %7689 = vmatprep.subr.mxu0 0.0
  %7690 = vmatpush2.msra.mxu0 0.0
  %7691 = vmatprep.subr.mxu0 0.0
  %7692 = vmatpush2.msra.mxu0 0.0
  %7693 = vmatprep.subr.mxu0 0.0
  %7694 = vmatpush2.msra.mxu0 0.0
  %7695 = vmatprep.subr.mxu0 0.0
  %7696 = vmatpush2.msra.mxu0 0.0
  %7697 = vmatprep.subr.mxu0 0.0
  %7698 = vmatpush2.msra.mxu0 0.0
  %7699 = vmatprep.mubr.f32.mxu0 0.0
  %7700 = vmatmul.mubr.f32.gmra.mxu0 %v5567
  %v7701 = vpop.f32.mrf.mxu0
  %v7702 = vadd.f32 %v7597, %v7701
  %v7703 = vpop.f32.mrf.mxu0
  %7704 = vmatprep.mubr.f32.mxu0 0.0
  %7705 = vmatmul.mubr.f32.gmra.mxu0 %v5568
  %v7706 = vpop.f32.mrf.mxu0
  %v7707 = vadd.f32 %v7602, %v7706
  %v7708 = vpop.f32.mrf.mxu0
  %7709 = vmatprep.mubr.f32.mxu0 0.0
  %7710 = vmatmul.mubr.f32.gmra.mxu0 %v5569
  %v7711 = vpop.f32.mrf.mxu0
  %v7712 = vadd.f32 %v7607, %v7711
  %v7713 = vpop.f32.mrf.mxu0
  %7714 = vmatprep.mubr.f32.mxu0 0.0
  %7715 = vmatmul.mubr.f32.gmra.mxu0 %v5570
  %v7716 = vpop.f32.mrf.mxu0
  %v7717 = vadd.f32 %v7612, %v7716
  %v7718 = vpop.f32.mrf.mxu0
  %7719 = vmatprep.mubr.f32.mxu0 0.0
  %7720 = vmatmul.mubr.f32.gmra.mxu0 %v5571
  %v7721 = vpop.f32.mrf.mxu0
  %v7722 = vadd.f32 %v7617, %v7721
  %v7723 = vpop.f32.mrf.mxu0
  %7724 = vmatprep.mubr.f32.mxu0 0.0
  %7725 = vmatmul.mubr.f32.gmra.mxu0 %v5572
  %v7726 = vpop.f32.mrf.mxu0
  %v7727 = vadd.f32 %v7622, %v7726
  %v7728 = vpop.f32.mrf.mxu0
  %7729 = vmatprep.mubr.f32.mxu0 0.0
  %7730 = vmatmul.mubr.f32.gmra.mxu0 %v5573
  %v7731 = vpop.f32.mrf.mxu0
  %v7732 = vadd.f32 %v7627, %v7731
  %v7733 = vpop.f32.mrf.mxu0
  %7734 = vmatprep.mubr.f32.mxu0 0.0
  %7735 = vmatmul.mubr.f32.gmra.mxu0 %v5574
  %v7736 = vpop.f32.mrf.mxu0
  %v7737 = vadd.f32 %v7632, %v7736
  %v7738 = vpop.f32.mrf.mxu0
  %7739 = vdwg.mxu0
  %s7740 = scalar_lea.vmem [#allocation2], 896
  %v7741 = vld [vmem:[%s7740] sm:$0xff]
  %v7742 = vld [vmem:[%s7740 + $0x8] sm:$0xff]
  %v7743 = vld [vmem:[%s7740 + $0x10] sm:$0xff]
  %v7744 = vld [vmem:[%s7740 + $0x18] sm:$0xff]
  %v7745 = vld [vmem:[%s7740 + $0x20] sm:$0xff]
  %v7746 = vld [vmem:[%s7740 + $0x28] sm:$0xff]
  %v7747 = vld [vmem:[%s7740 + $0x30] sm:$0xff]
  %v7748 = vld [vmem:[%s7740 + $0x38] sm:$0xff]
  %v7749 = vld [vmem:[%s7740 + $0x40] sm:$0xff]
  %v7750 = vld [vmem:[%s7740 + $0x48] sm:$0xff]
  %v7751 = vld [vmem:[%s7740 + $0x50] sm:$0xff]
  %v7752 = vld [vmem:[%s7740 + $0x58] sm:$0xff]
  %v7753 = vld [vmem:[%s7740 + $0x60] sm:$0xff]
  %v7754 = vld [vmem:[%s7740 + $0x68] sm:$0xff]
  %v7755 = vld [vmem:[%s7740 + $0x70] sm:$0xff]
  %v7756 = vld [vmem:[%s7740 + $0x78] sm:$0xff]
  %7757 = vmatprep.subr.mxu0 0.0
  %7758 = vmatpush1.msra.mxu0 %v7756
  %7759 = vmatprep.subr.mxu0 0.0
  %7760 = vmatpush1.msra.mxu0 %v7755
  %7761 = vmatprep.subr.mxu0 0.0
  %7762 = vmatpush1.msra.mxu0 %v7754
  %7763 = vmatprep.subr.mxu0 0.0
  %7764 = vmatpush1.msra.mxu0 %v7753
  %7765 = vmatprep.subr.mxu0 0.0
  %7766 = vmatpush1.msra.mxu0 %v7752
  %7767 = vmatprep.subr.mxu0 0.0
  %7768 = vmatpush1.msra.mxu0 %v7751
  %7769 = vmatprep.subr.mxu0 0.0
  %7770 = vmatpush1.msra.mxu0 %v7750
  %7771 = vmatprep.subr.mxu0 0.0
  %7772 = vmatpush1.msra.mxu0 %v7749
  %7773 = vmatprep.subr.mxu0 0.0
  %7774 = vmatpush1.msra.mxu0 %v7748
  %7775 = vmatprep.subr.mxu0 0.0
  %7776 = vmatpush1.msra.mxu0 %v7747
  %7777 = vmatprep.subr.mxu0 0.0
  %7778 = vmatpush1.msra.mxu0 %v7746
  %7779 = vmatprep.subr.mxu0 0.0
  %7780 = vmatpush1.msra.mxu0 %v7745
  %7781 = vmatprep.subr.mxu0 0.0
  %7782 = vmatpush1.msra.mxu0 %v7744
  %7783 = vmatprep.subr.mxu0 0.0
  %7784 = vmatpush1.msra.mxu0 %v7743
  %7785 = vmatprep.subr.mxu0 0.0
  %7786 = vmatpush1.msra.mxu0 %v7742
  %7787 = vmatprep.subr.mxu0 0.0
  %7788 = vmatpush1.msra.mxu0 %v7741
  %7789 = vmatprep.subr.mxu0 0.0
  %7790 = vmatpush2.msra.mxu0 0.0
  %7791 = vmatprep.subr.mxu0 0.0
  %7792 = vmatpush2.msra.mxu0 0.0
  %7793 = vmatprep.subr.mxu0 0.0
  %7794 = vmatpush2.msra.mxu0 0.0
  %7795 = vmatprep.subr.mxu0 0.0
  %7796 = vmatpush2.msra.mxu0 0.0
  %7797 = vmatprep.subr.mxu0 0.0
  %7798 = vmatpush2.msra.mxu0 0.0
  %7799 = vmatprep.subr.mxu0 0.0
  %7800 = vmatpush2.msra.mxu0 0.0
  %7801 = vmatprep.subr.mxu0 0.0
  %7802 = vmatpush2.msra.mxu0 0.0
  %7803 = vmatprep.subr.mxu0 0.0
  %7804 = vmatpush2.msra.mxu0 0.0
  %7805 = vmatprep.subr.mxu0 0.0
  %7806 = vmatpush2.msra.mxu0 0.0
  %7807 = vmatprep.subr.mxu0 0.0
  %7808 = vmatpush2.msra.mxu0 0.0
  %7809 = vmatprep.subr.mxu0 0.0
  %7810 = vmatpush2.msra.mxu0 0.0
  %7811 = vmatprep.subr.mxu0 0.0
  %7812 = vmatpush2.msra.mxu0 0.0
  %7813 = vmatprep.subr.mxu0 0.0
  %7814 = vmatpush2.msra.mxu0 0.0
  %7815 = vmatprep.subr.mxu0 0.0
  %7816 = vmatpush2.msra.mxu0 0.0
  %7817 = vmatprep.subr.mxu0 0.0
  %7818 = vmatpush2.msra.mxu0 0.0
  %7819 = vmatprep.subr.mxu0 0.0
  %7820 = vmatpush2.msra.mxu0 0.0
  %7821 = vmatprep.mubr.f32.mxu0 0.0
  %7822 = vmatmul.mubr.f32.gmra.mxu0 %v5585
  %v7823 = vpop.f32.mrf.mxu0
  %v7824 = vadd.f32 0.0, %v7823
  %v7825 = vpop.f32.mrf.mxu0
  %7826 = vmatprep.mubr.f32.mxu0 0.0
  %7827 = vmatmul.mubr.f32.gmra.mxu0 %v5586
  %v7828 = vpop.f32.mrf.mxu0
  %v7829 = vadd.f32 0.0, %v7828
  %v7830 = vpop.f32.mrf.mxu0
  %7831 = vmatprep.mubr.f32.mxu0 0.0
  %7832 = vmatmul.mubr.f32.gmra.mxu0 %v5587
  %v7833 = vpop.f32.mrf.mxu0
  %v7834 = vadd.f32 0.0, %v7833
  %v7835 = vpop.f32.mrf.mxu0
  %7836 = vmatprep.mubr.f32.mxu0 0.0
  %7837 = vmatmul.mubr.f32.gmra.mxu0 %v5588
  %v7838 = vpop.f32.mrf.mxu0
  %v7839 = vadd.f32 0.0, %v7838
  %v7840 = vpop.f32.mrf.mxu0
  %7841 = vmatprep.mubr.f32.mxu0 0.0
  %7842 = vmatmul.mubr.f32.gmra.mxu0 %v5589
  %v7843 = vpop.f32.mrf.mxu0
  %v7844 = vadd.f32 0.0, %v7843
  %v7845 = vpop.f32.mrf.mxu0
  %7846 = vmatprep.mubr.f32.mxu0 0.0
  %7847 = vmatmul.mubr.f32.gmra.mxu0 %v5590
  %v7848 = vpop.f32.mrf.mxu0
  %v7849 = vadd.f32 0.0, %v7848
  %v7850 = vpop.f32.mrf.mxu0
  %7851 = vmatprep.mubr.f32.mxu0 0.0
  %7852 = vmatmul.mubr.f32.gmra.mxu0 %v5591
  %v7853 = vpop.f32.mrf.mxu0
  %v7854 = vadd.f32 0.0, %v7853
  %v7855 = vpop.f32.mrf.mxu0
  %7856 = vmatprep.mubr.f32.mxu0 0.0
  %7857 = vmatmul.mubr.f32.gmra.mxu0 %v5592
  %v7858 = vpop.f32.mrf.mxu0
  %v7859 = vadd.f32 0.0, %v7858
  %v7860 = vpop.f32.mrf.mxu0
  %7861 = vdwg.mxu0
  %v7862 = vadd.f32 %v7702, %v7824
  %v7863 = vadd.f32 %v7707, %v7829
  %v7864 = vadd.f32 %v7712, %v7834
  %v7865 = vadd.f32 %v7717, %v7839
  %v7866 = vadd.f32 %v7722, %v7844
  %v7867 = vadd.f32 %v7727, %v7849
  %v7868 = vadd.f32 %v7732, %v7854
  %v7869 = vadd.f32 %v7737, %v7859
  %s7870 = scalar_lea.vmem %s2, 320
  %7871 = vst [vmem:[%s7870] sm:$0xff] %v7862
  %7872 = vst [vmem:[%s7870 + $0x8] sm:$0xff] %v7863
  %7873 = vst [vmem:[%s7870 + $0x10] sm:$0xff] %v7864
  %7874 = vst [vmem:[%s7870 + $0x18] sm:$0xff] %v7865
  %7875 = vst [vmem:[%s7870 + $0x20] sm:$0xff] %v7866
  %7876 = vst [vmem:[%s7870 + $0x28] sm:$0xff] %v7867
  %7877 = vst [vmem:[%s7870 + $0x30] sm:$0xff] %v7868
  %7878 = vst [vmem:[%s7870 + $0x38] sm:$0xff] %v7869
  %v7879 = vld [vmem:[%s2838] sm:$0xff]
  %v7880 = vld [vmem:[%s2838 + $0x8] sm:$0xff]
  %v7881 = vld [vmem:[%s2838 + $0x10] sm:$0xff]
  %v7882 = vld [vmem:[%s2838 + $0x18] sm:$0xff]
  %v7883 = vld [vmem:[%s2838 + $0x20] sm:$0xff]
  %v7884 = vld [vmem:[%s2838 + $0x28] sm:$0xff]
  %v7885 = vld [vmem:[%s2838 + $0x30] sm:$0xff]
  %v7886 = vld [vmem:[%s2838 + $0x38] sm:$0xff]
  %v7887 = vld [vmem:[%s2838 + $0x40] sm:$0xff]
  %v7888 = vld [vmem:[%s2838 + $0x48] sm:$0xff]
  %v7889 = vld [vmem:[%s2838 + $0x50] sm:$0xff]
  %v7890 = vld [vmem:[%s2838 + $0x58] sm:$0xff]
  %v7891 = vld [vmem:[%s2838 + $0x60] sm:$0xff]
  %v7892 = vld [vmem:[%s2838 + $0x68] sm:$0xff]
  %v7893 = vld [vmem:[%s2838 + $0x70] sm:$0xff]
  %v7894 = vld [vmem:[%s2838 + $0x78] sm:$0xff]
  %s7895 = scalar_lea.vmem [#allocation2], 1152
  %v7896 = vld [vmem:[%s7895] sm:$0xff]
  %v7897 = vld [vmem:[%s7895 + $0x8] sm:$0xff]
  %v7898 = vld [vmem:[%s7895 + $0x10] sm:$0xff]
  %v7899 = vld [vmem:[%s7895 + $0x18] sm:$0xff]
  %v7900 = vld [vmem:[%s7895 + $0x20] sm:$0xff]
  %v7901 = vld [vmem:[%s7895 + $0x28] sm:$0xff]
  %v7902 = vld [vmem:[%s7895 + $0x30] sm:$0xff]
  %v7903 = vld [vmem:[%s7895 + $0x38] sm:$0xff]
  %v7904 = vld [vmem:[%s7895 + $0x40] sm:$0xff]
  %v7905 = vld [vmem:[%s7895 + $0x48] sm:$0xff]
  %v7906 = vld [vmem:[%s7895 + $0x50] sm:$0xff]
  %v7907 = vld [vmem:[%s7895 + $0x58] sm:$0xff]
  %v7908 = vld [vmem:[%s7895 + $0x60] sm:$0xff]
  %v7909 = vld [vmem:[%s7895 + $0x68] sm:$0xff]
  %v7910 = vld [vmem:[%s7895 + $0x70] sm:$0xff]
  %v7911 = vld [vmem:[%s7895 + $0x78] sm:$0xff]
  %7912 = vmatprep.subr.mxu0 0.0
  %7913 = vmatpush1.msra.mxu0 %v7911
  %7914 = vmatprep.subr.mxu0 0.0
  %7915 = vmatpush1.msra.mxu0 %v7910
  %7916 = vmatprep.subr.mxu0 0.0
  %7917 = vmatpush1.msra.mxu0 %v7909
  %7918 = vmatprep.subr.mxu0 0.0
  %7919 = vmatpush1.msra.mxu0 %v7908
  %7920 = vmatprep.subr.mxu0 0.0
  %7921 = vmatpush1.msra.mxu0 %v7907
  %7922 = vmatprep.subr.mxu0 0.0
  %7923 = vmatpush1.msra.mxu0 %v7906
  %7924 = vmatprep.subr.mxu0 0.0
  %7925 = vmatpush1.msra.mxu0 %v7905
  %7926 = vmatprep.subr.mxu0 0.0
  %7927 = vmatpush1.msra.mxu0 %v7904
  %7928 = vmatprep.subr.mxu0 0.0
  %7929 = vmatpush1.msra.mxu0 %v7903
  %7930 = vmatprep.subr.mxu0 0.0
  %7931 = vmatpush1.msra.mxu0 %v7902
  %7932 = vmatprep.subr.mxu0 0.0
  %7933 = vmatpush1.msra.mxu0 %v7901
  %7934 = vmatprep.subr.mxu0 0.0
  %7935 = vmatpush1.msra.mxu0 %v7900
  %7936 = vmatprep.subr.mxu0 0.0
  %7937 = vmatpush1.msra.mxu0 %v7899
  %7938 = vmatprep.subr.mxu0 0.0
  %7939 = vmatpush1.msra.mxu0 %v7898
  %7940 = vmatprep.subr.mxu0 0.0
  %7941 = vmatpush1.msra.mxu0 %v7897
  %7942 = vmatprep.subr.mxu0 0.0
  %7943 = vmatpush1.msra.mxu0 %v7896
  %7944 = vmatprep.subr.mxu0 0.0
  %7945 = vmatpush2.msra.mxu0 0.0
  %7946 = vmatprep.subr.mxu0 0.0
  %7947 = vmatpush2.msra.mxu0 0.0
  %7948 = vmatprep.subr.mxu0 0.0
  %7949 = vmatpush2.msra.mxu0 0.0
  %7950 = vmatprep.subr.mxu0 0.0
  %7951 = vmatpush2.msra.mxu0 0.0
  %7952 = vmatprep.subr.mxu0 0.0
  %7953 = vmatpush2.msra.mxu0 0.0
  %7954 = vmatprep.subr.mxu0 0.0
  %7955 = vmatpush2.msra.mxu0 0.0
  %7956 = vmatprep.subr.mxu0 0.0
  %7957 = vmatpush2.msra.mxu0 0.0
  %7958 = vmatprep.subr.mxu0 0.0
  %7959 = vmatpush2.msra.mxu0 0.0
  %7960 = vmatprep.subr.mxu0 0.0
  %7961 = vmatpush2.msra.mxu0 0.0
  %7962 = vmatprep.subr.mxu0 0.0
  %7963 = vmatpush2.msra.mxu0 0.0
  %7964 = vmatprep.subr.mxu0 0.0
  %7965 = vmatpush2.msra.mxu0 0.0
  %7966 = vmatprep.subr.mxu0 0.0
  %7967 = vmatpush2.msra.mxu0 0.0
  %7968 = vmatprep.subr.mxu0 0.0
  %7969 = vmatpush2.msra.mxu0 0.0
  %7970 = vmatprep.subr.mxu0 0.0
  %7971 = vmatpush2.msra.mxu0 0.0
  %7972 = vmatprep.subr.mxu0 0.0
  %7973 = vmatpush2.msra.mxu0 0.0
  %7974 = vmatprep.subr.mxu0 0.0
  %7975 = vmatpush2.msra.mxu0 0.0
  %7976 = vmatprep.mubr.f32.mxu0 0.0
  %7977 = vmatmul.mubr.f32.gmra.mxu0 %v5576
  %v7978 = vpop.f32.mrf.mxu0
  %v7979 = vadd.f32 0.0, %v7978
  %v7980 = vpop.f32.mrf.mxu0
  %7981 = vmatprep.mubr.f32.mxu0 0.0
  %7982 = vmatmul.mubr.f32.gmra.mxu0 %v5577
  %v7983 = vpop.f32.mrf.mxu0
  %v7984 = vadd.f32 0.0, %v7983
  %v7985 = vpop.f32.mrf.mxu0
  %7986 = vmatprep.mubr.f32.mxu0 0.0
  %7987 = vmatmul.mubr.f32.gmra.mxu0 %v5578
  %v7988 = vpop.f32.mrf.mxu0
  %v7989 = vadd.f32 0.0, %v7988
  %v7990 = vpop.f32.mrf.mxu0
  %7991 = vmatprep.mubr.f32.mxu0 0.0
  %7992 = vmatmul.mubr.f32.gmra.mxu0 %v5579
  %v7993 = vpop.f32.mrf.mxu0
  %v7994 = vadd.f32 0.0, %v7993
  %v7995 = vpop.f32.mrf.mxu0
  %7996 = vmatprep.mubr.f32.mxu0 0.0
  %7997 = vmatmul.mubr.f32.gmra.mxu0 %v5580
  %v7998 = vpop.f32.mrf.mxu0
  %v7999 = vadd.f32 0.0, %v7998
  %v8000 = vpop.f32.mrf.mxu0
  %8001 = vmatprep.mubr.f32.mxu0 0.0
  %8002 = vmatmul.mubr.f32.gmra.mxu0 %v5581
  %v8003 = vpop.f32.mrf.mxu0
  %v8004 = vadd.f32 0.0, %v8003
  %v8005 = vpop.f32.mrf.mxu0
  %8006 = vmatprep.mubr.f32.mxu0 0.0
  %8007 = vmatmul.mubr.f32.gmra.mxu0 %v5582
  %v8008 = vpop.f32.mrf.mxu0
  %v8009 = vadd.f32 0.0, %v8008
  %v8010 = vpop.f32.mrf.mxu0
  %8011 = vmatprep.mubr.f32.mxu0 0.0
  %8012 = vmatmul.mubr.f32.gmra.mxu0 %v5583
  %v8013 = vpop.f32.mrf.mxu0
  %v8014 = vadd.f32 0.0, %v8013
  %v8015 = vpop.f32.mrf.mxu0
  %8016 = vdwg.mxu0
  %8017 = vmatprep.subr.mxu0 0.0
  %8018 = vmatpush1.msra.mxu0 %v7894
  %8019 = vmatprep.subr.mxu0 0.0
  %8020 = vmatpush1.msra.mxu0 %v7893
  %8021 = vmatprep.subr.mxu0 0.0
  %8022 = vmatpush1.msra.mxu0 %v7892
  %8023 = vmatprep.subr.mxu0 0.0
  %8024 = vmatpush1.msra.mxu0 %v7891
  %8025 = vmatprep.subr.mxu0 0.0
  %8026 = vmatpush1.msra.mxu0 %v7890
  %8027 = vmatprep.subr.mxu0 0.0
  %8028 = vmatpush1.msra.mxu0 %v7889
  %8029 = vmatprep.subr.mxu0 0.0
  %8030 = vmatpush1.msra.mxu0 %v7888
  %8031 = vmatprep.subr.mxu0 0.0
  %8032 = vmatpush1.msra.mxu0 %v7887
  %8033 = vmatprep.subr.mxu0 0.0
  %8034 = vmatpush1.msra.mxu0 %v7886
  %8035 = vmatprep.subr.mxu0 0.0
  %8036 = vmatpush1.msra.mxu0 %v7885
  %8037 = vmatprep.subr.mxu0 0.0
  %8038 = vmatpush1.msra.mxu0 %v7884
  %8039 = vmatprep.subr.mxu0 0.0
  %8040 = vmatpush1.msra.mxu0 %v7883
  %8041 = vmatprep.subr.mxu0 0.0
  %8042 = vmatpush1.msra.mxu0 %v7882
  %8043 = vmatprep.subr.mxu0 0.0
  %8044 = vmatpush1.msra.mxu0 %v7881
  %8045 = vmatprep.subr.mxu0 0.0
  %8046 = vmatpush1.msra.mxu0 %v7880
  %8047 = vmatprep.subr.mxu0 0.0
  %8048 = vmatpush1.msra.mxu0 %v7879
  %8049 = vmatprep.subr.mxu0 0.0
  %8050 = vmatpush2.msra.mxu0 0.0
  %8051 = vmatprep.subr.mxu0 0.0
  %8052 = vmatpush2.msra.mxu0 0.0
  %8053 = vmatprep.subr.mxu0 0.0
  %8054 = vmatpush2.msra.mxu0 0.0
  %8055 = vmatprep.subr.mxu0 0.0
  %8056 = vmatpush2.msra.mxu0 0.0
  %8057 = vmatprep.subr.mxu0 0.0
  %8058 = vmatpush2.msra.mxu0 0.0
  %8059 = vmatprep.subr.mxu0 0.0
  %8060 = vmatpush2.msra.mxu0 0.0
  %8061 = vmatprep.subr.mxu0 0.0
  %8062 = vmatpush2.msra.mxu0 0.0
  %8063 = vmatprep.subr.mxu0 0.0
  %8064 = vmatpush2.msra.mxu0 0.0
  %8065 = vmatprep.subr.mxu0 0.0
  %8066 = vmatpush2.msra.mxu0 0.0
  %8067 = vmatprep.subr.mxu0 0.0
  %8068 = vmatpush2.msra.mxu0 0.0
  %8069 = vmatprep.subr.mxu0 0.0
  %8070 = vmatpush2.msra.mxu0 0.0
  %8071 = vmatprep.subr.mxu0 0.0
  %8072 = vmatpush2.msra.mxu0 0.0
  %8073 = vmatprep.subr.mxu0 0.0
  %8074 = vmatpush2.msra.mxu0 0.0
  %8075 = vmatprep.subr.mxu0 0.0
  %8076 = vmatpush2.msra.mxu0 0.0
  %8077 = vmatprep.subr.mxu0 0.0
  %8078 = vmatpush2.msra.mxu0 0.0
  %8079 = vmatprep.subr.mxu0 0.0
  %8080 = vmatpush2.msra.mxu0 0.0
  %8081 = vmatprep.mubr.f32.mxu0 0.0
  %8082 = vmatmul.mubr.f32.gmra.mxu0 %v5567
  %v8083 = vpop.f32.mrf.mxu0
  %v8084 = vadd.f32 %v7979, %v8083
  %v8085 = vpop.f32.mrf.mxu0
  %8086 = vmatprep.mubr.f32.mxu0 0.0
  %8087 = vmatmul.mubr.f32.gmra.mxu0 %v5568
  %v8088 = vpop.f32.mrf.mxu0
  %v8089 = vadd.f32 %v7984, %v8088
  %v8090 = vpop.f32.mrf.mxu0
  %8091 = vmatprep.mubr.f32.mxu0 0.0
  %8092 = vmatmul.mubr.f32.gmra.mxu0 %v5569
  %v8093 = vpop.f32.mrf.mxu0
  %v8094 = vadd.f32 %v7989, %v8093
  %v8095 = vpop.f32.mrf.mxu0
  %8096 = vmatprep.mubr.f32.mxu0 0.0
  %8097 = vmatmul.mubr.f32.gmra.mxu0 %v5570
  %v8098 = vpop.f32.mrf.mxu0
  %v8099 = vadd.f32 %v7994, %v8098
  %v8100 = vpop.f32.mrf.mxu0
  %8101 = vmatprep.mubr.f32.mxu0 0.0
  %8102 = vmatmul.mubr.f32.gmra.mxu0 %v5571
  %v8103 = vpop.f32.mrf.mxu0
  %v8104 = vadd.f32 %v7999, %v8103
  %v8105 = vpop.f32.mrf.mxu0
  %8106 = vmatprep.mubr.f32.mxu0 0.0
  %8107 = vmatmul.mubr.f32.gmra.mxu0 %v5572
  %v8108 = vpop.f32.mrf.mxu0
  %v8109 = vadd.f32 %v8004, %v8108
  %v8110 = vpop.f32.mrf.mxu0
  %8111 = vmatprep.mubr.f32.mxu0 0.0
  %8112 = vmatmul.mubr.f32.gmra.mxu0 %v5573
  %v8113 = vpop.f32.mrf.mxu0
  %v8114 = vadd.f32 %v8009, %v8113
  %v8115 = vpop.f32.mrf.mxu0
  %8116 = vmatprep.mubr.f32.mxu0 0.0
  %8117 = vmatmul.mubr.f32.gmra.mxu0 %v5574
  %v8118 = vpop.f32.mrf.mxu0
  %v8119 = vadd.f32 %v8014, %v8118
  %v8120 = vpop.f32.mrf.mxu0
  %8121 = vdwg.mxu0
  %s8122 = scalar_lea.vmem [#allocation2], 1280
  %v8123 = vld [vmem:[%s8122] sm:$0xff]
  %v8124 = vld [vmem:[%s8122 + $0x8] sm:$0xff]
  %v8125 = vld [vmem:[%s8122 + $0x10] sm:$0xff]
  %v8126 = vld [vmem:[%s8122 + $0x18] sm:$0xff]
  %v8127 = vld [vmem:[%s8122 + $0x20] sm:$0xff]
  %v8128 = vld [vmem:[%s8122 + $0x28] sm:$0xff]
  %v8129 = vld [vmem:[%s8122 + $0x30] sm:$0xff]
  %v8130 = vld [vmem:[%s8122 + $0x38] sm:$0xff]
  %v8131 = vld [vmem:[%s8122 + $0x40] sm:$0xff]
  %v8132 = vld [vmem:[%s8122 + $0x48] sm:$0xff]
  %v8133 = vld [vmem:[%s8122 + $0x50] sm:$0xff]
  %v8134 = vld [vmem:[%s8122 + $0x58] sm:$0xff]
  %v8135 = vld [vmem:[%s8122 + $0x60] sm:$0xff]
  %v8136 = vld [vmem:[%s8122 + $0x68] sm:$0xff]
  %v8137 = vld [vmem:[%s8122 + $0x70] sm:$0xff]
  %v8138 = vld [vmem:[%s8122 + $0x78] sm:$0xff]
  %8139 = vmatprep.subr.mxu0 0.0
  %8140 = vmatpush1.msra.mxu0 %v8138
  %8141 = vmatprep.subr.mxu0 0.0
  %8142 = vmatpush1.msra.mxu0 %v8137
  %8143 = vmatprep.subr.mxu0 0.0
  %8144 = vmatpush1.msra.mxu0 %v8136
  %8145 = vmatprep.subr.mxu0 0.0
  %8146 = vmatpush1.msra.mxu0 %v8135
  %8147 = vmatprep.subr.mxu0 0.0
  %8148 = vmatpush1.msra.mxu0 %v8134
  %8149 = vmatprep.subr.mxu0 0.0
  %8150 = vmatpush1.msra.mxu0 %v8133
  %8151 = vmatprep.subr.mxu0 0.0
  %8152 = vmatpush1.msra.mxu0 %v8132
  %8153 = vmatprep.subr.mxu0 0.0
  %8154 = vmatpush1.msra.mxu0 %v8131
  %8155 = vmatprep.subr.mxu0 0.0
  %8156 = vmatpush1.msra.mxu0 %v8130
  %8157 = vmatprep.subr.mxu0 0.0
  %8158 = vmatpush1.msra.mxu0 %v8129
  %8159 = vmatprep.subr.mxu0 0.0
  %8160 = vmatpush1.msra.mxu0 %v8128
  %8161 = vmatprep.subr.mxu0 0.0
  %8162 = vmatpush1.msra.mxu0 %v8127
  %8163 = vmatprep.subr.mxu0 0.0
  %8164 = vmatpush1.msra.mxu0 %v8126
  %8165 = vmatprep.subr.mxu0 0.0
  %8166 = vmatpush1.msra.mxu0 %v8125
  %8167 = vmatprep.subr.mxu0 0.0
  %8168 = vmatpush1.msra.mxu0 %v8124
  %8169 = vmatprep.subr.mxu0 0.0
  %8170 = vmatpush1.msra.mxu0 %v8123
  %8171 = vmatprep.subr.mxu0 0.0
  %8172 = vmatpush2.msra.mxu0 0.0
  %8173 = vmatprep.subr.mxu0 0.0
  %8174 = vmatpush2.msra.mxu0 0.0
  %8175 = vmatprep.subr.mxu0 0.0
  %8176 = vmatpush2.msra.mxu0 0.0
  %8177 = vmatprep.subr.mxu0 0.0
  %8178 = vmatpush2.msra.mxu0 0.0
  %8179 = vmatprep.subr.mxu0 0.0
  %8180 = vmatpush2.msra.mxu0 0.0
  %8181 = vmatprep.subr.mxu0 0.0
  %8182 = vmatpush2.msra.mxu0 0.0
  %8183 = vmatprep.subr.mxu0 0.0
  %8184 = vmatpush2.msra.mxu0 0.0
  %8185 = vmatprep.subr.mxu0 0.0
  %8186 = vmatpush2.msra.mxu0 0.0
  %8187 = vmatprep.subr.mxu0 0.0
  %8188 = vmatpush2.msra.mxu0 0.0
  %8189 = vmatprep.subr.mxu0 0.0
  %8190 = vmatpush2.msra.mxu0 0.0
  %8191 = vmatprep.subr.mxu0 0.0
  %8192 = vmatpush2.msra.mxu0 0.0
  %8193 = vmatprep.subr.mxu0 0.0
  %8194 = vmatpush2.msra.mxu0 0.0
  %8195 = vmatprep.subr.mxu0 0.0
  %8196 = vmatpush2.msra.mxu0 0.0
  %8197 = vmatprep.subr.mxu0 0.0
  %8198 = vmatpush2.msra.mxu0 0.0
  %8199 = vmatprep.subr.mxu0 0.0
  %8200 = vmatpush2.msra.mxu0 0.0
  %8201 = vmatprep.subr.mxu0 0.0
  %8202 = vmatpush2.msra.mxu0 0.0
  %8203 = vmatprep.mubr.f32.mxu0 0.0
  %8204 = vmatmul.mubr.f32.gmra.mxu0 %v5585
  %v8205 = vpop.f32.mrf.mxu0
  %v8206 = vadd.f32 0.0, %v8205
  %v8207 = vpop.f32.mrf.mxu0
  %8208 = vmatprep.mubr.f32.mxu0 0.0
  %8209 = vmatmul.mubr.f32.gmra.mxu0 %v5586
  %v8210 = vpop.f32.mrf.mxu0
  %v8211 = vadd.f32 0.0, %v8210
  %v8212 = vpop.f32.mrf.mxu0
  %8213 = vmatprep.mubr.f32.mxu0 0.0
  %8214 = vmatmul.mubr.f32.gmra.mxu0 %v5587
  %v8215 = vpop.f32.mrf.mxu0
  %v8216 = vadd.f32 0.0, %v8215
  %v8217 = vpop.f32.mrf.mxu0
  %8218 = vmatprep.mubr.f32.mxu0 0.0
  %8219 = vmatmul.mubr.f32.gmra.mxu0 %v5588
  %v8220 = vpop.f32.mrf.mxu0
  %v8221 = vadd.f32 0.0, %v8220
  %v8222 = vpop.f32.mrf.mxu0
  %8223 = vmatprep.mubr.f32.mxu0 0.0
  %8224 = vmatmul.mubr.f32.gmra.mxu0 %v5589
  %v8225 = vpop.f32.mrf.mxu0
  %v8226 = vadd.f32 0.0, %v8225
  %v8227 = vpop.f32.mrf.mxu0
  %8228 = vmatprep.mubr.f32.mxu0 0.0
  %8229 = vmatmul.mubr.f32.gmra.mxu0 %v5590
  %v8230 = vpop.f32.mrf.mxu0
  %v8231 = vadd.f32 0.0, %v8230
  %v8232 = vpop.f32.mrf.mxu0
  %8233 = vmatprep.mubr.f32.mxu0 0.0
  %8234 = vmatmul.mubr.f32.gmra.mxu0 %v5591
  %v8235 = vpop.f32.mrf.mxu0
  %v8236 = vadd.f32 0.0, %v8235
  %v8237 = vpop.f32.mrf.mxu0
  %8238 = vmatprep.mubr.f32.mxu0 0.0
  %8239 = vmatmul.mubr.f32.gmra.mxu0 %v5592
  %v8240 = vpop.f32.mrf.mxu0
  %v8241 = vadd.f32 0.0, %v8240
  %v8242 = vpop.f32.mrf.mxu0
  %8243 = vdwg.mxu0
  %v8244 = vadd.f32 %v8084, %v8206
  %v8245 = vadd.f32 %v8089, %v8211
  %v8246 = vadd.f32 %v8094, %v8216
  %v8247 = vadd.f32 %v8099, %v8221
  %v8248 = vadd.f32 %v8104, %v8226
  %v8249 = vadd.f32 %v8109, %v8231
  %v8250 = vadd.f32 %v8114, %v8236
  %v8251 = vadd.f32 %v8119, %v8241
  %s8252 = scalar_lea.vmem %s2, 384
  %8253 = vst [vmem:[%s8252] sm:$0xff] %v8244
  %8254 = vst [vmem:[%s8252 + $0x8] sm:$0xff] %v8245
  %8255 = vst [vmem:[%s8252 + $0x10] sm:$0xff] %v8246
  %8256 = vst [vmem:[%s8252 + $0x18] sm:$0xff] %v8247
  %8257 = vst [vmem:[%s8252 + $0x20] sm:$0xff] %v8248
  %8258 = vst [vmem:[%s8252 + $0x28] sm:$0xff] %v8249
  %8259 = vst [vmem:[%s8252 + $0x30] sm:$0xff] %v8250
  %8260 = vst [vmem:[%s8252 + $0x38] sm:$0xff] %v8251
  %v8261 = vld [vmem:[%s7895] sm:$0xff]
  %v8262 = vld [vmem:[%s7895 + $0x8] sm:$0xff]
  %v8263 = vld [vmem:[%s7895 + $0x10] sm:$0xff]
  %v8264 = vld [vmem:[%s7895 + $0x18] sm:$0xff]
  %v8265 = vld [vmem:[%s7895 + $0x20] sm:$0xff]
  %v8266 = vld [vmem:[%s7895 + $0x28] sm:$0xff]
  %v8267 = vld [vmem:[%s7895 + $0x30] sm:$0xff]
  %v8268 = vld [vmem:[%s7895 + $0x38] sm:$0xff]
  %v8269 = vld [vmem:[%s7895 + $0x40] sm:$0xff]
  %v8270 = vld [vmem:[%s7895 + $0x48] sm:$0xff]
  %v8271 = vld [vmem:[%s7895 + $0x50] sm:$0xff]
  %v8272 = vld [vmem:[%s7895 + $0x58] sm:$0xff]
  %v8273 = vld [vmem:[%s7895 + $0x60] sm:$0xff]
  %v8274 = vld [vmem:[%s7895 + $0x68] sm:$0xff]
  %v8275 = vld [vmem:[%s7895 + $0x70] sm:$0xff]
  %v8276 = vld [vmem:[%s7895 + $0x78] sm:$0xff]
  %v8277 = vld [vmem:[%s8122] sm:$0xff]
  %v8278 = vld [vmem:[%s8122 + $0x8] sm:$0xff]
  %v8279 = vld [vmem:[%s8122 + $0x10] sm:$0xff]
  %v8280 = vld [vmem:[%s8122 + $0x18] sm:$0xff]
  %v8281 = vld [vmem:[%s8122 + $0x20] sm:$0xff]
  %v8282 = vld [vmem:[%s8122 + $0x28] sm:$0xff]
  %v8283 = vld [vmem:[%s8122 + $0x30] sm:$0xff]
  %v8284 = vld [vmem:[%s8122 + $0x38] sm:$0xff]
  %v8285 = vld [vmem:[%s8122 + $0x40] sm:$0xff]
  %v8286 = vld [vmem:[%s8122 + $0x48] sm:$0xff]
  %v8287 = vld [vmem:[%s8122 + $0x50] sm:$0xff]
  %v8288 = vld [vmem:[%s8122 + $0x58] sm:$0xff]
  %v8289 = vld [vmem:[%s8122 + $0x60] sm:$0xff]
  %v8290 = vld [vmem:[%s8122 + $0x68] sm:$0xff]
  %v8291 = vld [vmem:[%s8122 + $0x70] sm:$0xff]
  %v8292 = vld [vmem:[%s8122 + $0x78] sm:$0xff]
  %8293 = vmatprep.subr.mxu0 0.0
  %8294 = vmatpush1.msra.mxu0 %v8292
  %8295 = vmatprep.subr.mxu0 0.0
  %8296 = vmatpush1.msra.mxu0 %v8291
  %8297 = vmatprep.subr.mxu0 0.0
  %8298 = vmatpush1.msra.mxu0 %v8290
  %8299 = vmatprep.subr.mxu0 0.0
  %8300 = vmatpush1.msra.mxu0 %v8289
  %8301 = vmatprep.subr.mxu0 0.0
  %8302 = vmatpush1.msra.mxu0 %v8288
  %8303 = vmatprep.subr.mxu0 0.0
  %8304 = vmatpush1.msra.mxu0 %v8287
  %8305 = vmatprep.subr.mxu0 0.0
  %8306 = vmatpush1.msra.mxu0 %v8286
  %8307 = vmatprep.subr.mxu0 0.0
  %8308 = vmatpush1.msra.mxu0 %v8285
  %8309 = vmatprep.subr.mxu0 0.0
  %8310 = vmatpush1.msra.mxu0 %v8284
  %8311 = vmatprep.subr.mxu0 0.0
  %8312 = vmatpush1.msra.mxu0 %v8283
  %8313 = vmatprep.subr.mxu0 0.0
  %8314 = vmatpush1.msra.mxu0 %v8282
  %8315 = vmatprep.subr.mxu0 0.0
  %8316 = vmatpush1.msra.mxu0 %v8281
  %8317 = vmatprep.subr.mxu0 0.0
  %8318 = vmatpush1.msra.mxu0 %v8280
  %8319 = vmatprep.subr.mxu0 0.0
  %8320 = vmatpush1.msra.mxu0 %v8279
  %8321 = vmatprep.subr.mxu0 0.0
  %8322 = vmatpush1.msra.mxu0 %v8278
  %8323 = vmatprep.subr.mxu0 0.0
  %8324 = vmatpush1.msra.mxu0 %v8277
  %8325 = vmatprep.subr.mxu0 0.0
  %8326 = vmatpush2.msra.mxu0 0.0
  %8327 = vmatprep.subr.mxu0 0.0
  %8328 = vmatpush2.msra.mxu0 0.0
  %8329 = vmatprep.subr.mxu0 0.0
  %8330 = vmatpush2.msra.mxu0 0.0
  %8331 = vmatprep.subr.mxu0 0.0
  %8332 = vmatpush2.msra.mxu0 0.0
  %8333 = vmatprep.subr.mxu0 0.0
  %8334 = vmatpush2.msra.mxu0 0.0
  %8335 = vmatprep.subr.mxu0 0.0
  %8336 = vmatpush2.msra.mxu0 0.0
  %8337 = vmatprep.subr.mxu0 0.0
  %8338 = vmatpush2.msra.mxu0 0.0
  %8339 = vmatprep.subr.mxu0 0.0
  %8340 = vmatpush2.msra.mxu0 0.0
  %8341 = vmatprep.subr.mxu0 0.0
  %8342 = vmatpush2.msra.mxu0 0.0
  %8343 = vmatprep.subr.mxu0 0.0
  %8344 = vmatpush2.msra.mxu0 0.0
  %8345 = vmatprep.subr.mxu0 0.0
  %8346 = vmatpush2.msra.mxu0 0.0
  %8347 = vmatprep.subr.mxu0 0.0
  %8348 = vmatpush2.msra.mxu0 0.0
  %8349 = vmatprep.subr.mxu0 0.0
  %8350 = vmatpush2.msra.mxu0 0.0
  %8351 = vmatprep.subr.mxu0 0.0
  %8352 = vmatpush2.msra.mxu0 0.0
  %8353 = vmatprep.subr.mxu0 0.0
  %8354 = vmatpush2.msra.mxu0 0.0
  %8355 = vmatprep.subr.mxu0 0.0
  %8356 = vmatpush2.msra.mxu0 0.0
  %8357 = vmatprep.mubr.f32.mxu0 0.0
  %8358 = vmatmul.mubr.f32.gmra.mxu0 %v5576
  %v8359 = vpop.f32.mrf.mxu0
  %v8360 = vadd.f32 0.0, %v8359
  %v8361 = vpop.f32.mrf.mxu0
  %8362 = vmatprep.mubr.f32.mxu0 0.0
  %8363 = vmatmul.mubr.f32.gmra.mxu0 %v5577
  %v8364 = vpop.f32.mrf.mxu0
  %v8365 = vadd.f32 0.0, %v8364
  %v8366 = vpop.f32.mrf.mxu0
  %8367 = vmatprep.mubr.f32.mxu0 0.0
  %8368 = vmatmul.mubr.f32.gmra.mxu0 %v5578
  %v8369 = vpop.f32.mrf.mxu0
  %v8370 = vadd.f32 0.0, %v8369
  %v8371 = vpop.f32.mrf.mxu0
  %8372 = vmatprep.mubr.f32.mxu0 0.0
  %8373 = vmatmul.mubr.f32.gmra.mxu0 %v5579
  %v8374 = vpop.f32.mrf.mxu0
  %v8375 = vadd.f32 0.0, %v8374
  %v8376 = vpop.f32.mrf.mxu0
  %8377 = vmatprep.mubr.f32.mxu0 0.0
  %8378 = vmatmul.mubr.f32.gmra.mxu0 %v5580
  %v8379 = vpop.f32.mrf.mxu0
  %v8380 = vadd.f32 0.0, %v8379
  %v8381 = vpop.f32.mrf.mxu0
  %8382 = vmatprep.mubr.f32.mxu0 0.0
  %8383 = vmatmul.mubr.f32.gmra.mxu0 %v5581
  %v8384 = vpop.f32.mrf.mxu0
  %v8385 = vadd.f32 0.0, %v8384
  %v8386 = vpop.f32.mrf.mxu0
  %8387 = vmatprep.mubr.f32.mxu0 0.0
  %8388 = vmatmul.mubr.f32.gmra.mxu0 %v5582
  %v8389 = vpop.f32.mrf.mxu0
  %v8390 = vadd.f32 0.0, %v8389
  %v8391 = vpop.f32.mrf.mxu0
  %8392 = vmatprep.mubr.f32.mxu0 0.0
  %8393 = vmatmul.mubr.f32.gmra.mxu0 %v5583
  %v8394 = vpop.f32.mrf.mxu0
  %v8395 = vadd.f32 0.0, %v8394
  %v8396 = vpop.f32.mrf.mxu0
  %8397 = vdwg.mxu0
  %8398 = vmatprep.subr.mxu0 0.0
  %8399 = vmatpush1.msra.mxu0 %v8276
  %8400 = vmatprep.subr.mxu0 0.0
  %8401 = vmatpush1.msra.mxu0 %v8275
  %8402 = vmatprep.subr.mxu0 0.0
  %8403 = vmatpush1.msra.mxu0 %v8274
  %8404 = vmatprep.subr.mxu0 0.0
  %8405 = vmatpush1.msra.mxu0 %v8273
  %8406 = vmatprep.subr.mxu0 0.0
  %8407 = vmatpush1.msra.mxu0 %v8272
  %8408 = vmatprep.subr.mxu0 0.0
  %8409 = vmatpush1.msra.mxu0 %v8271
  %8410 = vmatprep.subr.mxu0 0.0
  %8411 = vmatpush1.msra.mxu0 %v8270
  %8412 = vmatprep.subr.mxu0 0.0
  %8413 = vmatpush1.msra.mxu0 %v8269
  %8414 = vmatprep.subr.mxu0 0.0
  %8415 = vmatpush1.msra.mxu0 %v8268
  %8416 = vmatprep.subr.mxu0 0.0
  %8417 = vmatpush1.msra.mxu0 %v8267
  %8418 = vmatprep.subr.mxu0 0.0
  %8419 = vmatpush1.msra.mxu0 %v8266
  %8420 = vmatprep.subr.mxu0 0.0
  %8421 = vmatpush1.msra.mxu0 %v8265
  %8422 = vmatprep.subr.mxu0 0.0
  %8423 = vmatpush1.msra.mxu0 %v8264
  %8424 = vmatprep.subr.mxu0 0.0
  %8425 = vmatpush1.msra.mxu0 %v8263
  %8426 = vmatprep.subr.mxu0 0.0
  %8427 = vmatpush1.msra.mxu0 %v8262
  %8428 = vmatprep.subr.mxu0 0.0
  %8429 = vmatpush1.msra.mxu0 %v8261
  %8430 = vmatprep.subr.mxu0 0.0
  %8431 = vmatpush2.msra.mxu0 0.0
  %8432 = vmatprep.subr.mxu0 0.0
  %8433 = vmatpush2.msra.mxu0 0.0
  %8434 = vmatprep.subr.mxu0 0.0
  %8435 = vmatpush2.msra.mxu0 0.0
  %8436 = vmatprep.subr.mxu0 0.0
  %8437 = vmatpush2.msra.mxu0 0.0
  %8438 = vmatprep.subr.mxu0 0.0
  %8439 = vmatpush2.msra.mxu0 0.0
  %8440 = vmatprep.subr.mxu0 0.0
  %8441 = vmatpush2.msra.mxu0 0.0
  %8442 = vmatprep.subr.mxu0 0.0
  %8443 = vmatpush2.msra.mxu0 0.0
  %8444 = vmatprep.subr.mxu0 0.0
  %8445 = vmatpush2.msra.mxu0 0.0
  %8446 = vmatprep.subr.mxu0 0.0
  %8447 = vmatpush2.msra.mxu0 0.0
  %8448 = vmatprep.subr.mxu0 0.0
  %8449 = vmatpush2.msra.mxu0 0.0
  %8450 = vmatprep.subr.mxu0 0.0
  %8451 = vmatpush2.msra.mxu0 0.0
  %8452 = vmatprep.subr.mxu0 0.0
  %8453 = vmatpush2.msra.mxu0 0.0
  %8454 = vmatprep.subr.mxu0 0.0
  %8455 = vmatpush2.msra.mxu0 0.0
  %8456 = vmatprep.subr.mxu0 0.0
  %8457 = vmatpush2.msra.mxu0 0.0
  %8458 = vmatprep.subr.mxu0 0.0
  %8459 = vmatpush2.msra.mxu0 0.0
  %8460 = vmatprep.subr.mxu0 0.0
  %8461 = vmatpush2.msra.mxu0 0.0
  %8462 = vmatprep.mubr.f32.mxu0 0.0
  %8463 = vmatmul.mubr.f32.gmra.mxu0 %v5567
  %v8464 = vpop.f32.mrf.mxu0
  %v8465 = vadd.f32 %v8360, %v8464
  %v8466 = vpop.f32.mrf.mxu0
  %8467 = vmatprep.mubr.f32.mxu0 0.0
  %8468 = vmatmul.mubr.f32.gmra.mxu0 %v5568
  %v8469 = vpop.f32.mrf.mxu0
  %v8470 = vadd.f32 %v8365, %v8469
  %v8471 = vpop.f32.mrf.mxu0
  %8472 = vmatprep.mubr.f32.mxu0 0.0
  %8473 = vmatmul.mubr.f32.gmra.mxu0 %v5569
  %v8474 = vpop.f32.mrf.mxu0
  %v8475 = vadd.f32 %v8370, %v8474
  %v8476 = vpop.f32.mrf.mxu0
  %8477 = vmatprep.mubr.f32.mxu0 0.0
  %8478 = vmatmul.mubr.f32.gmra.mxu0 %v5570
  %v8479 = vpop.f32.mrf.mxu0
  %v8480 = vadd.f32 %v8375, %v8479
  %v8481 = vpop.f32.mrf.mxu0
  %8482 = vmatprep.mubr.f32.mxu0 0.0
  %8483 = vmatmul.mubr.f32.gmra.mxu0 %v5571
  %v8484 = vpop.f32.mrf.mxu0
  %v8485 = vadd.f32 %v8380, %v8484
  %v8486 = vpop.f32.mrf.mxu0
  %8487 = vmatprep.mubr.f32.mxu0 0.0
  %8488 = vmatmul.mubr.f32.gmra.mxu0 %v5572
  %v8489 = vpop.f32.mrf.mxu0
  %v8490 = vadd.f32 %v8385, %v8489
  %v8491 = vpop.f32.mrf.mxu0
  %8492 = vmatprep.mubr.f32.mxu0 0.0
  %8493 = vmatmul.mubr.f32.gmra.mxu0 %v5573
  %v8494 = vpop.f32.mrf.mxu0
  %v8495 = vadd.f32 %v8390, %v8494
  %v8496 = vpop.f32.mrf.mxu0
  %8497 = vmatprep.mubr.f32.mxu0 0.0
  %8498 = vmatmul.mubr.f32.gmra.mxu0 %v5574
  %v8499 = vpop.f32.mrf.mxu0
  %v8500 = vadd.f32 %v8395, %v8499
  %v8501 = vpop.f32.mrf.mxu0
  %8502 = vdwg.mxu0
  %s8503 = scalar_lea.vmem [#allocation2], 1408
  %v8504 = vld [vmem:[%s8503] sm:$0xff]
  %v8505 = vld [vmem:[%s8503 + $0x8] sm:$0xff]
  %v8506 = vld [vmem:[%s8503 + $0x10] sm:$0xff]
  %v8507 = vld [vmem:[%s8503 + $0x18] sm:$0xff]
  %v8508 = vld [vmem:[%s8503 + $0x20] sm:$0xff]
  %v8509 = vld [vmem:[%s8503 + $0x28] sm:$0xff]
  %v8510 = vld [vmem:[%s8503 + $0x30] sm:$0xff]
  %v8511 = vld [vmem:[%s8503 + $0x38] sm:$0xff]
  %v8512 = vld [vmem:[%s8503 + $0x40] sm:$0xff]
  %v8513 = vld [vmem:[%s8503 + $0x48] sm:$0xff]
  %v8514 = vld [vmem:[%s8503 + $0x50] sm:$0xff]
  %v8515 = vld [vmem:[%s8503 + $0x58] sm:$0xff]
  %v8516 = vld [vmem:[%s8503 + $0x60] sm:$0xff]
  %v8517 = vld [vmem:[%s8503 + $0x68] sm:$0xff]
  %v8518 = vld [vmem:[%s8503 + $0x70] sm:$0xff]
  %v8519 = vld [vmem:[%s8503 + $0x78] sm:$0xff]
  %8520 = vmatprep.subr.mxu0 0.0
  %8521 = vmatpush1.msra.mxu0 %v8519
  %8522 = vmatprep.subr.mxu0 0.0
  %8523 = vmatpush1.msra.mxu0 %v8518
  %8524 = vmatprep.subr.mxu0 0.0
  %8525 = vmatpush1.msra.mxu0 %v8517
  %8526 = vmatprep.subr.mxu0 0.0
  %8527 = vmatpush1.msra.mxu0 %v8516
  %8528 = vmatprep.subr.mxu0 0.0
  %8529 = vmatpush1.msra.mxu0 %v8515
  %8530 = vmatprep.subr.mxu0 0.0
  %8531 = vmatpush1.msra.mxu0 %v8514
  %8532 = vmatprep.subr.mxu0 0.0
  %8533 = vmatpush1.msra.mxu0 %v8513
  %8534 = vmatprep.subr.mxu0 0.0
  %8535 = vmatpush1.msra.mxu0 %v8512
  %8536 = vmatprep.subr.mxu0 0.0
  %8537 = vmatpush1.msra.mxu0 %v8511
  %8538 = vmatprep.subr.mxu0 0.0
  %8539 = vmatpush1.msra.mxu0 %v8510
  %8540 = vmatprep.subr.mxu0 0.0
  %8541 = vmatpush1.msra.mxu0 %v8509
  %8542 = vmatprep.subr.mxu0 0.0
  %8543 = vmatpush1.msra.mxu0 %v8508
  %8544 = vmatprep.subr.mxu0 0.0
  %8545 = vmatpush1.msra.mxu0 %v8507
  %8546 = vmatprep.subr.mxu0 0.0
  %8547 = vmatpush1.msra.mxu0 %v8506
  %8548 = vmatprep.subr.mxu0 0.0
  %8549 = vmatpush1.msra.mxu0 %v8505
  %8550 = vmatprep.subr.mxu0 0.0
  %8551 = vmatpush1.msra.mxu0 %v8504
  %8552 = vmatprep.subr.mxu0 0.0
  %8553 = vmatpush2.msra.mxu0 0.0
  %8554 = vmatprep.subr.mxu0 0.0
  %8555 = vmatpush2.msra.mxu0 0.0
  %8556 = vmatprep.subr.mxu0 0.0
  %8557 = vmatpush2.msra.mxu0 0.0
  %8558 = vmatprep.subr.mxu0 0.0
  %8559 = vmatpush2.msra.mxu0 0.0
  %8560 = vmatprep.subr.mxu0 0.0
  %8561 = vmatpush2.msra.mxu0 0.0
  %8562 = vmatprep.subr.mxu0 0.0
  %8563 = vmatpush2.msra.mxu0 0.0
  %8564 = vmatprep.subr.mxu0 0.0
  %8565 = vmatpush2.msra.mxu0 0.0
  %8566 = vmatprep.subr.mxu0 0.0
  %8567 = vmatpush2.msra.mxu0 0.0
  %8568 = vmatprep.subr.mxu0 0.0
  %8569 = vmatpush2.msra.mxu0 0.0
  %8570 = vmatprep.subr.mxu0 0.0
  %8571 = vmatpush2.msra.mxu0 0.0
  %8572 = vmatprep.subr.mxu0 0.0
  %8573 = vmatpush2.msra.mxu0 0.0
  %8574 = vmatprep.subr.mxu0 0.0
  %8575 = vmatpush2.msra.mxu0 0.0
  %8576 = vmatprep.subr.mxu0 0.0
  %8577 = vmatpush2.msra.mxu0 0.0
  %8578 = vmatprep.subr.mxu0 0.0
  %8579 = vmatpush2.msra.mxu0 0.0
  %8580 = vmatprep.subr.mxu0 0.0
  %8581 = vmatpush2.msra.mxu0 0.0
  %8582 = vmatprep.subr.mxu0 0.0
  %8583 = vmatpush2.msra.mxu0 0.0
  %8584 = vmatprep.mubr.f32.mxu0 0.0
  %8585 = vmatmul.mubr.f32.gmra.mxu0 %v5585
  %v8586 = vpop.f32.mrf.mxu0
  %v8587 = vadd.f32 0.0, %v8586
  %v8588 = vpop.f32.mrf.mxu0
  %8589 = vmatprep.mubr.f32.mxu0 0.0
  %8590 = vmatmul.mubr.f32.gmra.mxu0 %v5586
  %v8591 = vpop.f32.mrf.mxu0
  %v8592 = vadd.f32 0.0, %v8591
  %v8593 = vpop.f32.mrf.mxu0
  %8594 = vmatprep.mubr.f32.mxu0 0.0
  %8595 = vmatmul.mubr.f32.gmra.mxu0 %v5587
  %v8596 = vpop.f32.mrf.mxu0
  %v8597 = vadd.f32 0.0, %v8596
  %v8598 = vpop.f32.mrf.mxu0
  %8599 = vmatprep.mubr.f32.mxu0 0.0
  %8600 = vmatmul.mubr.f32.gmra.mxu0 %v5588
  %v8601 = vpop.f32.mrf.mxu0
  %v8602 = vadd.f32 0.0, %v8601
  %v8603 = vpop.f32.mrf.mxu0
  %8604 = vmatprep.mubr.f32.mxu0 0.0
  %8605 = vmatmul.mubr.f32.gmra.mxu0 %v5589
  %v8606 = vpop.f32.mrf.mxu0
  %v8607 = vadd.f32 0.0, %v8606
  %v8608 = vpop.f32.mrf.mxu0
  %8609 = vmatprep.mubr.f32.mxu0 0.0
  %8610 = vmatmul.mubr.f32.gmra.mxu0 %v5590
  %v8611 = vpop.f32.mrf.mxu0
  %v8612 = vadd.f32 0.0, %v8611
  %v8613 = vpop.f32.mrf.mxu0
  %8614 = vmatprep.mubr.f32.mxu0 0.0
  %8615 = vmatmul.mubr.f32.gmra.mxu0 %v5591
  %v8616 = vpop.f32.mrf.mxu0
  %v8617 = vadd.f32 0.0, %v8616
  %v8618 = vpop.f32.mrf.mxu0
  %8619 = vmatprep.mubr.f32.mxu0 0.0
  %8620 = vmatmul.mubr.f32.gmra.mxu0 %v5592
  %v8621 = vpop.f32.mrf.mxu0
  %v8622 = vadd.f32 0.0, %v8621
  %v8623 = vpop.f32.mrf.mxu0
  %8624 = vdwg.mxu0
  %v8625 = vadd.f32 %v8465, %v8587
  %v8626 = vadd.f32 %v8470, %v8592
  %v8627 = vadd.f32 %v8475, %v8597
  %v8628 = vadd.f32 %v8480, %v8602
  %v8629 = vadd.f32 %v8485, %v8607
  %v8630 = vadd.f32 %v8490, %v8612
  %v8631 = vadd.f32 %v8495, %v8617
  %v8632 = vadd.f32 %v8500, %v8622
  %s8633 = scalar_lea.vmem %s2, 448
  %8634 = vst [vmem:[%s8633] sm:$0xff] %v8625
  %8635 = vst [vmem:[%s8633 + $0x8] sm:$0xff] %v8626
  %8636 = vst [vmem:[%s8633 + $0x10] sm:$0xff] %v8627
  %8637 = vst [vmem:[%s8633 + $0x18] sm:$0xff] %v8628
  %8638 = vst [vmem:[%s8633 + $0x20] sm:$0xff] %v8629
  %8639 = vst [vmem:[%s8633 + $0x28] sm:$0xff] %v8630
  %8640 = vst [vmem:[%s8633 + $0x30] sm:$0xff] %v8631
  %8641 = vst [vmem:[%s8633 + $0x38] sm:$0xff] %v8632
  %v8642 = vld [vmem:[%s8122] sm:$0xff]
  %v8643 = vld [vmem:[%s8122 + $0x8] sm:$0xff]
  %v8644 = vld [vmem:[%s8122 + $0x10] sm:$0xff]
  %v8645 = vld [vmem:[%s8122 + $0x18] sm:$0xff]
  %v8646 = vld [vmem:[%s8122 + $0x20] sm:$0xff]
  %v8647 = vld [vmem:[%s8122 + $0x28] sm:$0xff]
  %v8648 = vld [vmem:[%s8122 + $0x30] sm:$0xff]
  %v8649 = vld [vmem:[%s8122 + $0x38] sm:$0xff]
  %v8650 = vld [vmem:[%s8122 + $0x40] sm:$0xff]
  %v8651 = vld [vmem:[%s8122 + $0x48] sm:$0xff]
  %v8652 = vld [vmem:[%s8122 + $0x50] sm:$0xff]
  %v8653 = vld [vmem:[%s8122 + $0x58] sm:$0xff]
  %v8654 = vld [vmem:[%s8122 + $0x60] sm:$0xff]
  %v8655 = vld [vmem:[%s8122 + $0x68] sm:$0xff]
  %v8656 = vld [vmem:[%s8122 + $0x70] sm:$0xff]
  %v8657 = vld [vmem:[%s8122 + $0x78] sm:$0xff]
  %v8658 = vld [vmem:[%s8503] sm:$0xff]
  %v8659 = vld [vmem:[%s8503 + $0x8] sm:$0xff]
  %v8660 = vld [vmem:[%s8503 + $0x10] sm:$0xff]
  %v8661 = vld [vmem:[%s8503 + $0x18] sm:$0xff]
  %v8662 = vld [vmem:[%s8503 + $0x20] sm:$0xff]
  %v8663 = vld [vmem:[%s8503 + $0x28] sm:$0xff]
  %v8664 = vld [vmem:[%s8503 + $0x30] sm:$0xff]
  %v8665 = vld [vmem:[%s8503 + $0x38] sm:$0xff]
  %v8666 = vld [vmem:[%s8503 + $0x40] sm:$0xff]
  %v8667 = vld [vmem:[%s8503 + $0x48] sm:$0xff]
  %v8668 = vld [vmem:[%s8503 + $0x50] sm:$0xff]
  %v8669 = vld [vmem:[%s8503 + $0x58] sm:$0xff]
  %v8670 = vld [vmem:[%s8503 + $0x60] sm:$0xff]
  %v8671 = vld [vmem:[%s8503 + $0x68] sm:$0xff]
  %v8672 = vld [vmem:[%s8503 + $0x70] sm:$0xff]
  %v8673 = vld [vmem:[%s8503 + $0x78] sm:$0xff]
  %8674 = vmatprep.subr.mxu0 0.0
  %8675 = vmatpush1.msra.mxu0 %v8673
  %8676 = vmatprep.subr.mxu0 0.0
  %8677 = vmatpush1.msra.mxu0 %v8672
  %8678 = vmatprep.subr.mxu0 0.0
  %8679 = vmatpush1.msra.mxu0 %v8671
  %8680 = vmatprep.subr.mxu0 0.0
  %8681 = vmatpush1.msra.mxu0 %v8670
  %8682 = vmatprep.subr.mxu0 0.0
  %8683 = vmatpush1.msra.mxu0 %v8669
  %8684 = vmatprep.subr.mxu0 0.0
  %8685 = vmatpush1.msra.mxu0 %v8668
  %8686 = vmatprep.subr.mxu0 0.0
  %8687 = vmatpush1.msra.mxu0 %v8667
  %8688 = vmatprep.subr.mxu0 0.0
  %8689 = vmatpush1.msra.mxu0 %v8666
  %8690 = vmatprep.subr.mxu0 0.0
  %8691 = vmatpush1.msra.mxu0 %v8665
  %8692 = vmatprep.subr.mxu0 0.0
  %8693 = vmatpush1.msra.mxu0 %v8664
  %8694 = vmatprep.subr.mxu0 0.0
  %8695 = vmatpush1.msra.mxu0 %v8663
  %8696 = vmatprep.subr.mxu0 0.0
  %8697 = vmatpush1.msra.mxu0 %v8662
  %8698 = vmatprep.subr.mxu0 0.0
  %8699 = vmatpush1.msra.mxu0 %v8661
  %8700 = vmatprep.subr.mxu0 0.0
  %8701 = vmatpush1.msra.mxu0 %v8660
  %8702 = vmatprep.subr.mxu0 0.0
  %8703 = vmatpush1.msra.mxu0 %v8659
  %8704 = vmatprep.subr.mxu0 0.0
  %8705 = vmatpush1.msra.mxu0 %v8658
  %8706 = vmatprep.subr.mxu0 0.0
  %8707 = vmatpush2.msra.mxu0 0.0
  %8708 = vmatprep.subr.mxu0 0.0
  %8709 = vmatpush2.msra.mxu0 0.0
  %8710 = vmatprep.subr.mxu0 0.0
  %8711 = vmatpush2.msra.mxu0 0.0
  %8712 = vmatprep.subr.mxu0 0.0
  %8713 = vmatpush2.msra.mxu0 0.0
  %8714 = vmatprep.subr.mxu0 0.0
  %8715 = vmatpush2.msra.mxu0 0.0
  %8716 = vmatprep.subr.mxu0 0.0
  %8717 = vmatpush2.msra.mxu0 0.0
  %8718 = vmatprep.subr.mxu0 0.0
  %8719 = vmatpush2.msra.mxu0 0.0
  %8720 = vmatprep.subr.mxu0 0.0
  %8721 = vmatpush2.msra.mxu0 0.0
  %8722 = vmatprep.subr.mxu0 0.0
  %8723 = vmatpush2.msra.mxu0 0.0
  %8724 = vmatprep.subr.mxu0 0.0
  %8725 = vmatpush2.msra.mxu0 0.0
  %8726 = vmatprep.subr.mxu0 0.0
  %8727 = vmatpush2.msra.mxu0 0.0
  %8728 = vmatprep.subr.mxu0 0.0
  %8729 = vmatpush2.msra.mxu0 0.0
  %8730 = vmatprep.subr.mxu0 0.0
  %8731 = vmatpush2.msra.mxu0 0.0
  %8732 = vmatprep.subr.mxu0 0.0
  %8733 = vmatpush2.msra.mxu0 0.0
  %8734 = vmatprep.subr.mxu0 0.0
  %8735 = vmatpush2.msra.mxu0 0.0
  %8736 = vmatprep.subr.mxu0 0.0
  %8737 = vmatpush2.msra.mxu0 0.0
  %8738 = vmatprep.mubr.f32.mxu0 0.0
  %8739 = vmatmul.mubr.f32.gmra.mxu0 %v5576
  %v8740 = vpop.f32.mrf.mxu0
  %v8741 = vadd.f32 0.0, %v8740
  %v8742 = vpop.f32.mrf.mxu0
  %8743 = vmatprep.mubr.f32.mxu0 0.0
  %8744 = vmatmul.mubr.f32.gmra.mxu0 %v5577
  %v8745 = vpop.f32.mrf.mxu0
  %v8746 = vadd.f32 0.0, %v8745
  %v8747 = vpop.f32.mrf.mxu0
  %8748 = vmatprep.mubr.f32.mxu0 0.0
  %8749 = vmatmul.mubr.f32.gmra.mxu0 %v5578
  %v8750 = vpop.f32.mrf.mxu0
  %v8751 = vadd.f32 0.0, %v8750
  %v8752 = vpop.f32.mrf.mxu0
  %8753 = vmatprep.mubr.f32.mxu0 0.0
  %8754 = vmatmul.mubr.f32.gmra.mxu0 %v5579
  %v8755 = vpop.f32.mrf.mxu0
  %v8756 = vadd.f32 0.0, %v8755
  %v8757 = vpop.f32.mrf.mxu0
  %8758 = vmatprep.mubr.f32.mxu0 0.0
  %8759 = vmatmul.mubr.f32.gmra.mxu0 %v5580
  %v8760 = vpop.f32.mrf.mxu0
  %v8761 = vadd.f32 0.0, %v8760
  %v8762 = vpop.f32.mrf.mxu0
  %8763 = vmatprep.mubr.f32.mxu0 0.0
  %8764 = vmatmul.mubr.f32.gmra.mxu0 %v5581
  %v8765 = vpop.f32.mrf.mxu0
  %v8766 = vadd.f32 0.0, %v8765
  %v8767 = vpop.f32.mrf.mxu0
  %8768 = vmatprep.mubr.f32.mxu0 0.0
  %8769 = vmatmul.mubr.f32.gmra.mxu0 %v5582
  %v8770 = vpop.f32.mrf.mxu0
  %v8771 = vadd.f32 0.0, %v8770
  %v8772 = vpop.f32.mrf.mxu0
  %8773 = vmatprep.mubr.f32.mxu0 0.0
  %8774 = vmatmul.mubr.f32.gmra.mxu0 %v5583
  %v8775 = vpop.f32.mrf.mxu0
  %v8776 = vadd.f32 0.0, %v8775
  %v8777 = vpop.f32.mrf.mxu0
  %8778 = vdwg.mxu0
  %8779 = vmatprep.subr.mxu0 0.0
  %8780 = vmatpush1.msra.mxu0 %v8657
  %8781 = vmatprep.subr.mxu0 0.0
  %8782 = vmatpush1.msra.mxu0 %v8656
  %8783 = vmatprep.subr.mxu0 0.0
  %8784 = vmatpush1.msra.mxu0 %v8655
  %8785 = vmatprep.subr.mxu0 0.0
  %8786 = vmatpush1.msra.mxu0 %v8654
  %8787 = vmatprep.subr.mxu0 0.0
  %8788 = vmatpush1.msra.mxu0 %v8653
  %8789 = vmatprep.subr.mxu0 0.0
  %8790 = vmatpush1.msra.mxu0 %v8652
  %8791 = vmatprep.subr.mxu0 0.0
  %8792 = vmatpush1.msra.mxu0 %v8651
  %8793 = vmatprep.subr.mxu0 0.0
  %8794 = vmatpush1.msra.mxu0 %v8650
  %8795 = vmatprep.subr.mxu0 0.0
  %8796 = vmatpush1.msra.mxu0 %v8649
  %8797 = vmatprep.subr.mxu0 0.0
  %8798 = vmatpush1.msra.mxu0 %v8648
  %8799 = vmatprep.subr.mxu0 0.0
  %8800 = vmatpush1.msra.mxu0 %v8647
  %8801 = vmatprep.subr.mxu0 0.0
  %8802 = vmatpush1.msra.mxu0 %v8646
  %8803 = vmatprep.subr.mxu0 0.0
  %8804 = vmatpush1.msra.mxu0 %v8645
  %8805 = vmatprep.subr.mxu0 0.0
  %8806 = vmatpush1.msra.mxu0 %v8644
  %8807 = vmatprep.subr.mxu0 0.0
  %8808 = vmatpush1.msra.mxu0 %v8643
  %8809 = vmatprep.subr.mxu0 0.0
  %8810 = vmatpush1.msra.mxu0 %v8642
  %8811 = vmatprep.subr.mxu0 0.0
  %8812 = vmatpush2.msra.mxu0 0.0
  %8813 = vmatprep.subr.mxu0 0.0
  %8814 = vmatpush2.msra.mxu0 0.0
  %8815 = vmatprep.subr.mxu0 0.0
  %8816 = vmatpush2.msra.mxu0 0.0
  %8817 = vmatprep.subr.mxu0 0.0
  %8818 = vmatpush2.msra.mxu0 0.0
  %8819 = vmatprep.subr.mxu0 0.0
  %8820 = vmatpush2.msra.mxu0 0.0
  %8821 = vmatprep.subr.mxu0 0.0
  %8822 = vmatpush2.msra.mxu0 0.0
  %8823 = vmatprep.subr.mxu0 0.0
  %8824 = vmatpush2.msra.mxu0 0.0
  %8825 = vmatprep.subr.mxu0 0.0
  %8826 = vmatpush2.msra.mxu0 0.0
  %8827 = vmatprep.subr.mxu0 0.0
  %8828 = vmatpush2.msra.mxu0 0.0
  %8829 = vmatprep.subr.mxu0 0.0
  %8830 = vmatpush2.msra.mxu0 0.0
  %8831 = vmatprep.subr.mxu0 0.0
  %8832 = vmatpush2.msra.mxu0 0.0
  %8833 = vmatprep.subr.mxu0 0.0
  %8834 = vmatpush2.msra.mxu0 0.0
  %8835 = vmatprep.subr.mxu0 0.0
  %8836 = vmatpush2.msra.mxu0 0.0
  %8837 = vmatprep.subr.mxu0 0.0
  %8838 = vmatpush2.msra.mxu0 0.0
  %8839 = vmatprep.subr.mxu0 0.0
  %8840 = vmatpush2.msra.mxu0 0.0
  %8841 = vmatprep.subr.mxu0 0.0
  %8842 = vmatpush2.msra.mxu0 0.0
  %8843 = vmatprep.mubr.f32.mxu0 0.0
  %8844 = vmatmul.mubr.f32.gmra.mxu0 %v5567
  %v8845 = vpop.f32.mrf.mxu0
  %v8846 = vadd.f32 %v8741, %v8845
  %v8847 = vpop.f32.mrf.mxu0
  %8848 = vmatprep.mubr.f32.mxu0 0.0
  %8849 = vmatmul.mubr.f32.gmra.mxu0 %v5568
  %v8850 = vpop.f32.mrf.mxu0
  %v8851 = vadd.f32 %v8746, %v8850
  %v8852 = vpop.f32.mrf.mxu0
  %8853 = vmatprep.mubr.f32.mxu0 0.0
  %8854 = vmatmul.mubr.f32.gmra.mxu0 %v5569
  %v8855 = vpop.f32.mrf.mxu0
  %v8856 = vadd.f32 %v8751, %v8855
  %v8857 = vpop.f32.mrf.mxu0
  %8858 = vmatprep.mubr.f32.mxu0 0.0
  %8859 = vmatmul.mubr.f32.gmra.mxu0 %v5570
  %v8860 = vpop.f32.mrf.mxu0
  %v8861 = vadd.f32 %v8756, %v8860
  %v8862 = vpop.f32.mrf.mxu0
  %8863 = vmatprep.mubr.f32.mxu0 0.0
  %8864 = vmatmul.mubr.f32.gmra.mxu0 %v5571
  %v8865 = vpop.f32.mrf.mxu0
  %v8866 = vadd.f32 %v8761, %v8865
  %v8867 = vpop.f32.mrf.mxu0
  %8868 = vmatprep.mubr.f32.mxu0 0.0
  %8869 = vmatmul.mubr.f32.gmra.mxu0 %v5572
  %v8870 = vpop.f32.mrf.mxu0
  %v8871 = vadd.f32 %v8766, %v8870
  %v8872 = vpop.f32.mrf.mxu0
  %8873 = vmatprep.mubr.f32.mxu0 0.0
  %8874 = vmatmul.mubr.f32.gmra.mxu0 %v5573
  %v8875 = vpop.f32.mrf.mxu0
  %v8876 = vadd.f32 %v8771, %v8875
  %v8877 = vpop.f32.mrf.mxu0
  %8878 = vmatprep.mubr.f32.mxu0 0.0
  %8879 = vmatmul.mubr.f32.gmra.mxu0 %v5574
  %v8880 = vpop.f32.mrf.mxu0
  %v8881 = vadd.f32 %v8776, %v8880
  %v8882 = vpop.f32.mrf.mxu0
  %8883 = vdwg.mxu0
  %s8884 = scalar_lea.vmem [#allocation2], 1536
  %v8885 = vld [vmem:[%s8884] sm:$0xff]
  %v8886 = vld [vmem:[%s8884 + $0x8] sm:$0xff]
  %v8887 = vld [vmem:[%s8884 + $0x10] sm:$0xff]
  %v8888 = vld [vmem:[%s8884 + $0x18] sm:$0xff]
  %v8889 = vld [vmem:[%s8884 + $0x20] sm:$0xff]
  %v8890 = vld [vmem:[%s8884 + $0x28] sm:$0xff]
  %v8891 = vld [vmem:[%s8884 + $0x30] sm:$0xff]
  %v8892 = vld [vmem:[%s8884 + $0x38] sm:$0xff]
  %v8893 = vld [vmem:[%s8884 + $0x40] sm:$0xff]
  %v8894 = vld [vmem:[%s8884 + $0x48] sm:$0xff]
  %v8895 = vld [vmem:[%s8884 + $0x50] sm:$0xff]
  %v8896 = vld [vmem:[%s8884 + $0x58] sm:$0xff]
  %v8897 = vld [vmem:[%s8884 + $0x60] sm:$0xff]
  %v8898 = vld [vmem:[%s8884 + $0x68] sm:$0xff]
  %v8899 = vld [vmem:[%s8884 + $0x70] sm:$0xff]
  %v8900 = vld [vmem:[%s8884 + $0x78] sm:$0xff]
  %8901 = vmatprep.subr.mxu0 0.0
  %8902 = vmatpush1.msra.mxu0 %v8900
  %8903 = vmatprep.subr.mxu0 0.0
  %8904 = vmatpush1.msra.mxu0 %v8899
  %8905 = vmatprep.subr.mxu0 0.0
  %8906 = vmatpush1.msra.mxu0 %v8898
  %8907 = vmatprep.subr.mxu0 0.0
  %8908 = vmatpush1.msra.mxu0 %v8897
  %8909 = vmatprep.subr.mxu0 0.0
  %8910 = vmatpush1.msra.mxu0 %v8896
  %8911 = vmatprep.subr.mxu0 0.0
  %8912 = vmatpush1.msra.mxu0 %v8895
  %8913 = vmatprep.subr.mxu0 0.0
  %8914 = vmatpush1.msra.mxu0 %v8894
  %8915 = vmatprep.subr.mxu0 0.0
  %8916 = vmatpush1.msra.mxu0 %v8893
  %8917 = vmatprep.subr.mxu0 0.0
  %8918 = vmatpush1.msra.mxu0 %v8892
  %8919 = vmatprep.subr.mxu0 0.0
  %8920 = vmatpush1.msra.mxu0 %v8891
  %8921 = vmatprep.subr.mxu0 0.0
  %8922 = vmatpush1.msra.mxu0 %v8890
  %8923 = vmatprep.subr.mxu0 0.0
  %8924 = vmatpush1.msra.mxu0 %v8889
  %8925 = vmatprep.subr.mxu0 0.0
  %8926 = vmatpush1.msra.mxu0 %v8888
  %8927 = vmatprep.subr.mxu0 0.0
  %8928 = vmatpush1.msra.mxu0 %v8887
  %8929 = vmatprep.subr.mxu0 0.0
  %8930 = vmatpush1.msra.mxu0 %v8886
  %8931 = vmatprep.subr.mxu0 0.0
  %8932 = vmatpush1.msra.mxu0 %v8885
  %8933 = vmatprep.subr.mxu0 0.0
  %8934 = vmatpush2.msra.mxu0 0.0
  %8935 = vmatprep.subr.mxu0 0.0
  %8936 = vmatpush2.msra.mxu0 0.0
  %8937 = vmatprep.subr.mxu0 0.0
  %8938 = vmatpush2.msra.mxu0 0.0
  %8939 = vmatprep.subr.mxu0 0.0
  %8940 = vmatpush2.msra.mxu0 0.0
  %8941 = vmatprep.subr.mxu0 0.0
  %8942 = vmatpush2.msra.mxu0 0.0
  %8943 = vmatprep.subr.mxu0 0.0
  %8944 = vmatpush2.msra.mxu0 0.0
  %8945 = vmatprep.subr.mxu0 0.0
  %8946 = vmatpush2.msra.mxu0 0.0
  %8947 = vmatprep.subr.mxu0 0.0
  %8948 = vmatpush2.msra.mxu0 0.0
  %8949 = vmatprep.subr.mxu0 0.0
  %8950 = vmatpush2.msra.mxu0 0.0
  %8951 = vmatprep.subr.mxu0 0.0
  %8952 = vmatpush2.msra.mxu0 0.0
  %8953 = vmatprep.subr.mxu0 0.0
  %8954 = vmatpush2.msra.mxu0 0.0
  %8955 = vmatprep.subr.mxu0 0.0
  %8956 = vmatpush2.msra.mxu0 0.0
  %8957 = vmatprep.subr.mxu0 0.0
  %8958 = vmatpush2.msra.mxu0 0.0
  %8959 = vmatprep.subr.mxu0 0.0
  %8960 = vmatpush2.msra.mxu0 0.0
  %8961 = vmatprep.subr.mxu0 0.0
  %8962 = vmatpush2.msra.mxu0 0.0
  %8963 = vmatprep.subr.mxu0 0.0
  %8964 = vmatpush2.msra.mxu0 0.0
  %8965 = vmatprep.mubr.f32.mxu0 0.0
  %8966 = vmatmul.mubr.f32.gmra.mxu0 %v5585
  %v8967 = vpop.f32.mrf.mxu0
  %v8968 = vadd.f32 0.0, %v8967
  %v8969 = vpop.f32.mrf.mxu0
  %8970 = vmatprep.mubr.f32.mxu0 0.0
  %8971 = vmatmul.mubr.f32.gmra.mxu0 %v5586
  %v8972 = vpop.f32.mrf.mxu0
  %v8973 = vadd.f32 0.0, %v8972
  %v8974 = vpop.f32.mrf.mxu0
  %8975 = vmatprep.mubr.f32.mxu0 0.0
  %8976 = vmatmul.mubr.f32.gmra.mxu0 %v5587
  %v8977 = vpop.f32.mrf.mxu0
  %v8978 = vadd.f32 0.0, %v8977
  %v8979 = vpop.f32.mrf.mxu0
  %8980 = vmatprep.mubr.f32.mxu0 0.0
  %8981 = vmatmul.mubr.f32.gmra.mxu0 %v5588
  %v8982 = vpop.f32.mrf.mxu0
  %v8983 = vadd.f32 0.0, %v8982
  %v8984 = vpop.f32.mrf.mxu0
  %8985 = vmatprep.mubr.f32.mxu0 0.0
  %8986 = vmatmul.mubr.f32.gmra.mxu0 %v5589
  %v8987 = vpop.f32.mrf.mxu0
  %v8988 = vadd.f32 0.0, %v8987
  %v8989 = vpop.f32.mrf.mxu0
  %8990 = vmatprep.mubr.f32.mxu0 0.0
  %8991 = vmatmul.mubr.f32.gmra.mxu0 %v5590
  %v8992 = vpop.f32.mrf.mxu0
  %v8993 = vadd.f32 0.0, %v8992
  %v8994 = vpop.f32.mrf.mxu0
  %8995 = vmatprep.mubr.f32.mxu0 0.0
  %8996 = vmatmul.mubr.f32.gmra.mxu0 %v5591
  %v8997 = vpop.f32.mrf.mxu0
  %v8998 = vadd.f32 0.0, %v8997
  %v8999 = vpop.f32.mrf.mxu0
  %9000 = vmatprep.mubr.f32.mxu0 0.0
  %9001 = vmatmul.mubr.f32.gmra.mxu0 %v5592
  %v9002 = vpop.f32.mrf.mxu0
  %v9003 = vadd.f32 0.0, %v9002
  %v9004 = vpop.f32.mrf.mxu0
  %9005 = vdwg.mxu0
  %v9006 = vadd.f32 %v8846, %v8968
  %v9007 = vadd.f32 %v8851, %v8973
  %v9008 = vadd.f32 %v8856, %v8978
  %v9009 = vadd.f32 %v8861, %v8983
  %v9010 = vadd.f32 %v8866, %v8988
  %v9011 = vadd.f32 %v8871, %v8993
  %v9012 = vadd.f32 %v8876, %v8998
  %v9013 = vadd.f32 %v8881, %v9003
  %s9014 = scalar_lea.vmem %s2, 512
  %9015 = vst [vmem:[%s9014] sm:$0xff] %v9006
  %9016 = vst [vmem:[%s9014 + $0x8] sm:$0xff] %v9007
  %9017 = vst [vmem:[%s9014 + $0x10] sm:$0xff] %v9008
  %9018 = vst [vmem:[%s9014 + $0x18] sm:$0xff] %v9009
  %9019 = vst [vmem:[%s9014 + $0x20] sm:$0xff] %v9010
  %9020 = vst [vmem:[%s9014 + $0x28] sm:$0xff] %v9011
  %9021 = vst [vmem:[%s9014 + $0x30] sm:$0xff] %v9012
  %9022 = vst [vmem:[%s9014 + $0x38] sm:$0xff] %v9013
  %v9023 = vld [vmem:[%s8503] sm:$0xff]
  %v9024 = vld [vmem:[%s8503 + $0x8] sm:$0xff]
  %v9025 = vld [vmem:[%s8503 + $0x10] sm:$0xff]
  %v9026 = vld [vmem:[%s8503 + $0x18] sm:$0xff]
  %v9027 = vld [vmem:[%s8503 + $0x20] sm:$0xff]
  %v9028 = vld [vmem:[%s8503 + $0x28] sm:$0xff]
  %v9029 = vld [vmem:[%s8503 + $0x30] sm:$0xff]
  %v9030 = vld [vmem:[%s8503 + $0x38] sm:$0xff]
  %v9031 = vld [vmem:[%s8503 + $0x40] sm:$0xff]
  %v9032 = vld [vmem:[%s8503 + $0x48] sm:$0xff]
  %v9033 = vld [vmem:[%s8503 + $0x50] sm:$0xff]
  %v9034 = vld [vmem:[%s8503 + $0x58] sm:$0xff]
  %v9035 = vld [vmem:[%s8503 + $0x60] sm:$0xff]
  %v9036 = vld [vmem:[%s8503 + $0x68] sm:$0xff]
  %v9037 = vld [vmem:[%s8503 + $0x70] sm:$0xff]
  %v9038 = vld [vmem:[%s8503 + $0x78] sm:$0xff]
  %v9039 = vld [vmem:[%s8884] sm:$0xff]
  %v9040 = vld [vmem:[%s8884 + $0x8] sm:$0xff]
  %v9041 = vld [vmem:[%s8884 + $0x10] sm:$0xff]
  %v9042 = vld [vmem:[%s8884 + $0x18] sm:$0xff]
  %v9043 = vld [vmem:[%s8884 + $0x20] sm:$0xff]
  %v9044 = vld [vmem:[%s8884 + $0x28] sm:$0xff]
  %v9045 = vld [vmem:[%s8884 + $0x30] sm:$0xff]
  %v9046 = vld [vmem:[%s8884 + $0x38] sm:$0xff]
  %v9047 = vld [vmem:[%s8884 + $0x40] sm:$0xff]
  %v9048 = vld [vmem:[%s8884 + $0x48] sm:$0xff]
  %v9049 = vld [vmem:[%s8884 + $0x50] sm:$0xff]
  %v9050 = vld [vmem:[%s8884 + $0x58] sm:$0xff]
  %v9051 = vld [vmem:[%s8884 + $0x60] sm:$0xff]
  %v9052 = vld [vmem:[%s8884 + $0x68] sm:$0xff]
  %v9053 = vld [vmem:[%s8884 + $0x70] sm:$0xff]
  %v9054 = vld [vmem:[%s8884 + $0x78] sm:$0xff]
  %9055 = vmatprep.subr.mxu0 0.0
  %9056 = vmatpush1.msra.mxu0 %v9054
  %9057 = vmatprep.subr.mxu0 0.0
  %9058 = vmatpush1.msra.mxu0 %v9053
  %9059 = vmatprep.subr.mxu0 0.0
  %9060 = vmatpush1.msra.mxu0 %v9052
  %9061 = vmatprep.subr.mxu0 0.0
  %9062 = vmatpush1.msra.mxu0 %v9051
  %9063 = vmatprep.subr.mxu0 0.0
  %9064 = vmatpush1.msra.mxu0 %v9050
  %9065 = vmatprep.subr.mxu0 0.0
  %9066 = vmatpush1.msra.mxu0 %v9049
  %9067 = vmatprep.subr.mxu0 0.0
  %9068 = vmatpush1.msra.mxu0 %v9048
  %9069 = vmatprep.subr.mxu0 0.0
  %9070 = vmatpush1.msra.mxu0 %v9047
  %9071 = vmatprep.subr.mxu0 0.0
  %9072 = vmatpush1.msra.mxu0 %v9046
  %9073 = vmatprep.subr.mxu0 0.0
  %9074 = vmatpush1.msra.mxu0 %v9045
  %9075 = vmatprep.subr.mxu0 0.0
  %9076 = vmatpush1.msra.mxu0 %v9044
  %9077 = vmatprep.subr.mxu0 0.0
  %9078 = vmatpush1.msra.mxu0 %v9043
  %9079 = vmatprep.subr.mxu0 0.0
  %9080 = vmatpush1.msra.mxu0 %v9042
  %9081 = vmatprep.subr.mxu0 0.0
  %9082 = vmatpush1.msra.mxu0 %v9041
  %9083 = vmatprep.subr.mxu0 0.0
  %9084 = vmatpush1.msra.mxu0 %v9040
  %9085 = vmatprep.subr.mxu0 0.0
  %9086 = vmatpush1.msra.mxu0 %v9039
  %9087 = vmatprep.subr.mxu0 0.0
  %9088 = vmatpush2.msra.mxu0 0.0
  %9089 = vmatprep.subr.mxu0 0.0
  %9090 = vmatpush2.msra.mxu0 0.0
  %9091 = vmatprep.subr.mxu0 0.0
  %9092 = vmatpush2.msra.mxu0 0.0
  %9093 = vmatprep.subr.mxu0 0.0
  %9094 = vmatpush2.msra.mxu0 0.0
  %9095 = vmatprep.subr.mxu0 0.0
  %9096 = vmatpush2.msra.mxu0 0.0
  %9097 = vmatprep.subr.mxu0 0.0
  %9098 = vmatpush2.msra.mxu0 0.0
  %9099 = vmatprep.subr.mxu0 0.0
  %9100 = vmatpush2.msra.mxu0 0.0
  %9101 = vmatprep.subr.mxu0 0.0
  %9102 = vmatpush2.msra.mxu0 0.0
  %9103 = vmatprep.subr.mxu0 0.0
  %9104 = vmatpush2.msra.mxu0 0.0
  %9105 = vmatprep.subr.mxu0 0.0
  %9106 = vmatpush2.msra.mxu0 0.0
  %9107 = vmatprep.subr.mxu0 0.0
  %9108 = vmatpush2.msra.mxu0 0.0
  %9109 = vmatprep.subr.mxu0 0.0
  %9110 = vmatpush2.msra.mxu0 0.0
  %9111 = vmatprep.subr.mxu0 0.0
  %9112 = vmatpush2.msra.mxu0 0.0
  %9113 = vmatprep.subr.mxu0 0.0
  %9114 = vmatpush2.msra.mxu0 0.0
  %9115 = vmatprep.subr.mxu0 0.0
  %9116 = vmatpush2.msra.mxu0 0.0
  %9117 = vmatprep.subr.mxu0 0.0
  %9118 = vmatpush2.msra.mxu0 0.0
  %9119 = vmatprep.mubr.f32.mxu0 0.0
  %9120 = vmatmul.mubr.f32.gmra.mxu0 %v5576
  %v9121 = vpop.f32.mrf.mxu0
  %v9122 = vadd.f32 0.0, %v9121
  %v9123 = vpop.f32.mrf.mxu0
  %9124 = vmatprep.mubr.f32.mxu0 0.0
  %9125 = vmatmul.mubr.f32.gmra.mxu0 %v5577
  %v9126 = vpop.f32.mrf.mxu0
  %v9127 = vadd.f32 0.0, %v9126
  %v9128 = vpop.f32.mrf.mxu0
  %9129 = vmatprep.mubr.f32.mxu0 0.0
  %9130 = vmatmul.mubr.f32.gmra.mxu0 %v5578
  %v9131 = vpop.f32.mrf.mxu0
  %v9132 = vadd.f32 0.0, %v9131
  %v9133 = vpop.f32.mrf.mxu0
  %9134 = vmatprep.mubr.f32.mxu0 0.0
  %9135 = vmatmul.mubr.f32.gmra.mxu0 %v5579
  %v9136 = vpop.f32.mrf.mxu0
  %v9137 = vadd.f32 0.0, %v9136
  %v9138 = vpop.f32.mrf.mxu0
  %9139 = vmatprep.mubr.f32.mxu0 0.0
  %9140 = vmatmul.mubr.f32.gmra.mxu0 %v5580
  %v9141 = vpop.f32.mrf.mxu0
  %v9142 = vadd.f32 0.0, %v9141
  %v9143 = vpop.f32.mrf.mxu0
  %9144 = vmatprep.mubr.f32.mxu0 0.0
  %9145 = vmatmul.mubr.f32.gmra.mxu0 %v5581
  %v9146 = vpop.f32.mrf.mxu0
  %v9147 = vadd.f32 0.0, %v9146
  %v9148 = vpop.f32.mrf.mxu0
  %9149 = vmatprep.mubr.f32.mxu0 0.0
  %9150 = vmatmul.mubr.f32.gmra.mxu0 %v5582
  %v9151 = vpop.f32.mrf.mxu0
  %v9152 = vadd.f32 0.0, %v9151
  %v9153 = vpop.f32.mrf.mxu0
  %9154 = vmatprep.mubr.f32.mxu0 0.0
  %9155 = vmatmul.mubr.f32.gmra.mxu0 %v5583
  %v9156 = vpop.f32.mrf.mxu0
  %v9157 = vadd.f32 0.0, %v9156
  %v9158 = vpop.f32.mrf.mxu0
  %9159 = vdwg.mxu0
  %9160 = vmatprep.subr.mxu0 0.0
  %9161 = vmatpush1.msra.mxu0 %v9038
  %9162 = vmatprep.subr.mxu0 0.0
  %9163 = vmatpush1.msra.mxu0 %v9037
  %9164 = vmatprep.subr.mxu0 0.0
  %9165 = vmatpush1.msra.mxu0 %v9036
  %9166 = vmatprep.subr.mxu0 0.0
  %9167 = vmatpush1.msra.mxu0 %v9035
  %9168 = vmatprep.subr.mxu0 0.0
  %9169 = vmatpush1.msra.mxu0 %v9034
  %9170 = vmatprep.subr.mxu0 0.0
  %9171 = vmatpush1.msra.mxu0 %v9033
  %9172 = vmatprep.subr.mxu0 0.0
  %9173 = vmatpush1.msra.mxu0 %v9032
  %9174 = vmatprep.subr.mxu0 0.0
  %9175 = vmatpush1.msra.mxu0 %v9031
  %9176 = vmatprep.subr.mxu0 0.0
  %9177 = vmatpush1.msra.mxu0 %v9030
  %9178 = vmatprep.subr.mxu0 0.0
  %9179 = vmatpush1.msra.mxu0 %v9029
  %9180 = vmatprep.subr.mxu0 0.0
  %9181 = vmatpush1.msra.mxu0 %v9028
  %9182 = vmatprep.subr.mxu0 0.0
  %9183 = vmatpush1.msra.mxu0 %v9027
  %9184 = vmatprep.subr.mxu0 0.0
  %9185 = vmatpush1.msra.mxu0 %v9026
  %9186 = vmatprep.subr.mxu0 0.0
  %9187 = vmatpush1.msra.mxu0 %v9025
  %9188 = vmatprep.subr.mxu0 0.0
  %9189 = vmatpush1.msra.mxu0 %v9024
  %9190 = vmatprep.subr.mxu0 0.0
  %9191 = vmatpush1.msra.mxu0 %v9023
  %9192 = vmatprep.subr.mxu0 0.0
  %9193 = vmatpush2.msra.mxu0 0.0
  %9194 = vmatprep.subr.mxu0 0.0
  %9195 = vmatpush2.msra.mxu0 0.0
  %9196 = vmatprep.subr.mxu0 0.0
  %9197 = vmatpush2.msra.mxu0 0.0
  %9198 = vmatprep.subr.mxu0 0.0
  %9199 = vmatpush2.msra.mxu0 0.0
  %9200 = vmatprep.subr.mxu0 0.0
  %9201 = vmatpush2.msra.mxu0 0.0
  %9202 = vmatprep.subr.mxu0 0.0
  %9203 = vmatpush2.msra.mxu0 0.0
  %9204 = vmatprep.subr.mxu0 0.0
  %9205 = vmatpush2.msra.mxu0 0.0
  %9206 = vmatprep.subr.mxu0 0.0
  %9207 = vmatpush2.msra.mxu0 0.0
  %9208 = vmatprep.subr.mxu0 0.0
  %9209 = vmatpush2.msra.mxu0 0.0
  %9210 = vmatprep.subr.mxu0 0.0
  %9211 = vmatpush2.msra.mxu0 0.0
  %9212 = vmatprep.subr.mxu0 0.0
  %9213 = vmatpush2.msra.mxu0 0.0
  %9214 = vmatprep.subr.mxu0 0.0
  %9215 = vmatpush2.msra.mxu0 0.0
  %9216 = vmatprep.subr.mxu0 0.0
  %9217 = vmatpush2.msra.mxu0 0.0
  %9218 = vmatprep.subr.mxu0 0.0
  %9219 = vmatpush2.msra.mxu0 0.0
  %9220 = vmatprep.subr.mxu0 0.0
  %9221 = vmatpush2.msra.mxu0 0.0
  %9222 = vmatprep.subr.mxu0 0.0
  %9223 = vmatpush2.msra.mxu0 0.0
  %9224 = vmatprep.mubr.f32.mxu0 0.0
  %9225 = vmatmul.mubr.f32.gmra.mxu0 %v5567
  %v9226 = vpop.f32.mrf.mxu0
  %v9227 = vadd.f32 %v9122, %v9226
  %v9228 = vpop.f32.mrf.mxu0
  %9229 = vmatprep.mubr.f32.mxu0 0.0
  %9230 = vmatmul.mubr.f32.gmra.mxu0 %v5568
  %v9231 = vpop.f32.mrf.mxu0
  %v9232 = vadd.f32 %v9127, %v9231
  %v9233 = vpop.f32.mrf.mxu0
  %9234 = vmatprep.mubr.f32.mxu0 0.0
  %9235 = vmatmul.mubr.f32.gmra.mxu0 %v5569
  %v9236 = vpop.f32.mrf.mxu0
  %v9237 = vadd.f32 %v9132, %v9236
  %v9238 = vpop.f32.mrf.mxu0
  %9239 = vmatprep.mubr.f32.mxu0 0.0
  %9240 = vmatmul.mubr.f32.gmra.mxu0 %v5570
  %v9241 = vpop.f32.mrf.mxu0
  %v9242 = vadd.f32 %v9137, %v9241
  %v9243 = vpop.f32.mrf.mxu0
  %9244 = vmatprep.mubr.f32.mxu0 0.0
  %9245 = vmatmul.mubr.f32.gmra.mxu0 %v5571
  %v9246 = vpop.f32.mrf.mxu0
  %v9247 = vadd.f32 %v9142, %v9246
  %v9248 = vpop.f32.mrf.mxu0
  %9249 = vmatprep.mubr.f32.mxu0 0.0
  %9250 = vmatmul.mubr.f32.gmra.mxu0 %v5572
  %v9251 = vpop.f32.mrf.mxu0
  %v9252 = vadd.f32 %v9147, %v9251
  %v9253 = vpop.f32.mrf.mxu0
  %9254 = vmatprep.mubr.f32.mxu0 0.0
  %9255 = vmatmul.mubr.f32.gmra.mxu0 %v5573
  %v9256 = vpop.f32.mrf.mxu0
  %v9257 = vadd.f32 %v9152, %v9256
  %v9258 = vpop.f32.mrf.mxu0
  %9259 = vmatprep.mubr.f32.mxu0 0.0
  %9260 = vmatmul.mubr.f32.gmra.mxu0 %v5574
  %v9261 = vpop.f32.mrf.mxu0
  %v9262 = vadd.f32 %v9157, %v9261
  %v9263 = vpop.f32.mrf.mxu0
  %9264 = vdwg.mxu0
  %s9265 = scalar_lea.vmem [#allocation2], 1664
  %v9266 = vld [vmem:[%s9265] sm:$0xff]
  %v9267 = vld [vmem:[%s9265 + $0x8] sm:$0xff]
  %v9268 = vld [vmem:[%s9265 + $0x10] sm:$0xff]
  %v9269 = vld [vmem:[%s9265 + $0x18] sm:$0xff]
  %v9270 = vld [vmem:[%s9265 + $0x20] sm:$0xff]
  %v9271 = vld [vmem:[%s9265 + $0x28] sm:$0xff]
  %v9272 = vld [vmem:[%s9265 + $0x30] sm:$0xff]
  %v9273 = vld [vmem:[%s9265 + $0x38] sm:$0xff]
  %v9274 = vld [vmem:[%s9265 + $0x40] sm:$0xff]
  %v9275 = vld [vmem:[%s9265 + $0x48] sm:$0xff]
  %v9276 = vld [vmem:[%s9265 + $0x50] sm:$0xff]
  %v9277 = vld [vmem:[%s9265 + $0x58] sm:$0xff]
  %v9278 = vld [vmem:[%s9265 + $0x60] sm:$0xff]
  %v9279 = vld [vmem:[%s9265 + $0x68] sm:$0xff]
  %v9280 = vld [vmem:[%s9265 + $0x70] sm:$0xff]
  %v9281 = vld [vmem:[%s9265 + $0x78] sm:$0xff]
  %9282 = vmatprep.subr.mxu0 0.0
  %9283 = vmatpush1.msra.mxu0 %v9281
  %9284 = vmatprep.subr.mxu0 0.0
  %9285 = vmatpush1.msra.mxu0 %v9280
  %9286 = vmatprep.subr.mxu0 0.0
  %9287 = vmatpush1.msra.mxu0 %v9279
  %9288 = vmatprep.subr.mxu0 0.0
  %9289 = vmatpush1.msra.mxu0 %v9278
  %9290 = vmatprep.subr.mxu0 0.0
  %9291 = vmatpush1.msra.mxu0 %v9277
  %9292 = vmatprep.subr.mxu0 0.0
  %9293 = vmatpush1.msra.mxu0 %v9276
  %9294 = vmatprep.subr.mxu0 0.0
  %9295 = vmatpush1.msra.mxu0 %v9275
  %9296 = vmatprep.subr.mxu0 0.0
  %9297 = vmatpush1.msra.mxu0 %v9274
  %9298 = vmatprep.subr.mxu0 0.0
  %9299 = vmatpush1.msra.mxu0 %v9273
  %9300 = vmatprep.subr.mxu0 0.0
  %9301 = vmatpush1.msra.mxu0 %v9272
  %9302 = vmatprep.subr.mxu0 0.0
  %9303 = vmatpush1.msra.mxu0 %v9271
  %9304 = vmatprep.subr.mxu0 0.0
  %9305 = vmatpush1.msra.mxu0 %v9270
  %9306 = vmatprep.subr.mxu0 0.0
  %9307 = vmatpush1.msra.mxu0 %v9269
  %9308 = vmatprep.subr.mxu0 0.0
  %9309 = vmatpush1.msra.mxu0 %v9268
  %9310 = vmatprep.subr.mxu0 0.0
  %9311 = vmatpush1.msra.mxu0 %v9267
  %9312 = vmatprep.subr.mxu0 0.0
  %9313 = vmatpush1.msra.mxu0 %v9266
  %9314 = vmatprep.subr.mxu0 0.0
  %9315 = vmatpush2.msra.mxu0 0.0
  %9316 = vmatprep.subr.mxu0 0.0
  %9317 = vmatpush2.msra.mxu0 0.0
  %9318 = vmatprep.subr.mxu0 0.0
  %9319 = vmatpush2.msra.mxu0 0.0
  %9320 = vmatprep.subr.mxu0 0.0
  %9321 = vmatpush2.msra.mxu0 0.0
  %9322 = vmatprep.subr.mxu0 0.0
  %9323 = vmatpush2.msra.mxu0 0.0
  %9324 = vmatprep.subr.mxu0 0.0
  %9325 = vmatpush2.msra.mxu0 0.0
  %9326 = vmatprep.subr.mxu0 0.0
  %9327 = vmatpush2.msra.mxu0 0.0
  %9328 = vmatprep.subr.mxu0 0.0
  %9329 = vmatpush2.msra.mxu0 0.0
  %9330 = vmatprep.subr.mxu0 0.0
  %9331 = vmatpush2.msra.mxu0 0.0
  %9332 = vmatprep.subr.mxu0 0.0
  %9333 = vmatpush2.msra.mxu0 0.0
  %9334 = vmatprep.subr.mxu0 0.0
  %9335 = vmatpush2.msra.mxu0 0.0
  %9336 = vmatprep.subr.mxu0 0.0
  %9337 = vmatpush2.msra.mxu0 0.0
  %9338 = vmatprep.subr.mxu0 0.0
  %9339 = vmatpush2.msra.mxu0 0.0
  %9340 = vmatprep.subr.mxu0 0.0
  %9341 = vmatpush2.msra.mxu0 0.0
  %9342 = vmatprep.subr.mxu0 0.0
  %9343 = vmatpush2.msra.mxu0 0.0
  %9344 = vmatprep.subr.mxu0 0.0
  %9345 = vmatpush2.msra.mxu0 0.0
  %9346 = vmatprep.mubr.f32.mxu0 0.0
  %9347 = vmatmul.mubr.f32.gmra.mxu0 %v5585
  %v9348 = vpop.f32.mrf.mxu0
  %v9349 = vadd.f32 0.0, %v9348
  %v9350 = vpop.f32.mrf.mxu0
  %9351 = vmatprep.mubr.f32.mxu0 0.0
  %9352 = vmatmul.mubr.f32.gmra.mxu0 %v5586
  %v9353 = vpop.f32.mrf.mxu0
  %v9354 = vadd.f32 0.0, %v9353
  %v9355 = vpop.f32.mrf.mxu0
  %9356 = vmatprep.mubr.f32.mxu0 0.0
  %9357 = vmatmul.mubr.f32.gmra.mxu0 %v5587
  %v9358 = vpop.f32.mrf.mxu0
  %v9359 = vadd.f32 0.0, %v9358
  %v9360 = vpop.f32.mrf.mxu0
  %9361 = vmatprep.mubr.f32.mxu0 0.0
  %9362 = vmatmul.mubr.f32.gmra.mxu0 %v5588
  %v9363 = vpop.f32.mrf.mxu0
  %v9364 = vadd.f32 0.0, %v9363
  %v9365 = vpop.f32.mrf.mxu0
  %9366 = vmatprep.mubr.f32.mxu0 0.0
  %9367 = vmatmul.mubr.f32.gmra.mxu0 %v5589
  %v9368 = vpop.f32.mrf.mxu0
  %v9369 = vadd.f32 0.0, %v9368
  %v9370 = vpop.f32.mrf.mxu0
  %9371 = vmatprep.mubr.f32.mxu0 0.0
  %9372 = vmatmul.mubr.f32.gmra.mxu0 %v5590
  %v9373 = vpop.f32.mrf.mxu0
  %v9374 = vadd.f32 0.0, %v9373
  %v9375 = vpop.f32.mrf.mxu0
  %9376 = vmatprep.mubr.f32.mxu0 0.0
  %9377 = vmatmul.mubr.f32.gmra.mxu0 %v5591
  %v9378 = vpop.f32.mrf.mxu0
  %v9379 = vadd.f32 0.0, %v9378
  %v9380 = vpop.f32.mrf.mxu0
  %9381 = vmatprep.mubr.f32.mxu0 0.0
  %9382 = vmatmul.mubr.f32.gmra.mxu0 %v5592
  %v9383 = vpop.f32.mrf.mxu0
  %v9384 = vadd.f32 0.0, %v9383
  %v9385 = vpop.f32.mrf.mxu0
  %9386 = vdwg.mxu0
  %v9387 = vadd.f32 %v9227, %v9349
  %v9388 = vadd.f32 %v9232, %v9354
  %v9389 = vadd.f32 %v9237, %v9359
  %v9390 = vadd.f32 %v9242, %v9364
  %v9391 = vadd.f32 %v9247, %v9369
  %v9392 = vadd.f32 %v9252, %v9374
  %v9393 = vadd.f32 %v9257, %v9379
  %v9394 = vadd.f32 %v9262, %v9384
  %s9395 = scalar_lea.vmem %s2, 576
  %9396 = vst [vmem:[%s9395] sm:$0xff] %v9387
  %9397 = vst [vmem:[%s9395 + $0x8] sm:$0xff] %v9388
  %9398 = vst [vmem:[%s9395 + $0x10] sm:$0xff] %v9389
  %9399 = vst [vmem:[%s9395 + $0x18] sm:$0xff] %v9390
  %9400 = vst [vmem:[%s9395 + $0x20] sm:$0xff] %v9391
  %9401 = vst [vmem:[%s9395 + $0x28] sm:$0xff] %v9392
  %9402 = vst [vmem:[%s9395 + $0x30] sm:$0xff] %v9393
  %9403 = vst [vmem:[%s9395 + $0x38] sm:$0xff] %v9394
  %v9404 = vld [vmem:[%s8884] sm:$0xff]
  %v9405 = vld [vmem:[%s8884 + $0x8] sm:$0xff]
  %v9406 = vld [vmem:[%s8884 + $0x10] sm:$0xff]
  %v9407 = vld [vmem:[%s8884 + $0x18] sm:$0xff]
  %v9408 = vld [vmem:[%s8884 + $0x20] sm:$0xff]
  %v9409 = vld [vmem:[%s8884 + $0x28] sm:$0xff]
  %v9410 = vld [vmem:[%s8884 + $0x30] sm:$0xff]
  %v9411 = vld [vmem:[%s8884 + $0x38] sm:$0xff]
  %v9412 = vld [vmem:[%s8884 + $0x40] sm:$0xff]
  %v9413 = vld [vmem:[%s8884 + $0x48] sm:$0xff]
  %v9414 = vld [vmem:[%s8884 + $0x50] sm:$0xff]
  %v9415 = vld [vmem:[%s8884 + $0x58] sm:$0xff]
  %v9416 = vld [vmem:[%s8884 + $0x60] sm:$0xff]
  %v9417 = vld [vmem:[%s8884 + $0x68] sm:$0xff]
  %v9418 = vld [vmem:[%s8884 + $0x70] sm:$0xff]
  %v9419 = vld [vmem:[%s8884 + $0x78] sm:$0xff]
  %v9420 = vld [vmem:[%s9265] sm:$0xff]
  %v9421 = vld [vmem:[%s9265 + $0x8] sm:$0xff]
  %v9422 = vld [vmem:[%s9265 + $0x10] sm:$0xff]
  %v9423 = vld [vmem:[%s9265 + $0x18] sm:$0xff]
  %v9424 = vld [vmem:[%s9265 + $0x20] sm:$0xff]
  %v9425 = vld [vmem:[%s9265 + $0x28] sm:$0xff]
  %v9426 = vld [vmem:[%s9265 + $0x30] sm:$0xff]
  %v9427 = vld [vmem:[%s9265 + $0x38] sm:$0xff]
  %v9428 = vld [vmem:[%s9265 + $0x40] sm:$0xff]
  %v9429 = vld [vmem:[%s9265 + $0x48] sm:$0xff]
  %v9430 = vld [vmem:[%s9265 + $0x50] sm:$0xff]
  %v9431 = vld [vmem:[%s9265 + $0x58] sm:$0xff]
  %v9432 = vld [vmem:[%s9265 + $0x60] sm:$0xff]
  %v9433 = vld [vmem:[%s9265 + $0x68] sm:$0xff]
  %v9434 = vld [vmem:[%s9265 + $0x70] sm:$0xff]
  %v9435 = vld [vmem:[%s9265 + $0x78] sm:$0xff]
  %9436 = vmatprep.subr.mxu0 0.0
  %9437 = vmatpush1.msra.mxu0 %v9435
  %9438 = vmatprep.subr.mxu0 0.0
  %9439 = vmatpush1.msra.mxu0 %v9434
  %9440 = vmatprep.subr.mxu0 0.0
  %9441 = vmatpush1.msra.mxu0 %v9433
  %9442 = vmatprep.subr.mxu0 0.0
  %9443 = vmatpush1.msra.mxu0 %v9432
  %9444 = vmatprep.subr.mxu0 0.0
  %9445 = vmatpush1.msra.mxu0 %v9431
  %9446 = vmatprep.subr.mxu0 0.0
  %9447 = vmatpush1.msra.mxu0 %v9430
  %9448 = vmatprep.subr.mxu0 0.0
  %9449 = vmatpush1.msra.mxu0 %v9429
  %9450 = vmatprep.subr.mxu0 0.0
  %9451 = vmatpush1.msra.mxu0 %v9428
  %9452 = vmatprep.subr.mxu0 0.0
  %9453 = vmatpush1.msra.mxu0 %v9427
  %9454 = vmatprep.subr.mxu0 0.0
  %9455 = vmatpush1.msra.mxu0 %v9426
  %9456 = vmatprep.subr.mxu0 0.0
  %9457 = vmatpush1.msra.mxu0 %v9425
  %9458 = vmatprep.subr.mxu0 0.0
  %9459 = vmatpush1.msra.mxu0 %v9424
  %9460 = vmatprep.subr.mxu0 0.0
  %9461 = vmatpush1.msra.mxu0 %v9423
  %9462 = vmatprep.subr.mxu0 0.0
  %9463 = vmatpush1.msra.mxu0 %v9422
  %9464 = vmatprep.subr.mxu0 0.0
  %9465 = vmatpush1.msra.mxu0 %v9421
  %9466 = vmatprep.subr.mxu0 0.0
  %9467 = vmatpush1.msra.mxu0 %v9420
  %9468 = vmatprep.subr.mxu0 0.0
  %9469 = vmatpush2.msra.mxu0 0.0
  %9470 = vmatprep.subr.mxu0 0.0
  %9471 = vmatpush2.msra.mxu0 0.0
  %9472 = vmatprep.subr.mxu0 0.0
  %9473 = vmatpush2.msra.mxu0 0.0
  %9474 = vmatprep.subr.mxu0 0.0
  %9475 = vmatpush2.msra.mxu0 0.0
  %9476 = vmatprep.subr.mxu0 0.0
  %9477 = vmatpush2.msra.mxu0 0.0
  %9478 = vmatprep.subr.mxu0 0.0
  %9479 = vmatpush2.msra.mxu0 0.0
  %9480 = vmatprep.subr.mxu0 0.0
  %9481 = vmatpush2.msra.mxu0 0.0
  %9482 = vmatprep.subr.mxu0 0.0
  %9483 = vmatpush2.msra.mxu0 0.0
  %9484 = vmatprep.subr.mxu0 0.0
  %9485 = vmatpush2.msra.mxu0 0.0
  %9486 = vmatprep.subr.mxu0 0.0
  %9487 = vmatpush2.msra.mxu0 0.0
  %9488 = vmatprep.subr.mxu0 0.0
  %9489 = vmatpush2.msra.mxu0 0.0
  %9490 = vmatprep.subr.mxu0 0.0
  %9491 = vmatpush2.msra.mxu0 0.0
  %9492 = vmatprep.subr.mxu0 0.0
  %9493 = vmatpush2.msra.mxu0 0.0
  %9494 = vmatprep.subr.mxu0 0.0
  %9495 = vmatpush2.msra.mxu0 0.0
  %9496 = vmatprep.subr.mxu0 0.0
  %9497 = vmatpush2.msra.mxu0 0.0
  %9498 = vmatprep.subr.mxu0 0.0
  %9499 = vmatpush2.msra.mxu0 0.0
  %9500 = vmatprep.mubr.f32.mxu0 0.0
  %9501 = vmatmul.mubr.f32.gmra.mxu0 %v5576
  %v9502 = vpop.f32.mrf.mxu0
  %v9503 = vadd.f32 0.0, %v9502
  %v9504 = vpop.f32.mrf.mxu0
  %9505 = vmatprep.mubr.f32.mxu0 0.0
  %9506 = vmatmul.mubr.f32.gmra.mxu0 %v5577
  %v9507 = vpop.f32.mrf.mxu0
  %v9508 = vadd.f32 0.0, %v9507
  %v9509 = vpop.f32.mrf.mxu0
  %9510 = vmatprep.mubr.f32.mxu0 0.0
  %9511 = vmatmul.mubr.f32.gmra.mxu0 %v5578
  %v9512 = vpop.f32.mrf.mxu0
  %v9513 = vadd.f32 0.0, %v9512
  %v9514 = vpop.f32.mrf.mxu0
  %9515 = vmatprep.mubr.f32.mxu0 0.0
  %9516 = vmatmul.mubr.f32.gmra.mxu0 %v5579
  %v9517 = vpop.f32.mrf.mxu0
  %v9518 = vadd.f32 0.0, %v9517
  %v9519 = vpop.f32.mrf.mxu0
  %9520 = vmatprep.mubr.f32.mxu0 0.0
  %9521 = vmatmul.mubr.f32.gmra.mxu0 %v5580
  %v9522 = vpop.f32.mrf.mxu0
  %v9523 = vadd.f32 0.0, %v9522
  %v9524 = vpop.f32.mrf.mxu0
  %9525 = vmatprep.mubr.f32.mxu0 0.0
  %9526 = vmatmul.mubr.f32.gmra.mxu0 %v5581
  %v9527 = vpop.f32.mrf.mxu0
  %v9528 = vadd.f32 0.0, %v9527
  %v9529 = vpop.f32.mrf.mxu0
  %9530 = vmatprep.mubr.f32.mxu0 0.0
  %9531 = vmatmul.mubr.f32.gmra.mxu0 %v5582
  %v9532 = vpop.f32.mrf.mxu0
  %v9533 = vadd.f32 0.0, %v9532
  %v9534 = vpop.f32.mrf.mxu0
  %9535 = vmatprep.mubr.f32.mxu0 0.0
  %9536 = vmatmul.mubr.f32.gmra.mxu0 %v5583
  %v9537 = vpop.f32.mrf.mxu0
  %v9538 = vadd.f32 0.0, %v9537
  %v9539 = vpop.f32.mrf.mxu0
  %9540 = vdwg.mxu0
  %9541 = vmatprep.subr.mxu0 0.0
  %9542 = vmatpush1.msra.mxu0 %v9419
  %9543 = vmatprep.subr.mxu0 0.0
  %9544 = vmatpush1.msra.mxu0 %v9418
  %9545 = vmatprep.subr.mxu0 0.0
  %9546 = vmatpush1.msra.mxu0 %v9417
  %9547 = vmatprep.subr.mxu0 0.0
  %9548 = vmatpush1.msra.mxu0 %v9416
  %9549 = vmatprep.subr.mxu0 0.0
  %9550 = vmatpush1.msra.mxu0 %v9415
  %9551 = vmatprep.subr.mxu0 0.0
  %9552 = vmatpush1.msra.mxu0 %v9414
  %9553 = vmatprep.subr.mxu0 0.0
  %9554 = vmatpush1.msra.mxu0 %v9413
  %9555 = vmatprep.subr.mxu0 0.0
  %9556 = vmatpush1.msra.mxu0 %v9412
  %9557 = vmatprep.subr.mxu0 0.0
  %9558 = vmatpush1.msra.mxu0 %v9411
  %9559 = vmatprep.subr.mxu0 0.0
  %9560 = vmatpush1.msra.mxu0 %v9410
  %9561 = vmatprep.subr.mxu0 0.0
  %9562 = vmatpush1.msra.mxu0 %v9409
  %9563 = vmatprep.subr.mxu0 0.0
  %9564 = vmatpush1.msra.mxu0 %v9408
  %9565 = vmatprep.subr.mxu0 0.0
  %9566 = vmatpush1.msra.mxu0 %v9407
  %9567 = vmatprep.subr.mxu0 0.0
  %9568 = vmatpush1.msra.mxu0 %v9406
  %9569 = vmatprep.subr.mxu0 0.0
  %9570 = vmatpush1.msra.mxu0 %v9405
  %9571 = vmatprep.subr.mxu0 0.0
  %9572 = vmatpush1.msra.mxu0 %v9404
  %9573 = vmatprep.subr.mxu0 0.0
  %9574 = vmatpush2.msra.mxu0 0.0
  %9575 = vmatprep.subr.mxu0 0.0
  %9576 = vmatpush2.msra.mxu0 0.0
  %9577 = vmatprep.subr.mxu0 0.0
  %9578 = vmatpush2.msra.mxu0 0.0
  %9579 = vmatprep.subr.mxu0 0.0
  %9580 = vmatpush2.msra.mxu0 0.0
  %9581 = vmatprep.subr.mxu0 0.0
  %9582 = vmatpush2.msra.mxu0 0.0
  %9583 = vmatprep.subr.mxu0 0.0
  %9584 = vmatpush2.msra.mxu0 0.0
  %9585 = vmatprep.subr.mxu0 0.0
  %9586 = vmatpush2.msra.mxu0 0.0
  %9587 = vmatprep.subr.mxu0 0.0
  %9588 = vmatpush2.msra.mxu0 0.0
  %9589 = vmatprep.subr.mxu0 0.0
  %9590 = vmatpush2.msra.mxu0 0.0
  %9591 = vmatprep.subr.mxu0 0.0
  %9592 = vmatpush2.msra.mxu0 0.0
  %9593 = vmatprep.subr.mxu0 0.0
  %9594 = vmatpush2.msra.mxu0 0.0
  %9595 = vmatprep.subr.mxu0 0.0
  %9596 = vmatpush2.msra.mxu0 0.0
  %9597 = vmatprep.subr.mxu0 0.0
  %9598 = vmatpush2.msra.mxu0 0.0
  %9599 = vmatprep.subr.mxu0 0.0
  %9600 = vmatpush2.msra.mxu0 0.0
  %9601 = vmatprep.subr.mxu0 0.0
  %9602 = vmatpush2.msra.mxu0 0.0
  %9603 = vmatprep.subr.mxu0 0.0
  %9604 = vmatpush2.msra.mxu0 0.0
  %9605 = vmatprep.mubr.f32.mxu0 0.0
  %9606 = vmatmul.mubr.f32.gmra.mxu0 %v5567
  %v9607 = vpop.f32.mrf.mxu0
  %v9608 = vadd.f32 %v9503, %v9607
  %v9609 = vpop.f32.mrf.mxu0
  %9610 = vmatprep.mubr.f32.mxu0 0.0
  %9611 = vmatmul.mubr.f32.gmra.mxu0 %v5568
  %v9612 = vpop.f32.mrf.mxu0
  %v9613 = vadd.f32 %v9508, %v9612
  %v9614 = vpop.f32.mrf.mxu0
  %9615 = vmatprep.mubr.f32.mxu0 0.0
  %9616 = vmatmul.mubr.f32.gmra.mxu0 %v5569
  %v9617 = vpop.f32.mrf.mxu0
  %v9618 = vadd.f32 %v9513, %v9617
  %v9619 = vpop.f32.mrf.mxu0
  %9620 = vmatprep.mubr.f32.mxu0 0.0
  %9621 = vmatmul.mubr.f32.gmra.mxu0 %v5570
  %v9622 = vpop.f32.mrf.mxu0
  %v9623 = vadd.f32 %v9518, %v9622
  %v9624 = vpop.f32.mrf.mxu0
  %9625 = vmatprep.mubr.f32.mxu0 0.0
  %9626 = vmatmul.mubr.f32.gmra.mxu0 %v5571
  %v9627 = vpop.f32.mrf.mxu0
  %v9628 = vadd.f32 %v9523, %v9627
  %v9629 = vpop.f32.mrf.mxu0
  %9630 = vmatprep.mubr.f32.mxu0 0.0
  %9631 = vmatmul.mubr.f32.gmra.mxu0 %v5572
  %v9632 = vpop.f32.mrf.mxu0
  %v9633 = vadd.f32 %v9528, %v9632
  %v9634 = vpop.f32.mrf.mxu0
  %9635 = vmatprep.mubr.f32.mxu0 0.0
  %9636 = vmatmul.mubr.f32.gmra.mxu0 %v5573
  %v9637 = vpop.f32.mrf.mxu0
  %v9638 = vadd.f32 %v9533, %v9637
  %v9639 = vpop.f32.mrf.mxu0
  %9640 = vmatprep.mubr.f32.mxu0 0.0
  %9641 = vmatmul.mubr.f32.gmra.mxu0 %v5574
  %v9642 = vpop.f32.mrf.mxu0
  %v9643 = vadd.f32 %v9538, %v9642
  %v9644 = vpop.f32.mrf.mxu0
  %9645 = vdwg.mxu0
  %s9646 = scalar_lea.vmem [#allocation2], 1792
  %v9647 = vld [vmem:[%s9646] sm:$0xff]
  %v9648 = vld [vmem:[%s9646 + $0x8] sm:$0xff]
  %v9649 = vld [vmem:[%s9646 + $0x10] sm:$0xff]
  %v9650 = vld [vmem:[%s9646 + $0x18] sm:$0xff]
  %v9651 = vld [vmem:[%s9646 + $0x20] sm:$0xff]
  %v9652 = vld [vmem:[%s9646 + $0x28] sm:$0xff]
  %v9653 = vld [vmem:[%s9646 + $0x30] sm:$0xff]
  %v9654 = vld [vmem:[%s9646 + $0x38] sm:$0xff]
  %v9655 = vld [vmem:[%s9646 + $0x40] sm:$0xff]
  %v9656 = vld [vmem:[%s9646 + $0x48] sm:$0xff]
  %v9657 = vld [vmem:[%s9646 + $0x50] sm:$0xff]
  %v9658 = vld [vmem:[%s9646 + $0x58] sm:$0xff]
  %v9659 = vld [vmem:[%s9646 + $0x60] sm:$0xff]
  %v9660 = vld [vmem:[%s9646 + $0x68] sm:$0xff]
  %v9661 = vld [vmem:[%s9646 + $0x70] sm:$0xff]
  %v9662 = vld [vmem:[%s9646 + $0x78] sm:$0xff]
  %9663 = vmatprep.subr.mxu0 0.0
  %9664 = vmatpush1.msra.mxu0 %v9662
  %9665 = vmatprep.subr.mxu0 0.0
  %9666 = vmatpush1.msra.mxu0 %v9661
  %9667 = vmatprep.subr.mxu0 0.0
  %9668 = vmatpush1.msra.mxu0 %v9660
  %9669 = vmatprep.subr.mxu0 0.0
  %9670 = vmatpush1.msra.mxu0 %v9659
  %9671 = vmatprep.subr.mxu0 0.0
  %9672 = vmatpush1.msra.mxu0 %v9658
  %9673 = vmatprep.subr.mxu0 0.0
  %9674 = vmatpush1.msra.mxu0 %v9657
  %9675 = vmatprep.subr.mxu0 0.0
  %9676 = vmatpush1.msra.mxu0 %v9656
  %9677 = vmatprep.subr.mxu0 0.0
  %9678 = vmatpush1.msra.mxu0 %v9655
  %9679 = vmatprep.subr.mxu0 0.0
  %9680 = vmatpush1.msra.mxu0 %v9654
  %9681 = vmatprep.subr.mxu0 0.0
  %9682 = vmatpush1.msra.mxu0 %v9653
  %9683 = vmatprep.subr.mxu0 0.0
  %9684 = vmatpush1.msra.mxu0 %v9652
  %9685 = vmatprep.subr.mxu0 0.0
  %9686 = vmatpush1.msra.mxu0 %v9651
  %9687 = vmatprep.subr.mxu0 0.0
  %9688 = vmatpush1.msra.mxu0 %v9650
  %9689 = vmatprep.subr.mxu0 0.0
  %9690 = vmatpush1.msra.mxu0 %v9649
  %9691 = vmatprep.subr.mxu0 0.0
  %9692 = vmatpush1.msra.mxu0 %v9648
  %9693 = vmatprep.subr.mxu0 0.0
  %9694 = vmatpush1.msra.mxu0 %v9647
  %9695 = vmatprep.subr.mxu0 0.0
  %9696 = vmatpush2.msra.mxu0 0.0
  %9697 = vmatprep.subr.mxu0 0.0
  %9698 = vmatpush2.msra.mxu0 0.0
  %9699 = vmatprep.subr.mxu0 0.0
  %9700 = vmatpush2.msra.mxu0 0.0
  %9701 = vmatprep.subr.mxu0 0.0
  %9702 = vmatpush2.msra.mxu0 0.0
  %9703 = vmatprep.subr.mxu0 0.0
  %9704 = vmatpush2.msra.mxu0 0.0
  %9705 = vmatprep.subr.mxu0 0.0
  %9706 = vmatpush2.msra.mxu0 0.0
  %9707 = vmatprep.subr.mxu0 0.0
  %9708 = vmatpush2.msra.mxu0 0.0
  %9709 = vmatprep.subr.mxu0 0.0
  %9710 = vmatpush2.msra.mxu0 0.0
  %9711 = vmatprep.subr.mxu0 0.0
  %9712 = vmatpush2.msra.mxu0 0.0
  %9713 = vmatprep.subr.mxu0 0.0
  %9714 = vmatpush2.msra.mxu0 0.0
  %9715 = vmatprep.subr.mxu0 0.0
  %9716 = vmatpush2.msra.mxu0 0.0
  %9717 = vmatprep.subr.mxu0 0.0
  %9718 = vmatpush2.msra.mxu0 0.0
  %9719 = vmatprep.subr.mxu0 0.0
  %9720 = vmatpush2.msra.mxu0 0.0
  %9721 = vmatprep.subr.mxu0 0.0
  %9722 = vmatpush2.msra.mxu0 0.0
  %9723 = vmatprep.subr.mxu0 0.0
  %9724 = vmatpush2.msra.mxu0 0.0
  %9725 = vmatprep.subr.mxu0 0.0
  %9726 = vmatpush2.msra.mxu0 0.0
  %9727 = vmatprep.mubr.f32.mxu0 0.0
  %9728 = vmatmul.mubr.f32.gmra.mxu0 %v5585
  %v9729 = vpop.f32.mrf.mxu0
  %v9730 = vadd.f32 0.0, %v9729
  %v9731 = vpop.f32.mrf.mxu0
  %9732 = vmatprep.mubr.f32.mxu0 0.0
  %9733 = vmatmul.mubr.f32.gmra.mxu0 %v5586
  %v9734 = vpop.f32.mrf.mxu0
  %v9735 = vadd.f32 0.0, %v9734
  %v9736 = vpop.f32.mrf.mxu0
  %9737 = vmatprep.mubr.f32.mxu0 0.0
  %9738 = vmatmul.mubr.f32.gmra.mxu0 %v5587
  %v9739 = vpop.f32.mrf.mxu0
  %v9740 = vadd.f32 0.0, %v9739
  %v9741 = vpop.f32.mrf.mxu0
  %9742 = vmatprep.mubr.f32.mxu0 0.0
  %9743 = vmatmul.mubr.f32.gmra.mxu0 %v5588
  %v9744 = vpop.f32.mrf.mxu0
  %v9745 = vadd.f32 0.0, %v9744
  %v9746 = vpop.f32.mrf.mxu0
  %9747 = vmatprep.mubr.f32.mxu0 0.0
  %9748 = vmatmul.mubr.f32.gmra.mxu0 %v5589
  %v9749 = vpop.f32.mrf.mxu0
  %v9750 = vadd.f32 0.0, %v9749
  %v9751 = vpop.f32.mrf.mxu0
  %9752 = vmatprep.mubr.f32.mxu0 0.0
  %9753 = vmatmul.mubr.f32.gmra.mxu0 %v5590
  %v9754 = vpop.f32.mrf.mxu0
  %v9755 = vadd.f32 0.0, %v9754
  %v9756 = vpop.f32.mrf.mxu0
  %9757 = vmatprep.mubr.f32.mxu0 0.0
  %9758 = vmatmul.mubr.f32.gmra.mxu0 %v5591
  %v9759 = vpop.f32.mrf.mxu0
  %v9760 = vadd.f32 0.0, %v9759
  %v9761 = vpop.f32.mrf.mxu0
  %9762 = vmatprep.mubr.f32.mxu0 0.0
  %9763 = vmatmul.mubr.f32.gmra.mxu0 %v5592
  %v9764 = vpop.f32.mrf.mxu0
  %v9765 = vadd.f32 0.0, %v9764
  %v9766 = vpop.f32.mrf.mxu0
  %9767 = vdwg.mxu0
  %v9768 = vadd.f32 %v9608, %v9730
  %v9769 = vadd.f32 %v9613, %v9735
  %v9770 = vadd.f32 %v9618, %v9740
  %v9771 = vadd.f32 %v9623, %v9745
  %v9772 = vadd.f32 %v9628, %v9750
  %v9773 = vadd.f32 %v9633, %v9755
  %v9774 = vadd.f32 %v9638, %v9760
  %v9775 = vadd.f32 %v9643, %v9765
  %s9776 = scalar_lea.vmem %s2, 640
  %9777 = vst [vmem:[%s9776] sm:$0xff] %v9768
  %9778 = vst [vmem:[%s9776 + $0x8] sm:$0xff] %v9769
  %9779 = vst [vmem:[%s9776 + $0x10] sm:$0xff] %v9770
  %9780 = vst [vmem:[%s9776 + $0x18] sm:$0xff] %v9771
  %9781 = vst [vmem:[%s9776 + $0x20] sm:$0xff] %v9772
  %9782 = vst [vmem:[%s9776 + $0x28] sm:$0xff] %v9773
  %9783 = vst [vmem:[%s9776 + $0x30] sm:$0xff] %v9774
  %9784 = vst [vmem:[%s9776 + $0x38] sm:$0xff] %v9775
  %v9785 = vld [vmem:[%s9265] sm:$0xff]
  %v9786 = vld [vmem:[%s9265 + $0x8] sm:$0xff]
  %v9787 = vld [vmem:[%s9265 + $0x10] sm:$0xff]
  %v9788 = vld [vmem:[%s9265 + $0x18] sm:$0xff]
  %v9789 = vld [vmem:[%s9265 + $0x20] sm:$0xff]
  %v9790 = vld [vmem:[%s9265 + $0x28] sm:$0xff]
  %v9791 = vld [vmem:[%s9265 + $0x30] sm:$0xff]
  %v9792 = vld [vmem:[%s9265 + $0x38] sm:$0xff]
  %v9793 = vld [vmem:[%s9265 + $0x40] sm:$0xff]
  %v9794 = vld [vmem:[%s9265 + $0x48] sm:$0xff]
  %v9795 = vld [vmem:[%s9265 + $0x50] sm:$0xff]
  %v9796 = vld [vmem:[%s9265 + $0x58] sm:$0xff]
  %v9797 = vld [vmem:[%s9265 + $0x60] sm:$0xff]
  %v9798 = vld [vmem:[%s9265 + $0x68] sm:$0xff]
  %v9799 = vld [vmem:[%s9265 + $0x70] sm:$0xff]
  %v9800 = vld [vmem:[%s9265 + $0x78] sm:$0xff]
  %v9801 = vld [vmem:[%s9646] sm:$0xff]
  %v9802 = vld [vmem:[%s9646 + $0x8] sm:$0xff]
  %v9803 = vld [vmem:[%s9646 + $0x10] sm:$0xff]
  %v9804 = vld [vmem:[%s9646 + $0x18] sm:$0xff]
  %v9805 = vld [vmem:[%s9646 + $0x20] sm:$0xff]
  %v9806 = vld [vmem:[%s9646 + $0x28] sm:$0xff]
  %v9807 = vld [vmem:[%s9646 + $0x30] sm:$0xff]
  %v9808 = vld [vmem:[%s9646 + $0x38] sm:$0xff]
  %v9809 = vld [vmem:[%s9646 + $0x40] sm:$0xff]
  %v9810 = vld [vmem:[%s9646 + $0x48] sm:$0xff]
  %v9811 = vld [vmem:[%s9646 + $0x50] sm:$0xff]
  %v9812 = vld [vmem:[%s9646 + $0x58] sm:$0xff]
  %v9813 = vld [vmem:[%s9646 + $0x60] sm:$0xff]
  %v9814 = vld [vmem:[%s9646 + $0x68] sm:$0xff]
  %v9815 = vld [vmem:[%s9646 + $0x70] sm:$0xff]
  %v9816 = vld [vmem:[%s9646 + $0x78] sm:$0xff]
  %9817 = vmatprep.subr.mxu0 0.0
  %9818 = vmatpush1.msra.mxu0 %v9816
  %9819 = vmatprep.subr.mxu0 0.0
  %9820 = vmatpush1.msra.mxu0 %v9815
  %9821 = vmatprep.subr.mxu0 0.0
  %9822 = vmatpush1.msra.mxu0 %v9814
  %9823 = vmatprep.subr.mxu0 0.0
  %9824 = vmatpush1.msra.mxu0 %v9813
  %9825 = vmatprep.subr.mxu0 0.0
  %9826 = vmatpush1.msra.mxu0 %v9812
  %9827 = vmatprep.subr.mxu0 0.0
  %9828 = vmatpush1.msra.mxu0 %v9811
  %9829 = vmatprep.subr.mxu0 0.0
  %9830 = vmatpush1.msra.mxu0 %v9810
  %9831 = vmatprep.subr.mxu0 0.0
  %9832 = vmatpush1.msra.mxu0 %v9809
  %9833 = vmatprep.subr.mxu0 0.0
  %9834 = vmatpush1.msra.mxu0 %v9808
  %9835 = vmatprep.subr.mxu0 0.0
  %9836 = vmatpush1.msra.mxu0 %v9807
  %9837 = vmatprep.subr.mxu0 0.0
  %9838 = vmatpush1.msra.mxu0 %v9806
  %9839 = vmatprep.subr.mxu0 0.0
  %9840 = vmatpush1.msra.mxu0 %v9805
  %9841 = vmatprep.subr.mxu0 0.0
  %9842 = vmatpush1.msra.mxu0 %v9804
  %9843 = vmatprep.subr.mxu0 0.0
  %9844 = vmatpush1.msra.mxu0 %v9803
  %9845 = vmatprep.subr.mxu0 0.0
  %9846 = vmatpush1.msra.mxu0 %v9802
  %9847 = vmatprep.subr.mxu0 0.0
  %9848 = vmatpush1.msra.mxu0 %v9801
  %9849 = vmatprep.subr.mxu0 0.0
  %9850 = vmatpush2.msra.mxu0 0.0
  %9851 = vmatprep.subr.mxu0 0.0
  %9852 = vmatpush2.msra.mxu0 0.0
  %9853 = vmatprep.subr.mxu0 0.0
  %9854 = vmatpush2.msra.mxu0 0.0
  %9855 = vmatprep.subr.mxu0 0.0
  %9856 = vmatpush2.msra.mxu0 0.0
  %9857 = vmatprep.subr.mxu0 0.0
  %9858 = vmatpush2.msra.mxu0 0.0
  %9859 = vmatprep.subr.mxu0 0.0
  %9860 = vmatpush2.msra.mxu0 0.0
  %9861 = vmatprep.subr.mxu0 0.0
  %9862 = vmatpush2.msra.mxu0 0.0
  %9863 = vmatprep.subr.mxu0 0.0
  %9864 = vmatpush2.msra.mxu0 0.0
  %9865 = vmatprep.subr.mxu0 0.0
  %9866 = vmatpush2.msra.mxu0 0.0
  %9867 = vmatprep.subr.mxu0 0.0
  %9868 = vmatpush2.msra.mxu0 0.0
  %9869 = vmatprep.subr.mxu0 0.0
  %9870 = vmatpush2.msra.mxu0 0.0
  %9871 = vmatprep.subr.mxu0 0.0
  %9872 = vmatpush2.msra.mxu0 0.0
  %9873 = vmatprep.subr.mxu0 0.0
  %9874 = vmatpush2.msra.mxu0 0.0
  %9875 = vmatprep.subr.mxu0 0.0
  %9876 = vmatpush2.msra.mxu0 0.0
  %9877 = vmatprep.subr.mxu0 0.0
  %9878 = vmatpush2.msra.mxu0 0.0
  %9879 = vmatprep.subr.mxu0 0.0
  %9880 = vmatpush2.msra.mxu0 0.0
  %9881 = vmatprep.mubr.f32.mxu0 0.0
  %9882 = vmatmul.mubr.f32.gmra.mxu0 %v5576
  %v9883 = vpop.f32.mrf.mxu0
  %v9884 = vadd.f32 0.0, %v9883
  %v9885 = vpop.f32.mrf.mxu0
  %9886 = vmatprep.mubr.f32.mxu0 0.0
  %9887 = vmatmul.mubr.f32.gmra.mxu0 %v5577
  %v9888 = vpop.f32.mrf.mxu0
  %v9889 = vadd.f32 0.0, %v9888
  %v9890 = vpop.f32.mrf.mxu0
  %9891 = vmatprep.mubr.f32.mxu0 0.0
  %9892 = vmatmul.mubr.f32.gmra.mxu0 %v5578
  %v9893 = vpop.f32.mrf.mxu0
  %v9894 = vadd.f32 0.0, %v9893
  %v9895 = vpop.f32.mrf.mxu0
  %9896 = vmatprep.mubr.f32.mxu0 0.0
  %9897 = vmatmul.mubr.f32.gmra.mxu0 %v5579
  %v9898 = vpop.f32.mrf.mxu0
  %v9899 = vadd.f32 0.0, %v9898
  %v9900 = vpop.f32.mrf.mxu0
  %9901 = vmatprep.mubr.f32.mxu0 0.0
  %9902 = vmatmul.mubr.f32.gmra.mxu0 %v5580
  %v9903 = vpop.f32.mrf.mxu0
  %v9904 = vadd.f32 0.0, %v9903
  %v9905 = vpop.f32.mrf.mxu0
  %9906 = vmatprep.mubr.f32.mxu0 0.0
  %9907 = vmatmul.mubr.f32.gmra.mxu0 %v5581
  %v9908 = vpop.f32.mrf.mxu0
  %v9909 = vadd.f32 0.0, %v9908
  %v9910 = vpop.f32.mrf.mxu0
  %9911 = vmatprep.mubr.f32.mxu0 0.0
  %9912 = vmatmul.mubr.f32.gmra.mxu0 %v5582
  %v9913 = vpop.f32.mrf.mxu0
  %v9914 = vadd.f32 0.0, %v9913
  %v9915 = vpop.f32.mrf.mxu0
  %9916 = vmatprep.mubr.f32.mxu0 0.0
  %9917 = vmatmul.mubr.f32.gmra.mxu0 %v5583
  %v9918 = vpop.f32.mrf.mxu0
  %v9919 = vadd.f32 0.0, %v9918
  %v9920 = vpop.f32.mrf.mxu0
  %9921 = vdwg.mxu0
  %9922 = vmatprep.subr.mxu0 0.0
  %9923 = vmatpush1.msra.mxu0 %v9800
  %9924 = vmatprep.subr.mxu0 0.0
  %9925 = vmatpush1.msra.mxu0 %v9799
  %9926 = vmatprep.subr.mxu0 0.0
  %9927 = vmatpush1.msra.mxu0 %v9798
  %9928 = vmatprep.subr.mxu0 0.0
  %9929 = vmatpush1.msra.mxu0 %v9797
  %9930 = vmatprep.subr.mxu0 0.0
  %9931 = vmatpush1.msra.mxu0 %v9796
  %9932 = vmatprep.subr.mxu0 0.0
  %9933 = vmatpush1.msra.mxu0 %v9795
  %9934 = vmatprep.subr.mxu0 0.0
  %9935 = vmatpush1.msra.mxu0 %v9794
  %9936 = vmatprep.subr.mxu0 0.0
  %9937 = vmatpush1.msra.mxu0 %v9793
  %9938 = vmatprep.subr.mxu0 0.0
  %9939 = vmatpush1.msra.mxu0 %v9792
  %9940 = vmatprep.subr.mxu0 0.0
  %9941 = vmatpush1.msra.mxu0 %v9791
  %9942 = vmatprep.subr.mxu0 0.0
  %9943 = vmatpush1.msra.mxu0 %v9790
  %9944 = vmatprep.subr.mxu0 0.0
  %9945 = vmatpush1.msra.mxu0 %v9789
  %9946 = vmatprep.subr.mxu0 0.0
  %9947 = vmatpush1.msra.mxu0 %v9788
  %9948 = vmatprep.subr.mxu0 0.0
  %9949 = vmatpush1.msra.mxu0 %v9787
  %9950 = vmatprep.subr.mxu0 0.0
  %9951 = vmatpush1.msra.mxu0 %v9786
  %9952 = vmatprep.subr.mxu0 0.0
  %9953 = vmatpush1.msra.mxu0 %v9785
  %9954 = vmatprep.subr.mxu0 0.0
  %9955 = vmatpush2.msra.mxu0 0.0
  %9956 = vmatprep.subr.mxu0 0.0
  %9957 = vmatpush2.msra.mxu0 0.0
  %9958 = vmatprep.subr.mxu0 0.0
  %9959 = vmatpush2.msra.mxu0 0.0
  %9960 = vmatprep.subr.mxu0 0.0
  %9961 = vmatpush2.msra.mxu0 0.0
  %9962 = vmatprep.subr.mxu0 0.0
  %9963 = vmatpush2.msra.mxu0 0.0
  %9964 = vmatprep.subr.mxu0 0.0
  %9965 = vmatpush2.msra.mxu0 0.0
  %9966 = vmatprep.subr.mxu0 0.0
  %9967 = vmatpush2.msra.mxu0 0.0
  %9968 = vmatprep.subr.mxu0 0.0
  %9969 = vmatpush2.msra.mxu0 0.0
  %9970 = vmatprep.subr.mxu0 0.0
  %9971 = vmatpush2.msra.mxu0 0.0
  %9972 = vmatprep.subr.mxu0 0.0
  %9973 = vmatpush2.msra.mxu0 0.0
  %9974 = vmatprep.subr.mxu0 0.0
  %9975 = vmatpush2.msra.mxu0 0.0
  %9976 = vmatprep.subr.mxu0 0.0
  %9977 = vmatpush2.msra.mxu0 0.0
  %9978 = vmatprep.subr.mxu0 0.0
  %9979 = vmatpush2.msra.mxu0 0.0
  %9980 = vmatprep.subr.mxu0 0.0
  %9981 = vmatpush2.msra.mxu0 0.0
  %9982 = vmatprep.subr.mxu0 0.0
  %9983 = vmatpush2.msra.mxu0 0.0
  %9984 = vmatprep.subr.mxu0 0.0
  %9985 = vmatpush2.msra.mxu0 0.0
  %9986 = vmatprep.mubr.f32.mxu0 0.0
  %9987 = vmatmul.mubr.f32.gmra.mxu0 %v5567
  %v9988 = vpop.f32.mrf.mxu0
  %v9989 = vadd.f32 %v9884, %v9988
  %v9990 = vpop.f32.mrf.mxu0
  %9991 = vmatprep.mubr.f32.mxu0 0.0
  %9992 = vmatmul.mubr.f32.gmra.mxu0 %v5568
  %v9993 = vpop.f32.mrf.mxu0
  %v9994 = vadd.f32 %v9889, %v9993
  %v9995 = vpop.f32.mrf.mxu0
  %9996 = vmatprep.mubr.f32.mxu0 0.0
  %9997 = vmatmul.mubr.f32.gmra.mxu0 %v5569
  %v9998 = vpop.f32.mrf.mxu0
  %v9999 = vadd.f32 %v9894, %v9998
  %v10000 = vpop.f32.mrf.mxu0
  %10001 = vmatprep.mubr.f32.mxu0 0.0
  %10002 = vmatmul.mubr.f32.gmra.mxu0 %v5570
  %v10003 = vpop.f32.mrf.mxu0
  %v10004 = vadd.f32 %v9899, %v10003
  %v10005 = vpop.f32.mrf.mxu0
  %10006 = vmatprep.mubr.f32.mxu0 0.0
  %10007 = vmatmul.mubr.f32.gmra.mxu0 %v5571
  %v10008 = vpop.f32.mrf.mxu0
  %v10009 = vadd.f32 %v9904, %v10008
  %v10010 = vpop.f32.mrf.mxu0
  %10011 = vmatprep.mubr.f32.mxu0 0.0
  %10012 = vmatmul.mubr.f32.gmra.mxu0 %v5572
  %v10013 = vpop.f32.mrf.mxu0
  %v10014 = vadd.f32 %v9909, %v10013
  %v10015 = vpop.f32.mrf.mxu0
  %10016 = vmatprep.mubr.f32.mxu0 0.0
  %10017 = vmatmul.mubr.f32.gmra.mxu0 %v5573
  %v10018 = vpop.f32.mrf.mxu0
  %v10019 = vadd.f32 %v9914, %v10018
  %v10020 = vpop.f32.mrf.mxu0
  %10021 = vmatprep.mubr.f32.mxu0 0.0
  %10022 = vmatmul.mubr.f32.gmra.mxu0 %v5574
  %v10023 = vpop.f32.mrf.mxu0
  %v10024 = vadd.f32 %v9919, %v10023
  %v10025 = vpop.f32.mrf.mxu0
  %10026 = vdwg.mxu0
  %s10027 = scalar_lea.vmem [#allocation2], 1920
  %v10028 = vld [vmem:[%s10027] sm:$0xff]
  %v10029 = vld [vmem:[%s10027 + $0x8] sm:$0xff]
  %v10030 = vld [vmem:[%s10027 + $0x10] sm:$0xff]
  %v10031 = vld [vmem:[%s10027 + $0x18] sm:$0xff]
  %v10032 = vld [vmem:[%s10027 + $0x20] sm:$0xff]
  %v10033 = vld [vmem:[%s10027 + $0x28] sm:$0xff]
  %v10034 = vld [vmem:[%s10027 + $0x30] sm:$0xff]
  %v10035 = vld [vmem:[%s10027 + $0x38] sm:$0xff]
  %v10036 = vld [vmem:[%s10027 + $0x40] sm:$0xff]
  %v10037 = vld [vmem:[%s10027 + $0x48] sm:$0xff]
  %v10038 = vld [vmem:[%s10027 + $0x50] sm:$0xff]
  %v10039 = vld [vmem:[%s10027 + $0x58] sm:$0xff]
  %v10040 = vld [vmem:[%s10027 + $0x60] sm:$0xff]
  %v10041 = vld [vmem:[%s10027 + $0x68] sm:$0xff]
  %v10042 = vld [vmem:[%s10027 + $0x70] sm:$0xff]
  %v10043 = vld [vmem:[%s10027 + $0x78] sm:$0xff]
  %10044 = vmatprep.subr.mxu0 0.0
  %10045 = vmatpush1.msra.mxu0 %v10043
  %10046 = vmatprep.subr.mxu0 0.0
  %10047 = vmatpush1.msra.mxu0 %v10042
  %10048 = vmatprep.subr.mxu0 0.0
  %10049 = vmatpush1.msra.mxu0 %v10041
  %10050 = vmatprep.subr.mxu0 0.0
  %10051 = vmatpush1.msra.mxu0 %v10040
  %10052 = vmatprep.subr.mxu0 0.0
  %10053 = vmatpush1.msra.mxu0 %v10039
  %10054 = vmatprep.subr.mxu0 0.0
  %10055 = vmatpush1.msra.mxu0 %v10038
  %10056 = vmatprep.subr.mxu0 0.0
  %10057 = vmatpush1.msra.mxu0 %v10037
  %10058 = vmatprep.subr.mxu0 0.0
  %10059 = vmatpush1.msra.mxu0 %v10036
  %10060 = vmatprep.subr.mxu0 0.0
  %10061 = vmatpush1.msra.mxu0 %v10035
  %10062 = vmatprep.subr.mxu0 0.0
  %10063 = vmatpush1.msra.mxu0 %v10034
  %10064 = vmatprep.subr.mxu0 0.0
  %10065 = vmatpush1.msra.mxu0 %v10033
  %10066 = vmatprep.subr.mxu0 0.0
  %10067 = vmatpush1.msra.mxu0 %v10032
  %10068 = vmatprep.subr.mxu0 0.0
  %10069 = vmatpush1.msra.mxu0 %v10031
  %10070 = vmatprep.subr.mxu0 0.0
  %10071 = vmatpush1.msra.mxu0 %v10030
  %10072 = vmatprep.subr.mxu0 0.0
  %10073 = vmatpush1.msra.mxu0 %v10029
  %10074 = vmatprep.subr.mxu0 0.0
  %10075 = vmatpush1.msra.mxu0 %v10028
  %10076 = vmatprep.subr.mxu0 0.0
  %10077 = vmatpush2.msra.mxu0 0.0
  %10078 = vmatprep.subr.mxu0 0.0
  %10079 = vmatpush2.msra.mxu0 0.0
  %10080 = vmatprep.subr.mxu0 0.0
  %10081 = vmatpush2.msra.mxu0 0.0
  %10082 = vmatprep.subr.mxu0 0.0
  %10083 = vmatpush2.msra.mxu0 0.0
  %10084 = vmatprep.subr.mxu0 0.0
  %10085 = vmatpush2.msra.mxu0 0.0
  %10086 = vmatprep.subr.mxu0 0.0
  %10087 = vmatpush2.msra.mxu0 0.0
  %10088 = vmatprep.subr.mxu0 0.0
  %10089 = vmatpush2.msra.mxu0 0.0
  %10090 = vmatprep.subr.mxu0 0.0
  %10091 = vmatpush2.msra.mxu0 0.0
  %10092 = vmatprep.subr.mxu0 0.0
  %10093 = vmatpush2.msra.mxu0 0.0
  %10094 = vmatprep.subr.mxu0 0.0
  %10095 = vmatpush2.msra.mxu0 0.0
  %10096 = vmatprep.subr.mxu0 0.0
  %10097 = vmatpush2.msra.mxu0 0.0
  %10098 = vmatprep.subr.mxu0 0.0
  %10099 = vmatpush2.msra.mxu0 0.0
  %10100 = vmatprep.subr.mxu0 0.0
  %10101 = vmatpush2.msra.mxu0 0.0
  %10102 = vmatprep.subr.mxu0 0.0
  %10103 = vmatpush2.msra.mxu0 0.0
  %10104 = vmatprep.subr.mxu0 0.0
  %10105 = vmatpush2.msra.mxu0 0.0
  %10106 = vmatprep.subr.mxu0 0.0
  %10107 = vmatpush2.msra.mxu0 0.0
  %10108 = vmatprep.mubr.f32.mxu0 0.0
  %10109 = vmatmul.mubr.f32.gmra.mxu0 %v5585
  %v10110 = vpop.f32.mrf.mxu0
  %v10111 = vadd.f32 0.0, %v10110
  %v10112 = vpop.f32.mrf.mxu0
  %10113 = vmatprep.mubr.f32.mxu0 0.0
  %10114 = vmatmul.mubr.f32.gmra.mxu0 %v5586
  %v10115 = vpop.f32.mrf.mxu0
  %v10116 = vadd.f32 0.0, %v10115
  %v10117 = vpop.f32.mrf.mxu0
  %10118 = vmatprep.mubr.f32.mxu0 0.0
  %10119 = vmatmul.mubr.f32.gmra.mxu0 %v5587
  %v10120 = vpop.f32.mrf.mxu0
  %v10121 = vadd.f32 0.0, %v10120
  %v10122 = vpop.f32.mrf.mxu0
  %10123 = vmatprep.mubr.f32.mxu0 0.0
  %10124 = vmatmul.mubr.f32.gmra.mxu0 %v5588
  %v10125 = vpop.f32.mrf.mxu0
  %v10126 = vadd.f32 0.0, %v10125
  %v10127 = vpop.f32.mrf.mxu0
  %10128 = vmatprep.mubr.f32.mxu0 0.0
  %10129 = vmatmul.mubr.f32.gmra.mxu0 %v5589
  %v10130 = vpop.f32.mrf.mxu0
  %v10131 = vadd.f32 0.0, %v10130
  %v10132 = vpop.f32.mrf.mxu0
  %10133 = vmatprep.mubr.f32.mxu0 0.0
  %10134 = vmatmul.mubr.f32.gmra.mxu0 %v5590
  %v10135 = vpop.f32.mrf.mxu0
  %v10136 = vadd.f32 0.0, %v10135
  %v10137 = vpop.f32.mrf.mxu0
  %10138 = vmatprep.mubr.f32.mxu0 0.0
  %10139 = vmatmul.mubr.f32.gmra.mxu0 %v5591
  %v10140 = vpop.f32.mrf.mxu0
  %v10141 = vadd.f32 0.0, %v10140
  %v10142 = vpop.f32.mrf.mxu0
  %10143 = vmatprep.mubr.f32.mxu0 0.0
  %10144 = vmatmul.mubr.f32.gmra.mxu0 %v5592
  %v10145 = vpop.f32.mrf.mxu0
  %v10146 = vadd.f32 0.0, %v10145
  %v10147 = vpop.f32.mrf.mxu0
  %10148 = vdwg.mxu0
  %v10149 = vadd.f32 %v9989, %v10111
  %v10150 = vadd.f32 %v9994, %v10116
  %v10151 = vadd.f32 %v9999, %v10121
  %v10152 = vadd.f32 %v10004, %v10126
  %v10153 = vadd.f32 %v10009, %v10131
  %v10154 = vadd.f32 %v10014, %v10136
  %v10155 = vadd.f32 %v10019, %v10141
  %v10156 = vadd.f32 %v10024, %v10146
  %s10157 = scalar_lea.vmem %s2, 704
  %10158 = vst [vmem:[%s10157] sm:$0xff] %v10149
  %10159 = vst [vmem:[%s10157 + $0x8] sm:$0xff] %v10150
  %10160 = vst [vmem:[%s10157 + $0x10] sm:$0xff] %v10151
  %10161 = vst [vmem:[%s10157 + $0x18] sm:$0xff] %v10152
  %10162 = vst [vmem:[%s10157 + $0x20] sm:$0xff] %v10153
  %10163 = vst [vmem:[%s10157 + $0x28] sm:$0xff] %v10154
  %10164 = vst [vmem:[%s10157 + $0x30] sm:$0xff] %v10155
  %10165 = vst [vmem:[%s10157 + $0x38] sm:$0xff] %v10156
  // Predicated region
  $region10: #{conv3d_pallas.1} parent=0 // pred_check
    _
  $region11: #{conv3d_pallas.1} parent=0 // pred_check_branch
    %10167 = sbr.rel (0) target = $region13
  $region12: #{conv3d_pallas.1} parent=0 // pred_region
    _
  $region13: #{conv3d_pallas.1} parent=0 // pred_fallthru
    _
  // Predicated region
  $region14: #{conv3d_pallas.1} parent=0 // pred_check
    _
  $region15: #{conv3d_pallas.1} parent=0 // pred_check_branch
    %10169 = sbr.rel (0) target = $region17
  $region16: #{conv3d_pallas.1} parent=0 // pred_region
    _
  $region17: #{conv3d_pallas.1} parent=0 // pred_fallthru
    _

</llo_original>
